<compile_context>
chip_gen: v5e
topology: v5e:2x2
jax: 0.10.0
libtpu: 0.0.40
codegen_flags: <defaults>
</compile_context>

<pallas_src>
import functools

import jax
import jax.numpy as jnp
import numpy as np
from jax.experimental import pallas as pl
from jax.experimental.pallas import tpu as pltpu

DILATIONS = (6, 12, 18)     # branch2/3/4 dilations (module default rate=1)
MAX_D = max(DILATIONS)
PAD_H = MAX_D + 1           # zero-halo rows above/below -> every used flat slice is in-bounds
LANE = 128

assert PAD_H >= MAX_D + 1   # flat-slice tap safety (no runtime bounds check on VMEM refs)


def _round_up(v, m):
    return ((v + m - 1) // m) * m


def aspp_kernel(x_hbm, w1_ref, b1_ref, w2_ref, b2_ref, w3_ref, b3_ref,
                w4_ref, b4_ref, bias_ref, wc_ref, out_ref,
                xbuf, sem, br_acc, acc_ref, *, H, W, TR, n_k, CK):
    f32 = jnp.float32
    bf16 = jnp.bfloat16
    TRW = TR * W
    TRH = TR + 2 * PAD_H
    base = PAD_H * W                      # flat offset of the strip's first output row
    b = pl.program_id(0)
    s = pl.program_id(1)
    n_strips = pl.num_programs(1)

    # ------- manual double-buffered halo DMA (strip s, channel chunk kidx) ----------
    def start_fetch(strip, kidx, slot):
        src = x_hbm.at[b, pl.ds(strip * TRW, TRH * W), pl.ds(kidx * CK, CK)]
        pltpu.make_async_copy(src, xbuf.at[slot], sem.at[slot]).start()

    def wait_fetch(slot):
        src = x_hbm.at[b, pl.ds(0, TRH * W), pl.ds(0, CK)]   # shape-matched dummy src
        pltpu.make_async_copy(src, xbuf.at[slot], sem.at[slot]).wait()

    # prime the per-image prefetch chain at the first strip of each batch element
    @pl.when(s == 0)
    def _():
        start_fetch(0, 0, 0)

    # column-validity masks for the shifted taps, hoisted out of the branch/K loops
    col = jax.lax.broadcasted_iota(jnp.int32, (TRW, 1), 0) % W
    masks = {}
    for d in DILATIONS:
        for dx in (-d, d):
            if abs(dx) < W and dx not in masks:
                masks[dx] = jnp.logical_and(col + dx >= 0, col + dx < W)

    branches = ((w1_ref, b1_ref, 0), (w2_ref, b2_ref, DILATIONS[0]),
                (w3_ref, b3_ref, DILATIONS[1]), (w4_ref, b4_ref, DILATIONS[2]))

    # --------------------- C_in reduction loop (static, chunked) --------------------
    for kidx in range(n_k):
        t = s * n_k + kidx
        slot = t % 2
        wait_fetch(slot)
        # prefetch the next (strip, chunk) window while this one is consumed
        nslot = (t + 1) % 2
        if kidx + 1 < n_k:
            start_fetch(s, kidx + 1, nslot)
        else:
            @pl.when(s + 1 < n_strips)
            def _():
                start_fetch(s + 1, 0, nslot)

        k0 = kidx * CK                     # static offset into the resident weights
        xv = xbuf.at[slot]                 # (TRH*W, CK) ref view, no load
        xc = xv[pl.ds(base, TRW), :]       # centre (unshifted) strip rows

        for bi, (w_r, _, d) in enumerate(branches):
            if d == 0:                     # branch1: 1x1 conv
                part = jnp.dot(xc, w_r[pl.ds(k0, CK), :], preferred_element_type=f32)
            else:                          # dilated 3x3 conv via contiguous flat taps
                part = None
                for kx, dx in enumerate((-d, 0, d)):
                    if abs(dx) >= W:       # whole tap column reads zero padding
                        continue
                    p_dx = None
                    for ky, dy in enumerate((-d, 0, d)):
                        if abs(dy) >= H:   # whole tap row lies in the zero halo
                            continue
                        start = base + dy * W + dx          # static, in-bounds by PAD_H
                        xs = xv[pl.ds(start, TRW), :]
                        pp = jnp.dot(xs, w_r[ky, kx, pl.ds(k0, CK), :],
                                     preferred_element_type=f32)
                        # chained accumulation -> MRB in-place accumulate on v7x
                        p_dx = pp if p_dx is None else p_dx + pp
                    if dx != 0:            # mask columns that wrapped across rows
                        p_dx = jnp.where(masks[dx], p_dx, 0.0)
                    part = p_dx if part is None else part + p_dx
            # per-branch pre-ReLU accumulation over C_in chunks (explicit VMEM home)
            if kidx == 0:
                br_acc[bi] = part
            else:
                br_acc[bi] += part

    # ---- epilogue: per-branch bias+ReLU, fused 1x1 over the virtual concat ----------
    # TODO(synk): on v6e/v7x with C_out<=128, pair branches (K=256) for fuller MXU depth.
    for bi, (_, b_r, _) in enumerate(branches):
        br = jnp.maximum(br_acc[bi] + b_r[...], 0.0).astype(bf16)
        contrib = jnp.dot(br, wc_ref[bi], preferred_element_type=f32)
        if bi == 0:
            acc_ref[...] = contrib
        else:
            acc_ref[...] += contrib

    # bias_ref already contains conv_cat bias + folded global-pool branch contribution
    out_ref[0] = jnp.maximum(acc_ref[...] + bias_ref[0], 0.0).astype(out_ref.dtype)


def aspp_pallas(x_nchw, params, *, row_tile=8, cin_tile=512):
    """x_nchw: (B, C_in, H, W) float32; params: BN-folded weights/biases (see make_params)."""
    (w1, b1, w2, b2, w3, b3, w4, b4, w5, b5, wc, bc) = params
    B, C_in, H, W = x_nchw.shape
    C_out = w1.shape[-1]
    CI = _round_up(C_in, LANE)
    CO = _round_up(C_out, LANE)
    bf16 = jnp.bfloat16

    ck = min(cin_tile, CI)
    if CI % ck != 0:
        ck = CI
    n_k = CI // ck

    TR = max(1, row_tile)
    while (TR * W) % 8 != 0:               # lane/sublane-friendly strip size
        TR += 1
    n_strips = -(-H // TR)
    H2 = n_strips * TR                     # H rounded up to the strip size (extra rows sliced off)
    TRH = TR + 2 * PAD_H
    Np = (H2 + 2 * PAD_H) * W

    # NCHW -> NHWC (channels on lanes), bf16, zero halo along H (+ strip-rounding rows),
    # channels zero-padded to a lane multiple, (H, W) flattened so every dilated tap is a
    # contiguous row-major slice of the strip buffer.  (Channel pad is a no-op when
    # C_in is already a multiple of 128, e.g. production 2048.)
    x = jnp.transpose(x_nchw, (0, 2, 3, 1)).astype(bf16)
    x = jnp.pad(x, ((0, 0), (PAD_H, PAD_H + (H2 - H)), (0, 0), (0, CI - C_in)))
    xflat = x.reshape(B, Np, CI)

    def pad_mat(w):       # (C_in, C_out) -> (CI, CO), bf16
        return jnp.pad(w, ((0, CI - C_in), (0, CO - C_out))).astype(bf16)

    def pad_w33(w):       # (3, 3, C_in, C_out) -> (3, 3, CI, CO), bf16
        return jnp.pad(w, ((0, 0), (0, 0), (0, CI - C_in), (0, CO - C_out))).astype(bf16)

    def pad_bias(v):      # (., C_out) -> (., CO), f32 (added post-matmul)
        return jnp.pad(v, ((0, 0), (0, CO - C_out))).astype(jnp.float32)

    # Global-pool branch: AdaptiveAvgPool(1) -> 1x1 conv+BN+ReLU -> bilinear upsample from
    # a 1x1 map == constant broadcast, so its conv_cat contribution folds into the bias.
    # (Computed here in f32; it is a tiny full-image reduction that cannot precede the
    #  first strip inside a single-pass kernel.)
    gmean = jnp.mean(x_nchw.astype(jnp.float32), axis=(2, 3))           # (B, C_in)
    g = jnp.maximum(gmean @ w5 + b5, 0.0)                               # (B, C_out)
    wc5 = wc.reshape(5, C_out, C_out)
    bias_tot = pad_bias(bc + g @ wc5[4])[:, None, :]                    # (B, 1, CO) f32
    wc4 = jnp.pad(wc5[:4], ((0, 0), (0, CO - C_out), (0, CO - C_out))).astype(bf16)

    args = (xflat,
            pad_mat(w1), pad_bias(b1),
            pad_w33(w2), pad_bias(b2),
            pad_w33(w3), pad_bias(b3),
            pad_w33(w4), pad_bias(b4),
            bias_tot, wc4)

    def resident(a):      # constant index_map -> stays in VMEM, not re-DMA'd per step
        return pl.BlockSpec(a.shape, lambda b, s, _n=a.ndim: (0,) * _n)

    in_specs = ([pl.BlockSpec(memory_space=pl.ANY)]                     # x stays in HBM
                + [resident(a) for a in args[1:9]]
                + [pl.BlockSpec((1, 1, CO), lambda b, s: (b, 0, 0)),    # per-batch bias
                   resident(wc4)])

    # explicit scoped-VMEM budget from the actual footprint (weights worst-case x2 in case
    # Mosaic double-buffers the resident blocks, double-buffered x chunk, accumulators,
    # double-buffered output block) + headroom.
    wbytes = sum(int(a.size) * a.dtype.itemsize for a in args[1:])
    est = (2 * wbytes + 2 * TRH * W * ck * 2 + 5 * TR * W * CO * 4
           + 2 * TR * W * CO * 2 + (16 << 20))
    vmem_limit = int(min(max(est, 32 << 20), 120 << 20))

    out = pl.pallas_call(
        functools.partial(aspp_kernel, H=H, W=W, TR=TR, n_k=n_k, CK=ck),
        grid=(B, n_strips),
        in_specs=in_specs,
        out_specs=pl.BlockSpec((1, TR * W, CO), lambda b, s: (b, s, 0)),  # lane-dense strips
        out_shape=jax.ShapeDtypeStruct((B, H2 * W, CO), bf16),            # bf16 writeback
        scratch_shapes=[pltpu.VMEM((2, TRH * W, ck), bf16),                # x halo double-buffer
                        pltpu.SemaphoreType.DMA((2,)),
                        pltpu.VMEM((4, TR * W, CO), jnp.float32),          # per-branch pre-ReLU acc
                        pltpu.VMEM((TR * W, CO), jnp.float32)],            # fused 1x1 accumulator
        compiler_params=pltpu.CompilerParams(
            dimension_semantics=("parallel", "arbitrary"),
            vmem_limit_bytes=vmem_limit),
    )(*args)

    out = out.reshape(B, H2, W, CO)[:, :H, :, :C_out]
    return jnp.transpose(out, (0, 3, 1, 2)).astype(x_nchw.dtype)          # back to NCHW f32


# ------------------------ parameter construction (synthetic) ---------------------
def fold_bn(w, b, gamma, beta, mean, var, eps=1e-5):
    """Fold eval-mode BatchNorm into the preceding conv's weight/bias."""
    scale = gamma / jnp.sqrt(var + eps)          # (C_out,)
    wf = w * scale                               # broadcasts over last (C_out) axis
    bf = scale * (b - mean) + beta
    return wf.astype(jnp.float32), bf.reshape(1, -1).astype(jnp.float32)


def make_params(key, C_in, C_out):
    def conv_bn(key, kshape):
        ks = jax.random.split(key, 6)
        w = jax.random.normal(ks[0], kshape, jnp.float32) * 0.1
        b = jax.random.normal(ks[1], (kshape[-1],), jnp.float32) * 0.1
        gamma = 1.0 + 0.1 * jax.random.normal(ks[2], (kshape[-1],), jnp.float32)
        beta = 0.1 * jax.random.normal(ks[3], (kshape[-1],), jnp.float32)
        mean = 0.1 * jax.random.normal(ks[4], (kshape[-1],), jnp.float32)
        var = 0.5 + jnp.abs(jax.random.normal(ks[5], (kshape[-1],), jnp.float32))
        return fold_bn(w, b, gamma, beta, mean, var)

    k = jax.random.split(key, 6)
    w1, b1 = conv_bn(k[0], (C_in, C_out))            # branch1 1x1
    w2, b2 = conv_bn(k[1], (3, 3, C_in, C_out))      # branch2 dil=6
    w3, b3 = conv_bn(k[2], (3, 3, C_in, C_out))      # branch3 dil=12
    w4, b4 = conv_bn(k[3], (3, 3, C_in, C_out))      # branch4 dil=18
    w5, b5 = conv_bn(k[4], (C_in, C_out))            # branch5 1x1 (on pooled feature)
    wc, bc = conv_bn(k[5], (5 * C_out, C_out))       # conv_cat 1x1
    return (w1, b1, w2, b2, w3, b3, w4, b4, w5, b5, wc, bc)


# ------------------------------ pure-JAX reference --------------------------------
def aspp_reference(x_nchw, params):
    (w1, b1, w2, b2, w3, b3, w4, b4, w5, b5, wc, bc) = params
    x = jnp.transpose(x_nchw, (0, 2, 3, 1))
    dn = ("NHWC", "HWIO", "NHWC")

    def conv(inp, w, b, dil, pad):
        y = jax.lax.conv_general_dilated(
            inp, w, window_strides=(1, 1), padding=((pad, pad), (pad, pad)),
            rhs_dilation=(dil, dil), dimension_numbers=dn)
        return jnp.maximum(y + b.reshape(1, 1, 1, -1), 0.0)

    br1 = conv(x, w1.reshape(1, 1, *w1.shape), b1, 1, 0)
    br2 = conv(x, w2, b2, 6, 6)
    br3 = conv(x, w3, b3, 12, 12)
    br4 = conv(x, w4, b4, 18, 18)
    g = jnp.mean(x, axis=(1, 2), keepdims=True)                       # (B,1,1,C_in)
    g = conv(g, w5.reshape(1, 1, *w5.shape), b5, 1, 0)
    g = jnp.broadcast_to(g, br1.shape)
    cat = jnp.concatenate([br1, br2, br3, br4, g], axis=-1)
    out = conv(cat, wc.reshape(1, 1, *wc.shape), bc, 1, 0)
    return jnp.transpose(out, (0, 3, 1, 2))


if __name__ == "__main__":
    def run_case(case, B, C_in, C_out, H, W, row_tile, cin_tile):
        key = jax.random.fold_in(jax.random.PRNGKey(0), case)
        kx, kp = jax.random.split(key)
        x = jax.random.normal(kx, (B, C_in, H, W), jnp.float32)
        params = make_params(kp, C_in, C_out)
        # The kernel computes in bf16 (f32 accumulation). Quantize inputs to bf16 for both
        # paths so the f32 reference isolates kernel-structure correctness.
        q = lambda a: a.astype(jnp.bfloat16).astype(jnp.float32)
        x = q(x)
        params = tuple(q(p) for p in params)
        out = jax.block_until_ready(
            aspp_pallas(x, params, row_tile=row_tile, cin_tile=cin_tile))
        ref = jax.block_until_ready(aspp_reference(x, params))
        np.testing.assert_allclose(np.asarray(out), np.asarray(ref), rtol=2e-2, atol=2e-2)

    # case 0: 2 batches x 2 row strips, single C_in chunk, W<=18 (d=18 x-taps skipped)
    run_case(0, B=2, C_in=8, C_out=8, H=16, W=16, row_tile=8, cin_tile=128)
    # case 1: H not divisible by the row tile, 2 non-trivial C_in chunks, all taps active
    run_case(1, B=1, C_in=80, C_out=8, H=20, W=24, row_tile=8, cin_tile=64)

    print("KERNEL_OK")
</pallas_src>

<mosaic_0001>
module attributes {stable_mosaic.version = 11 : i64} {
  func.func @aspp_kernel(%arg0: i32, %arg1: i32, %arg2: memref<2x864x128xbf16, #tpu.memory_space<any>>, %arg3: memref<128x128xbf16, #tpu.memory_space<vmem>>, %arg4: memref<1x128xf32, #tpu.memory_space<vmem>>, %arg5: memref<3x3x128x128xbf16, #tpu.memory_space<vmem>>, %arg6: memref<1x128xf32, #tpu.memory_space<vmem>>, %arg7: memref<3x3x128x128xbf16, #tpu.memory_space<vmem>>, %arg8: memref<1x128xf32, #tpu.memory_space<vmem>>, %arg9: memref<3x3x128x128xbf16, #tpu.memory_space<vmem>>, %arg10: memref<1x128xf32, #tpu.memory_space<vmem>>, %arg11: memref<1x1x128xf32, #tpu.memory_space<vmem>>, %arg12: memref<4x128x128xbf16, #tpu.memory_space<vmem>>, %arg13: memref<1x128x128xbf16, #tpu.memory_space<vmem>>, %arg14: memref<2x736x128xbf16, #tpu.memory_space<vmem>>, %arg15: memref<2x!tpu.dma_semaphore, #tpu.memory_space<semaphore_mem>>, %arg16: memref<4x128x128xf32, #tpu.memory_space<vmem>>, %arg17: memref<128x128xf32, #tpu.memory_space<vmem>>) attributes {dimension_semantics = [#tpu.dimension_semantics<parallel>, #tpu.dimension_semantics<arbitrary>], iteration_bounds = array<i64: 2, 2>, scalar_prefetch = 0 : i64, scratch_operands = 4 : i64, tpu.core_type = #tpu.core_type<tc>, window_params = [{}, {pipeline_mode = #tpu.pipeline_mode<synchronous>, transform_indices = @transform_1, window_bounds = array<i64: 128, 128>}, {pipeline_mode = #tpu.pipeline_mode<synchronous>, transform_indices = @transform_2, window_bounds = array<i64: 1, 128>}, {pipeline_mode = #tpu.pipeline_mode<synchronous>, transform_indices = @transform_3, window_bounds = array<i64: 3, 3, 128, 128>}, {pipeline_mode = #tpu.pipeline_mode<synchronous>, transform_indices = @transform_4, window_bounds = array<i64: 1, 128>}, {pipeline_mode = #tpu.pipeline_mode<synchronous>, transform_indices = @transform_5, window_bounds = array<i64: 3, 3, 128, 128>}, {pipeline_mode = #tpu.pipeline_mode<synchronous>, transform_indices = @transform_6, window_bounds = array<i64: 1, 128>}, {pipeline_mode = #tpu.pipeline_mode<synchronous>, transform_indices = @transform_7, window_bounds = array<i64: 3, 3, 128, 128>}, {pipeline_mode = #tpu.pipeline_mode<synchronous>, transform_indices = @transform_8, window_bounds = array<i64: 1, 128>}, {transform_indices = @transform_9, window_bounds = array<i64: 1, 1, 128>}, {pipeline_mode = #tpu.pipeline_mode<synchronous>, transform_indices = @transform_10, window_bounds = array<i64: 4, 128, 128>}, {transform_indices = @transform_11, window_bounds = array<i64: 1, 128, 128>}]} {
    %c0_i32 = arith.constant 0 : i32
    %0 = arith.cmpi eq, %arg1, %c0_i32 : i32
    %1 = arith.extui %0 : i1 to i32
    %c0_i32_0 = arith.constant 0 : i32
    %2 = arith.cmpi ne, %1, %c0_i32_0 : i32
    scf.if %2 {
      %c0_i32_273 = arith.constant 0 : i32
      %c0_i32_274 = arith.constant 0 : i32
      %c0_i32_275 = arith.constant 0 : i32
      %c0_i32_276 = arith.constant 0 : i32
      %317 = tpu.memref_slice %arg2[%arg0, %c0_i32_275, %c0_i32_276] : memref<2x864x128xbf16, #tpu.memory_space<any>> -> memref<1x736x128xbf16, #tpu.memory_space<any>>
      %318 = tpu.memref_squeeze %317 : memref<1x736x128xbf16, #tpu.memory_space<any>> -> memref<736x128xbf16, #tpu.memory_space<any>>
      %c0_i32_277 = arith.constant 0 : i32
      %c0_i32_278 = arith.constant 0 : i32
      %319 = tpu.memref_slice %arg14[%c0_i32_273, %c0_i32_277, %c0_i32_278] : memref<2x736x128xbf16, #tpu.memory_space<vmem>> -> memref<1x736x128xbf16, #tpu.memory_space<vmem>>
      %320 = tpu.memref_squeeze %319 : memref<1x736x128xbf16, #tpu.memory_space<vmem>> -> memref<736x128xbf16, #tpu.memory_space<vmem>>
      %321 = tpu.memref_slice %arg15[%c0_i32_274] : memref<2x!tpu.dma_semaphore, #tpu.memory_space<semaphore_mem>> -> memref<1x!tpu.dma_semaphore, #tpu.memory_space<semaphore_mem>>
      %322 = tpu.memref_squeeze %321 : memref<1x!tpu.dma_semaphore, #tpu.memory_space<semaphore_mem>> -> memref<!tpu.dma_semaphore, #tpu.memory_space<semaphore_mem>>
      tpu.enqueue_dma source(%318 : memref<736x128xbf16, #tpu.memory_space<any>>) target(%320 : memref<736x128xbf16, #tpu.memory_space<vmem>>) target_semaphore(%322 : memref<!tpu.dma_semaphore, #tpu.memory_space<semaphore_mem>>)
    } else {
    }
    %3 = tpu.iota {dimensions = array<i32: 0>} : vector<128x1xi32>
    %c16_i32 = arith.constant 16 : i32
    %c0_i32_1 = arith.constant 0 : i32
    %4 = arith.cmpi eq, %c16_i32, %c0_i32_1 : i32
    %c1_i32 = arith.constant 1 : i32
    %5 = arith.select %4, %c1_i32, %c16_i32 : i32
    %6 = vector.broadcast %5 : i32 to vector<128x1xi32>
    %7 = arith.remsi %3, %6 : vector<128x1xi32>
    %c0_i32_2 = arith.constant 0 : i32
    %8 = vector.broadcast %c0_i32_2 : i32 to vector<128x1xi32>
    %9 = arith.cmpi ne, %7, %8 : vector<128x1xi32>
    %c0_i32_3 = arith.constant 0 : i32
    %10 = vector.broadcast %c0_i32_3 : i32 to vector<128x1xi32>
    %11 = arith.cmpi slt, %7, %10 : vector<128x1xi32>
    %c0_i32_4 = arith.constant 0 : i32
    %12 = arith.cmpi slt, %5, %c0_i32_4 : i32
    %13 = vector.broadcast %12 : i1 to vector<128x1xi1>
    %14 = vector.broadcast %13 : vector<128x1xi1> to vector<128x1xi1>
    %15 = arith.xori %11, %14 : vector<128x1xi1>
    %16 = arith.andi %15, %9 : vector<128x1xi1>
    %17 = vector.broadcast %5 : i32 to vector<128x1xi32>
    %18 = arith.addi %7, %17 : vector<128x1xi32>
    %19 = arith.select %16, %18, %7 : vector<128x1xi1>, vector<128x1xi32>
    %c-6_i32 = arith.constant -6 : i32
    %20 = vector.broadcast %c-6_i32 : i32 to vector<128x1xi32>
    %21 = arith.addi %19, %20 : vector<128x1xi32>
    %c0_i32_5 = arith.constant 0 : i32
    %22 = vector.broadcast %c0_i32_5 : i32 to vector<128x1xi32>
    %23 = arith.cmpi sge, %21, %22 : vector<128x1xi32>
    %c-6_i32_6 = arith.constant -6 : i32
    %24 = vector.broadcast %c-6_i32_6 : i32 to vector<128x1xi32>
    %25 = arith.addi %19, %24 : vector<128x1xi32>
    %c16_i32_7 = arith.constant 16 : i32
    %26 = vector.broadcast %c16_i32_7 : i32 to vector<128x1xi32>
    %27 = arith.cmpi slt, %25, %26 : vector<128x1xi32>
    %28 = arith.andi %23, %27 : vector<128x1xi1>
    %c6_i32 = arith.constant 6 : i32
    %29 = vector.broadcast %c6_i32 : i32 to vector<128x1xi32>
    %30 = arith.addi %19, %29 : vector<128x1xi32>
    %c0_i32_8 = arith.constant 0 : i32
    %31 = vector.broadcast %c0_i32_8 : i32 to vector<128x1xi32>
    %32 = arith.cmpi sge, %30, %31 : vector<128x1xi32>
    %c6_i32_9 = arith.constant 6 : i32
    %33 = vector.broadcast %c6_i32_9 : i32 to vector<128x1xi32>
    %34 = arith.addi %19, %33 : vector<128x1xi32>
    %c16_i32_10 = arith.constant 16 : i32
    %35 = vector.broadcast %c16_i32_10 : i32 to vector<128x1xi32>
    %36 = arith.cmpi slt, %34, %35 : vector<128x1xi32>
    %37 = arith.andi %32, %36 : vector<128x1xi1>
    %c-12_i32 = arith.constant -12 : i32
    %38 = vector.broadcast %c-12_i32 : i32 to vector<128x1xi32>
    %39 = arith.addi %19, %38 : vector<128x1xi32>
    %c0_i32_11 = arith.constant 0 : i32
    %40 = vector.broadcast %c0_i32_11 : i32 to vector<128x1xi32>
    %41 = arith.cmpi sge, %39, %40 : vector<128x1xi32>
    %c-12_i32_12 = arith.constant -12 : i32
    %42 = vector.broadcast %c-12_i32_12 : i32 to vector<128x1xi32>
    %43 = arith.addi %19, %42 : vector<128x1xi32>
    %c16_i32_13 = arith.constant 16 : i32
    %44 = vector.broadcast %c16_i32_13 : i32 to vector<128x1xi32>
    %45 = arith.cmpi slt, %43, %44 : vector<128x1xi32>
    %46 = arith.andi %41, %45 : vector<128x1xi1>
    %c12_i32 = arith.constant 12 : i32
    %47 = vector.broadcast %c12_i32 : i32 to vector<128x1xi32>
    %48 = arith.addi %19, %47 : vector<128x1xi32>
    %c0_i32_14 = arith.constant 0 : i32
    %49 = vector.broadcast %c0_i32_14 : i32 to vector<128x1xi32>
    %50 = arith.cmpi sge, %48, %49 : vector<128x1xi32>
    %c12_i32_15 = arith.constant 12 : i32
    %51 = vector.broadcast %c12_i32_15 : i32 to vector<128x1xi32>
    %52 = arith.addi %19, %51 : vector<128x1xi32>
    %c16_i32_16 = arith.constant 16 : i32
    %53 = vector.broadcast %c16_i32_16 : i32 to vector<128x1xi32>
    %54 = arith.cmpi slt, %52, %53 : vector<128x1xi32>
    %55 = arith.andi %50, %54 : vector<128x1xi1>
    %c1_i32_17 = arith.constant 1 : i32
    %56 = arith.muli %arg1, %c1_i32_17 : i32
    %c0_i32_18 = arith.constant 0 : i32
    %57 = arith.addi %56, %c0_i32_18 : i32
    %c2_i32 = arith.constant 2 : i32
    %c0_i32_19 = arith.constant 0 : i32
    %58 = arith.cmpi eq, %c2_i32, %c0_i32_19 : i32
    %c1_i32_20 = arith.constant 1 : i32
    %59 = arith.select %58, %c1_i32_20, %c2_i32 : i32
    %60 = arith.remsi %57, %59 : i32
    %c0_i32_21 = arith.constant 0 : i32
    %61 = arith.cmpi ne, %60, %c0_i32_21 : i32
    %c0_i32_22 = arith.constant 0 : i32
    %62 = arith.cmpi slt, %60, %c0_i32_22 : i32
    %c0_i32_23 = arith.constant 0 : i32
    %63 = arith.cmpi slt, %59, %c0_i32_23 : i32
    %64 = arith.xori %62, %63 : i1
    %65 = arith.andi %64, %61 : i1
    %66 = arith.addi %60, %59 : i32
    %67 = arith.select %65, %66, %60 : i32
    %c0_i32_24 = arith.constant 0 : i32
    %c0_i32_25 = arith.constant 0 : i32
    %68 = tpu.memref_slice %arg2[%arg0, %c0_i32_24, %c0_i32_25] : memref<2x864x128xbf16, #tpu.memory_space<any>> -> memref<1x736x128xbf16, #tpu.memory_space<any>>
    %69 = tpu.memref_squeeze %68 : memref<1x736x128xbf16, #tpu.memory_space<any>> -> memref<736x128xbf16, #tpu.memory_space<any>>
    %c0_i32_26 = arith.constant 0 : i32
    %c0_i32_27 = arith.constant 0 : i32
    %70 = tpu.memref_slice %arg14[%67, %c0_i32_26, %c0_i32_27] : memref<2x736x128xbf16, #tpu.memory_space<vmem>> -> memref<1x736x128xbf16, #tpu.memory_space<vmem>>
    %71 = tpu.memref_squeeze %70 : memref<1x736x128xbf16, #tpu.memory_space<vmem>> -> memref<736x128xbf16, #tpu.memory_space<vmem>>
    %72 = tpu.memref_slice %arg15[%67] : memref<2x!tpu.dma_semaphore, #tpu.memory_space<semaphore_mem>> -> memref<1x!tpu.dma_semaphore, #tpu.memory_space<semaphore_mem>>
    %73 = tpu.memref_squeeze %72 : memref<1x!tpu.dma_semaphore, #tpu.memory_space<semaphore_mem>> -> memref<!tpu.dma_semaphore, #tpu.memory_space<semaphore_mem>>
    tpu.wait_dma2 semaphore(%73 : memref<!tpu.dma_semaphore, #tpu.memory_space<semaphore_mem>>) src(%69 : memref<736x128xbf16, #tpu.memory_space<any>>) dst(%71 : memref<736x128xbf16, #tpu.memory_space<vmem>>)
    %c1_i32_28 = arith.constant 1 : i32
    %74 = arith.addi %57, %c1_i32_28 : i32
    %c2_i32_29 = arith.constant 2 : i32
    %c0_i32_30 = arith.constant 0 : i32
    %75 = arith.cmpi eq, %c2_i32_29, %c0_i32_30 : i32
    %c1_i32_31 = arith.constant 1 : i32
    %76 = arith.select %75, %c1_i32_31, %c2_i32_29 : i32
    %77 = arith.remsi %74, %76 : i32
    %c0_i32_32 = arith.constant 0 : i32
    %78 = arith.cmpi ne, %77, %c0_i32_32 : i32
    %c0_i32_33 = arith.constant 0 : i32
    %79 = arith.cmpi slt, %77, %c0_i32_33 : i32
    %c0_i32_34 = arith.constant 0 : i32
    %80 = arith.cmpi slt, %76, %c0_i32_34 : i32
    %81 = arith.xori %79, %80 : i1
    %82 = arith.andi %81, %78 : i1
    %83 = arith.addi %77, %76 : i32
    %84 = arith.select %82, %83, %77 : i32
    %c1_i32_35 = arith.constant 1 : i32
    %85 = arith.addi %arg1, %c1_i32_35 : i32
    %c2_i32_36 = arith.constant 2 : i32
    %86 = arith.cmpi slt, %85, %c2_i32_36 : i32
    %87 = arith.extui %86 : i1 to i32
    %c0_i32_37 = arith.constant 0 : i32
    %88 = arith.cmpi ne, %87, %c0_i32_37 : i32
    scf.if %88 {
      %c1_i32_273 = arith.constant 1 : i32
      %317 = arith.addi %arg1, %c1_i32_273 : i32
      %c128_i32 = arith.constant 128 : i32
      %318 = arith.muli %317, %c128_i32 : i32
      %c0_i32_274 = arith.constant 0 : i32
      %319 = tpu.memref_slice %arg2[%arg0, %318, %c0_i32_274] : memref<2x864x128xbf16, #tpu.memory_space<any>> -> memref<1x736x128xbf16, #tpu.memory_space<any>>
      %320 = tpu.memref_squeeze %319 : memref<1x736x128xbf16, #tpu.memory_space<any>> -> memref<736x128xbf16, #tpu.memory_space<any>>
      %c0_i32_275 = arith.constant 0 : i32
      %c0_i32_276 = arith.constant 0 : i32
      %321 = tpu.memref_slice %arg14[%84, %c0_i32_275, %c0_i32_276] : memref<2x736x128xbf16, #tpu.memory_space<vmem>> -> memref<1x736x128xbf16, #tpu.memory_space<vmem>>
      %322 = tpu.memref_squeeze %321 : memref<1x736x128xbf16, #tpu.memory_space<vmem>> -> memref<736x128xbf16, #tpu.memory_space<vmem>>
      %323 = tpu.memref_slice %arg15[%84] : memref<2x!tpu.dma_semaphore, #tpu.memory_space<semaphore_mem>> -> memref<1x!tpu.dma_semaphore, #tpu.memory_space<semaphore_mem>>
      %324 = tpu.memref_squeeze %323 : memref<1x!tpu.dma_semaphore, #tpu.memory_space<semaphore_mem>> -> memref<!tpu.dma_semaphore, #tpu.memory_space<semaphore_mem>>
      tpu.enqueue_dma source(%320 : memref<736x128xbf16, #tpu.memory_space<any>>) target(%322 : memref<736x128xbf16, #tpu.memory_space<vmem>>) target_semaphore(%324 : memref<!tpu.dma_semaphore, #tpu.memory_space<semaphore_mem>>)
    } else {
    }
    %c0_i32_38 = arith.constant 0 : i32
    %c0_i32_39 = arith.constant 0 : i32
    %89 = tpu.memref_slice %arg14[%67, %c0_i32_38, %c0_i32_39] : memref<2x736x128xbf16, #tpu.memory_space<vmem>> -> memref<1x736x128xbf16, #tpu.memory_space<vmem>>
    %90 = tpu.memref_squeeze %89 : memref<1x736x128xbf16, #tpu.memory_space<vmem>> -> memref<736x128xbf16, #tpu.memory_space<vmem>>
    %c304 = arith.constant 304 : index
    %c0 = arith.constant 0 : index
    %91 = vector.load %90[%c304, %c0] : memref<736x128xbf16, #tpu.memory_space<vmem>>, vector<128x128xbf16>
    %c0_40 = arith.constant 0 : index
    %c0_41 = arith.constant 0 : index
    %92 = vector.load %arg3[%c0_40, %c0_41] : memref<128x128xbf16, #tpu.memory_space<vmem>>, vector<128x128xbf16>
    %cst = arith.constant dense<0.000000e+00> : vector<128x128xf32>
    %93 = tpu.matmul %91, %92, %cst {dimension_numbers = #tpu.dot_dimension_numbers<[1], [0], [0], [1], [0, 0, 1, 1], [], []>} : vector<128x128xbf16>, vector<128x128xbf16>, vector<128x128xf32> -> vector<128x128xf32>
    %c0_42 = arith.constant 0 : index
    %c0_43 = arith.constant 0 : index
    %c0_44 = arith.constant 0 : index
    %94 = vector.load %arg16[%c0_42, %c0_43, %c0_44] : memref<4x128x128xf32, #tpu.memory_space<vmem>>, vector<1x128x128xf32>
    %95 = vector.shape_cast %94 : vector<1x128x128xf32> to vector<128x128xf32>
    %96 = vector.shape_cast %93 : vector<128x128xf32> to vector<1x128x128xf32>
    tpu.vector_store %arg16[%c0_42, %c0_43, %c0_44], %96 {strides = array<i32>} : memref<4x128x128xf32, #tpu.memory_space<vmem>>, vector<1x128x128xf32>,
    %c0_i32_45 = arith.constant 0 : i32
    %c0_i32_46 = arith.constant 0 : i32
    %97 = tpu.memref_slice %arg14[%67, %c0_i32_45, %c0_i32_46] : memref<2x736x128xbf16, #tpu.memory_space<vmem>> -> memref<1x736x128xbf16, #tpu.memory_space<vmem>>
    %98 = tpu.memref_squeeze %97 : memref<1x736x128xbf16, #tpu.memory_space<vmem>> -> memref<736x128xbf16, #tpu.memory_space<vmem>>
    %c202 = arith.constant 202 : index
    %c0_47 = arith.constant 0 : index
    %99 = vector.load %98[%c202, %c0_47] : memref<736x128xbf16, #tpu.memory_space<vmem>>, vector<128x128xbf16>
    %c0_48 = arith.constant 0 : index
    %c0_49 = arith.constant 0 : index
    %c0_50 = arith.constant 0 : index
    %c0_51 = arith.constant 0 : index
    %100 = vector.load %arg5[%c0_48, %c0_49, %c0_50, %c0_51] : memref<3x3x128x128xbf16, #tpu.memory_space<vmem>>, vector<1x1x128x128xbf16>
    %101 = vector.shape_cast %100 : vector<1x1x128x128xbf16> to vector<128x128xbf16>
    %cst_52 = arith.constant dense<0.000000e+00> : vector<128x128xf32>
    %102 = tpu.matmul %99, %101, %cst_52 {dimension_numbers = #tpu.dot_dimension_numbers<[1], [0], [0], [1], [0, 0, 1, 1], [], []>} : vector<128x128xbf16>, vector<128x128xbf16>, vector<128x128xf32> -> vector<128x128xf32>
    %c0_i32_53 = arith.constant 0 : i32
    %c0_i32_54 = arith.constant 0 : i32
    %103 = tpu.memref_slice %arg14[%67, %c0_i32_53, %c0_i32_54] : memref<2x736x128xbf16, #tpu.memory_space<vmem>> -> memref<1x736x128xbf16, #tpu.memory_space<vmem>>
    %104 = tpu.memref_squeeze %103 : memref<1x736x128xbf16, #tpu.memory_space<vmem>> -> memref<736x128xbf16, #tpu.memory_space<vmem>>
    %c298 = arith.constant 298 : index
    %c0_55 = arith.constant 0 : index
    %105 = vector.load %104[%c298, %c0_55] : memref<736x128xbf16, #tpu.memory_space<vmem>>, vector<128x128xbf16>
    %c1 = arith.constant 1 : index
    %c0_56 = arith.constant 0 : index
    %c0_57 = arith.constant 0 : index
    %c0_58 = arith.constant 0 : index
    %106 = vector.load %arg5[%c1, %c0_56, %c0_57, %c0_58] : memref<3x3x128x128xbf16, #tpu.memory_space<vmem>>, vector<1x1x128x128xbf16>
    %107 = vector.shape_cast %106 : vector<1x1x128x128xbf16> to vector<128x128xbf16>
    %cst_59 = arith.constant dense<0.000000e+00> : vector<128x128xf32>
    %108 = tpu.matmul %105, %107, %cst_59 {dimension_numbers = #tpu.dot_dimension_numbers<[1], [0], [0], [1], [0, 0, 1, 1], [], []>} : vector<128x128xbf16>, vector<128x128xbf16>, vector<128x128xf32> -> vector<128x128xf32>
    %109 = arith.addf %102, %108 : vector<128x128xf32>
    %c0_i32_60 = arith.constant 0 : i32
    %c0_i32_61 = arith.constant 0 : i32
    %110 = tpu.memref_slice %arg14[%67, %c0_i32_60, %c0_i32_61] : memref<2x736x128xbf16, #tpu.memory_space<vmem>> -> memref<1x736x128xbf16, #tpu.memory_space<vmem>>
    %111 = tpu.memref_squeeze %110 : memref<1x736x128xbf16, #tpu.memory_space<vmem>> -> memref<736x128xbf16, #tpu.memory_space<vmem>>
    %c394 = arith.constant 394 : index
    %c0_62 = arith.constant 0 : index
    %112 = vector.load %111[%c394, %c0_62] : memref<736x128xbf16, #tpu.memory_space<vmem>>, vector<128x128xbf16>
    %c2 = arith.constant 2 : index
    %c0_63 = arith.constant 0 : index
    %c0_64 = arith.constant 0 : index
    %c0_65 = arith.constant 0 : index
    %113 = vector.load %arg5[%c2, %c0_63, %c0_64, %c0_65] : memref<3x3x128x128xbf16, #tpu.memory_space<vmem>>, vector<1x1x128x128xbf16>
    %114 = vector.shape_cast %113 : vector<1x1x128x128xbf16> to vector<128x128xbf16>
    %cst_66 = arith.constant dense<0.000000e+00> : vector<128x128xf32>
    %115 = tpu.matmul %112, %114, %cst_66 {dimension_numbers = #tpu.dot_dimension_numbers<[1], [0], [0], [1], [0, 0, 1, 1], [], []>} : vector<128x128xbf16>, vector<128x128xbf16>, vector<128x128xf32> -> vector<128x128xf32>
    %116 = arith.addf %109, %115 : vector<128x128xf32>
    %cst_67 = arith.constant 0.000000e+00 : f32
    %117 = vector.shape_cast %28 : vector<128x1xi1> to vector<128x1xi1>
    %118 = vector.broadcast %117 : vector<128x1xi1> to vector<128x128xi1>
    %119 = vector.broadcast %cst_67 : f32 to vector<128x128xf32>
    %120 = arith.select %118, %116, %119 : vector<128x128xi1>, vector<128x128xf32>
    %c0_i32_68 = arith.constant 0 : i32
    %c0_i32_69 = arith.constant 0 : i32
    %121 = tpu.memref_slice %arg14[%67, %c0_i32_68, %c0_i32_69] : memref<2x736x128xbf16, #tpu.memory_space<vmem>> -> memref<1x736x128xbf16, #tpu.memory_space<vmem>>
    %122 = tpu.memref_squeeze %121 : memref<1x736x128xbf16, #tpu.memory_space<vmem>> -> memref<736x128xbf16, #tpu.memory_space<vmem>>
    %c208 = arith.constant 208 : index
    %c0_70 = arith.constant 0 : index
    %123 = vector.load %122[%c208, %c0_70] : memref<736x128xbf16, #tpu.memory_space<vmem>>, vector<128x128xbf16>
    %c0_71 = arith.constant 0 : index
    %c1_72 = arith.constant 1 : index
    %c0_73 = arith.constant 0 : index
    %c0_74 = arith.constant 0 : index
    %124 = vector.load %arg5[%c0_71, %c1_72, %c0_73, %c0_74] : memref<3x3x128x128xbf16, #tpu.memory_space<vmem>>, vector<1x1x128x128xbf16>
    %125 = vector.shape_cast %124 : vector<1x1x128x128xbf16> to vector<128x128xbf16>
    %cst_75 = arith.constant dense<0.000000e+00> : vector<128x128xf32>
    %126 = tpu.matmul %123, %125, %cst_75 {dimension_numbers = #tpu.dot_dimension_numbers<[1], [0], [0], [1], [0, 0, 1, 1], [], []>} : vector<128x128xbf16>, vector<128x128xbf16>, vector<128x128xf32> -> vector<128x128xf32>
    %c0_i32_76 = arith.constant 0 : i32
    %c0_i32_77 = arith.constant 0 : i32
    %127 = tpu.memref_slice %arg14[%67, %c0_i32_76, %c0_i32_77] : memref<2x736x128xbf16, #tpu.memory_space<vmem>> -> memref<1x736x128xbf16, #tpu.memory_space<vmem>>
    %128 = tpu.memref_squeeze %127 : memref<1x736x128xbf16, #tpu.memory_space<vmem>> -> memref<736x128xbf16, #tpu.memory_space<vmem>>
    %c304_78 = arith.constant 304 : index
    %c0_79 = arith.constant 0 : index
    %129 = vector.load %128[%c304_78, %c0_79] : memref<736x128xbf16, #tpu.memory_space<vmem>>, vector<128x128xbf16>
    %c1_80 = arith.constant 1 : index
    %c1_81 = arith.constant 1 : index
    %c0_82 = arith.constant 0 : index
    %c0_83 = arith.constant 0 : index
    %130 = vector.load %arg5[%c1_80, %c1_81, %c0_82, %c0_83] : memref<3x3x128x128xbf16, #tpu.memory_space<vmem>>, vector<1x1x128x128xbf16>
    %131 = vector.shape_cast %130 : vector<1x1x128x128xbf16> to vector<128x128xbf16>
    %cst_84 = arith.constant dense<0.000000e+00> : vector<128x128xf32>
    %132 = tpu.matmul %129, %131, %cst_84 {dimension_numbers = #tpu.dot_dimension_numbers<[1], [0], [0], [1], [0, 0, 1, 1], [], []>} : vector<128x128xbf16>, vector<128x128xbf16>, vector<128x128xf32> -> vector<128x128xf32>
    %133 = arith.addf %126, %132 : vector<128x128xf32>
    %c0_i32_85 = arith.constant 0 : i32
    %c0_i32_86 = arith.constant 0 : i32
    %134 = tpu.memref_slice %arg14[%67, %c0_i32_85, %c0_i32_86] : memref<2x736x128xbf16, #tpu.memory_space<vmem>> -> memref<1x736x128xbf16, #tpu.memory_space<vmem>>
    %135 = tpu.memref_squeeze %134 : memref<1x736x128xbf16, #tpu.memory_space<vmem>> -> memref<736x128xbf16, #tpu.memory_space<vmem>>
    %c400 = arith.constant 400 : index
    %c0_87 = arith.constant 0 : index
    %136 = vector.load %135[%c400, %c0_87] : memref<736x128xbf16, #tpu.memory_space<vmem>>, vector<128x128xbf16>
    %c2_88 = arith.constant 2 : index
    %c1_89 = arith.constant 1 : index
    %c0_90 = arith.constant 0 : index
    %c0_91 = arith.constant 0 : index
    %137 = vector.load %arg5[%c2_88, %c1_89, %c0_90, %c0_91] : memref<3x3x128x128xbf16, #tpu.memory_space<vmem>>, vector<1x1x128x128xbf16>
    %138 = vector.shape_cast %137 : vector<1x1x128x128xbf16> to vector<128x128xbf16>
    %cst_92 = arith.constant dense<0.000000e+00> : vector<128x128xf32>
    %139 = tpu.matmul %136, %138, %cst_92 {dimension_numbers = #tpu.dot_dimension_numbers<[1], [0], [0], [1], [0, 0, 1, 1], [], []>} : vector<128x128xbf16>, vector<128x128xbf16>, vector<128x128xf32> -> vector<128x128xf32>
    %140 = arith.addf %133, %139 : vector<128x128xf32>
    %141 = arith.addf %120, %140 : vector<128x128xf32>
    %c0_i32_93 = arith.constant 0 : i32
    %c0_i32_94 = arith.constant 0 : i32
    %142 = tpu.memref_slice %arg14[%67, %c0_i32_93, %c0_i32_94] : memref<2x736x128xbf16, #tpu.memory_space<vmem>> -> memref<1x736x128xbf16, #tpu.memory_space<vmem>>
    %143 = tpu.memref_squeeze %142 : memref<1x736x128xbf16, #tpu.memory_space<vmem>> -> memref<736x128xbf16, #tpu.memory_space<vmem>>
    %c214 = arith.constant 214 : index
    %c0_95 = arith.constant 0 : index
    %144 = vector.load %143[%c214, %c0_95] : memref<736x128xbf16, #tpu.memory_space<vmem>>, vector<128x128xbf16>
    %c0_96 = arith.constant 0 : index
    %c2_97 = arith.constant 2 : index
    %c0_98 = arith.constant 0 : index
    %c0_99 = arith.constant 0 : index
    %145 = vector.load %arg5[%c0_96, %c2_97, %c0_98, %c0_99] : memref<3x3x128x128xbf16, #tpu.memory_space<vmem>>, vector<1x1x128x128xbf16>
    %146 = vector.shape_cast %145 : vector<1x1x128x128xbf16> to vector<128x128xbf16>
    %cst_100 = arith.constant dense<0.000000e+00> : vector<128x128xf32>
    %147 = tpu.matmul %144, %146, %cst_100 {dimension_numbers = #tpu.dot_dimension_numbers<[1], [0], [0], [1], [0, 0, 1, 1], [], []>} : vector<128x128xbf16>, vector<128x128xbf16>, vector<128x128xf32> -> vector<128x128xf32>
    %c0_i32_101 = arith.constant 0 : i32
    %c0_i32_102 = arith.constant 0 : i32
    %148 = tpu.memref_slice %arg14[%67, %c0_i32_101, %c0_i32_102] : memref<2x736x128xbf16, #tpu.memory_space<vmem>> -> memref<1x736x128xbf16, #tpu.memory_space<vmem>>
    %149 = tpu.memref_squeeze %148 : memref<1x736x128xbf16, #tpu.memory_space<vmem>> -> memref<736x128xbf16, #tpu.memory_space<vmem>>
    %c310 = arith.constant 310 : index
    %c0_103 = arith.constant 0 : index
    %150 = vector.load %149[%c310, %c0_103] : memref<736x128xbf16, #tpu.memory_space<vmem>>, vector<128x128xbf16>
    %c1_104 = arith.constant 1 : index
    %c2_105 = arith.constant 2 : index
    %c0_106 = arith.constant 0 : index
    %c0_107 = arith.constant 0 : index
    %151 = vector.load %arg5[%c1_104, %c2_105, %c0_106, %c0_107] : memref<3x3x128x128xbf16, #tpu.memory_space<vmem>>, vector<1x1x128x128xbf16>
    %152 = vector.shape_cast %151 : vector<1x1x128x128xbf16> to vector<128x128xbf16>
    %cst_108 = arith.constant dense<0.000000e+00> : vector<128x128xf32>
    %153 = tpu.matmul %150, %152, %cst_108 {dimension_numbers = #tpu.dot_dimension_numbers<[1], [0], [0], [1], [0, 0, 1, 1], [], []>} : vector<128x128xbf16>, vector<128x128xbf16>, vector<128x128xf32> -> vector<128x128xf32>
    %154 = arith.addf %147, %153 : vector<128x128xf32>
    %c0_i32_109 = arith.constant 0 : i32
    %c0_i32_110 = arith.constant 0 : i32
    %155 = tpu.memref_slice %arg14[%67, %c0_i32_109, %c0_i32_110] : memref<2x736x128xbf16, #tpu.memory_space<vmem>> -> memref<1x736x128xbf16, #tpu.memory_space<vmem>>
    %156 = tpu.memref_squeeze %155 : memref<1x736x128xbf16, #tpu.memory_space<vmem>> -> memref<736x128xbf16, #tpu.memory_space<vmem>>
    %c406 = arith.constant 406 : index
    %c0_111 = arith.constant 0 : index
    %157 = vector.load %156[%c406, %c0_111] : memref<736x128xbf16, #tpu.memory_space<vmem>>, vector<128x128xbf16>
    %c2_112 = arith.constant 2 : index
    %c2_113 = arith.constant 2 : index
    %c0_114 = arith.constant 0 : index
    %c0_115 = arith.constant 0 : index
    %158 = vector.load %arg5[%c2_112, %c2_113, %c0_114, %c0_115] : memref<3x3x128x128xbf16, #tpu.memory_space<vmem>>, vector<1x1x128x128xbf16>
    %159 = vector.shape_cast %158 : vector<1x1x128x128xbf16> to vector<128x128xbf16>
    %cst_116 = arith.constant dense<0.000000e+00> : vector<128x128xf32>
    %160 = tpu.matmul %157, %159, %cst_116 {dimension_numbers = #tpu.dot_dimension_numbers<[1], [0], [0], [1], [0, 0, 1, 1], [], []>} : vector<128x128xbf16>, vector<128x128xbf16>, vector<128x128xf32> -> vector<128x128xf32>
    %161 = arith.addf %154, %160 : vector<128x128xf32>
    %cst_117 = arith.constant 0.000000e+00 : f32
    %162 = vector.shape_cast %37 : vector<128x1xi1> to vector<128x1xi1>
    %163 = vector.broadcast %162 : vector<128x1xi1> to vector<128x128xi1>
    %164 = vector.broadcast %cst_117 : f32 to vector<128x128xf32>
    %165 = arith.select %163, %161, %164 : vector<128x128xi1>, vector<128x128xf32>
    %166 = arith.addf %141, %165 : vector<128x128xf32>
    %c1_118 = arith.constant 1 : index
    %c0_119 = arith.constant 0 : index
    %c0_120 = arith.constant 0 : index
    %167 = vector.load %arg16[%c1_118, %c0_119, %c0_120] : memref<4x128x128xf32, #tpu.memory_space<vmem>>, vector<1x128x128xf32>
    %168 = vector.shape_cast %167 : vector<1x128x128xf32> to vector<128x128xf32>
    %169 = vector.shape_cast %166 : vector<128x128xf32> to vector<1x128x128xf32>
    tpu.vector_store %arg16[%c1_118, %c0_119, %c0_120], %169 {strides = array<i32>} : memref<4x128x128xf32, #tpu.memory_space<vmem>>, vector<1x128x128xf32>,
    %c0_i32_121 = arith.constant 0 : i32
    %c0_i32_122 = arith.constant 0 : i32
    %170 = tpu.memref_slice %arg14[%67, %c0_i32_121, %c0_i32_122] : memref<2x736x128xbf16, #tpu.memory_space<vmem>> -> memref<1x736x128xbf16, #tpu.memory_space<vmem>>
    %171 = tpu.memref_squeeze %170 : memref<1x736x128xbf16, #tpu.memory_space<vmem>> -> memref<736x128xbf16, #tpu.memory_space<vmem>>
    %c100 = arith.constant 100 : index
    %c0_123 = arith.constant 0 : index
    %172 = vector.load %171[%c100, %c0_123] : memref<736x128xbf16, #tpu.memory_space<vmem>>, vector<128x128xbf16>
    %c0_124 = arith.constant 0 : index
    %c0_125 = arith.constant 0 : index
    %c0_126 = arith.constant 0 : index
    %c0_127 = arith.constant 0 : index
    %173 = vector.load %arg7[%c0_124, %c0_125, %c0_126, %c0_127] : memref<3x3x128x128xbf16, #tpu.memory_space<vmem>>, vector<1x1x128x128xbf16>
    %174 = vector.shape_cast %173 : vector<1x1x128x128xbf16> to vector<128x128xbf16>
    %cst_128 = arith.constant dense<0.000000e+00> : vector<128x128xf32>
    %175 = tpu.matmul %172, %174, %cst_128 {dimension_numbers = #tpu.dot_dimension_numbers<[1], [0], [0], [1], [0, 0, 1, 1], [], []>} : vector<128x128xbf16>, vector<128x128xbf16>, vector<128x128xf32> -> vector<128x128xf32>
    %c0_i32_129 = arith.constant 0 : i32
    %c0_i32_130 = arith.constant 0 : i32
    %176 = tpu.memref_slice %arg14[%67, %c0_i32_129, %c0_i32_130] : memref<2x736x128xbf16, #tpu.memory_space<vmem>> -> memref<1x736x128xbf16, #tpu.memory_space<vmem>>
    %177 = tpu.memref_squeeze %176 : memref<1x736x128xbf16, #tpu.memory_space<vmem>> -> memref<736x128xbf16, #tpu.memory_space<vmem>>
    %c292 = arith.constant 292 : index
    %c0_131 = arith.constant 0 : index
    %178 = vector.load %177[%c292, %c0_131] : memref<736x128xbf16, #tpu.memory_space<vmem>>, vector<128x128xbf16>
    %c1_132 = arith.constant 1 : index
    %c0_133 = arith.constant 0 : index
    %c0_134 = arith.constant 0 : index
    %c0_135 = arith.constant 0 : index
    %179 = vector.load %arg7[%c1_132, %c0_133, %c0_134, %c0_135] : memref<3x3x128x128xbf16, #tpu.memory_space<vmem>>, vector<1x1x128x128xbf16>
    %180 = vector.shape_cast %179 : vector<1x1x128x128xbf16> to vector<128x128xbf16>
    %cst_136 = arith.constant dense<0.000000e+00> : vector<128x128xf32>
    %181 = tpu.matmul %178, %180, %cst_136 {dimension_numbers = #tpu.dot_dimension_numbers<[1], [0], [0], [1], [0, 0, 1, 1], [], []>} : vector<128x128xbf16>, vector<128x128xbf16>, vector<128x128xf32> -> vector<128x128xf32>
    %182 = arith.addf %175, %181 : vector<128x128xf32>
    %c0_i32_137 = arith.constant 0 : i32
    %c0_i32_138 = arith.constant 0 : i32
    %183 = tpu.memref_slice %arg14[%67, %c0_i32_137, %c0_i32_138] : memref<2x736x128xbf16, #tpu.memory_space<vmem>> -> memref<1x736x128xbf16, #tpu.memory_space<vmem>>
    %184 = tpu.memref_squeeze %183 : memref<1x736x128xbf16, #tpu.memory_space<vmem>> -> memref<736x128xbf16, #tpu.memory_space<vmem>>
    %c484 = arith.constant 484 : index
    %c0_139 = arith.constant 0 : index
    %185 = vector.load %184[%c484, %c0_139] : memref<736x128xbf16, #tpu.memory_space<vmem>>, vector<128x128xbf16>
    %c2_140 = arith.constant 2 : index
    %c0_141 = arith.constant 0 : index
    %c0_142 = arith.constant 0 : index
    %c0_143 = arith.constant 0 : index
    %186 = vector.load %arg7[%c2_140, %c0_141, %c0_142, %c0_143] : memref<3x3x128x128xbf16, #tpu.memory_space<vmem>>, vector<1x1x128x128xbf16>
    %187 = vector.shape_cast %186 : vector<1x1x128x128xbf16> to vector<128x128xbf16>
    %cst_144 = arith.constant dense<0.000000e+00> : vector<128x128xf32>
    %188 = tpu.matmul %185, %187, %cst_144 {dimension_numbers = #tpu.dot_dimension_numbers<[1], [0], [0], [1], [0, 0, 1, 1], [], []>} : vector<128x128xbf16>, vector<128x128xbf16>, vector<128x128xf32> -> vector<128x128xf32>
    %189 = arith.addf %182, %188 : vector<128x128xf32>
    %cst_145 = arith.constant 0.000000e+00 : f32
    %190 = vector.shape_cast %46 : vector<128x1xi1> to vector<128x1xi1>
    %191 = vector.broadcast %190 : vector<128x1xi1> to vector<128x128xi1>
    %192 = vector.broadcast %cst_145 : f32 to vector<128x128xf32>
    %193 = arith.select %191, %189, %192 : vector<128x128xi1>, vector<128x128xf32>
    %c0_i32_146 = arith.constant 0 : i32
    %c0_i32_147 = arith.constant 0 : i32
    %194 = tpu.memref_slice %arg14[%67, %c0_i32_146, %c0_i32_147] : memref<2x736x128xbf16, #tpu.memory_space<vmem>> -> memref<1x736x128xbf16, #tpu.memory_space<vmem>>
    %195 = tpu.memref_squeeze %194 : memref<1x736x128xbf16, #tpu.memory_space<vmem>> -> memref<736x128xbf16, #tpu.memory_space<vmem>>
    %c112 = arith.constant 112 : index
    %c0_148 = arith.constant 0 : index
    %196 = vector.load %195[%c112, %c0_148] : memref<736x128xbf16, #tpu.memory_space<vmem>>, vector<128x128xbf16>
    %c0_149 = arith.constant 0 : index
    %c1_150 = arith.constant 1 : index
    %c0_151 = arith.constant 0 : index
    %c0_152 = arith.constant 0 : index
    %197 = vector.load %arg7[%c0_149, %c1_150, %c0_151, %c0_152] : memref<3x3x128x128xbf16, #tpu.memory_space<vmem>>, vector<1x1x128x128xbf16>
    %198 = vector.shape_cast %197 : vector<1x1x128x128xbf16> to vector<128x128xbf16>
    %cst_153 = arith.constant dense<0.000000e+00> : vector<128x128xf32>
    %199 = tpu.matmul %196, %198, %cst_153 {dimension_numbers = #tpu.dot_dimension_numbers<[1], [0], [0], [1], [0, 0, 1, 1], [], []>} : vector<128x128xbf16>, vector<128x128xbf16>, vector<128x128xf32> -> vector<128x128xf32>
    %c0_i32_154 = arith.constant 0 : i32
    %c0_i32_155 = arith.constant 0 : i32
    %200 = tpu.memref_slice %arg14[%67, %c0_i32_154, %c0_i32_155] : memref<2x736x128xbf16, #tpu.memory_space<vmem>> -> memref<1x736x128xbf16, #tpu.memory_space<vmem>>
    %201 = tpu.memref_squeeze %200 : memref<1x736x128xbf16, #tpu.memory_space<vmem>> -> memref<736x128xbf16, #tpu.memory_space<vmem>>
    %c304_156 = arith.constant 304 : index
    %c0_157 = arith.constant 0 : index
    %202 = vector.load %201[%c304_156, %c0_157] : memref<736x128xbf16, #tpu.memory_space<vmem>>, vector<128x128xbf16>
    %c1_158 = arith.constant 1 : index
    %c1_159 = arith.constant 1 : index
    %c0_160 = arith.constant 0 : index
    %c0_161 = arith.constant 0 : index
    %203 = vector.load %arg7[%c1_158, %c1_159, %c0_160, %c0_161] : memref<3x3x128x128xbf16, #tpu.memory_space<vmem>>, vector<1x1x128x128xbf16>
    %204 = vector.shape_cast %203 : vector<1x1x128x128xbf16> to vector<128x128xbf16>
    %cst_162 = arith.constant dense<0.000000e+00> : vector<128x128xf32>
    %205 = tpu.matmul %202, %204, %cst_162 {dimension_numbers = #tpu.dot_dimension_numbers<[1], [0], [0], [1], [0, 0, 1, 1], [], []>} : vector<128x128xbf16>, vector<128x128xbf16>, vector<128x128xf32> -> vector<128x128xf32>
    %206 = arith.addf %199, %205 : vector<128x128xf32>
    %c0_i32_163 = arith.constant 0 : i32
    %c0_i32_164 = arith.constant 0 : i32
    %207 = tpu.memref_slice %arg14[%67, %c0_i32_163, %c0_i32_164] : memref<2x736x128xbf16, #tpu.memory_space<vmem>> -> memref<1x736x128xbf16, #tpu.memory_space<vmem>>
    %208 = tpu.memref_squeeze %207 : memref<1x736x128xbf16, #tpu.memory_space<vmem>> -> memref<736x128xbf16, #tpu.memory_space<vmem>>
    %c496 = arith.constant 496 : index
    %c0_165 = arith.constant 0 : index
    %209 = vector.load %208[%c496, %c0_165] : memref<736x128xbf16, #tpu.memory_space<vmem>>, vector<128x128xbf16>
    %c2_166 = arith.constant 2 : index
    %c1_167 = arith.constant 1 : index
    %c0_168 = arith.constant 0 : index
    %c0_169 = arith.constant 0 : index
    %210 = vector.load %arg7[%c2_166, %c1_167, %c0_168, %c0_169] : memref<3x3x128x128xbf16, #tpu.memory_space<vmem>>, vector<1x1x128x128xbf16>
    %211 = vector.shape_cast %210 : vector<1x1x128x128xbf16> to vector<128x128xbf16>
    %cst_170 = arith.constant dense<0.000000e+00> : vector<128x128xf32>
    %212 = tpu.matmul %209, %211, %cst_170 {dimension_numbers = #tpu.dot_dimension_numbers<[1], [0], [0], [1], [0, 0, 1, 1], [], []>} : vector<128x128xbf16>, vector<128x128xbf16>, vector<128x128xf32> -> vector<128x128xf32>
    %213 = arith.addf %206, %212 : vector<128x128xf32>
    %214 = arith.addf %193, %213 : vector<128x128xf32>
    %c0_i32_171 = arith.constant 0 : i32
    %c0_i32_172 = arith.constant 0 : i32
    %215 = tpu.memref_slice %arg14[%67, %c0_i32_171, %c0_i32_172] : memref<2x736x128xbf16, #tpu.memory_space<vmem>> -> memref<1x736x128xbf16, #tpu.memory_space<vmem>>
    %216 = tpu.memref_squeeze %215 : memref<1x736x128xbf16, #tpu.memory_space<vmem>> -> memref<736x128xbf16, #tpu.memory_space<vmem>>
    %c124 = arith.constant 124 : index
    %c0_173 = arith.constant 0 : index
    %217 = vector.load %216[%c124, %c0_173] : memref<736x128xbf16, #tpu.memory_space<vmem>>, vector<128x128xbf16>
    %c0_174 = arith.constant 0 : index
    %c2_175 = arith.constant 2 : index
    %c0_176 = arith.constant 0 : index
    %c0_177 = arith.constant 0 : index
    %218 = vector.load %arg7[%c0_174, %c2_175, %c0_176, %c0_177] : memref<3x3x128x128xbf16, #tpu.memory_space<vmem>>, vector<1x1x128x128xbf16>
    %219 = vector.shape_cast %218 : vector<1x1x128x128xbf16> to vector<128x128xbf16>
    %cst_178 = arith.constant dense<0.000000e+00> : vector<128x128xf32>
    %220 = tpu.matmul %217, %219, %cst_178 {dimension_numbers = #tpu.dot_dimension_numbers<[1], [0], [0], [1], [0, 0, 1, 1], [], []>} : vector<128x128xbf16>, vector<128x128xbf16>, vector<128x128xf32> -> vector<128x128xf32>
    %c0_i32_179 = arith.constant 0 : i32
    %c0_i32_180 = arith.constant 0 : i32
    %221 = tpu.memref_slice %arg14[%67, %c0_i32_179, %c0_i32_180] : memref<2x736x128xbf16, #tpu.memory_space<vmem>> -> memref<1x736x128xbf16, #tpu.memory_space<vmem>>
    %222 = tpu.memref_squeeze %221 : memref<1x736x128xbf16, #tpu.memory_space<vmem>> -> memref<736x128xbf16, #tpu.memory_space<vmem>>
    %c316 = arith.constant 316 : index
    %c0_181 = arith.constant 0 : index
    %223 = vector.load %222[%c316, %c0_181] : memref<736x128xbf16, #tpu.memory_space<vmem>>, vector<128x128xbf16>
    %c1_182 = arith.constant 1 : index
    %c2_183 = arith.constant 2 : index
    %c0_184 = arith.constant 0 : index
    %c0_185 = arith.constant 0 : index
    %224 = vector.load %arg7[%c1_182, %c2_183, %c0_184, %c0_185] : memref<3x3x128x128xbf16, #tpu.memory_space<vmem>>, vector<1x1x128x128xbf16>
    %225 = vector.shape_cast %224 : vector<1x1x128x128xbf16> to vector<128x128xbf16>
    %cst_186 = arith.constant dense<0.000000e+00> : vector<128x128xf32>
    %226 = tpu.matmul %223, %225, %cst_186 {dimension_numbers = #tpu.dot_dimension_numbers<[1], [0], [0], [1], [0, 0, 1, 1], [], []>} : vector<128x128xbf16>, vector<128x128xbf16>, vector<128x128xf32> -> vector<128x128xf32>
    %227 = arith.addf %220, %226 : vector<128x128xf32>
    %c0_i32_187 = arith.constant 0 : i32
    %c0_i32_188 = arith.constant 0 : i32
    %228 = tpu.memref_slice %arg14[%67, %c0_i32_187, %c0_i32_188] : memref<2x736x128xbf16, #tpu.memory_space<vmem>> -> memref<1x736x128xbf16, #tpu.memory_space<vmem>>
    %229 = tpu.memref_squeeze %228 : memref<1x736x128xbf16, #tpu.memory_space<vmem>> -> memref<736x128xbf16, #tpu.memory_space<vmem>>
    %c508 = arith.constant 508 : index
    %c0_189 = arith.constant 0 : index
    %230 = vector.load %229[%c508, %c0_189] : memref<736x128xbf16, #tpu.memory_space<vmem>>, vector<128x128xbf16>
    %c2_190 = arith.constant 2 : index
    %c2_191 = arith.constant 2 : index
    %c0_192 = arith.constant 0 : index
    %c0_193 = arith.constant 0 : index
    %231 = vector.load %arg7[%c2_190, %c2_191, %c0_192, %c0_193] : memref<3x3x128x128xbf16, #tpu.memory_space<vmem>>, vector<1x1x128x128xbf16>
    %232 = vector.shape_cast %231 : vector<1x1x128x128xbf16> to vector<128x128xbf16>
    %cst_194 = arith.constant dense<0.000000e+00> : vector<128x128xf32>
    %233 = tpu.matmul %230, %232, %cst_194 {dimension_numbers = #tpu.dot_dimension_numbers<[1], [0], [0], [1], [0, 0, 1, 1], [], []>} : vector<128x128xbf16>, vector<128x128xbf16>, vector<128x128xf32> -> vector<128x128xf32>
    %234 = arith.addf %227, %233 : vector<128x128xf32>
    %cst_195 = arith.constant 0.000000e+00 : f32
    %235 = vector.shape_cast %55 : vector<128x1xi1> to vector<128x1xi1>
    %236 = vector.broadcast %235 : vector<128x1xi1> to vector<128x128xi1>
    %237 = vector.broadcast %cst_195 : f32 to vector<128x128xf32>
    %238 = arith.select %236, %234, %237 : vector<128x128xi1>, vector<128x128xf32>
    %239 = arith.addf %214, %238 : vector<128x128xf32>
    %c2_196 = arith.constant 2 : index
    %c0_197 = arith.constant 0 : index
    %c0_198 = arith.constant 0 : index
    %240 = vector.load %arg16[%c2_196, %c0_197, %c0_198] : memref<4x128x128xf32, #tpu.memory_space<vmem>>, vector<1x128x128xf32>
    %241 = vector.shape_cast %240 : vector<1x128x128xf32> to vector<128x128xf32>
    %242 = vector.shape_cast %239 : vector<128x128xf32> to vector<1x128x128xf32>
    tpu.vector_store %arg16[%c2_196, %c0_197, %c0_198], %242 {strides = array<i32>} : memref<4x128x128xf32, #tpu.memory_space<vmem>>, vector<1x128x128xf32>,
    %c0_i32_199 = arith.constant 0 : i32
    %c0_i32_200 = arith.constant 0 : i32
    %243 = tpu.memref_slice %arg14[%67, %c0_i32_199, %c0_i32_200] : memref<2x736x128xbf16, #tpu.memory_space<vmem>> -> memref<1x736x128xbf16, #tpu.memory_space<vmem>>
    %244 = tpu.memref_squeeze %243 : memref<1x736x128xbf16, #tpu.memory_space<vmem>> -> memref<736x128xbf16, #tpu.memory_space<vmem>>
    %c304_201 = arith.constant 304 : index
    %c0_202 = arith.constant 0 : index
    %245 = vector.load %244[%c304_201, %c0_202] : memref<736x128xbf16, #tpu.memory_space<vmem>>, vector<128x128xbf16>
    %c1_203 = arith.constant 1 : index
    %c1_204 = arith.constant 1 : index
    %c0_205 = arith.constant 0 : index
    %c0_206 = arith.constant 0 : index
    %246 = vector.load %arg9[%c1_203, %c1_204, %c0_205, %c0_206] : memref<3x3x128x128xbf16, #tpu.memory_space<vmem>>, vector<1x1x128x128xbf16>
    %247 = vector.shape_cast %246 : vector<1x1x128x128xbf16> to vector<128x128xbf16>
    %cst_207 = arith.constant dense<0.000000e+00> : vector<128x128xf32>
    %248 = tpu.matmul %245, %247, %cst_207 {dimension_numbers = #tpu.dot_dimension_numbers<[1], [0], [0], [1], [0, 0, 1, 1], [], []>} : vector<128x128xbf16>, vector<128x128xbf16>, vector<128x128xf32> -> vector<128x128xf32>
    %c3 = arith.constant 3 : index
    %c0_208 = arith.constant 0 : index
    %c0_209 = arith.constant 0 : index
    %249 = vector.load %arg16[%c3, %c0_208, %c0_209] : memref<4x128x128xf32, #tpu.memory_space<vmem>>, vector<1x128x128xf32>
    %250 = vector.shape_cast %249 : vector<1x128x128xf32> to vector<128x128xf32>
    %251 = vector.shape_cast %248 : vector<128x128xf32> to vector<1x128x128xf32>
    tpu.vector_store %arg16[%c3, %c0_208, %c0_209], %251 {strides = array<i32>} : memref<4x128x128xf32, #tpu.memory_space<vmem>>, vector<1x128x128xf32>,
    %c0_210 = arith.constant 0 : index
    %c0_211 = arith.constant 0 : index
    %c0_212 = arith.constant 0 : index
    %252 = vector.load %arg16[%c0_210, %c0_211, %c0_212] : memref<4x128x128xf32, #tpu.memory_space<vmem>>, vector<1x128x128xf32>
    %253 = vector.shape_cast %252 : vector<1x128x128xf32> to vector<128x128xf32>
    %c0_213 = arith.constant 0 : index
    %c0_214 = arith.constant 0 : index
    %254 = vector.load %arg4[%c0_213, %c0_214] : memref<1x128xf32, #tpu.memory_space<vmem>>, vector<1x128xf32>
    %255 = vector.broadcast %254 : vector<1x128xf32> to vector<128x128xf32>
    %256 = arith.addf %253, %255 : vector<128x128xf32>
    %cst_215 = arith.constant 0.000000e+00 : f32
    %257 = vector.broadcast %cst_215 : f32 to vector<128x128xf32>
    %258 = arith.maximumf %256, %257 : vector<128x128xf32>
    %259 = arith.truncf %258 : vector<128x128xf32> to vector<128x128xbf16>
    %c0_216 = arith.constant 0 : index
    %c0_217 = arith.constant 0 : index
    %c0_218 = arith.constant 0 : index
    %260 = vector.load %arg12[%c0_216, %c0_217, %c0_218] : memref<4x128x128xbf16, #tpu.memory_space<vmem>>, vector<1x128x128xbf16>
    %261 = vector.shape_cast %260 : vector<1x128x128xbf16> to vector<128x128xbf16>
    %cst_219 = arith.constant dense<0.000000e+00> : vector<128x128xf32>
    %262 = tpu.matmul %259, %261, %cst_219 {dimension_numbers = #tpu.dot_dimension_numbers<[1], [0], [0], [1], [0, 0, 1, 1], [], []>} : vector<128x128xbf16>, vector<128x128xbf16>, vector<128x128xf32> -> vector<128x128xf32>
    %c0_220 = arith.constant 0 : index
    %c0_221 = arith.constant 0 : index
    %263 = vector.load %arg17[%c0_220, %c0_221] : memref<128x128xf32, #tpu.memory_space<vmem>>, vector<128x128xf32>
    tpu.vector_store %arg17[%c0_220, %c0_221], %262 {strides = array<i32>} : memref<128x128xf32, #tpu.memory_space<vmem>>, vector<128x128xf32>,
    %c1_222 = arith.constant 1 : index
    %c0_223 = arith.constant 0 : index
    %c0_224 = arith.constant 0 : index
    %264 = vector.load %arg16[%c1_222, %c0_223, %c0_224] : memref<4x128x128xf32, #tpu.memory_space<vmem>>, vector<1x128x128xf32>
    %265 = vector.shape_cast %264 : vector<1x128x128xf32> to vector<128x128xf32>
    %c0_225 = arith.constant 0 : index
    %c0_226 = arith.constant 0 : index
    %266 = vector.load %arg6[%c0_225, %c0_226] : memref<1x128xf32, #tpu.memory_space<vmem>>, vector<1x128xf32>
    %267 = vector.broadcast %266 : vector<1x128xf32> to vector<128x128xf32>
    %268 = arith.addf %265, %267 : vector<128x128xf32>
    %cst_227 = arith.constant 0.000000e+00 : f32
    %269 = vector.broadcast %cst_227 : f32 to vector<128x128xf32>
    %270 = arith.maximumf %268, %269 : vector<128x128xf32>
    %271 = arith.truncf %270 : vector<128x128xf32> to vector<128x128xbf16>
    %c1_228 = arith.constant 1 : index
    %c0_229 = arith.constant 0 : index
    %c0_230 = arith.constant 0 : index
    %272 = vector.load %arg12[%c1_228, %c0_229, %c0_230] : memref<4x128x128xbf16, #tpu.memory_space<vmem>>, vector<1x128x128xbf16>
    %273 = vector.shape_cast %272 : vector<1x128x128xbf16> to vector<128x128xbf16>
    %cst_231 = arith.constant dense<0.000000e+00> : vector<128x128xf32>
    %274 = tpu.matmul %271, %273, %cst_231 {dimension_numbers = #tpu.dot_dimension_numbers<[1], [0], [0], [1], [0, 0, 1, 1], [], []>} : vector<128x128xbf16>, vector<128x128xbf16>, vector<128x128xf32> -> vector<128x128xf32>
    %c0_232 = arith.constant 0 : index
    %c0_233 = arith.constant 0 : index
    %275 = vector.load %arg17[%c0_232, %c0_233] : memref<128x128xf32, #tpu.memory_space<vmem>>, vector<128x128xf32>
    %276 = arith.addf %275, %274 : vector<128x128xf32>
    %c0_234 = arith.constant 0 : index
    %c0_235 = arith.constant 0 : index
    %277 = vector.load %arg17[%c0_234, %c0_235] : memref<128x128xf32, #tpu.memory_space<vmem>>, vector<128x128xf32>
    tpu.vector_store %arg17[%c0_234, %c0_235], %276 {strides = array<i32>} : memref<128x128xf32, #tpu.memory_space<vmem>>, vector<128x128xf32>,
    %c2_236 = arith.constant 2 : index
    %c0_237 = arith.constant 0 : index
    %c0_238 = arith.constant 0 : index
    %278 = vector.load %arg16[%c2_236, %c0_237, %c0_238] : memref<4x128x128xf32, #tpu.memory_space<vmem>>, vector<1x128x128xf32>
    %279 = vector.shape_cast %278 : vector<1x128x128xf32> to vector<128x128xf32>
    %c0_239 = arith.constant 0 : index
    %c0_240 = arith.constant 0 : index
    %280 = vector.load %arg8[%c0_239, %c0_240] : memref<1x128xf32, #tpu.memory_space<vmem>>, vector<1x128xf32>
    %281 = vector.broadcast %280 : vector<1x128xf32> to vector<128x128xf32>
    %282 = arith.addf %279, %281 : vector<128x128xf32>
    %cst_241 = arith.constant 0.000000e+00 : f32
    %283 = vector.broadcast %cst_241 : f32 to vector<128x128xf32>
    %284 = arith.maximumf %282, %283 : vector<128x128xf32>
    %285 = arith.truncf %284 : vector<128x128xf32> to vector<128x128xbf16>
    %c2_242 = arith.constant 2 : index
    %c0_243 = arith.constant 0 : index
    %c0_244 = arith.constant 0 : index
    %286 = vector.load %arg12[%c2_242, %c0_243, %c0_244] : memref<4x128x128xbf16, #tpu.memory_space<vmem>>, vector<1x128x128xbf16>
    %287 = vector.shape_cast %286 : vector<1x128x128xbf16> to vector<128x128xbf16>
    %cst_245 = arith.constant dense<0.000000e+00> : vector<128x128xf32>
    %288 = tpu.matmul %285, %287, %cst_245 {dimension_numbers = #tpu.dot_dimension_numbers<[1], [0], [0], [1], [0, 0, 1, 1], [], []>} : vector<128x128xbf16>, vector<128x128xbf16>, vector<128x128xf32> -> vector<128x128xf32>
    %c0_246 = arith.constant 0 : index
    %c0_247 = arith.constant 0 : index
    %289 = vector.load %arg17[%c0_246, %c0_247] : memref<128x128xf32, #tpu.memory_space<vmem>>, vector<128x128xf32>
    %290 = arith.addf %289, %288 : vector<128x128xf32>
    %c0_248 = arith.constant 0 : index
    %c0_249 = arith.constant 0 : index
    %291 = vector.load %arg17[%c0_248, %c0_249] : memref<128x128xf32, #tpu.memory_space<vmem>>, vector<128x128xf32>
    tpu.vector_store %arg17[%c0_248, %c0_249], %290 {strides = array<i32>} : memref<128x128xf32, #tpu.memory_space<vmem>>, vector<128x128xf32>,
    %c3_250 = arith.constant 3 : index
    %c0_251 = arith.constant 0 : index
    %c0_252 = arith.constant 0 : index
    %292 = vector.load %arg16[%c3_250, %c0_251, %c0_252] : memref<4x128x128xf32, #tpu.memory_space<vmem>>, vector<1x128x128xf32>
    %293 = vector.shape_cast %292 : vector<1x128x128xf32> to vector<128x128xf32>
    %c0_253 = arith.constant 0 : index
    %c0_254 = arith.constant 0 : index
    %294 = vector.load %arg10[%c0_253, %c0_254] : memref<1x128xf32, #tpu.memory_space<vmem>>, vector<1x128xf32>
    %295 = vector.broadcast %294 : vector<1x128xf32> to vector<128x128xf32>
    %296 = arith.addf %293, %295 : vector<128x128xf32>
    %cst_255 = arith.constant 0.000000e+00 : f32
    %297 = vector.broadcast %cst_255 : f32 to vector<128x128xf32>
    %298 = arith.maximumf %296, %297 : vector<128x128xf32>
    %299 = arith.truncf %298 : vector<128x128xf32> to vector<128x128xbf16>
    %c3_256 = arith.constant 3 : index
    %c0_257 = arith.constant 0 : index
    %c0_258 = arith.constant 0 : index
    %300 = vector.load %arg12[%c3_256, %c0_257, %c0_258] : memref<4x128x128xbf16, #tpu.memory_space<vmem>>, vector<1x128x128xbf16>
    %301 = vector.shape_cast %300 : vector<1x128x128xbf16> to vector<128x128xbf16>
    %cst_259 = arith.constant dense<0.000000e+00> : vector<128x128xf32>
    %302 = tpu.matmul %299, %301, %cst_259 {dimension_numbers = #tpu.dot_dimension_numbers<[1], [0], [0], [1], [0, 0, 1, 1], [], []>} : vector<128x128xbf16>, vector<128x128xbf16>, vector<128x128xf32> -> vector<128x128xf32>
    %c0_260 = arith.constant 0 : index
    %c0_261 = arith.constant 0 : index
    %303 = vector.load %arg17[%c0_260, %c0_261] : memref<128x128xf32, #tpu.memory_space<vmem>>, vector<128x128xf32>
    %304 = arith.addf %303, %302 : vector<128x128xf32>
    %c0_262 = arith.constant 0 : index
    %c0_263 = arith.constant 0 : index
    %305 = vector.load %arg17[%c0_262, %c0_263] : memref<128x128xf32, #tpu.memory_space<vmem>>, vector<128x128xf32>
    tpu.vector_store %arg17[%c0_262, %c0_263], %304 {strides = array<i32>} : memref<128x128xf32, #tpu.memory_space<vmem>>, vector<128x128xf32>,
    %c0_264 = arith.constant 0 : index
    %c0_265 = arith.constant 0 : index
    %306 = vector.load %arg17[%c0_264, %c0_265] : memref<128x128xf32, #tpu.memory_space<vmem>>, vector<128x128xf32>
    %c0_266 = arith.constant 0 : index
    %c0_267 = arith.constant 0 : index
    %c0_268 = arith.constant 0 : index
    %307 = vector.load %arg11[%c0_266, %c0_267, %c0_268] : memref<1x1x128xf32, #tpu.memory_space<vmem>>, vector<1x1x128xf32>
    %308 = vector.shape_cast %307 : vector<1x1x128xf32> to vector<1x128xf32>
    %309 = vector.broadcast %308 : vector<1x128xf32> to vector<128x128xf32>
    %310 = arith.addf %306, %309 : vector<128x128xf32>
    %cst_269 = arith.constant 0.000000e+00 : f32
    %311 = vector.broadcast %cst_269 : f32 to vector<128x128xf32>
    %312 = arith.maximumf %310, %311 : vector<128x128xf32>
    %313 = arith.truncf %312 : vector<128x128xf32> to vector<128x128xbf16>
    %c0_270 = arith.constant 0 : index
    %c0_271 = arith.constant 0 : index
    %c0_272 = arith.constant 0 : index
    %314 = vector.load %arg13[%c0_270, %c0_271, %c0_272] : memref<1x128x128xbf16, #tpu.memory_space<vmem>>, vector<1x128x128xbf16>
    %315 = vector.shape_cast %314 : vector<1x128x128xbf16> to vector<128x128xbf16>
    %316 = vector.shape_cast %313 : vector<128x128xbf16> to vector<1x128x128xbf16>
    tpu.vector_store %arg13[%c0_270, %c0_271, %c0_272], %316 {strides = array<i32>} : memref<1x128x128xbf16, #tpu.memory_space<vmem>>, vector<1x128x128xbf16>,
    return
  }
  func.func @transform_1(%arg0: i32, %arg1: i32) -> (i32, i32) {
    %c0_i32 = arith.constant 0 : i32
    %c0_i32_0 = arith.constant 0 : i32
    %c0_i32_1 = arith.constant 0 : i32
    return %c0_i32, %c0_i32_0 : i32, i32
  }
  func.func @transform_2(%arg0: i32, %arg1: i32) -> (i32, i32) {
    %c0_i32 = arith.constant 0 : i32
    %c0_i32_0 = arith.constant 0 : i32
    %c0_i32_1 = arith.constant 0 : i32
    return %c0_i32, %c0_i32_0 : i32, i32
  }
  func.func @transform_3(%arg0: i32, %arg1: i32) -> (i32, i32, i32, i32) {
    %c0_i32 = arith.constant 0 : i32
    %c0_i32_0 = arith.constant 0 : i32
    %c0_i32_1 = arith.constant 0 : i32
    %c0_i32_2 = arith.constant 0 : i32
    %c0_i32_3 = arith.constant 0 : i32
    return %c0_i32, %c0_i32_0, %c0_i32_1, %c0_i32_2 : i32, i32, i32, i32
  }
  func.func @transform_4(%arg0: i32, %arg1: i32) -> (i32, i32) {
    %c0_i32 = arith.constant 0 : i32
    %c0_i32_0 = arith.constant 0 : i32
    %c0_i32_1 = arith.constant 0 : i32
    return %c0_i32, %c0_i32_0 : i32, i32
  }
  func.func @transform_5(%arg0: i32, %arg1: i32) -> (i32, i32, i32, i32) {
    %c0_i32 = arith.constant 0 : i32
    %c0_i32_0 = arith.constant 0 : i32
    %c0_i32_1 = arith.constant 0 : i32
    %c0_i32_2 = arith.constant 0 : i32
    %c0_i32_3 = arith.constant 0 : i32
    return %c0_i32, %c0_i32_0, %c0_i32_1, %c0_i32_2 : i32, i32, i32, i32
  }
  func.func @transform_6(%arg0: i32, %arg1: i32) -> (i32, i32) {
    %c0_i32 = arith.constant 0 : i32
    %c0_i32_0 = arith.constant 0 : i32
    %c0_i32_1 = arith.constant 0 : i32
    return %c0_i32, %c0_i32_0 : i32, i32
  }
  func.func @transform_7(%arg0: i32, %arg1: i32) -> (i32, i32, i32, i32) {
    %c0_i32 = arith.constant 0 : i32
    %c0_i32_0 = arith.constant 0 : i32
    %c0_i32_1 = arith.constant 0 : i32
    %c0_i32_2 = arith.constant 0 : i32
    %c0_i32_3 = arith.constant 0 : i32
    return %c0_i32, %c0_i32_0, %c0_i32_1, %c0_i32_2 : i32, i32, i32, i32
  }
  func.func @transform_8(%arg0: i32, %arg1: i32) -> (i32, i32) {
    %c0_i32 = arith.constant 0 : i32
    %c0_i32_0 = arith.constant 0 : i32
    %c0_i32_1 = arith.constant 0 : i32
    return %c0_i32, %c0_i32_0 : i32, i32
  }
  func.func @transform_9(%arg0: i32, %arg1: i32) -> (i32, i32, i32) {
    %c0_i32 = arith.constant 0 : i32
    %c0_i32_0 = arith.constant 0 : i32
    %c0_i32_1 = arith.constant 0 : i32
    return %arg0, %c0_i32, %c0_i32_0 : i32, i32, i32
  }
  func.func @transform_10(%arg0: i32, %arg1: i32) -> (i32, i32, i32) {
    %c0_i32 = arith.constant 0 : i32
    %c0_i32_0 = arith.constant 0 : i32
    %c0_i32_1 = arith.constant 0 : i32
    %c0_i32_2 = arith.constant 0 : i32
    return %c0_i32, %c0_i32_0, %c0_i32_1 : i32, i32, i32
  }
  func.func @transform_11(%arg0: i32, %arg1: i32) -> (i32, i32, i32) {
    %c0_i32 = arith.constant 0 : i32
    %c0_i32_0 = arith.constant 0 : i32
    return %arg0, %arg1, %c0_i32 : i32, i32, i32
  }
}

</mosaic_0001>

<llo_original>
// kernel: tpu_custom_call.1
$region0: #{tpu_custom_call.1}
  #allocation0 [shape = 'u32[]', space=smem, size = 0x4, offset = 0x4, fixed_abs, tag = 'smem constant byte address 0x4 - core index']
  #allocation1 [shape = 'u32[72,128]{1,0:T(1,128)}', space=vmem, size = 0x9000, scoped, tag = 'internal scratch']
  #allocation2 [shape = 'bf16[2,736,128]{2,1,0:T(8,128)(2,1)}', space=vmem, size = 0x5c000, scoped, tag = 'scratch operand']
  #allocation3 [shape = 's32[2]{0}', space=sflag, size = 0x8, scoped, tag = 'scratch operand']
  #allocation4 [shape = 'f32[4,128,128]{2,1,0:T(8,128)}', space=vmem, size = 0x40000, scoped, tag = 'scratch operand']
  #allocation5 [shape = 'f32[128,128]{1,0:T(8,128)}', space=vmem, size = 0x10000, scoped, tag = 'scratch operand']
  #allocation18 [shape = 's32[]', space=sflag, size = 0x4, offset = 0, fixed_abs, tag = 'sflag constant byte address 0x0 - dummy sync flag']
  #allocation19 [shape = 's32[]', space=sflag, size = 0x4, offset = 0, fixed_abs, tag = 'sflag constant byte address 0x0 - dummy sync flag']
  #allocation20 [shape = 'u32[]', space=smem, size = 0x4, offset = 0x44, fixed_abs, tag = 'smem constant byte address 0x44 - assertion arg 0']
  #allocation21 [shape = 'u32[]', space=smem, size = 0x4, offset = 0x48, fixed_abs, tag = 'smem constant byte address 0x48 - assertion arg 1']
  #allocation22 [shape = 's32[]', space=sflag, size = 0x4, offset = 0, fixed_abs, tag = 'sflag constant byte address 0x0 - dummy sync flag']
  #allocation23 [shape = 's32[]', space=sflag, size = 0x4, offset = 0, fixed_abs, tag = 'sflag constant byte address 0x0 - dummy sync flag']
  %s0 = inlined_call_operand.hbm [shape: bf16[2,864,128], index: 0, kind: input, shape index: {}]
  %s1 = inlined_call_operand.hbm [shape: bf16[128,128], index: 1, kind: input, shape index: {}]
  %s2 = inlined_call_operand.vmem [shape: f32[1,128], index: 2, kind: input, shape index: {}]
  %s3 = inlined_call_operand.hbm [shape: bf16[3,3,128,128], index: 3, kind: input, shape index: {}]
  %s4 = inlined_call_operand.hbm [shape: f32[1,128], index: 4, kind: input, shape index: {}]
  %s5 = inlined_call_operand.hbm [shape: bf16[3,3,128,128], index: 5, kind: input, shape index: {}]
  %s6 = inlined_call_operand.vmem [shape: f32[1,128], index: 6, kind: input, shape index: {}]
  %s7 = inlined_call_operand.hbm [shape: bf16[3,3,128,128], index: 7, kind: input, shape index: {}]
  %s8 = inlined_call_operand.vmem [shape: f32[1,128], index: 8, kind: input, shape index: {}]
  %s9 = inlined_call_operand.vmem [shape: f32[2,1,128], index: 9, kind: input, shape index: {}]
  %s10 = inlined_call_operand.hbm [shape: bf16[4,128,128], index: 10, kind: input, shape index: {}]
  %s11 = inlined_call_operand.hbm [shape: bf16[2,256,128], index: 11, kind: output, shape index: {}]
  %s12 = sld [smem:[#allocation0]]
  $region113: #{tpu_custom_call.1} parent=0
    _
  %s14 = ssub.s32 1, %s12
  %s15 = scalar_select 0, %s14, %s12
  $region1: #{tpu_custom_call.1} parent=0
    #allocation6 [shape = 'u8[32768]{0}', space=vmem, size = 0x8000, scoped, tag = 'input window, operand 1, single buffered']
    #allocation7 [shape = 's32[2]{0}', space=sflag, size = 0x8, scoped, tag = 'scoped memory for tpu_custom_call.1']
    #allocation8 [shape = 's32[2]{0}', space=sflag, size = 0x8, scoped, tag = 'scoped memory for tpu_custom_call.1']
    #allocation9 [shape = 'u8[294912]{0}', space=vmem, size = 0x48000, scoped, tag = 'input window, operand 3, single buffered']
    #allocation10 [shape = 's32[1]{0}', space=sflag, size = 0x4, scoped, tag = 'scoped memory for tpu_custom_call.1']
    #allocation11 [shape = 'u8[512]{0}', space=vmem, size = 0x400, scoped, tag = 'input window, operand 4, single buffered']
    #allocation12 [shape = 'u8[294912]{0}', space=vmem, size = 0x48000, scoped, tag = 'input window, operand 5, single buffered']
    #allocation13 [shape = 's32[1]{0}', space=sflag, size = 0x4, scoped, tag = 'scoped memory for tpu_custom_call.1']
    #allocation14 [shape = 'u8[294912]{0}', space=vmem, size = 0x48000, scoped, tag = 'input window, operand 7, single buffered']
    #allocation15 [shape = 'u8[131072]{0}', space=vmem, size = 0x20000, scoped, tag = 'input window, operand 10, single buffered']
    #allocation16 [shape = 's32[1]{0}', space=sflag, size = 0x4, scoped, tag = 'scoped memory for tpu_custom_call.1']
    #allocation17 [shape = 'u8[65536]{0}', space=vmem, size = 0x10000, scoped, tag = 'output window, operand 0']
    %16 = vsyncpa [#allocation7], 0
    %17 = vsyncpa [#allocation10], 0
    %18 = vsyncpa [#allocation13], 0
    %19 = vsyncpa [#allocation16], 0
    %20 = vsyncpa [#allocation8], 0
    %s21 = scalar_lea.sflag [#allocation8], 1
    %22 = vsyncpa %s21, 0
    loop: start=0, step=1, limit=6
    $region2: #{tpu_custom_call.1} parent=1 // loop_pre_header
      _
    $region3: #{tpu_custom_call.1} parent=1 // loop_header
      %s24 = sphi 0, %s28
      %p25 = scmp.ge.s32.totalorder %s24, 6
      %s31 = sphi 0, %s43
      %s32 = sphi 0, %s39
      %s33 = sphi 0, %s31
      %s34 = sphi 0, %s32
      %s35 = sphi 0, %s33
      %s36 = sphi 0, %s34
      %s44 = sphi 0, %s44
      %s46 = sphi 0, %s44
      %s47 = sphi 0, %s46
      %s61 = sphi 0, %s47
      %s65 = sphi 0, %s65
      %s67 = sphi 0, %s65
      %s68 = sphi 0, %s67
      %s82 = sphi 0, %s68
      %s86 = sphi 0, %s86
      %s88 = sphi 0, %s86
      %s89 = sphi 0, %s88
      %s103 = sphi 0, %s89
      %s107 = sphi 0, %s107
      %s109 = sphi 0, %s107
      %s110 = sphi 0, %s109
      %s124 = sphi 0, %s110
      %s128 = sphi 0, %s128
      %s130 = sphi 0, %s128
      %s131 = sphi 0, %s130
      %s145 = sphi 0, %s131
      %s149 = sphi 0, %s149
      %s151 = sphi 0, %s149
      %s152 = sphi 0, %s151
      %s166 = sphi 0, %s152
      %s170 = sphi 0, %s170
      %s172 = sphi 0, %s170
      %s173 = sphi 0, %s172
      %s187 = sphi 0, %s173
      %s191 = sphi 0, %s191
      %s193 = sphi 0, %s191
      %s194 = sphi 0, %s193
      %s208 = sphi 0, %s194
      %s214 = sphi 0, %s216
      %s217 = sphi 0, %s214
      %s218 = sphi 0, %s217
      %s234 = sphi 0, %s218
      %s238 = sphi 0, %s238
      %s240 = sphi 0, %s238
      %s241 = sphi 0, %s240
      %s255 = sphi 0, %s241
      %s263 = sphi 0, %s265
      %s266 = sphi 0, %s263
      %s267 = sphi 0, %s266
      %s283 = sphi 0, %s267
    $region4: #{tpu_custom_call.1} parent=1 // loop_header_branch
      %27 = sbr.rel (%p25) target = $region8
    $region5: #{tpu_custom_call.1} parent=1 // loop_body
      %s29 = ssub.s32 %s24, 1
      %s30 = ssub.s32 %s24, 2
      %s37 = sadd.s32 1, %s32
      %p38 = scmp.ge.s32.totalorder %s37, 2
      %s39 = scalar_select %p38, 0, %s37
      %s40 = sadd.s32 1, %s31
      %s41 = scalar_select %p38, %s40, %s31
      %p42 = scmp.ge.s32.totalorder %s41, 2
      %s43 = scalar_select %p42, 0, %s41
      %s45 = sadd.s32 %s44, 1
      %p48 = scmp.eq.s32.totalorder %s24, 3
      %p49 = scmp.ne.s32.totalorder %s44, %s46
      %p50 = scmp.eq.s32.totalorder %s24, 0
      %p51 = por %p49, %p50
      %p52 = scmp.ne.s32.totalorder %s44, %s46
      %p53 = scmp.eq.s32.totalorder %s29, 3
      %p54 = por %p52, %p53
      %p55 = scmp.ne.s32.totalorder %s46, %s47
      %p56 = scmp.eq.s32.totalorder %s29, 0
      %p57 = por %p55, %p56
      %p58 = scmp.ne.s32.totalorder %s46, %s47
      %p59 = scmp.eq.s32.totalorder %s30, 3
      %p60 = por %p58, %p59
      %p62 = scmp.ne.s32.totalorder %s47, %s61
      %p63 = scmp.eq.s32.totalorder %s30, 0
      %p64 = por %p62, %p63
      %s66 = sadd.s32 %s65, 1
      %p69 = scmp.eq.s32.totalorder %s24, 3
      %p70 = scmp.ne.s32.totalorder %s65, %s67
      %p71 = scmp.eq.s32.totalorder %s24, 0
      %p72 = por %p70, %p71
      %p73 = scmp.ne.s32.totalorder %s65, %s67
      %p74 = scmp.eq.s32.totalorder %s29, 3
      %p75 = por %p73, %p74
      %p76 = scmp.ne.s32.totalorder %s67, %s68
      %p77 = scmp.eq.s32.totalorder %s29, 0
      %p78 = por %p76, %p77
      %p79 = scmp.ne.s32.totalorder %s67, %s68
      %p80 = scmp.eq.s32.totalorder %s30, 3
      %p81 = por %p79, %p80
      %p83 = scmp.ne.s32.totalorder %s68, %s82
      %p84 = scmp.eq.s32.totalorder %s30, 0
      %p85 = por %p83, %p84
      %s87 = sadd.s32 %s86, 1
      %p90 = scmp.eq.s32.totalorder %s24, 3
      %p91 = scmp.ne.s32.totalorder %s86, %s88
      %p92 = scmp.eq.s32.totalorder %s24, 0
      %p93 = por %p91, %p92
      %p94 = scmp.ne.s32.totalorder %s86, %s88
      %p95 = scmp.eq.s32.totalorder %s29, 3
      %p96 = por %p94, %p95
      %p97 = scmp.ne.s32.totalorder %s88, %s89
      %p98 = scmp.eq.s32.totalorder %s29, 0
      %p99 = por %p97, %p98
      %p100 = scmp.ne.s32.totalorder %s88, %s89
      %p101 = scmp.eq.s32.totalorder %s30, 3
      %p102 = por %p100, %p101
      %p104 = scmp.ne.s32.totalorder %s89, %s103
      %p105 = scmp.eq.s32.totalorder %s30, 0
      %p106 = por %p104, %p105
      %s108 = sadd.s32 %s107, 1
      %p111 = scmp.eq.s32.totalorder %s24, 3
      %p112 = scmp.ne.s32.totalorder %s107, %s109
      %p113 = scmp.eq.s32.totalorder %s24, 0
      %p114 = por %p112, %p113
      %p115 = scmp.ne.s32.totalorder %s107, %s109
      %p116 = scmp.eq.s32.totalorder %s29, 3
      %p117 = por %p115, %p116
      %p118 = scmp.ne.s32.totalorder %s109, %s110
      %p119 = scmp.eq.s32.totalorder %s29, 0
      %p120 = por %p118, %p119
      %p121 = scmp.ne.s32.totalorder %s109, %s110
      %p122 = scmp.eq.s32.totalorder %s30, 3
      %p123 = por %p121, %p122
      %p125 = scmp.ne.s32.totalorder %s110, %s124
      %p126 = scmp.eq.s32.totalorder %s30, 0
      %p127 = por %p125, %p126
      %s129 = sadd.s32 %s128, 1
      %p132 = scmp.eq.s32.totalorder %s24, 3
      %p133 = scmp.ne.s32.totalorder %s128, %s130
      %p134 = scmp.eq.s32.totalorder %s24, 0
      %p135 = por %p133, %p134
      %p136 = scmp.ne.s32.totalorder %s128, %s130
      %p137 = scmp.eq.s32.totalorder %s29, 3
      %p138 = por %p136, %p137
      %p139 = scmp.ne.s32.totalorder %s130, %s131
      %p140 = scmp.eq.s32.totalorder %s29, 0
      %p141 = por %p139, %p140
      %p142 = scmp.ne.s32.totalorder %s130, %s131
      %p143 = scmp.eq.s32.totalorder %s30, 3
      %p144 = por %p142, %p143
      %p146 = scmp.ne.s32.totalorder %s131, %s145
      %p147 = scmp.eq.s32.totalorder %s30, 0
      %p148 = por %p146, %p147
      %s150 = sadd.s32 %s149, 1
      %p153 = scmp.eq.s32.totalorder %s24, 3
      %p154 = scmp.ne.s32.totalorder %s149, %s151
      %p155 = scmp.eq.s32.totalorder %s24, 0
      %p156 = por %p154, %p155
      %p157 = scmp.ne.s32.totalorder %s149, %s151
      %p158 = scmp.eq.s32.totalorder %s29, 3
      %p159 = por %p157, %p158
      %p160 = scmp.ne.s32.totalorder %s151, %s152
      %p161 = scmp.eq.s32.totalorder %s29, 0
      %p162 = por %p160, %p161
      %p163 = scmp.ne.s32.totalorder %s151, %s152
      %p164 = scmp.eq.s32.totalorder %s30, 3
      %p165 = por %p163, %p164
      %p167 = scmp.ne.s32.totalorder %s152, %s166
      %p168 = scmp.eq.s32.totalorder %s30, 0
      %p169 = por %p167, %p168
      %s171 = sadd.s32 %s170, 1
      %p174 = scmp.eq.s32.totalorder %s24, 3
      %p175 = scmp.ne.s32.totalorder %s170, %s172
      %p176 = scmp.eq.s32.totalorder %s24, 0
      %p177 = por %p175, %p176
      %p178 = scmp.ne.s32.totalorder %s170, %s172
      %p179 = scmp.eq.s32.totalorder %s29, 3
      %p180 = por %p178, %p179
      %p181 = scmp.ne.s32.totalorder %s172, %s173
      %p182 = scmp.eq.s32.totalorder %s29, 0
      %p183 = por %p181, %p182
      %p184 = scmp.ne.s32.totalorder %s172, %s173
      %p185 = scmp.eq.s32.totalorder %s30, 3
      %p186 = por %p184, %p185
      %p188 = scmp.ne.s32.totalorder %s173, %s187
      %p189 = scmp.eq.s32.totalorder %s30, 0
      %p190 = por %p188, %p189
      %s192 = sadd.s32 %s191, 1
      %p195 = scmp.eq.s32.totalorder %s24, 3
      %p196 = scmp.ne.s32.totalorder %s191, %s193
      %p197 = scmp.eq.s32.totalorder %s24, 0
      %p198 = por %p196, %p197
      %p199 = scmp.ne.s32.totalorder %s191, %s193
      %p200 = scmp.eq.s32.totalorder %s29, 3
      %p201 = por %p199, %p200
      %p202 = scmp.ne.s32.totalorder %s193, %s194
      %p203 = scmp.eq.s32.totalorder %s29, 0
      %p204 = por %p202, %p203
      %p205 = scmp.ne.s32.totalorder %s193, %s194
      %p206 = scmp.eq.s32.totalorder %s30, 3
      %p207 = por %p205, %p206
      %p209 = scmp.ne.s32.totalorder %s194, %s208
      %p210 = scmp.eq.s32.totalorder %s30, 0
      %p211 = por %p209, %p210
      %s212 = ssub.s32 %s31, %s43
      %p213 = scmp.eq.s32.totalorder %s212, 0
      %s215 = sadd.s32 %s214, 1
      %s216 = scalar_select %p213, %s214, %s215
      %p219 = pneg %p213
      %p220 = scmp.eq.s32.totalorder %s24, 3
      %p221 = por %p219, %p220
      %p222 = scmp.ne.s32.totalorder %s214, %s217
      %p223 = scmp.eq.s32.totalorder %s24, 0
      %p224 = por %p222, %p223
      %p225 = scmp.ne.s32.totalorder %s214, %s217
      %p226 = scmp.eq.s32.totalorder %s29, 3
      %p227 = por %p225, %p226
      %p228 = scmp.ne.s32.totalorder %s217, %s218
      %p229 = scmp.eq.s32.totalorder %s29, 0
      %p230 = por %p228, %p229
      %p231 = scmp.ne.s32.totalorder %s217, %s218
      %p232 = scmp.eq.s32.totalorder %s30, 3
      %p233 = por %p231, %p232
      %p235 = scmp.ne.s32.totalorder %s218, %s234
      %p236 = scmp.eq.s32.totalorder %s30, 0
      %p237 = por %p235, %p236
      %s239 = sadd.s32 %s238, 1
      %p242 = scmp.eq.s32.totalorder %s24, 3
      %p243 = scmp.ne.s32.totalorder %s238, %s240
      %p244 = scmp.eq.s32.totalorder %s24, 0
      %p245 = por %p243, %p244
      %p246 = scmp.ne.s32.totalorder %s238, %s240
      %p247 = scmp.eq.s32.totalorder %s29, 3
      %p248 = por %p246, %p247
      %p249 = scmp.ne.s32.totalorder %s240, %s241
      %p250 = scmp.eq.s32.totalorder %s29, 0
      %p251 = por %p249, %p250
      %p252 = scmp.ne.s32.totalorder %s240, %s241
      %p253 = scmp.eq.s32.totalorder %s30, 3
      %p254 = por %p252, %p253
      %p256 = scmp.ne.s32.totalorder %s241, %s255
      %p257 = scmp.eq.s32.totalorder %s30, 0
      %p258 = por %p256, %p257
      %s259 = ssub.s32 %s31, %s43
      %s260 = ssub.s32 %s32, %s39
      %s261 = sor.u32 %s259, %s260
      %p262 = scmp.eq.s32.totalorder %s261, 0
      %s264 = sadd.s32 %s263, 1
      %s265 = scalar_select %p262, %s263, %s264
      %p268 = pneg %p262
      %p269 = scmp.eq.s32.totalorder %s24, 3
      %p270 = por %p268, %p269
      %p271 = scmp.ne.s32.totalorder %s263, %s266
      %p272 = scmp.eq.s32.totalorder %s24, 0
      %p273 = por %p271, %p272
      %p274 = scmp.ne.s32.totalorder %s263, %s266
      %p275 = scmp.eq.s32.totalorder %s29, 3
      %p276 = por %p274, %p275
      %p277 = scmp.ne.s32.totalorder %s266, %s267
      %p278 = scmp.eq.s32.totalorder %s29, 0
      %p279 = por %p277, %p278
      %p280 = scmp.ne.s32.totalorder %s266, %s267
      %p281 = scmp.eq.s32.totalorder %s30, 3
      %p282 = por %p280, %p281
      %p284 = scmp.ne.s32.totalorder %s267, %s283
      %p285 = scmp.eq.s32.totalorder %s30, 0
      %p286 = por %p284, %p285
      %p287 = scmp.le.s32.totalorder 1, %s24
      %p288 = scmp.lt.s32.totalorder %s24, 5
      %p289 = pnand %p287, %p288
      %p290 = pneg %p289
      // Predicated region
      $region9: #{tpu_custom_call.1} parent=5 // pred_check
        _
      $region10: #{tpu_custom_call.1} parent=5 // pred_check_branch
        %292 = sbr.rel (%p289) target = $region12
      $region11: #{tpu_custom_call.1} parent=5 // pred_region
        %s293 = ssub.s32 %s24, 1
        // Predicated region
        $region13: #{tpu_custom_call.1} parent=11 // pred_check
          %p294 = pneg %p57
        $region14: #{tpu_custom_call.1} parent=11 // pred_check_branch
          %296 = sbr.rel (%p294) target = $region16
        $region15: #{tpu_custom_call.1} parent=11 // pred_region
          %298 = vsyncadd [#allocation7], 0
          %s299 = sshll.u32 %s1, 4
          %s300 = int_to_ptr.hbm [resolvable:$true] %s299
          %s301 = sshll.u32 [#allocation6], 4
          %s302 = int_to_ptr.vmem [resolvable:$true] %s301
          %307 = dma.hbm_to_vmem [thread:$0]  %s300, 1024, %s302, [#allocation7], 64, 64, 4
        $region16: #{tpu_custom_call.1} parent=11 // pred_fallthru
          _
        // Predicated region
        $region17: #{tpu_custom_call.1} parent=11 // pred_check
          %p308 = pneg %p78
        $region18: #{tpu_custom_call.1} parent=11 // pred_check_branch
          %310 = sbr.rel (%p308) target = $region20
        $region19: #{tpu_custom_call.1} parent=11 // pred_region
          _
        $region20: #{tpu_custom_call.1} parent=11 // pred_fallthru
          _
        // Predicated region
        $region21: #{tpu_custom_call.1} parent=11 // pred_check
          %p311 = pneg %p99
        $region22: #{tpu_custom_call.1} parent=11 // pred_check_branch
          %313 = sbr.rel (%p311) target = $region24
        $region23: #{tpu_custom_call.1} parent=11 // pred_region
          %315 = vsyncadd [#allocation10], 0
          %s316 = sshll.u32 %s3, 4
          %s317 = int_to_ptr.hbm [resolvable:$true] %s316
          %s318 = sshll.u32 [#allocation9], 4
          %s319 = int_to_ptr.vmem [resolvable:$true] %s318
          %324 = dma.hbm_to_vmem [thread:$0]  %s317, 9216, %s319, [#allocation10], 64, 64, 4
        $region24: #{tpu_custom_call.1} parent=11 // pred_fallthru
          _
        // Predicated region
        $region25: #{tpu_custom_call.1} parent=11 // pred_check
          %p325 = pneg %p120
        $region26: #{tpu_custom_call.1} parent=11 // pred_check_branch
          %327 = sbr.rel (%p325) target = $region28
        $region27: #{tpu_custom_call.1} parent=11 // pred_region
          %329 = vsyncadd [#allocation10], 0
          %s331 = sshll.u32 %s4, 4
          %s332 = int_to_ptr.hbm [resolvable:$true] %s331
          %s333 = sshll.u32 [#allocation11], 4
          %s334 = int_to_ptr.vmem [resolvable:$true] %s333
          %336 = dma.hbm_to_vmem [thread:$0]  %s332, 16, %s334, [#allocation10]
        $region28: #{tpu_custom_call.1} parent=11 // pred_fallthru
          _
        // Predicated region
        $region29: #{tpu_custom_call.1} parent=11 // pred_check
          %p337 = pneg %p141
        $region30: #{tpu_custom_call.1} parent=11 // pred_check_branch
          %339 = sbr.rel (%p337) target = $region32
        $region31: #{tpu_custom_call.1} parent=11 // pred_region
          %341 = vsyncadd [#allocation13], 0
          %s342 = sshll.u32 %s5, 4
          %s343 = int_to_ptr.hbm [resolvable:$true] %s342
          %s344 = sshll.u32 [#allocation12], 4
          %s345 = int_to_ptr.vmem [resolvable:$true] %s344
          %350 = dma.hbm_to_vmem [thread:$0]  %s343, 9216, %s345, [#allocation13], 64, 64, 4
        $region32: #{tpu_custom_call.1} parent=11 // pred_fallthru
          _
        // Predicated region
        $region33: #{tpu_custom_call.1} parent=11 // pred_check
          %p351 = pneg %p162
        $region34: #{tpu_custom_call.1} parent=11 // pred_check_branch
          %353 = sbr.rel (%p351) target = $region36
        $region35: #{tpu_custom_call.1} parent=11 // pred_region
          _
        $region36: #{tpu_custom_call.1} parent=11 // pred_fallthru
          _
        // Predicated region
        $region37: #{tpu_custom_call.1} parent=11 // pred_check
          %p354 = pneg %p183
        $region38: #{tpu_custom_call.1} parent=11 // pred_check_branch
          %356 = sbr.rel (%p354) target = $region40
        $region39: #{tpu_custom_call.1} parent=11 // pred_region
          %358 = vsyncadd [#allocation13], 0
          %s359 = sshll.u32 %s7, 4
          %s360 = int_to_ptr.hbm [resolvable:$true] %s359
          %s361 = sshll.u32 [#allocation14], 4
          %s362 = int_to_ptr.vmem [resolvable:$true] %s361
          %367 = dma.hbm_to_vmem [thread:$0]  %s360, 9216, %s362, [#allocation13], 64, 64, 4
        $region40: #{tpu_custom_call.1} parent=11 // pred_fallthru
          _
        // Predicated region
        $region41: #{tpu_custom_call.1} parent=11 // pred_check
          %p368 = pneg %p204
        $region42: #{tpu_custom_call.1} parent=11 // pred_check_branch
          %370 = sbr.rel (%p368) target = $region44
        $region43: #{tpu_custom_call.1} parent=11 // pred_region
          _
        $region44: #{tpu_custom_call.1} parent=11 // pred_fallthru
          _
        // Predicated region
        $region45: #{tpu_custom_call.1} parent=11 // pred_check
          %p371 = pneg %p251
        $region46: #{tpu_custom_call.1} parent=11 // pred_check_branch
          %373 = sbr.rel (%p371) target = $region48
        $region47: #{tpu_custom_call.1} parent=11 // pred_region
          %375 = vsyncadd [#allocation16], 0
          %s376 = sshll.u32 %s10, 4
          %s377 = int_to_ptr.hbm [resolvable:$true] %s376
          %s378 = sshll.u32 [#allocation15], 4
          %s379 = int_to_ptr.vmem [resolvable:$true] %s378
          %384 = dma.hbm_to_vmem [thread:$0]  %s377, 4096, %s379, [#allocation16], 64, 64, 4
        $region48: #{tpu_custom_call.1} parent=11 // pred_fallthru
          _
      $region12: #{tpu_custom_call.1} parent=5 // pred_fallthru
        _
      %p385 = scmp.lt.s32.totalorder %s24, 4
      // Predicated region
      $region49: #{tpu_custom_call.1} parent=5 // pred_check
        %p386 = pneg %p385
      $region50: #{tpu_custom_call.1} parent=5 // pred_check_branch
        %388 = sbr.rel (%p386) target = $region52
      $region51: #{tpu_custom_call.1} parent=5 // pred_region
        // Predicated region
        $region53: #{tpu_custom_call.1} parent=51 // pred_check
          %p389 = pneg %p224
        $region54: #{tpu_custom_call.1} parent=51 // pred_check_branch
          %391 = sbr.rel (%p389) target = $region56
        $region55: #{tpu_custom_call.1} parent=51 // pred_region
          %p392 = scmp.lt.s32.totalorder %s31, 1
          %s393 = scalar_select %p392, %s31, 1
          %s394 = scalar_lea.vmem %s9, %s393
        $region56: #{tpu_custom_call.1} parent=51 // pred_fallthru
          _
      $region52: #{tpu_custom_call.1} parent=5 // pred_fallthru
        _
      %p395 = scmp.le.s32.totalorder 1, %s24
      %p396 = scmp.lt.s32.totalorder %s24, 5
      %p397 = pnand %p395, %p396
      %p398 = pneg %p397
      // Predicated region
      $region57: #{tpu_custom_call.1} parent=5 // pred_check
        _
      $region58: #{tpu_custom_call.1} parent=5 // pred_check_branch
        %400 = sbr.rel (%p397) target = $region60
      $region59: #{tpu_custom_call.1} parent=5 // pred_region
        %s401 = ssub.s32 %s24, 1
        // Predicated region
        $region61: #{tpu_custom_call.1} parent=59 // pred_check
          %p402 = pneg %p57
        $region62: #{tpu_custom_call.1} parent=59 // pred_check_branch
          %404 = sbr.rel (%p402) target = $region64
        $region63: #{tpu_custom_call.1} parent=59 // pred_region
          %406 = dma.done [#allocation7], 1024
        $region64: #{tpu_custom_call.1} parent=59 // pred_fallthru
          _
        // Predicated region
        $region65: #{tpu_custom_call.1} parent=59 // pred_check
          %p407 = pneg %p99
        $region66: #{tpu_custom_call.1} parent=59 // pred_check_branch
          %409 = sbr.rel (%p407) target = $region68
        $region67: #{tpu_custom_call.1} parent=59 // pred_region
          %411 = dma.done [#allocation10], 9216
        $region68: #{tpu_custom_call.1} parent=59 // pred_fallthru
          _
        // Predicated region
        $region69: #{tpu_custom_call.1} parent=59 // pred_check
          %p412 = pneg %p120
        $region70: #{tpu_custom_call.1} parent=59 // pred_check_branch
          %414 = sbr.rel (%p412) target = $region72
        $region71: #{tpu_custom_call.1} parent=59 // pred_region
          %416 = dma.done [#allocation10], 16
        $region72: #{tpu_custom_call.1} parent=59 // pred_fallthru
          _
        // Predicated region
        $region73: #{tpu_custom_call.1} parent=59 // pred_check
          %p417 = pneg %p141
        $region74: #{tpu_custom_call.1} parent=59 // pred_check_branch
          %419 = sbr.rel (%p417) target = $region76
        $region75: #{tpu_custom_call.1} parent=59 // pred_region
          %421 = dma.done [#allocation13], 9216
        $region76: #{tpu_custom_call.1} parent=59 // pred_fallthru
          _
        // Predicated region
        $region77: #{tpu_custom_call.1} parent=59 // pred_check
          %p422 = pneg %p183
        $region78: #{tpu_custom_call.1} parent=59 // pred_check_branch
          %424 = sbr.rel (%p422) target = $region80
        $region79: #{tpu_custom_call.1} parent=59 // pred_region
          %426 = dma.done [#allocation13], 9216
        $region80: #{tpu_custom_call.1} parent=59 // pred_fallthru
          _
        // Predicated region
        $region81: #{tpu_custom_call.1} parent=59 // pred_check
          %p427 = pneg %p251
        $region82: #{tpu_custom_call.1} parent=59 // pred_check_branch
          %429 = sbr.rel (%p427) target = $region84
        $region83: #{tpu_custom_call.1} parent=59 // pred_region
          %431 = dma.done [#allocation16], 4096
        $region84: #{tpu_custom_call.1} parent=59 // pred_fallthru
          _
        %p432 = pneg %p57
        %p433 = pneg %p54
        %p434 = pneg %p78
        %p435 = pneg %p75
        %p436 = pneg %p99
        %p437 = pneg %p96
        %p438 = pneg %p120
        %p439 = pneg %p117
        %p440 = pneg %p141
        %p441 = pneg %p138
        %p442 = pneg %p162
        %p443 = pneg %p159
        %p444 = pneg %p183
        %p445 = pneg %p180
        %p446 = pneg %p204
        %p447 = pneg %p201
        %p448 = scmp.lt.s32.totalorder %s33, 1
        %s449 = scalar_select %p448, %s33, 1
        %s450 = scalar_lea.vmem %s9, %s449
        %p451 = pneg %p230
        %p452 = pneg %p227
        %p453 = pneg %p251
        %p454 = pneg %p248
        %p455 = pneg %p279
        %p456 = pneg %p276
        %s457 = sand.u32 %s266, 1
        %s458 = scalar_lea.sflag [#allocation8], %s457
        %s459 = sand.u32 %s266, 1
        %s460 = smul.addr %s459, 64
        %s461 = scalar_lea.vmem [#allocation17], %s460
        %p462 = scmp.lt.s32.totalorder %s33, 1
        %s463 = scalar_select %p462, %s33, 1
        %s464 = scalar_lea.vmem %s9, %s463
        %s465 = smul.u32 16, %s34
        %p466 = scmp.eq.s32.totalorder %s34, 0
        // Predicated region
        $region85: #{tpu_custom_call.1} parent=59 // pred_check
          %p467 = pneg %p466
        $region86: #{tpu_custom_call.1} parent=59 // pred_check_branch
          %469 = sbr.rel (%p467) target = $region88
        $region87: #{tpu_custom_call.1} parent=59 // pred_region
          %s470 = smul.u32 %s33, 108
          %s471 = smul.addr %s470, 4
          %s472 = scalar_lea.hbm %s0, %s471
          // Predicated region
          $region89: #{tpu_custom_call.1} parent=87 // pred_check
            _
          $region90: #{tpu_custom_call.1} parent=87 // pred_check_branch
            %474 = sbr.rel target = $region92
          $region91: #{tpu_custom_call.1} parent=87 // pred_region
            %475 = sst [smem:[#allocation20]] [#allocation19]
            %476 = sst [smem:[#allocation21]] [#allocation18]
          $region92: #{tpu_custom_call.1} parent=87 // pred_fallthru
            _
          %478 = shalt.err (0)
          %s480 = sshll.u32 %s472, 4
          %s481 = int_to_ptr.hbm [resolvable:$true] %s480
          %s482 = sshll.u32 [#allocation2], 4
          %s483 = int_to_ptr.vmem [resolvable:$true] %s482
          %485 = dma.hbm_to_vmem [thread:$0]  %s481, 5888, %s483, [#allocation3]
        $region88: #{tpu_custom_call.1} parent=59 // pred_fallthru
          _
        %v486 = vlaneseq
        %v487 = vshrl.u32 %v486, 7
        %v488 = vadd.s32 %v487, 8
        %v489 = vadd.s32 %v487, 16
        %v490 = vadd.s32 %v487, 24
        %v491 = vadd.s32 %v487, 32
        %v492 = vadd.s32 %v487, 40
        %v493 = vadd.s32 %v487, 48
        %v494 = vadd.s32 %v487, 56
        %v495 = vadd.s32 %v487, 64
        %v496 = vadd.s32 %v487, 72
        %v497 = vadd.s32 %v487, 80
        %v498 = vadd.s32 %v487, 88
        %v499 = vadd.s32 %v487, 96
        %v500 = vadd.s32 %v487, 104
        %v501 = vadd.s32 %v487, 112
        %v502 = vadd.s32 %v487, 120
        %vm503 = vcmp.lt.s32.totalorder %v487, 0
        %v504 = vsub.s32 0, %v487
        %v505 = vsel %vm503, %v504, %v487
        %v506 = vshrl.u32 %v505, 4
        %v507 = vand.u32 %v505, 15
        %v508 = vsub.s32 0, %v507
        %v509 = vsel %vm503, %v508, %v507
        %vm510 = vcmp.lt.s32.totalorder %v488, 0
        %v511 = vsub.s32 0, %v488
        %v512 = vsel %vm510, %v511, %v488
        %v513 = vshrl.u32 %v512, 4
        %v514 = vand.u32 %v512, 15
        %v515 = vsub.s32 0, %v514
        %v516 = vsel %vm510, %v515, %v514
        %vm517 = vcmp.lt.s32.totalorder %v489, 0
        %v518 = vsub.s32 0, %v489
        %v519 = vsel %vm517, %v518, %v489
        %v520 = vshrl.u32 %v519, 4
        %v521 = vand.u32 %v519, 15
        %v522 = vsub.s32 0, %v521
        %v523 = vsel %vm517, %v522, %v521
        %vm524 = vcmp.lt.s32.totalorder %v490, 0
        %v525 = vsub.s32 0, %v490
        %v526 = vsel %vm524, %v525, %v490
        %v527 = vshrl.u32 %v526, 4
        %v528 = vand.u32 %v526, 15
        %v529 = vsub.s32 0, %v528
        %v530 = vsel %vm524, %v529, %v528
        %vm531 = vcmp.lt.s32.totalorder %v491, 0
        %v532 = vsub.s32 0, %v491
        %v533 = vsel %vm531, %v532, %v491
        %v534 = vshrl.u32 %v533, 4
        %v535 = vand.u32 %v533, 15
        %v536 = vsub.s32 0, %v535
        %v537 = vsel %vm531, %v536, %v535
        %vm538 = vcmp.lt.s32.totalorder %v492, 0
        %v539 = vsub.s32 0, %v492
        %v540 = vsel %vm538, %v539, %v492
        %v541 = vshrl.u32 %v540, 4
        %v542 = vand.u32 %v540, 15
        %v543 = vsub.s32 0, %v542
        %v544 = vsel %vm538, %v543, %v542
        %vm545 = vcmp.lt.s32.totalorder %v493, 0
        %v546 = vsub.s32 0, %v493
        %v547 = vsel %vm545, %v546, %v493
        %v548 = vshrl.u32 %v547, 4
        %v549 = vand.u32 %v547, 15
        %v550 = vsub.s32 0, %v549
        %v551 = vsel %vm545, %v550, %v549
        %vm552 = vcmp.lt.s32.totalorder %v494, 0
        %v553 = vsub.s32 0, %v494
        %v554 = vsel %vm552, %v553, %v494
        %v555 = vshrl.u32 %v554, 4
        %v556 = vand.u32 %v554, 15
        %v557 = vsub.s32 0, %v556
        %v558 = vsel %vm552, %v557, %v556
        %vm559 = vcmp.lt.s32.totalorder %v495, 0
        %v560 = vsub.s32 0, %v495
        %v561 = vsel %vm559, %v560, %v495
        %v562 = vshrl.u32 %v561, 4
        %v563 = vand.u32 %v561, 15
        %v564 = vsub.s32 0, %v563
        %v565 = vsel %vm559, %v564, %v563
        %vm566 = vcmp.lt.s32.totalorder %v496, 0
        %v567 = vsub.s32 0, %v496
        %v568 = vsel %vm566, %v567, %v496
        %v569 = vshrl.u32 %v568, 4
        %v570 = vand.u32 %v568, 15
        %v571 = vsub.s32 0, %v570
        %v572 = vsel %vm566, %v571, %v570
        %vm573 = vcmp.lt.s32.totalorder %v497, 0
        %v574 = vsub.s32 0, %v497
        %v575 = vsel %vm573, %v574, %v497
        %v576 = vshrl.u32 %v575, 4
        %v577 = vand.u32 %v575, 15
        %v578 = vsub.s32 0, %v577
        %v579 = vsel %vm573, %v578, %v577
        %vm580 = vcmp.lt.s32.totalorder %v498, 0
        %v581 = vsub.s32 0, %v498
        %v582 = vsel %vm580, %v581, %v498
        %v583 = vshrl.u32 %v582, 4
        %v584 = vand.u32 %v582, 15
        %v585 = vsub.s32 0, %v584
        %v586 = vsel %vm580, %v585, %v584
        %vm587 = vcmp.lt.s32.totalorder %v499, 0
        %v588 = vsub.s32 0, %v499
        %v589 = vsel %vm587, %v588, %v499
        %v590 = vshrl.u32 %v589, 4
        %v591 = vand.u32 %v589, 15
        %v592 = vsub.s32 0, %v591
        %v593 = vsel %vm587, %v592, %v591
        %vm594 = vcmp.lt.s32.totalorder %v500, 0
        %v595 = vsub.s32 0, %v500
        %v596 = vsel %vm594, %v595, %v500
        %v597 = vshrl.u32 %v596, 4
        %v598 = vand.u32 %v596, 15
        %v599 = vsub.s32 0, %v598
        %v600 = vsel %vm594, %v599, %v598
        %vm601 = vcmp.lt.s32.totalorder %v501, 0
        %v602 = vsub.s32 0, %v501
        %v603 = vsel %vm601, %v602, %v501
        %v604 = vshrl.u32 %v603, 4
        %v605 = vand.u32 %v603, 15
        %v606 = vsub.s32 0, %v605
        %v607 = vsel %vm601, %v606, %v605
        %vm608 = vcmp.lt.s32.totalorder %v502, 0
        %v609 = vsub.s32 0, %v502
        %v610 = vsel %vm608, %v609, %v502
        %v611 = vshrl.u32 %v610, 4
        %v612 = vand.u32 %v610, 15
        %v613 = vsub.s32 0, %v612
        %v614 = vsel %vm608, %v613, %v612
        %vm615 = vcmp.ne.s32.totalorder %v509, 0
        %vm616 = vcmp.ne.s32.totalorder %v516, 0
        %vm617 = vcmp.ne.s32.totalorder %v523, 0
        %vm618 = vcmp.ne.s32.totalorder %v530, 0
        %vm619 = vcmp.ne.s32.totalorder %v537, 0
        %vm620 = vcmp.ne.s32.totalorder %v544, 0
        %vm621 = vcmp.ne.s32.totalorder %v551, 0
        %vm622 = vcmp.ne.s32.totalorder %v558, 0
        %vm623 = vcmp.ne.s32.totalorder %v565, 0
        %vm624 = vcmp.ne.s32.totalorder %v572, 0
        %vm625 = vcmp.ne.s32.totalorder %v579, 0
        %vm626 = vcmp.ne.s32.totalorder %v586, 0
        %vm627 = vcmp.ne.s32.totalorder %v593, 0
        %vm628 = vcmp.ne.s32.totalorder %v600, 0
        %vm629 = vcmp.ne.s32.totalorder %v607, 0
        %vm630 = vcmp.ne.s32.totalorder %v614, 0
        %vm631 = vcmp.lt.s32.totalorder %v509, 0
        %vm632 = vcmp.lt.s32.totalorder %v516, 0
        %vm633 = vcmp.lt.s32.totalorder %v523, 0
        %vm634 = vcmp.lt.s32.totalorder %v530, 0
        %vm635 = vcmp.lt.s32.totalorder %v537, 0
        %vm636 = vcmp.lt.s32.totalorder %v544, 0
        %vm637 = vcmp.lt.s32.totalorder %v551, 0
        %vm638 = vcmp.lt.s32.totalorder %v558, 0
        %vm639 = vcmp.lt.s32.totalorder %v565, 0
        %vm640 = vcmp.lt.s32.totalorder %v572, 0
        %vm641 = vcmp.lt.s32.totalorder %v579, 0
        %vm642 = vcmp.lt.s32.totalorder %v586, 0
        %vm643 = vcmp.lt.s32.totalorder %v593, 0
        %vm644 = vcmp.lt.s32.totalorder %v600, 0
        %vm645 = vcmp.lt.s32.totalorder %v607, 0
        %vm646 = vcmp.lt.s32.totalorder %v614, 0
        %vm647 = vmand %vm631, %vm615
        %vm648 = vmand %vm632, %vm616
        %vm649 = vmand %vm633, %vm617
        %vm650 = vmand %vm634, %vm618
        %vm651 = vmand %vm635, %vm619
        %vm652 = vmand %vm636, %vm620
        %vm653 = vmand %vm637, %vm621
        %vm654 = vmand %vm638, %vm622
        %vm655 = vmand %vm639, %vm623
        %vm656 = vmand %vm640, %vm624
        %vm657 = vmand %vm641, %vm625
        %vm658 = vmand %vm642, %vm626
        %vm659 = vmand %vm643, %vm627
        %vm660 = vmand %vm644, %vm628
        %vm661 = vmand %vm645, %vm629
        %vm662 = vmand %vm646, %vm630
        %v663 = vadd.s32 %v509, 16
        %v664 = vadd.s32 %v516, 16
        %v665 = vadd.s32 %v523, 16
        %v666 = vadd.s32 %v530, 16
        %v667 = vadd.s32 %v537, 16
        %v668 = vadd.s32 %v544, 16
        %v669 = vadd.s32 %v551, 16
        %v670 = vadd.s32 %v558, 16
        %v671 = vadd.s32 %v565, 16
        %v672 = vadd.s32 %v572, 16
        %v673 = vadd.s32 %v579, 16
        %v674 = vadd.s32 %v586, 16
        %v675 = vadd.s32 %v593, 16
        %v676 = vadd.s32 %v600, 16
        %v677 = vadd.s32 %v607, 16
        %v678 = vadd.s32 %v614, 16
        %v679 = vsel %vm647, %v663, %v509
        %v680 = vsel %vm648, %v664, %v516
        %v681 = vsel %vm649, %v665, %v523
        %v682 = vsel %vm650, %v666, %v530
        %v683 = vsel %vm651, %v667, %v537
        %v684 = vsel %vm652, %v668, %v544
        %v685 = vsel %vm653, %v669, %v551
        %v686 = vsel %vm654, %v670, %v558
        %v687 = vsel %vm655, %v671, %v565
        %v688 = vsel %vm656, %v672, %v572
        %v689 = vsel %vm657, %v673, %v579
        %v690 = vsel %vm658, %v674, %v586
        %v691 = vsel %vm659, %v675, %v593
        %v692 = vsel %vm660, %v676, %v600
        %v693 = vsel %vm661, %v677, %v607
        %v694 = vsel %vm662, %v678, %v614
        %v695 = vadd.s32 %v679, 4294967290
        %v696 = vadd.s32 %v680, 4294967290
        %v697 = vadd.s32 %v681, 4294967290
        %v698 = vadd.s32 %v682, 4294967290
        %v699 = vadd.s32 %v683, 4294967290
        %v700 = vadd.s32 %v684, 4294967290
        %v701 = vadd.s32 %v685, 4294967290
        %v702 = vadd.s32 %v686, 4294967290
        %v703 = vadd.s32 %v687, 4294967290
        %v704 = vadd.s32 %v688, 4294967290
        %v705 = vadd.s32 %v689, 4294967290
        %v706 = vadd.s32 %v690, 4294967290
        %v707 = vadd.s32 %v691, 4294967290
        %v708 = vadd.s32 %v692, 4294967290
        %v709 = vadd.s32 %v693, 4294967290
        %v710 = vadd.s32 %v694, 4294967290
        %vm711 = vcmp.ge.s32.totalorder %v695, 0
        %vm712 = vcmp.ge.s32.totalorder %v696, 0
        %vm713 = vcmp.ge.s32.totalorder %v697, 0
        %vm714 = vcmp.ge.s32.totalorder %v698, 0
        %vm715 = vcmp.ge.s32.totalorder %v699, 0
        %vm716 = vcmp.ge.s32.totalorder %v700, 0
        %vm717 = vcmp.ge.s32.totalorder %v701, 0
        %vm718 = vcmp.ge.s32.totalorder %v702, 0
        %vm719 = vcmp.ge.s32.totalorder %v703, 0
        %vm720 = vcmp.ge.s32.totalorder %v704, 0
        %vm721 = vcmp.ge.s32.totalorder %v705, 0
        %vm722 = vcmp.ge.s32.totalorder %v706, 0
        %vm723 = vcmp.ge.s32.totalorder %v707, 0
        %vm724 = vcmp.ge.s32.totalorder %v708, 0
        %vm725 = vcmp.ge.s32.totalorder %v709, 0
        %vm726 = vcmp.ge.s32.totalorder %v710, 0
        %vm727 = vcmp.lt.s32.totalorder %v695, 16
        %vm728 = vcmp.lt.s32.totalorder %v696, 16
        %vm729 = vcmp.lt.s32.totalorder %v697, 16
        %vm730 = vcmp.lt.s32.totalorder %v698, 16
        %vm731 = vcmp.lt.s32.totalorder %v699, 16
        %vm732 = vcmp.lt.s32.totalorder %v700, 16
        %vm733 = vcmp.lt.s32.totalorder %v701, 16
        %vm734 = vcmp.lt.s32.totalorder %v702, 16
        %vm735 = vcmp.lt.s32.totalorder %v703, 16
        %vm736 = vcmp.lt.s32.totalorder %v704, 16
        %vm737 = vcmp.lt.s32.totalorder %v705, 16
        %vm738 = vcmp.lt.s32.totalorder %v706, 16
        %vm739 = vcmp.lt.s32.totalorder %v707, 16
        %vm740 = vcmp.lt.s32.totalorder %v708, 16
        %vm741 = vcmp.lt.s32.totalorder %v709, 16
        %vm742 = vcmp.lt.s32.totalorder %v710, 16
        %vm743 = vmand %vm711, %vm727
        %vm744 = vmand %vm712, %vm728
        %vm745 = vmand %vm713, %vm729
        %vm746 = vmand %vm714, %vm730
        %vm747 = vmand %vm715, %vm731
        %vm748 = vmand %vm716, %vm732
        %vm749 = vmand %vm717, %vm733
        %vm750 = vmand %vm718, %vm734
        %vm751 = vmand %vm719, %vm735
        %vm752 = vmand %vm720, %vm736
        %vm753 = vmand %vm721, %vm737
        %vm754 = vmand %vm722, %vm738
        %vm755 = vmand %vm723, %vm739
        %vm756 = vmand %vm724, %vm740
        %vm757 = vmand %vm725, %vm741
        %vm758 = vmand %vm726, %vm742
        %v759 = vadd.s32 %v679, 6
        %v760 = vadd.s32 %v680, 6
        %v761 = vadd.s32 %v681, 6
        %v762 = vadd.s32 %v682, 6
        %v763 = vadd.s32 %v683, 6
        %v764 = vadd.s32 %v684, 6
        %v765 = vadd.s32 %v685, 6
        %v766 = vadd.s32 %v686, 6
        %v767 = vadd.s32 %v687, 6
        %v768 = vadd.s32 %v688, 6
        %v769 = vadd.s32 %v689, 6
        %v770 = vadd.s32 %v690, 6
        %v771 = vadd.s32 %v691, 6
        %v772 = vadd.s32 %v692, 6
        %v773 = vadd.s32 %v693, 6
        %v774 = vadd.s32 %v694, 6
        %vm775 = vcmp.ge.s32.totalorder %v759, 0
        %vm776 = vcmp.ge.s32.totalorder %v760, 0
        %vm777 = vcmp.ge.s32.totalorder %v761, 0
        %vm778 = vcmp.ge.s32.totalorder %v762, 0
        %vm779 = vcmp.ge.s32.totalorder %v763, 0
        %vm780 = vcmp.ge.s32.totalorder %v764, 0
        %vm781 = vcmp.ge.s32.totalorder %v765, 0
        %vm782 = vcmp.ge.s32.totalorder %v766, 0
        %vm783 = vcmp.ge.s32.totalorder %v767, 0
        %vm784 = vcmp.ge.s32.totalorder %v768, 0
        %vm785 = vcmp.ge.s32.totalorder %v769, 0
        %vm786 = vcmp.ge.s32.totalorder %v770, 0
        %vm787 = vcmp.ge.s32.totalorder %v771, 0
        %vm788 = vcmp.ge.s32.totalorder %v772, 0
        %vm789 = vcmp.ge.s32.totalorder %v773, 0
        %vm790 = vcmp.ge.s32.totalorder %v774, 0
        %vm791 = vcmp.lt.s32.totalorder %v759, 16
        %vm792 = vcmp.lt.s32.totalorder %v760, 16
        %vm793 = vcmp.lt.s32.totalorder %v761, 16
        %vm794 = vcmp.lt.s32.totalorder %v762, 16
        %vm795 = vcmp.lt.s32.totalorder %v763, 16
        %vm796 = vcmp.lt.s32.totalorder %v764, 16
        %vm797 = vcmp.lt.s32.totalorder %v765, 16
        %vm798 = vcmp.lt.s32.totalorder %v766, 16
        %vm799 = vcmp.lt.s32.totalorder %v767, 16
        %vm800 = vcmp.lt.s32.totalorder %v768, 16
        %vm801 = vcmp.lt.s32.totalorder %v769, 16
        %vm802 = vcmp.lt.s32.totalorder %v770, 16
        %vm803 = vcmp.lt.s32.totalorder %v771, 16
        %vm804 = vcmp.lt.s32.totalorder %v772, 16
        %vm805 = vcmp.lt.s32.totalorder %v773, 16
        %vm806 = vcmp.lt.s32.totalorder %v774, 16
        %vm807 = vmand %vm775, %vm791
        %vm808 = vmand %vm776, %vm792
        %vm809 = vmand %vm777, %vm793
        %vm810 = vmand %vm778, %vm794
        %vm811 = vmand %vm779, %vm795
        %vm812 = vmand %vm780, %vm796
        %vm813 = vmand %vm781, %vm797
        %vm814 = vmand %vm782, %vm798
        %vm815 = vmand %vm783, %vm799
        %vm816 = vmand %vm784, %vm800
        %vm817 = vmand %vm785, %vm801
        %vm818 = vmand %vm786, %vm802
        %vm819 = vmand %vm787, %vm803
        %vm820 = vmand %vm788, %vm804
        %vm821 = vmand %vm789, %vm805
        %vm822 = vmand %vm790, %vm806
        %v823 = vadd.s32 %v679, 4294967284
        %v824 = vadd.s32 %v680, 4294967284
        %v825 = vadd.s32 %v681, 4294967284
        %v826 = vadd.s32 %v682, 4294967284
        %v827 = vadd.s32 %v683, 4294967284
        %v828 = vadd.s32 %v684, 4294967284
        %v829 = vadd.s32 %v685, 4294967284
        %v830 = vadd.s32 %v686, 4294967284
        %v831 = vadd.s32 %v687, 4294967284
        %v832 = vadd.s32 %v688, 4294967284
        %v833 = vadd.s32 %v689, 4294967284
        %v834 = vadd.s32 %v690, 4294967284
        %v835 = vadd.s32 %v691, 4294967284
        %v836 = vadd.s32 %v692, 4294967284
        %v837 = vadd.s32 %v693, 4294967284
        %v838 = vadd.s32 %v694, 4294967284
        %vm839 = vcmp.ge.s32.totalorder %v823, 0
        %vm840 = vcmp.ge.s32.totalorder %v824, 0
        %vm841 = vcmp.ge.s32.totalorder %v825, 0
        %vm842 = vcmp.ge.s32.totalorder %v826, 0
        %vm843 = vcmp.ge.s32.totalorder %v827, 0
        %vm844 = vcmp.ge.s32.totalorder %v828, 0
        %vm845 = vcmp.ge.s32.totalorder %v829, 0
        %vm846 = vcmp.ge.s32.totalorder %v830, 0
        %vm847 = vcmp.ge.s32.totalorder %v831, 0
        %vm848 = vcmp.ge.s32.totalorder %v832, 0
        %vm849 = vcmp.ge.s32.totalorder %v833, 0
        %vm850 = vcmp.ge.s32.totalorder %v834, 0
        %vm851 = vcmp.ge.s32.totalorder %v835, 0
        %vm852 = vcmp.ge.s32.totalorder %v836, 0
        %vm853 = vcmp.ge.s32.totalorder %v837, 0
        %vm854 = vcmp.ge.s32.totalorder %v838, 0
        %vm855 = vcmp.lt.s32.totalorder %v823, 16
        %vm856 = vcmp.lt.s32.totalorder %v824, 16
        %vm857 = vcmp.lt.s32.totalorder %v825, 16
        %vm858 = vcmp.lt.s32.totalorder %v826, 16
        %vm859 = vcmp.lt.s32.totalorder %v827, 16
        %vm860 = vcmp.lt.s32.totalorder %v828, 16
        %vm861 = vcmp.lt.s32.totalorder %v829, 16
        %vm862 = vcmp.lt.s32.totalorder %v830, 16
        %vm863 = vcmp.lt.s32.totalorder %v831, 16
        %vm864 = vcmp.lt.s32.totalorder %v832, 16
        %vm865 = vcmp.lt.s32.totalorder %v833, 16
        %vm866 = vcmp.lt.s32.totalorder %v834, 16
        %vm867 = vcmp.lt.s32.totalorder %v835, 16
        %vm868 = vcmp.lt.s32.totalorder %v836, 16
        %vm869 = vcmp.lt.s32.totalorder %v837, 16
        %vm870 = vcmp.lt.s32.totalorder %v838, 16
        %vm871 = vmand %vm839, %vm855
        %vm872 = vmand %vm840, %vm856
        %vm873 = vmand %vm841, %vm857
        %vm874 = vmand %vm842, %vm858
        %vm875 = vmand %vm843, %vm859
        %vm876 = vmand %vm844, %vm860
        %vm877 = vmand %vm845, %vm861
        %vm878 = vmand %vm846, %vm862
        %vm879 = vmand %vm847, %vm863
        %vm880 = vmand %vm848, %vm864
        %vm881 = vmand %vm849, %vm865
        %vm882 = vmand %vm850, %vm866
        %vm883 = vmand %vm851, %vm867
        %vm884 = vmand %vm852, %vm868
        %vm885 = vmand %vm853, %vm869
        %vm886 = vmand %vm854, %vm870
        %v887 = vadd.s32 %v679, 12
        %v888 = vadd.s32 %v680, 12
        %v889 = vadd.s32 %v681, 12
        %v890 = vadd.s32 %v682, 12
        %v891 = vadd.s32 %v683, 12
        %v892 = vadd.s32 %v684, 12
        %v893 = vadd.s32 %v685, 12
        %v894 = vadd.s32 %v686, 12
        %v895 = vadd.s32 %v687, 12
        %v896 = vadd.s32 %v688, 12
        %v897 = vadd.s32 %v689, 12
        %v898 = vadd.s32 %v690, 12
        %v899 = vadd.s32 %v691, 12
        %v900 = vadd.s32 %v692, 12
        %v901 = vadd.s32 %v693, 12
        %v902 = vadd.s32 %v694, 12
        %vm903 = vcmp.ge.s32.totalorder %v887, 0
        %vm904 = vcmp.ge.s32.totalorder %v888, 0
        %vm905 = vcmp.ge.s32.totalorder %v889, 0
        %vm906 = vcmp.ge.s32.totalorder %v890, 0
        %vm907 = vcmp.ge.s32.totalorder %v891, 0
        %vm908 = vcmp.ge.s32.totalorder %v892, 0
        %vm909 = vcmp.ge.s32.totalorder %v893, 0
        %vm910 = vcmp.ge.s32.totalorder %v894, 0
        %vm911 = vcmp.ge.s32.totalorder %v895, 0
        %vm912 = vcmp.ge.s32.totalorder %v896, 0
        %vm913 = vcmp.ge.s32.totalorder %v897, 0
        %vm914 = vcmp.ge.s32.totalorder %v898, 0
        %vm915 = vcmp.ge.s32.totalorder %v899, 0
        %vm916 = vcmp.ge.s32.totalorder %v900, 0
        %vm917 = vcmp.ge.s32.totalorder %v901, 0
        %vm918 = vcmp.ge.s32.totalorder %v902, 0
        %vm919 = vcmp.lt.s32.totalorder %v887, 16
        %vm920 = vcmp.lt.s32.totalorder %v888, 16
        %vm921 = vcmp.lt.s32.totalorder %v889, 16
        %vm922 = vcmp.lt.s32.totalorder %v890, 16
        %vm923 = vcmp.lt.s32.totalorder %v891, 16
        %vm924 = vcmp.lt.s32.totalorder %v892, 16
        %vm925 = vcmp.lt.s32.totalorder %v893, 16
        %vm926 = vcmp.lt.s32.totalorder %v894, 16
        %vm927 = vcmp.lt.s32.totalorder %v895, 16
        %vm928 = vcmp.lt.s32.totalorder %v896, 16
        %vm929 = vcmp.lt.s32.totalorder %v897, 16
        %vm930 = vcmp.lt.s32.totalorder %v898, 16
        %vm931 = vcmp.lt.s32.totalorder %v899, 16
        %vm932 = vcmp.lt.s32.totalorder %v900, 16
        %vm933 = vcmp.lt.s32.totalorder %v901, 16
        %vm934 = vcmp.lt.s32.totalorder %v902, 16
        %vm935 = vmand %vm903, %vm919
        %vm936 = vmand %vm904, %vm920
        %vm937 = vmand %vm905, %vm921
        %vm938 = vmand %vm906, %vm922
        %vm939 = vmand %vm907, %vm923
        %vm940 = vmand %vm908, %vm924
        %vm941 = vmand %vm909, %vm925
        %vm942 = vmand %vm910, %vm926
        %vm943 = vmand %vm911, %vm927
        %vm944 = vmand %vm912, %vm928
        %vm945 = vmand %vm913, %vm929
        %vm946 = vmand %vm914, %vm930
        %vm947 = vmand %vm915, %vm931
        %vm948 = vmand %vm916, %vm932
        %vm949 = vmand %vm917, %vm933
        %vm950 = vmand %vm918, %vm934
        %p951 = scmp.lt.s32.totalorder %s34, 0
        %s952 = ssub.s32 0, %s34
        %s953 = scalar_select %p951, %s952, %s34
        %s954 = sand.u32 %s953, 1
        %s955 = ssub.s32 0, %s954
        %s956 = scalar_select %p951, %s955, %s954
        %p957 = scmp.ne.s32.totalorder %s956, 0
        %p958 = scmp.lt.s32.totalorder %s956, 0
        %p959 = pnand %p958, %p957
        %p960 = pneg %p959
        %s961 = sadd.s32 %s956, 2
        %s962 = scalar_select %p960, %s961, %s956
        %s963 = smul.u32 %s962, 92
        %s964 = smul.addr %s963, 4
        %s965 = scalar_lea.vmem [#allocation2], %s964
        %s966 = scalar_lea.sflag [#allocation3], %s962
        %s967 = smul.u32 4, 92
        %s968 = smul.u32 %s967, 1
        %s969 = sshll.u32 %s968, 4
        %970 = dma.done %s966, %s969
        %s971 = sadd.s32 %s34, 1
        %p972 = scmp.lt.s32.totalorder %s971, 0
        %s973 = ssub.s32 0, %s971
        %s974 = scalar_select %p972, %s973, %s971
        %s975 = sand.u32 %s974, 1
        %s976 = ssub.s32 0, %s975
        %s977 = scalar_select %p972, %s976, %s975
        %p978 = scmp.ne.s32.totalorder %s977, 0
        %p979 = scmp.lt.s32.totalorder %s977, 0
        %p980 = pnand %p979, %p978
        %p981 = pneg %p980
        %s982 = sadd.s32 %s977, 2
        %s983 = scalar_select %p981, %s982, %s977
        %p984 = scmp.lt.s32.totalorder %s971, 2
        // Predicated region
        $region93: #{tpu_custom_call.1} parent=59 // pred_check
          %p985 = pneg %p984
        $region94: #{tpu_custom_call.1} parent=59 // pred_check_branch
          %987 = sbr.rel (%p985) target = $region96
        $region95: #{tpu_custom_call.1} parent=59 // pred_region
          %s988 = smul.u32 %s971, 128
          %s989 = sshra.s32 %s988, 3
          %s990 = sand.u32 %s988, 7
          %s991 = smul.u32 %s33, 108
          %s992 = sadd.s32 %s989, %s991
          %s993 = smul.addr %s992, 4
          %s994 = scalar_lea.hbm %s0, %s993
          %s995 = smul.u32 %s983, 92
          %s996 = smul.addr %s995, 4
          %s997 = scalar_lea.vmem [#allocation2], %s996
          %s998 = scalar_lea.sflag [#allocation3], %s983
          // Predicated region
          $region97: #{tpu_custom_call.1} parent=95 // pred_check
            _
          $region98: #{tpu_custom_call.1} parent=95 // pred_check_branch
            %1000 = sbr.rel target = $region100
          $region99: #{tpu_custom_call.1} parent=95 // pred_region
            %1001 = sst [smem:[#allocation20]] [#allocation23]
            %1002 = sst [smem:[#allocation21]] [#allocation22]
          $region100: #{tpu_custom_call.1} parent=95 // pred_fallthru
            _
          %1004 = shalt.err (0)
          %s1006 = sshll.u32 %s994, 4
          %s1007 = int_to_ptr.hbm [resolvable:$true] %s1006
          %s1008 = sshll.u32 %s997, 4
          %s1009 = int_to_ptr.vmem [resolvable:$true] %s1008
          %1011 = dma.hbm_to_vmem [thread:$0]  %s1007, 5888, %s1009, %s998
        $region96: #{tpu_custom_call.1} parent=59 // pred_fallthru
          _
        %v1012 = vld [vmem:[%s965 + $0x98] sm:$0xf]
        %v1013 = vld [vmem:[%s965 + $0x9c] sm:$0xf]
        %v1014 = vld [vmem:[%s965 + $0xa0] sm:$0xf]
        %v1015 = vld [vmem:[%s965 + $0xa4] sm:$0xf]
        %v1016 = vld [vmem:[%s965 + $0xa8] sm:$0xf]
        %v1017 = vld [vmem:[%s965 + $0xac] sm:$0xf]
        %v1018 = vld [vmem:[%s965 + $0xb0] sm:$0xf]
        %v1019 = vld [vmem:[%s965 + $0xb4] sm:$0xf]
        %v1020 = vld [vmem:[%s965 + $0xb8] sm:$0xf]
        %v1021 = vld [vmem:[%s965 + $0xbc] sm:$0xf]
        %v1022 = vld [vmem:[%s965 + $0xc0] sm:$0xf]
        %v1023 = vld [vmem:[%s965 + $0xc4] sm:$0xf]
        %v1024 = vld [vmem:[%s965 + $0xc8] sm:$0xf]
        %v1025 = vld [vmem:[%s965 + $0xcc] sm:$0xf]
        %v1026 = vld [vmem:[%s965 + $0xd0] sm:$0xf]
        %v1027 = vld [vmem:[%s965 + $0xd4] sm:$0xf]
        %v1028 = vld [vmem:[#allocation6] sm:$0xf]
        %v1029 = vld [vmem:[#allocation6 + $0x4] sm:$0xf]
        %v1030 = vld [vmem:[#allocation6 + $0x8] sm:$0xf]
        %v1031 = vld [vmem:[#allocation6 + $0xc] sm:$0xf]
        %v1032 = vld [vmem:[#allocation6 + $0x10] sm:$0xf]
        %v1033 = vld [vmem:[#allocation6 + $0x14] sm:$0xf]
        %v1034 = vld [vmem:[#allocation6 + $0x18] sm:$0xf]
        %v1035 = vld [vmem:[#allocation6 + $0x1c] sm:$0xf]
        %v1036 = vld [vmem:[#allocation6 + $0x20] sm:$0xf]
        %v1037 = vld [vmem:[#allocation6 + $0x24] sm:$0xf]
        %v1038 = vld [vmem:[#allocation6 + $0x28] sm:$0xf]
        %v1039 = vld [vmem:[#allocation6 + $0x2c] sm:$0xf]
        %v1040 = vld [vmem:[#allocation6 + $0x30] sm:$0xf]
        %v1041 = vld [vmem:[#allocation6 + $0x34] sm:$0xf]
        %v1042 = vld [vmem:[#allocation6 + $0x38] sm:$0xf]
        %v1043 = vld [vmem:[#allocation6 + $0x3c] sm:$0xf]
        %v1060 = vunpack.c.l.b16 %v1012
        %v1061 = vunpack.c.l.b16 %v1013
        %v1062 = vunpack.c.l.b16 %v1014
        %v1063 = vunpack.c.l.b16 %v1015
        %v1064 = vunpack.c.l.b16 %v1016
        %v1065 = vunpack.c.l.b16 %v1017
        %v1066 = vunpack.c.l.b16 %v1018
        %v1067 = vunpack.c.l.b16 %v1019
        %v1068 = vunpack.c.l.b16 %v1020
        %v1069 = vunpack.c.l.b16 %v1021
        %v1070 = vunpack.c.l.b16 %v1022
        %v1071 = vunpack.c.l.b16 %v1023
        %v1072 = vunpack.c.l.b16 %v1024
        %v1073 = vunpack.c.l.b16 %v1025
        %v1074 = vunpack.c.l.b16 %v1026
        %v1075 = vunpack.c.l.b16 %v1027
        %v1076 = vpack.c.b16 %v1061, %v1060
        %v1077 = vpack.c.b16 %v1063, %v1062
        %v1078 = vpack.c.b16 %v1065, %v1064
        %v1079 = vpack.c.b16 %v1067, %v1066
        %v1080 = vpack.c.b16 %v1069, %v1068
        %v1081 = vpack.c.b16 %v1071, %v1070
        %v1082 = vpack.c.b16 %v1073, %v1072
        %v1083 = vpack.c.b16 %v1075, %v1074
        %v1108 = vunpack.c.l.b16 %v1028
        %v1109 = vunpack.c.l.b16 %v1029
        %v1110 = vunpack.c.l.b16 %v1030
        %v1111 = vunpack.c.l.b16 %v1031
        %v1112 = vunpack.c.l.b16 %v1032
        %v1113 = vunpack.c.l.b16 %v1033
        %v1114 = vunpack.c.l.b16 %v1034
        %v1115 = vunpack.c.l.b16 %v1035
        %v1116 = vunpack.c.l.b16 %v1036
        %v1117 = vunpack.c.l.b16 %v1037
        %v1118 = vunpack.c.l.b16 %v1038
        %v1119 = vunpack.c.l.b16 %v1039
        %v1120 = vunpack.c.l.b16 %v1040
        %v1121 = vunpack.c.l.b16 %v1041
        %v1122 = vunpack.c.l.b16 %v1042
        %v1123 = vunpack.c.l.b16 %v1043
        %v1124 = vpack.c.b16 %v1109, %v1108
        %v1125 = vpack.c.b16 %v1111, %v1110
        %v1126 = vpack.c.b16 %v1113, %v1112
        %v1127 = vpack.c.b16 %v1115, %v1114
        %v1128 = vpack.c.b16 %v1117, %v1116
        %v1129 = vpack.c.b16 %v1119, %v1118
        %v1130 = vpack.c.b16 %v1121, %v1120
        %v1131 = vpack.c.b16 %v1123, %v1122
        %1140 = vmatpush.bf16.msra.mxu0 %v1131
        %1141 = vmatpush.bf16.msra.mxu0 %v1130
        %1142 = vmatpush.bf16.msra.mxu0 %v1129
        %1143 = vmatpush.bf16.msra.mxu0 %v1128
        %1144 = vmatpush.bf16.msra.mxu0 %v1127
        %1145 = vmatpush.bf16.msra.mxu0 %v1126
        %1146 = vmatpush.bf16.msra.mxu0 %v1125
        %1147 = vmatpush.bf16.msra.mxu0 %v1124
        %1148 = vmatmul.bf16.gmra.mxu0 %v1076
        %v1149 = vpop.f32.mrf.mxu0
        %v1150 = vadd.f32 0.0, %v1149
        %v1151 = vpop.f32.mrf.mxu0
        %v1152 = vadd.f32 0.0, %v1151
        %1153 = vmatmul.bf16.gmra.mxu0 %v1077
        %v1154 = vpop.f32.mrf.mxu0
        %v1155 = vadd.f32 0.0, %v1154
        %v1156 = vpop.f32.mrf.mxu0
        %v1157 = vadd.f32 0.0, %v1156
        %1158 = vmatmul.bf16.gmra.mxu0 %v1078
        %v1159 = vpop.f32.mrf.mxu0
        %v1160 = vadd.f32 0.0, %v1159
        %v1161 = vpop.f32.mrf.mxu0
        %v1162 = vadd.f32 0.0, %v1161
        %1163 = vmatmul.bf16.gmra.mxu0 %v1079
        %v1164 = vpop.f32.mrf.mxu0
        %v1165 = vadd.f32 0.0, %v1164
        %v1166 = vpop.f32.mrf.mxu0
        %v1167 = vadd.f32 0.0, %v1166
        %1168 = vmatmul.bf16.gmra.mxu0 %v1080
        %v1169 = vpop.f32.mrf.mxu0
        %v1170 = vadd.f32 0.0, %v1169
        %v1171 = vpop.f32.mrf.mxu0
        %v1172 = vadd.f32 0.0, %v1171
        %1173 = vmatmul.bf16.gmra.mxu0 %v1081
        %v1174 = vpop.f32.mrf.mxu0
        %v1175 = vadd.f32 0.0, %v1174
        %v1176 = vpop.f32.mrf.mxu0
        %v1177 = vadd.f32 0.0, %v1176
        %1178 = vmatmul.bf16.gmra.mxu0 %v1082
        %v1179 = vpop.f32.mrf.mxu0
        %v1180 = vadd.f32 0.0, %v1179
        %v1181 = vpop.f32.mrf.mxu0
        %v1182 = vadd.f32 0.0, %v1181
        %1183 = vmatmul.bf16.gmra.mxu0 %v1083
        %v1184 = vpop.f32.mrf.mxu0
        %v1185 = vadd.f32 0.0, %v1184
        %v1186 = vpop.f32.mrf.mxu0
        %v1187 = vadd.f32 0.0, %v1186
        %1188 = vdwg.mxu0
        %1189 = vst [vmem:[#allocation4] sm:$0xff] %v1150
        %1190 = vst [vmem:[#allocation4 + $0x8] sm:$0xff] %v1152
        %1191 = vst [vmem:[#allocation4 + $0x10] sm:$0xff] %v1155
        %1192 = vst [vmem:[#allocation4 + $0x18] sm:$0xff] %v1157
        %1193 = vst [vmem:[#allocation4 + $0x20] sm:$0xff] %v1160
        %1194 = vst [vmem:[#allocation4 + $0x28] sm:$0xff] %v1162
        %1195 = vst [vmem:[#allocation4 + $0x30] sm:$0xff] %v1165
        %1196 = vst [vmem:[#allocation4 + $0x38] sm:$0xff] %v1167
        %1197 = vst [vmem:[#allocation4 + $0x40] sm:$0xff] %v1170
        %1198 = vst [vmem:[#allocation4 + $0x48] sm:$0xff] %v1172
        %1199 = vst [vmem:[#allocation4 + $0x50] sm:$0xff] %v1175
        %1200 = vst [vmem:[#allocation4 + $0x58] sm:$0xff] %v1177
        %1201 = vst [vmem:[#allocation4 + $0x60] sm:$0xff] %v1180
        %1202 = vst [vmem:[#allocation4 + $0x68] sm:$0xff] %v1182
        %1203 = vst [vmem:[#allocation4 + $0x70] sm:$0xff] %v1185
        %1204 = vst [vmem:[#allocation4 + $0x78] sm:$0xff] %v1187
        %v1205 = vld [vmem:[%s965 + $0x64] sm:$0xe]
        %v1206 = vld [vmem:[%s965 + $0x68] sm:$0xf]
        %v1207 = vld [vmem:[%s965 + $0x6c] sm:$0xf]
        %v1208 = vld [vmem:[%s965 + $0x70] sm:$0xf]
        %v1209 = vld [vmem:[%s965 + $0x74] sm:$0xf]
        %v1210 = vld [vmem:[%s965 + $0x78] sm:$0xf]
        %v1211 = vld [vmem:[%s965 + $0x7c] sm:$0xf]
        %v1212 = vld [vmem:[%s965 + $0x80] sm:$0xf]
        %v1213 = vld [vmem:[%s965 + $0x84] sm:$0xf]
        %v1214 = vld [vmem:[%s965 + $0x88] sm:$0xf]
        %v1215 = vld [vmem:[%s965 + $0x8c] sm:$0xf]
        %v1216 = vld [vmem:[%s965 + $0x90] sm:$0xf]
        %v1217 = vld [vmem:[%s965 + $0x94] sm:$0xf]
        %v1218 = vld [vmem:[%s965 + $0x98] sm:$0xf]
        %v1219 = vld [vmem:[%s965 + $0x9c] sm:$0xf]
        %v1220 = vld [vmem:[%s965 + $0xa0] sm:$0xf]
        %v1221 = vld [vmem:[%s965 + $0xa4] sm:$0x1]
        %v1222 = vld [vmem:[#allocation9] sm:$0xf]
        %v1223 = vld [vmem:[#allocation9 + $0x4] sm:$0xf]
        %v1224 = vld [vmem:[#allocation9 + $0x8] sm:$0xf]
        %v1225 = vld [vmem:[#allocation9 + $0xc] sm:$0xf]
        %v1226 = vld [vmem:[#allocation9 + $0x10] sm:$0xf]
        %v1227 = vld [vmem:[#allocation9 + $0x14] sm:$0xf]
        %v1228 = vld [vmem:[#allocation9 + $0x18] sm:$0xf]
        %v1229 = vld [vmem:[#allocation9 + $0x1c] sm:$0xf]
        %v1230 = vld [vmem:[#allocation9 + $0x20] sm:$0xf]
        %v1231 = vld [vmem:[#allocation9 + $0x24] sm:$0xf]
        %v1232 = vld [vmem:[#allocation9 + $0x28] sm:$0xf]
        %v1233 = vld [vmem:[#allocation9 + $0x2c] sm:$0xf]
        %v1234 = vld [vmem:[#allocation9 + $0x30] sm:$0xf]
        %v1235 = vld [vmem:[#allocation9 + $0x34] sm:$0xf]
        %v1236 = vld [vmem:[#allocation9 + $0x38] sm:$0xf]
        %v1237 = vld [vmem:[#allocation9 + $0x3c] sm:$0xf]
        %v1238 = vld [vmem:[%s965 + $0x94] sm:$0xe]
        %v1239 = vld [vmem:[%s965 + $0xa4] sm:$0xf]
        %v1240 = vld [vmem:[%s965 + $0xa8] sm:$0xf]
        %v1241 = vld [vmem:[%s965 + $0xac] sm:$0xf]
        %v1242 = vld [vmem:[%s965 + $0xb0] sm:$0xf]
        %v1243 = vld [vmem:[%s965 + $0xb4] sm:$0xf]
        %v1244 = vld [vmem:[%s965 + $0xb8] sm:$0xf]
        %v1245 = vld [vmem:[%s965 + $0xbc] sm:$0xf]
        %v1246 = vld [vmem:[%s965 + $0xc0] sm:$0xf]
        %v1247 = vld [vmem:[%s965 + $0xc4] sm:$0xf]
        %v1248 = vld [vmem:[%s965 + $0xc8] sm:$0xf]
        %v1249 = vld [vmem:[%s965 + $0xcc] sm:$0xf]
        %v1250 = vld [vmem:[%s965 + $0xd0] sm:$0xf]
        %v1251 = vld [vmem:[%s965 + $0xd4] sm:$0x1]
        %s1252 = scalar_lea.vmem [#allocation9], 192
        %v1253 = vld [vmem:[%s1252] sm:$0xf]
        %v1254 = vld [vmem:[%s1252 + $0x4] sm:$0xf]
        %v1255 = vld [vmem:[%s1252 + $0x8] sm:$0xf]
        %v1256 = vld [vmem:[%s1252 + $0xc] sm:$0xf]
        %v1257 = vld [vmem:[%s1252 + $0x10] sm:$0xf]
        %v1258 = vld [vmem:[%s1252 + $0x14] sm:$0xf]
        %v1259 = vld [vmem:[%s1252 + $0x18] sm:$0xf]
        %v1260 = vld [vmem:[%s1252 + $0x1c] sm:$0xf]
        %v1261 = vld [vmem:[%s1252 + $0x20] sm:$0xf]
        %v1262 = vld [vmem:[%s1252 + $0x24] sm:$0xf]
        %v1263 = vld [vmem:[%s1252 + $0x28] sm:$0xf]
        %v1264 = vld [vmem:[%s1252 + $0x2c] sm:$0xf]
        %v1265 = vld [vmem:[%s1252 + $0x30] sm:$0xf]
        %v1266 = vld [vmem:[%s1252 + $0x34] sm:$0xf]
        %v1267 = vld [vmem:[%s1252 + $0x38] sm:$0xf]
        %v1268 = vld [vmem:[%s1252 + $0x3c] sm:$0xf]
        %v1286 = vunpack.c.l.b16 %v1238
        %v1287 = vunpack.c.l.b16 %v1218
        %v1288 = vunpack.c.l.b16 %v1219
        %v1289 = vunpack.c.l.b16 %v1220
        %v1290 = vunpack.c.l.b16 %v1239
        %v1291 = vunpack.c.l.b16 %v1240
        %v1292 = vunpack.c.l.b16 %v1241
        %v1293 = vunpack.c.l.b16 %v1242
        %v1294 = vunpack.c.l.b16 %v1243
        %v1295 = vunpack.c.l.b16 %v1244
        %v1296 = vunpack.c.l.b16 %v1245
        %v1297 = vunpack.c.l.b16 %v1246
        %v1298 = vunpack.c.l.b16 %v1247
        %v1299 = vunpack.c.l.b16 %v1248
        %v1300 = vunpack.c.l.b16 %v1249
        %v1301 = vunpack.c.l.b16 %v1250
        %v1302 = vunpack.c.l.b16 %v1251
        %v1303 = vpack.c.b16 %v1287, %v1286
        %v1304 = vpack.c.b16 %v1289, %v1288
        %v1305 = vpack.c.b16 %v1291, %v1290
        %v1306 = vpack.c.b16 %v1293, %v1292
        %v1307 = vpack.c.b16 %v1295, %v1294
        %v1308 = vpack.c.b16 %v1297, %v1296
        %v1309 = vpack.c.b16 %v1299, %v1298
        %v1310 = vpack.c.b16 %v1301, %v1300
        %v1311 = vpack.c.b16 %v1302, %v1302
        %vm1312 = vcmask 1046528
        %v1313 = vrot.slane %v1303, 1
        %v1314 = vrot.slane %v1304, 1
        %v1315 = vsel %vm1312, %v1313, %v1314
        %v1316 = vrot.slane %v1305, 1
        %v1317 = vsel %vm1312, %v1314, %v1316
        %v1318 = vrot.slane %v1306, 1
        %v1319 = vsel %vm1312, %v1316, %v1318
        %v1320 = vrot.slane %v1307, 1
        %v1321 = vsel %vm1312, %v1318, %v1320
        %v1322 = vrot.slane %v1308, 1
        %v1323 = vsel %vm1312, %v1320, %v1322
        %v1324 = vrot.slane %v1309, 1
        %v1325 = vsel %vm1312, %v1322, %v1324
        %v1326 = vrot.slane %v1310, 1
        %v1327 = vsel %vm1312, %v1324, %v1326
        %v1328 = vrot.slane %v1311, 1
        %v1329 = vsel %vm1312, %v1326, %v1328
        %v1354 = vunpack.c.l.b16 %v1253
        %v1355 = vunpack.c.l.b16 %v1254
        %v1356 = vunpack.c.l.b16 %v1255
        %v1357 = vunpack.c.l.b16 %v1256
        %v1358 = vunpack.c.l.b16 %v1257
        %v1359 = vunpack.c.l.b16 %v1258
        %v1360 = vunpack.c.l.b16 %v1259
        %v1361 = vunpack.c.l.b16 %v1260
        %v1362 = vunpack.c.l.b16 %v1261
        %v1363 = vunpack.c.l.b16 %v1262
        %v1364 = vunpack.c.l.b16 %v1263
        %v1365 = vunpack.c.l.b16 %v1264
        %v1366 = vunpack.c.l.b16 %v1265
        %v1367 = vunpack.c.l.b16 %v1266
        %v1368 = vunpack.c.l.b16 %v1267
        %v1369 = vunpack.c.l.b16 %v1268
        %v1370 = vpack.c.b16 %v1355, %v1354
        %v1371 = vpack.c.b16 %v1357, %v1356
        %v1372 = vpack.c.b16 %v1359, %v1358
        %v1373 = vpack.c.b16 %v1361, %v1360
        %v1374 = vpack.c.b16 %v1363, %v1362
        %v1375 = vpack.c.b16 %v1365, %v1364
        %v1376 = vpack.c.b16 %v1367, %v1366
        %v1377 = vpack.c.b16 %v1369, %v1368
        %1386 = vmatpush.bf16.msra.mxu0 %v1377
        %1387 = vmatpush.bf16.msra.mxu0 %v1376
        %1388 = vmatpush.bf16.msra.mxu0 %v1375
        %1389 = vmatpush.bf16.msra.mxu0 %v1374
        %1390 = vmatpush.bf16.msra.mxu0 %v1373
        %1391 = vmatpush.bf16.msra.mxu0 %v1372
        %1392 = vmatpush.bf16.msra.mxu0 %v1371
        %1393 = vmatpush.bf16.msra.mxu0 %v1370
        %1394 = vmatmul.bf16.gmra.mxu0 %v1315
        %v1395 = vpop.f32.mrf.mxu0
        %v1396 = vadd.f32 0.0, %v1395
        %v1397 = vpop.f32.mrf.mxu0
        %v1398 = vadd.f32 0.0, %v1397
        %1399 = vmatmul.bf16.gmra.mxu0 %v1317
        %v1400 = vpop.f32.mrf.mxu0
        %v1401 = vadd.f32 0.0, %v1400
        %v1402 = vpop.f32.mrf.mxu0
        %v1403 = vadd.f32 0.0, %v1402
        %1404 = vmatmul.bf16.gmra.mxu0 %v1319
        %v1405 = vpop.f32.mrf.mxu0
        %v1406 = vadd.f32 0.0, %v1405
        %v1407 = vpop.f32.mrf.mxu0
        %v1408 = vadd.f32 0.0, %v1407
        %1409 = vmatmul.bf16.gmra.mxu0 %v1321
        %v1410 = vpop.f32.mrf.mxu0
        %v1411 = vadd.f32 0.0, %v1410
        %v1412 = vpop.f32.mrf.mxu0
        %v1413 = vadd.f32 0.0, %v1412
        %1414 = vmatmul.bf16.gmra.mxu0 %v1323
        %v1415 = vpop.f32.mrf.mxu0
        %v1416 = vadd.f32 0.0, %v1415
        %v1417 = vpop.f32.mrf.mxu0
        %v1418 = vadd.f32 0.0, %v1417
        %1419 = vmatmul.bf16.gmra.mxu0 %v1325
        %v1420 = vpop.f32.mrf.mxu0
        %v1421 = vadd.f32 0.0, %v1420
        %v1422 = vpop.f32.mrf.mxu0
        %v1423 = vadd.f32 0.0, %v1422
        %1424 = vmatmul.bf16.gmra.mxu0 %v1327
        %v1425 = vpop.f32.mrf.mxu0
        %v1426 = vadd.f32 0.0, %v1425
        %v1427 = vpop.f32.mrf.mxu0
        %v1428 = vadd.f32 0.0, %v1427
        %1429 = vmatmul.bf16.gmra.mxu0 %v1329
        %v1430 = vpop.f32.mrf.mxu0
        %v1431 = vadd.f32 0.0, %v1430
        %v1432 = vpop.f32.mrf.mxu0
        %v1433 = vadd.f32 0.0, %v1432
        %1434 = vdwg.mxu0
        %v1449 = vunpack.c.l.b16 %v1205
        %v1450 = vunpack.c.l.b16 %v1206
        %v1451 = vunpack.c.l.b16 %v1207
        %v1452 = vunpack.c.l.b16 %v1208
        %v1453 = vunpack.c.l.b16 %v1209
        %v1454 = vunpack.c.l.b16 %v1210
        %v1455 = vunpack.c.l.b16 %v1211
        %v1456 = vunpack.c.l.b16 %v1212
        %v1457 = vunpack.c.l.b16 %v1213
        %v1458 = vunpack.c.l.b16 %v1214
        %v1459 = vunpack.c.l.b16 %v1215
        %v1460 = vunpack.c.l.b16 %v1216
        %v1461 = vunpack.c.l.b16 %v1217
        %v1462 = vunpack.c.l.b16 %v1221
        %v1463 = vpack.c.b16 %v1450, %v1449
        %v1464 = vpack.c.b16 %v1452, %v1451
        %v1465 = vpack.c.b16 %v1454, %v1453
        %v1466 = vpack.c.b16 %v1456, %v1455
        %v1467 = vpack.c.b16 %v1458, %v1457
        %v1468 = vpack.c.b16 %v1460, %v1459
        %v1469 = vpack.c.b16 %v1287, %v1461
        %v1470 = vpack.c.b16 %v1462, %v1462
        %v1471 = vrot.slane %v1463, 1
        %v1472 = vrot.slane %v1464, 1
        %v1473 = vsel %vm1312, %v1471, %v1472
        %v1474 = vrot.slane %v1465, 1
        %v1475 = vsel %vm1312, %v1472, %v1474
        %v1476 = vrot.slane %v1466, 1
        %v1477 = vsel %vm1312, %v1474, %v1476
        %v1478 = vrot.slane %v1467, 1
        %v1479 = vsel %vm1312, %v1476, %v1478
        %v1480 = vrot.slane %v1468, 1
        %v1481 = vsel %vm1312, %v1478, %v1480
        %v1482 = vrot.slane %v1469, 1
        %v1483 = vsel %vm1312, %v1480, %v1482
        %v1484 = vsel %vm1312, %v1482, %v1314
        %v1485 = vrot.slane %v1470, 1
        %v1486 = vsel %vm1312, %v1314, %v1485
        %v1511 = vunpack.c.l.b16 %v1222
        %v1512 = vunpack.c.l.b16 %v1223
        %v1513 = vunpack.c.l.b16 %v1224
        %v1514 = vunpack.c.l.b16 %v1225
        %v1515 = vunpack.c.l.b16 %v1226
        %v1516 = vunpack.c.l.b16 %v1227
        %v1517 = vunpack.c.l.b16 %v1228
        %v1518 = vunpack.c.l.b16 %v1229
        %v1519 = vunpack.c.l.b16 %v1230
        %v1520 = vunpack.c.l.b16 %v1231
        %v1521 = vunpack.c.l.b16 %v1232
        %v1522 = vunpack.c.l.b16 %v1233
        %v1523 = vunpack.c.l.b16 %v1234
        %v1524 = vunpack.c.l.b16 %v1235
        %v1525 = vunpack.c.l.b16 %v1236
        %v1526 = vunpack.c.l.b16 %v1237
        %v1527 = vpack.c.b16 %v1512, %v1511
        %v1528 = vpack.c.b16 %v1514, %v1513
        %v1529 = vpack.c.b16 %v1516, %v1515
        %v1530 = vpack.c.b16 %v1518, %v1517
        %v1531 = vpack.c.b16 %v1520, %v1519
        %v1532 = vpack.c.b16 %v1522, %v1521
        %v1533 = vpack.c.b16 %v1524, %v1523
        %v1534 = vpack.c.b16 %v1526, %v1525
        %1543 = vmatpush.bf16.msra.mxu0 %v1534
        %1544 = vmatpush.bf16.msra.mxu0 %v1533
        %1545 = vmatpush.bf16.msra.mxu0 %v1532
        %1546 = vmatpush.bf16.msra.mxu0 %v1531
        %1547 = vmatpush.bf16.msra.mxu0 %v1530
        %1548 = vmatpush.bf16.msra.mxu0 %v1529
        %1549 = vmatpush.bf16.msra.mxu0 %v1528
        %1550 = vmatpush.bf16.msra.mxu0 %v1527
        %1551 = vmatmul.bf16.gmra.mxu0 %v1473
        %v1552 = vpop.f32.mrf.mxu0
        %v1553 = vadd.f32 %v1396, %v1552
        %v1554 = vpop.f32.mrf.mxu0
        %v1555 = vadd.f32 %v1398, %v1554
        %1556 = vmatmul.bf16.gmra.mxu0 %v1475
        %v1557 = vpop.f32.mrf.mxu0
        %v1558 = vadd.f32 %v1401, %v1557
        %v1559 = vpop.f32.mrf.mxu0
        %v1560 = vadd.f32 %v1403, %v1559
        %1561 = vmatmul.bf16.gmra.mxu0 %v1477
        %v1562 = vpop.f32.mrf.mxu0
        %v1563 = vadd.f32 %v1406, %v1562
        %v1564 = vpop.f32.mrf.mxu0
        %v1565 = vadd.f32 %v1408, %v1564
        %1566 = vmatmul.bf16.gmra.mxu0 %v1479
        %v1567 = vpop.f32.mrf.mxu0
        %v1568 = vadd.f32 %v1411, %v1567
        %v1569 = vpop.f32.mrf.mxu0
        %v1570 = vadd.f32 %v1413, %v1569
        %1571 = vmatmul.bf16.gmra.mxu0 %v1481
        %v1572 = vpop.f32.mrf.mxu0
        %v1573 = vadd.f32 %v1416, %v1572
        %v1574 = vpop.f32.mrf.mxu0
        %v1575 = vadd.f32 %v1418, %v1574
        %1576 = vmatmul.bf16.gmra.mxu0 %v1483
        %v1577 = vpop.f32.mrf.mxu0
        %v1578 = vadd.f32 %v1421, %v1577
        %v1579 = vpop.f32.mrf.mxu0
        %v1580 = vadd.f32 %v1423, %v1579
        %1581 = vmatmul.bf16.gmra.mxu0 %v1484
        %v1582 = vpop.f32.mrf.mxu0
        %v1583 = vadd.f32 %v1426, %v1582
        %v1584 = vpop.f32.mrf.mxu0
        %v1585 = vadd.f32 %v1428, %v1584
        %1586 = vmatmul.bf16.gmra.mxu0 %v1486
        %v1587 = vpop.f32.mrf.mxu0
        %v1588 = vadd.f32 %v1431, %v1587
        %v1589 = vpop.f32.mrf.mxu0
        %v1590 = vadd.f32 %v1433, %v1589
        %1591 = vdwg.mxu0
        %v1592 = vld [vmem:[%s965 + $0xc4] sm:$0xe]
        %v1593 = vld [vmem:[%s965 + $0xc8] sm:$0xf]
        %v1594 = vld [vmem:[%s965 + $0xcc] sm:$0xf]
        %v1595 = vld [vmem:[%s965 + $0xd0] sm:$0xf]
        %v1596 = vld [vmem:[%s965 + $0xd4] sm:$0xf]
        %v1597 = vld [vmem:[%s965 + $0xd8] sm:$0xf]
        %v1598 = vld [vmem:[%s965 + $0xdc] sm:$0xf]
        %v1599 = vld [vmem:[%s965 + $0xe0] sm:$0xf]
        %v1600 = vld [vmem:[%s965 + $0xe4] sm:$0xf]
        %v1601 = vld [vmem:[%s965 + $0xe8] sm:$0xf]
        %v1602 = vld [vmem:[%s965 + $0xec] sm:$0xf]
        %v1603 = vld [vmem:[%s965 + $0xf0] sm:$0xf]
        %v1604 = vld [vmem:[%s965 + $0xf4] sm:$0xf]
        %v1605 = vld [vmem:[%s965 + $0xf8] sm:$0xf]
        %v1606 = vld [vmem:[%s965 + $0xfc] sm:$0xf]
        %v1607 = vld [vmem:[%s965 + $0x100] sm:$0xf]
        %v1608 = vld [vmem:[%s965 + $0x104] sm:$0x1]
        %s1609 = scalar_lea.vmem [#allocation9], 384
        %v1610 = vld [vmem:[%s1609] sm:$0xf]
        %v1611 = vld [vmem:[%s1609 + $0x4] sm:$0xf]
        %v1612 = vld [vmem:[%s1609 + $0x8] sm:$0xf]
        %v1613 = vld [vmem:[%s1609 + $0xc] sm:$0xf]
        %v1614 = vld [vmem:[%s1609 + $0x10] sm:$0xf]
        %v1615 = vld [vmem:[%s1609 + $0x14] sm:$0xf]
        %v1616 = vld [vmem:[%s1609 + $0x18] sm:$0xf]
        %v1617 = vld [vmem:[%s1609 + $0x1c] sm:$0xf]
        %v1618 = vld [vmem:[%s1609 + $0x20] sm:$0xf]
        %v1619 = vld [vmem:[%s1609 + $0x24] sm:$0xf]
        %v1620 = vld [vmem:[%s1609 + $0x28] sm:$0xf]
        %v1621 = vld [vmem:[%s1609 + $0x2c] sm:$0xf]
        %v1622 = vld [vmem:[%s1609 + $0x30] sm:$0xf]
        %v1623 = vld [vmem:[%s1609 + $0x34] sm:$0xf]
        %v1624 = vld [vmem:[%s1609 + $0x38] sm:$0xf]
        %v1625 = vld [vmem:[%s1609 + $0x3c] sm:$0xf]
        %v1643 = vunpack.c.l.b16 %v1592
        %v1644 = vunpack.c.l.b16 %v1593
        %v1645 = vunpack.c.l.b16 %v1594
        %v1646 = vunpack.c.l.b16 %v1595
        %v1647 = vunpack.c.l.b16 %v1596
        %v1648 = vunpack.c.l.b16 %v1597
        %v1649 = vunpack.c.l.b16 %v1598
        %v1650 = vunpack.c.l.b16 %v1599
        %v1651 = vunpack.c.l.b16 %v1600
        %v1652 = vunpack.c.l.b16 %v1601
        %v1653 = vunpack.c.l.b16 %v1602
        %v1654 = vunpack.c.l.b16 %v1603
        %v1655 = vunpack.c.l.b16 %v1604
        %v1656 = vunpack.c.l.b16 %v1605
        %v1657 = vunpack.c.l.b16 %v1606
        %v1658 = vunpack.c.l.b16 %v1607
        %v1659 = vunpack.c.l.b16 %v1608
        %v1660 = vpack.c.b16 %v1644, %v1643
        %v1661 = vpack.c.b16 %v1646, %v1645
        %v1662 = vpack.c.b16 %v1648, %v1647
        %v1663 = vpack.c.b16 %v1650, %v1649
        %v1664 = vpack.c.b16 %v1652, %v1651
        %v1665 = vpack.c.b16 %v1654, %v1653
        %v1666 = vpack.c.b16 %v1656, %v1655
        %v1667 = vpack.c.b16 %v1658, %v1657
        %v1668 = vpack.c.b16 %v1659, %v1659
        %v1669 = vrot.slane %v1660, 1
        %v1670 = vrot.slane %v1661, 1
        %v1671 = vsel %vm1312, %v1669, %v1670
        %v1672 = vrot.slane %v1662, 1
        %v1673 = vsel %vm1312, %v1670, %v1672
        %v1674 = vrot.slane %v1663, 1
        %v1675 = vsel %vm1312, %v1672, %v1674
        %v1676 = vrot.slane %v1664, 1
        %v1677 = vsel %vm1312, %v1674, %v1676
        %v1678 = vrot.slane %v1665, 1
        %v1679 = vsel %vm1312, %v1676, %v1678
        %v1680 = vrot.slane %v1666, 1
        %v1681 = vsel %vm1312, %v1678, %v1680
        %v1682 = vrot.slane %v1667, 1
        %v1683 = vsel %vm1312, %v1680, %v1682
        %v1684 = vrot.slane %v1668, 1
        %v1685 = vsel %vm1312, %v1682, %v1684
        %v1710 = vunpack.c.l.b16 %v1610
        %v1711 = vunpack.c.l.b16 %v1611
        %v1712 = vunpack.c.l.b16 %v1612
        %v1713 = vunpack.c.l.b16 %v1613
        %v1714 = vunpack.c.l.b16 %v1614
        %v1715 = vunpack.c.l.b16 %v1615
        %v1716 = vunpack.c.l.b16 %v1616
        %v1717 = vunpack.c.l.b16 %v1617
        %v1718 = vunpack.c.l.b16 %v1618
        %v1719 = vunpack.c.l.b16 %v1619
        %v1720 = vunpack.c.l.b16 %v1620
        %v1721 = vunpack.c.l.b16 %v1621
        %v1722 = vunpack.c.l.b16 %v1622
        %v1723 = vunpack.c.l.b16 %v1623
        %v1724 = vunpack.c.l.b16 %v1624
        %v1725 = vunpack.c.l.b16 %v1625
        %v1726 = vpack.c.b16 %v1711, %v1710
        %v1727 = vpack.c.b16 %v1713, %v1712
        %v1728 = vpack.c.b16 %v1715, %v1714
        %v1729 = vpack.c.b16 %v1717, %v1716
        %v1730 = vpack.c.b16 %v1719, %v1718
        %v1731 = vpack.c.b16 %v1721, %v1720
        %v1732 = vpack.c.b16 %v1723, %v1722
        %v1733 = vpack.c.b16 %v1725, %v1724
        %1742 = vmatpush.bf16.msra.mxu0 %v1733
        %1743 = vmatpush.bf16.msra.mxu0 %v1732
        %1744 = vmatpush.bf16.msra.mxu0 %v1731
        %1745 = vmatpush.bf16.msra.mxu0 %v1730
        %1746 = vmatpush.bf16.msra.mxu0 %v1729
        %1747 = vmatpush.bf16.msra.mxu0 %v1728
        %1748 = vmatpush.bf16.msra.mxu0 %v1727
        %1749 = vmatpush.bf16.msra.mxu0 %v1726
        %1750 = vmatmul.bf16.gmra.mxu0 %v1671
        %v1751 = vpop.f32.mrf.mxu0
        %v1752 = vadd.f32 0.0, %v1751
        %v1753 = vpop.f32.mrf.mxu0
        %v1754 = vadd.f32 0.0, %v1753
        %1755 = vmatmul.bf16.gmra.mxu0 %v1673
        %v1756 = vpop.f32.mrf.mxu0
        %v1757 = vadd.f32 0.0, %v1756
        %v1758 = vpop.f32.mrf.mxu0
        %v1759 = vadd.f32 0.0, %v1758
        %1760 = vmatmul.bf16.gmra.mxu0 %v1675
        %v1761 = vpop.f32.mrf.mxu0
        %v1762 = vadd.f32 0.0, %v1761
        %v1763 = vpop.f32.mrf.mxu0
        %v1764 = vadd.f32 0.0, %v1763
        %1765 = vmatmul.bf16.gmra.mxu0 %v1677
        %v1766 = vpop.f32.mrf.mxu0
        %v1767 = vadd.f32 0.0, %v1766
        %v1768 = vpop.f32.mrf.mxu0
        %v1769 = vadd.f32 0.0, %v1768
        %1770 = vmatmul.bf16.gmra.mxu0 %v1679
        %v1771 = vpop.f32.mrf.mxu0
        %v1772 = vadd.f32 0.0, %v1771
        %v1773 = vpop.f32.mrf.mxu0
        %v1774 = vadd.f32 0.0, %v1773
        %1775 = vmatmul.bf16.gmra.mxu0 %v1681
        %v1776 = vpop.f32.mrf.mxu0
        %v1777 = vadd.f32 0.0, %v1776
        %v1778 = vpop.f32.mrf.mxu0
        %v1779 = vadd.f32 0.0, %v1778
        %1780 = vmatmul.bf16.gmra.mxu0 %v1683
        %v1781 = vpop.f32.mrf.mxu0
        %v1782 = vadd.f32 0.0, %v1781
        %v1783 = vpop.f32.mrf.mxu0
        %v1784 = vadd.f32 0.0, %v1783
        %1785 = vmatmul.bf16.gmra.mxu0 %v1685
        %v1786 = vpop.f32.mrf.mxu0
        %v1787 = vadd.f32 0.0, %v1786
        %v1788 = vpop.f32.mrf.mxu0
        %v1789 = vadd.f32 0.0, %v1788
        %1790 = vdwg.mxu0
        %v1791 = vadd.f32 %v1553, %v1752
        %v1792 = vadd.f32 %v1555, %v1754
        %v1793 = vadd.f32 %v1558, %v1757
        %v1794 = vadd.f32 %v1560, %v1759
        %v1795 = vadd.f32 %v1563, %v1762
        %v1796 = vadd.f32 %v1565, %v1764
        %v1797 = vadd.f32 %v1568, %v1767
        %v1798 = vadd.f32 %v1570, %v1769
        %v1799 = vadd.f32 %v1573, %v1772
        %v1800 = vadd.f32 %v1575, %v1774
        %v1801 = vadd.f32 %v1578, %v1777
        %v1802 = vadd.f32 %v1580, %v1779
        %v1803 = vadd.f32 %v1583, %v1782
        %v1804 = vadd.f32 %v1585, %v1784
        %v1805 = vadd.f32 %v1588, %v1787
        %v1806 = vadd.f32 %v1590, %v1789
        %v1807 = vsel %vm743, 1, 0
        %v1808 = vsel %vm744, 1, 0
        %v1809 = vsel %vm745, 1, 0
        %v1810 = vsel %vm746, 1, 0
        %v1811 = vsel %vm747, 1, 0
        %v1812 = vsel %vm748, 1, 0
        %v1813 = vsel %vm749, 1, 0
        %v1814 = vsel %vm750, 1, 0
        %v1815 = vsel %vm751, 1, 0
        %v1816 = vsel %vm752, 1, 0
        %v1817 = vsel %vm753, 1, 0
        %v1818 = vsel %vm754, 1, 0
        %v1819 = vsel %vm755, 1, 0
        %v1820 = vsel %vm756, 1, 0
        %v1821 = vsel %vm757, 1, 0
        %v1822 = vsel %vm758, 1, 0
        %vm1823 = vcmp.eq.s32.totalorder %v1807, 1
        %vm1824 = vcmp.eq.s32.totalorder %v1808, 1
        %vm1825 = vcmp.eq.s32.totalorder %v1809, 1
        %vm1826 = vcmp.eq.s32.totalorder %v1810, 1
        %vm1827 = vcmp.eq.s32.totalorder %v1811, 1
        %vm1828 = vcmp.eq.s32.totalorder %v1812, 1
        %vm1829 = vcmp.eq.s32.totalorder %v1813, 1
        %vm1830 = vcmp.eq.s32.totalorder %v1814, 1
        %vm1831 = vcmp.eq.s32.totalorder %v1815, 1
        %vm1832 = vcmp.eq.s32.totalorder %v1816, 1
        %vm1833 = vcmp.eq.s32.totalorder %v1817, 1
        %vm1834 = vcmp.eq.s32.totalorder %v1818, 1
        %vm1835 = vcmp.eq.s32.totalorder %v1819, 1
        %vm1836 = vcmp.eq.s32.totalorder %v1820, 1
        %vm1837 = vcmp.eq.s32.totalorder %v1821, 1
        %vm1838 = vcmp.eq.s32.totalorder %v1822, 1
        %v1839 = vsel %vm1823, %v1791, 0.0
        %v1840 = vsel %vm1824, %v1792, 0.0
        %v1841 = vsel %vm1825, %v1793, 0.0
        %v1842 = vsel %vm1826, %v1794, 0.0
        %v1843 = vsel %vm1827, %v1795, 0.0
        %v1844 = vsel %vm1828, %v1796, 0.0
        %v1845 = vsel %vm1829, %v1797, 0.0
        %v1846 = vsel %vm1830, %v1798, 0.0
        %v1847 = vsel %vm1831, %v1799, 0.0
        %v1848 = vsel %vm1832, %v1800, 0.0
        %v1849 = vsel %vm1833, %v1801, 0.0
        %v1850 = vsel %vm1834, %v1802, 0.0
        %v1851 = vsel %vm1835, %v1803, 0.0
        %v1852 = vsel %vm1836, %v1804, 0.0
        %v1853 = vsel %vm1837, %v1805, 0.0
        %v1854 = vsel %vm1838, %v1806, 0.0
        %v1855 = vld [vmem:[%s965 + $0xa4] sm:$0xf]
        %s1856 = scalar_lea.vmem [#allocation9], 64
        %v1857 = vld [vmem:[%s1856] sm:$0xf]
        %v1858 = vld [vmem:[%s1856 + $0x4] sm:$0xf]
        %v1859 = vld [vmem:[%s1856 + $0x8] sm:$0xf]
        %v1860 = vld [vmem:[%s1856 + $0xc] sm:$0xf]
        %v1861 = vld [vmem:[%s1856 + $0x10] sm:$0xf]
        %v1862 = vld [vmem:[%s1856 + $0x14] sm:$0xf]
        %v1863 = vld [vmem:[%s1856 + $0x18] sm:$0xf]
        %v1864 = vld [vmem:[%s1856 + $0x1c] sm:$0xf]
        %v1865 = vld [vmem:[%s1856 + $0x20] sm:$0xf]
        %v1866 = vld [vmem:[%s1856 + $0x24] sm:$0xf]
        %v1867 = vld [vmem:[%s1856 + $0x28] sm:$0xf]
        %v1868 = vld [vmem:[%s1856 + $0x2c] sm:$0xf]
        %v1869 = vld [vmem:[%s1856 + $0x30] sm:$0xf]
        %v1870 = vld [vmem:[%s1856 + $0x34] sm:$0xf]
        %v1871 = vld [vmem:[%s1856 + $0x38] sm:$0xf]
        %v1872 = vld [vmem:[%s1856 + $0x3c] sm:$0xf]
        %v1873 = vld [vmem:[%s965 + $0xd4] sm:$0xf]
        %s1874 = scalar_lea.vmem [#allocation9], 256
        %v1875 = vld [vmem:[%s1874] sm:$0xf]
        %v1876 = vld [vmem:[%s1874 + $0x4] sm:$0xf]
        %v1877 = vld [vmem:[%s1874 + $0x8] sm:$0xf]
        %v1878 = vld [vmem:[%s1874 + $0xc] sm:$0xf]
        %v1879 = vld [vmem:[%s1874 + $0x10] sm:$0xf]
        %v1880 = vld [vmem:[%s1874 + $0x14] sm:$0xf]
        %v1881 = vld [vmem:[%s1874 + $0x18] sm:$0xf]
        %v1882 = vld [vmem:[%s1874 + $0x1c] sm:$0xf]
        %v1883 = vld [vmem:[%s1874 + $0x20] sm:$0xf]
        %v1884 = vld [vmem:[%s1874 + $0x24] sm:$0xf]
        %v1885 = vld [vmem:[%s1874 + $0x28] sm:$0xf]
        %v1886 = vld [vmem:[%s1874 + $0x2c] sm:$0xf]
        %v1887 = vld [vmem:[%s1874 + $0x30] sm:$0xf]
        %v1888 = vld [vmem:[%s1874 + $0x34] sm:$0xf]
        %v1889 = vld [vmem:[%s1874 + $0x38] sm:$0xf]
        %v1890 = vld [vmem:[%s1874 + $0x3c] sm:$0xf]
        %v1892 = vunpack.c.l.b16 %v1873
        %v1893 = vpack.c.b16 %v1288, %v1287
        %v1894 = vpack.c.b16 %v1290, %v1289
        %v1895 = vpack.c.b16 %v1292, %v1291
        %v1896 = vpack.c.b16 %v1294, %v1293
        %v1897 = vpack.c.b16 %v1296, %v1295
        %v1898 = vpack.c.b16 %v1298, %v1297
        %v1899 = vpack.c.b16 %v1300, %v1299
        %v1900 = vpack.c.b16 %v1892, %v1301
        %v1925 = vunpack.c.l.b16 %v1875
        %v1926 = vunpack.c.l.b16 %v1876
        %v1927 = vunpack.c.l.b16 %v1877
        %v1928 = vunpack.c.l.b16 %v1878
        %v1929 = vunpack.c.l.b16 %v1879
        %v1930 = vunpack.c.l.b16 %v1880
        %v1931 = vunpack.c.l.b16 %v1881
        %v1932 = vunpack.c.l.b16 %v1882
        %v1933 = vunpack.c.l.b16 %v1883
        %v1934 = vunpack.c.l.b16 %v1884
        %v1935 = vunpack.c.l.b16 %v1885
        %v1936 = vunpack.c.l.b16 %v1886
        %v1937 = vunpack.c.l.b16 %v1887
        %v1938 = vunpack.c.l.b16 %v1888
        %v1939 = vunpack.c.l.b16 %v1889
        %v1940 = vunpack.c.l.b16 %v1890
        %v1941 = vpack.c.b16 %v1926, %v1925
        %v1942 = vpack.c.b16 %v1928, %v1927
        %v1943 = vpack.c.b16 %v1930, %v1929
        %v1944 = vpack.c.b16 %v1932, %v1931
        %v1945 = vpack.c.b16 %v1934, %v1933
        %v1946 = vpack.c.b16 %v1936, %v1935
        %v1947 = vpack.c.b16 %v1938, %v1937
        %v1948 = vpack.c.b16 %v1940, %v1939
        %1957 = vmatpush.bf16.msra.mxu0 %v1948
        %1958 = vmatpush.bf16.msra.mxu0 %v1947
        %1959 = vmatpush.bf16.msra.mxu0 %v1946
        %1960 = vmatpush.bf16.msra.mxu0 %v1945
        %1961 = vmatpush.bf16.msra.mxu0 %v1944
        %1962 = vmatpush.bf16.msra.mxu0 %v1943
        %1963 = vmatpush.bf16.msra.mxu0 %v1942
        %1964 = vmatpush.bf16.msra.mxu0 %v1941
        %1965 = vmatmul.bf16.gmra.mxu0 %v1893
        %v1966 = vpop.f32.mrf.mxu0
        %v1967 = vadd.f32 0.0, %v1966
        %v1968 = vpop.f32.mrf.mxu0
        %v1969 = vadd.f32 0.0, %v1968
        %1970 = vmatmul.bf16.gmra.mxu0 %v1894
        %v1971 = vpop.f32.mrf.mxu0
        %v1972 = vadd.f32 0.0, %v1971
        %v1973 = vpop.f32.mrf.mxu0
        %v1974 = vadd.f32 0.0, %v1973
        %1975 = vmatmul.bf16.gmra.mxu0 %v1895
        %v1976 = vpop.f32.mrf.mxu0
        %v1977 = vadd.f32 0.0, %v1976
        %v1978 = vpop.f32.mrf.mxu0
        %v1979 = vadd.f32 0.0, %v1978
        %1980 = vmatmul.bf16.gmra.mxu0 %v1896
        %v1981 = vpop.f32.mrf.mxu0
        %v1982 = vadd.f32 0.0, %v1981
        %v1983 = vpop.f32.mrf.mxu0
        %v1984 = vadd.f32 0.0, %v1983
        %1985 = vmatmul.bf16.gmra.mxu0 %v1897
        %v1986 = vpop.f32.mrf.mxu0
        %v1987 = vadd.f32 0.0, %v1986
        %v1988 = vpop.f32.mrf.mxu0
        %v1989 = vadd.f32 0.0, %v1988
        %1990 = vmatmul.bf16.gmra.mxu0 %v1898
        %v1991 = vpop.f32.mrf.mxu0
        %v1992 = vadd.f32 0.0, %v1991
        %v1993 = vpop.f32.mrf.mxu0
        %v1994 = vadd.f32 0.0, %v1993
        %1995 = vmatmul.bf16.gmra.mxu0 %v1899
        %v1996 = vpop.f32.mrf.mxu0
        %v1997 = vadd.f32 0.0, %v1996
        %v1998 = vpop.f32.mrf.mxu0
        %v1999 = vadd.f32 0.0, %v1998
        %2000 = vmatmul.bf16.gmra.mxu0 %v1900
        %v2001 = vpop.f32.mrf.mxu0
        %v2002 = vadd.f32 0.0, %v2001
        %v2003 = vpop.f32.mrf.mxu0
        %v2004 = vadd.f32 0.0, %v2003
        %2005 = vdwg.mxu0
        %v2007 = vunpack.c.l.b16 %v1855
        %v2008 = vpack.c.b16 %v1451, %v1450
        %v2009 = vpack.c.b16 %v1453, %v1452
        %v2010 = vpack.c.b16 %v1455, %v1454
        %v2011 = vpack.c.b16 %v1457, %v1456
        %v2012 = vpack.c.b16 %v1459, %v1458
        %v2013 = vpack.c.b16 %v1461, %v1460
        %v2014 = vpack.c.b16 %v2007, %v1289
        %v2038 = vunpack.c.l.b16 %v1857
        %v2039 = vunpack.c.l.b16 %v1858
        %v2040 = vunpack.c.l.b16 %v1859
        %v2041 = vunpack.c.l.b16 %v1860
        %v2042 = vunpack.c.l.b16 %v1861
        %v2043 = vunpack.c.l.b16 %v1862
        %v2044 = vunpack.c.l.b16 %v1863
        %v2045 = vunpack.c.l.b16 %v1864
        %v2046 = vunpack.c.l.b16 %v1865
        %v2047 = vunpack.c.l.b16 %v1866
        %v2048 = vunpack.c.l.b16 %v1867
        %v2049 = vunpack.c.l.b16 %v1868
        %v2050 = vunpack.c.l.b16 %v1869
        %v2051 = vunpack.c.l.b16 %v1870
        %v2052 = vunpack.c.l.b16 %v1871
        %v2053 = vunpack.c.l.b16 %v1872
        %v2054 = vpack.c.b16 %v2039, %v2038
        %v2055 = vpack.c.b16 %v2041, %v2040
        %v2056 = vpack.c.b16 %v2043, %v2042
        %v2057 = vpack.c.b16 %v2045, %v2044
        %v2058 = vpack.c.b16 %v2047, %v2046
        %v2059 = vpack.c.b16 %v2049, %v2048
        %v2060 = vpack.c.b16 %v2051, %v2050
        %v2061 = vpack.c.b16 %v2053, %v2052
        %2070 = vmatpush.bf16.msra.mxu0 %v2061
        %2071 = vmatpush.bf16.msra.mxu0 %v2060
        %2072 = vmatpush.bf16.msra.mxu0 %v2059
        %2073 = vmatpush.bf16.msra.mxu0 %v2058
        %2074 = vmatpush.bf16.msra.mxu0 %v2057
        %2075 = vmatpush.bf16.msra.mxu0 %v2056
        %2076 = vmatpush.bf16.msra.mxu0 %v2055
        %2077 = vmatpush.bf16.msra.mxu0 %v2054
        %2078 = vmatmul.bf16.gmra.mxu0 %v2008
        %v2079 = vpop.f32.mrf.mxu0
        %v2080 = vadd.f32 %v1967, %v2079
        %v2081 = vpop.f32.mrf.mxu0
        %v2082 = vadd.f32 %v1969, %v2081
        %2083 = vmatmul.bf16.gmra.mxu0 %v2009
        %v2084 = vpop.f32.mrf.mxu0
        %v2085 = vadd.f32 %v1972, %v2084
        %v2086 = vpop.f32.mrf.mxu0
        %v2087 = vadd.f32 %v1974, %v2086
        %2088 = vmatmul.bf16.gmra.mxu0 %v2010
        %v2089 = vpop.f32.mrf.mxu0
        %v2090 = vadd.f32 %v1977, %v2089
        %v2091 = vpop.f32.mrf.mxu0
        %v2092 = vadd.f32 %v1979, %v2091
        %2093 = vmatmul.bf16.gmra.mxu0 %v2011
        %v2094 = vpop.f32.mrf.mxu0
        %v2095 = vadd.f32 %v1982, %v2094
        %v2096 = vpop.f32.mrf.mxu0
        %v2097 = vadd.f32 %v1984, %v2096
        %2098 = vmatmul.bf16.gmra.mxu0 %v2012
        %v2099 = vpop.f32.mrf.mxu0
        %v2100 = vadd.f32 %v1987, %v2099
        %v2101 = vpop.f32.mrf.mxu0
        %v2102 = vadd.f32 %v1989, %v2101
        %2103 = vmatmul.bf16.gmra.mxu0 %v2013
        %v2104 = vpop.f32.mrf.mxu0
        %v2105 = vadd.f32 %v1992, %v2104
        %v2106 = vpop.f32.mrf.mxu0
        %v2107 = vadd.f32 %v1994, %v2106
        %2108 = vmatmul.bf16.gmra.mxu0 %v1893
        %v2109 = vpop.f32.mrf.mxu0
        %v2110 = vadd.f32 %v1997, %v2109
        %v2111 = vpop.f32.mrf.mxu0
        %v2112 = vadd.f32 %v1999, %v2111
        %2113 = vmatmul.bf16.gmra.mxu0 %v2014
        %v2114 = vpop.f32.mrf.mxu0
        %v2115 = vadd.f32 %v2002, %v2114
        %v2116 = vpop.f32.mrf.mxu0
        %v2117 = vadd.f32 %v2004, %v2116
        %2118 = vdwg.mxu0
        %v2119 = vld [vmem:[%s965 + $0x104] sm:$0xf]
        %s2120 = scalar_lea.vmem [#allocation9], 448
        %v2121 = vld [vmem:[%s2120] sm:$0xf]
        %v2122 = vld [vmem:[%s2120 + $0x4] sm:$0xf]
        %v2123 = vld [vmem:[%s2120 + $0x8] sm:$0xf]
        %v2124 = vld [vmem:[%s2120 + $0xc] sm:$0xf]
        %v2125 = vld [vmem:[%s2120 + $0x10] sm:$0xf]
        %v2126 = vld [vmem:[%s2120 + $0x14] sm:$0xf]
        %v2127 = vld [vmem:[%s2120 + $0x18] sm:$0xf]
        %v2128 = vld [vmem:[%s2120 + $0x1c] sm:$0xf]
        %v2129 = vld [vmem:[%s2120 + $0x20] sm:$0xf]
        %v2130 = vld [vmem:[%s2120 + $0x24] sm:$0xf]
        %v2131 = vld [vmem:[%s2120 + $0x28] sm:$0xf]
        %v2132 = vld [vmem:[%s2120 + $0x2c] sm:$0xf]
        %v2133 = vld [vmem:[%s2120 + $0x30] sm:$0xf]
        %v2134 = vld [vmem:[%s2120 + $0x34] sm:$0xf]
        %v2135 = vld [vmem:[%s2120 + $0x38] sm:$0xf]
        %v2136 = vld [vmem:[%s2120 + $0x3c] sm:$0xf]
        %v2138 = vunpack.c.l.b16 %v2119
        %v2139 = vpack.c.b16 %v1645, %v1644
        %v2140 = vpack.c.b16 %v1647, %v1646
        %v2141 = vpack.c.b16 %v1649, %v1648
        %v2142 = vpack.c.b16 %v1651, %v1650
        %v2143 = vpack.c.b16 %v1653, %v1652
        %v2144 = vpack.c.b16 %v1655, %v1654
        %v2145 = vpack.c.b16 %v1657, %v1656
        %v2146 = vpack.c.b16 %v2138, %v1658
        %v2171 = vunpack.c.l.b16 %v2121
        %v2172 = vunpack.c.l.b16 %v2122
        %v2173 = vunpack.c.l.b16 %v2123
        %v2174 = vunpack.c.l.b16 %v2124
        %v2175 = vunpack.c.l.b16 %v2125
        %v2176 = vunpack.c.l.b16 %v2126
        %v2177 = vunpack.c.l.b16 %v2127
        %v2178 = vunpack.c.l.b16 %v2128
        %v2179 = vunpack.c.l.b16 %v2129
        %v2180 = vunpack.c.l.b16 %v2130
        %v2181 = vunpack.c.l.b16 %v2131
        %v2182 = vunpack.c.l.b16 %v2132
        %v2183 = vunpack.c.l.b16 %v2133
        %v2184 = vunpack.c.l.b16 %v2134
        %v2185 = vunpack.c.l.b16 %v2135
        %v2186 = vunpack.c.l.b16 %v2136
        %v2187 = vpack.c.b16 %v2172, %v2171
        %v2188 = vpack.c.b16 %v2174, %v2173
        %v2189 = vpack.c.b16 %v2176, %v2175
        %v2190 = vpack.c.b16 %v2178, %v2177
        %v2191 = vpack.c.b16 %v2180, %v2179
        %v2192 = vpack.c.b16 %v2182, %v2181
        %v2193 = vpack.c.b16 %v2184, %v2183
        %v2194 = vpack.c.b16 %v2186, %v2185
        %2203 = vmatpush.bf16.msra.mxu0 %v2194
        %2204 = vmatpush.bf16.msra.mxu0 %v2193
        %2205 = vmatpush.bf16.msra.mxu0 %v2192
        %2206 = vmatpush.bf16.msra.mxu0 %v2191
        %2207 = vmatpush.bf16.msra.mxu0 %v2190
        %2208 = vmatpush.bf16.msra.mxu0 %v2189
        %2209 = vmatpush.bf16.msra.mxu0 %v2188
        %2210 = vmatpush.bf16.msra.mxu0 %v2187
        %2211 = vmatmul.bf16.gmra.mxu0 %v2139
        %v2212 = vpop.f32.mrf.mxu0
        %v2213 = vadd.f32 0.0, %v2212
        %v2214 = vpop.f32.mrf.mxu0
        %v2215 = vadd.f32 0.0, %v2214
        %2216 = vmatmul.bf16.gmra.mxu0 %v2140
        %v2217 = vpop.f32.mrf.mxu0
        %v2218 = vadd.f32 0.0, %v2217
        %v2219 = vpop.f32.mrf.mxu0
        %v2220 = vadd.f32 0.0, %v2219
        %2221 = vmatmul.bf16.gmra.mxu0 %v2141
        %v2222 = vpop.f32.mrf.mxu0
        %v2223 = vadd.f32 0.0, %v2222
        %v2224 = vpop.f32.mrf.mxu0
        %v2225 = vadd.f32 0.0, %v2224
        %2226 = vmatmul.bf16.gmra.mxu0 %v2142
        %v2227 = vpop.f32.mrf.mxu0
        %v2228 = vadd.f32 0.0, %v2227
        %v2229 = vpop.f32.mrf.mxu0
        %v2230 = vadd.f32 0.0, %v2229
        %2231 = vmatmul.bf16.gmra.mxu0 %v2143
        %v2232 = vpop.f32.mrf.mxu0
        %v2233 = vadd.f32 0.0, %v2232
        %v2234 = vpop.f32.mrf.mxu0
        %v2235 = vadd.f32 0.0, %v2234
        %2236 = vmatmul.bf16.gmra.mxu0 %v2144
        %v2237 = vpop.f32.mrf.mxu0
        %v2238 = vadd.f32 0.0, %v2237
        %v2239 = vpop.f32.mrf.mxu0
        %v2240 = vadd.f32 0.0, %v2239
        %2241 = vmatmul.bf16.gmra.mxu0 %v2145
        %v2242 = vpop.f32.mrf.mxu0
        %v2243 = vadd.f32 0.0, %v2242
        %v2244 = vpop.f32.mrf.mxu0
        %v2245 = vadd.f32 0.0, %v2244
        %2246 = vmatmul.bf16.gmra.mxu0 %v2146
        %v2247 = vpop.f32.mrf.mxu0
        %v2248 = vadd.f32 0.0, %v2247
        %v2249 = vpop.f32.mrf.mxu0
        %v2250 = vadd.f32 0.0, %v2249
        %2251 = vdwg.mxu0
        %v2252 = vadd.f32 %v2080, %v2213
        %v2253 = vadd.f32 %v2082, %v2215
        %v2254 = vadd.f32 %v2085, %v2218
        %v2255 = vadd.f32 %v2087, %v2220
        %v2256 = vadd.f32 %v2090, %v2223
        %v2257 = vadd.f32 %v2092, %v2225
        %v2258 = vadd.f32 %v2095, %v2228
        %v2259 = vadd.f32 %v2097, %v2230
        %v2260 = vadd.f32 %v2100, %v2233
        %v2261 = vadd.f32 %v2102, %v2235
        %v2262 = vadd.f32 %v2105, %v2238
        %v2263 = vadd.f32 %v2107, %v2240
        %v2264 = vadd.f32 %v2110, %v2243
        %v2265 = vadd.f32 %v2112, %v2245
        %v2266 = vadd.f32 %v2115, %v2248
        %v2267 = vadd.f32 %v2117, %v2250
        %v2268 = vadd.f32 %v1839, %v2252
        %v2269 = vadd.f32 %v1840, %v2253
        %v2270 = vadd.f32 %v1841, %v2254
        %v2271 = vadd.f32 %v1842, %v2255
        %v2272 = vadd.f32 %v1843, %v2256
        %v2273 = vadd.f32 %v1844, %v2257
        %v2274 = vadd.f32 %v1845, %v2258
        %v2275 = vadd.f32 %v1846, %v2259
        %v2276 = vadd.f32 %v1847, %v2260
        %v2277 = vadd.f32 %v1848, %v2261
        %v2278 = vadd.f32 %v1849, %v2262
        %v2279 = vadd.f32 %v1850, %v2263
        %v2280 = vadd.f32 %v1851, %v2264
        %v2281 = vadd.f32 %v1852, %v2265
        %v2282 = vadd.f32 %v1853, %v2266
        %v2283 = vadd.f32 %v1854, %v2267
        %v2284 = vld [vmem:[%s965 + $0x68] sm:$0x8]
        %v2285 = vld [vmem:[%s965 + $0x6c] sm:$0xf]
        %v2286 = vld [vmem:[%s965 + $0x70] sm:$0xf]
        %v2287 = vld [vmem:[%s965 + $0x74] sm:$0xf]
        %v2288 = vld [vmem:[%s965 + $0x78] sm:$0xf]
        %v2289 = vld [vmem:[%s965 + $0x7c] sm:$0xf]
        %v2290 = vld [vmem:[%s965 + $0x80] sm:$0xf]
        %v2291 = vld [vmem:[%s965 + $0x84] sm:$0xf]
        %v2292 = vld [vmem:[%s965 + $0x88] sm:$0xf]
        %v2293 = vld [vmem:[%s965 + $0x8c] sm:$0xf]
        %v2294 = vld [vmem:[%s965 + $0x90] sm:$0xf]
        %v2295 = vld [vmem:[%s965 + $0x94] sm:$0xf]
        %v2296 = vld [vmem:[%s965 + $0x98] sm:$0xf]
        %v2297 = vld [vmem:[%s965 + $0x9c] sm:$0xf]
        %v2298 = vld [vmem:[%s965 + $0xa0] sm:$0xf]
        %v2299 = vld [vmem:[%s965 + $0xa4] sm:$0xf]
        %v2300 = vld [vmem:[%s965 + $0xa8] sm:$0x7]
        %s2301 = scalar_lea.vmem [#allocation9], 128
        %v2302 = vld [vmem:[%s2301] sm:$0xf]
        %v2303 = vld [vmem:[%s2301 + $0x4] sm:$0xf]
        %v2304 = vld [vmem:[%s2301 + $0x8] sm:$0xf]
        %v2305 = vld [vmem:[%s2301 + $0xc] sm:$0xf]
        %v2306 = vld [vmem:[%s2301 + $0x10] sm:$0xf]
        %v2307 = vld [vmem:[%s2301 + $0x14] sm:$0xf]
        %v2308 = vld [vmem:[%s2301 + $0x18] sm:$0xf]
        %v2309 = vld [vmem:[%s2301 + $0x1c] sm:$0xf]
        %v2310 = vld [vmem:[%s2301 + $0x20] sm:$0xf]
        %v2311 = vld [vmem:[%s2301 + $0x24] sm:$0xf]
        %v2312 = vld [vmem:[%s2301 + $0x28] sm:$0xf]
        %v2313 = vld [vmem:[%s2301 + $0x2c] sm:$0xf]
        %v2314 = vld [vmem:[%s2301 + $0x30] sm:$0xf]
        %v2315 = vld [vmem:[%s2301 + $0x34] sm:$0xf]
        %v2316 = vld [vmem:[%s2301 + $0x38] sm:$0xf]
        %v2317 = vld [vmem:[%s2301 + $0x3c] sm:$0xf]
        %v2318 = vld [vmem:[%s965 + $0x98] sm:$0x8]
        %v2319 = vld [vmem:[%s965 + $0xa8] sm:$0xf]
        %v2320 = vld [vmem:[%s965 + $0xac] sm:$0xf]
        %v2321 = vld [vmem:[%s965 + $0xb0] sm:$0xf]
        %v2322 = vld [vmem:[%s965 + $0xb4] sm:$0xf]
        %v2323 = vld [vmem:[%s965 + $0xb8] sm:$0xf]
        %v2324 = vld [vmem:[%s965 + $0xbc] sm:$0xf]
        %v2325 = vld [vmem:[%s965 + $0xc0] sm:$0xf]
        %v2326 = vld [vmem:[%s965 + $0xc4] sm:$0xf]
        %v2327 = vld [vmem:[%s965 + $0xc8] sm:$0xf]
        %v2328 = vld [vmem:[%s965 + $0xcc] sm:$0xf]
        %v2329 = vld [vmem:[%s965 + $0xd0] sm:$0xf]
        %v2330 = vld [vmem:[%s965 + $0xd4] sm:$0xf]
        %v2331 = vld [vmem:[%s965 + $0xd8] sm:$0x7]
        %s2332 = scalar_lea.vmem [#allocation9], 320
        %v2333 = vld [vmem:[%s2332] sm:$0xf]
        %v2334 = vld [vmem:[%s2332 + $0x4] sm:$0xf]
        %v2335 = vld [vmem:[%s2332 + $0x8] sm:$0xf]
        %v2336 = vld [vmem:[%s2332 + $0xc] sm:$0xf]
        %v2337 = vld [vmem:[%s2332 + $0x10] sm:$0xf]
        %v2338 = vld [vmem:[%s2332 + $0x14] sm:$0xf]
        %v2339 = vld [vmem:[%s2332 + $0x18] sm:$0xf]
        %v2340 = vld [vmem:[%s2332 + $0x1c] sm:$0xf]
        %v2341 = vld [vmem:[%s2332 + $0x20] sm:$0xf]
        %v2342 = vld [vmem:[%s2332 + $0x24] sm:$0xf]
        %v2343 = vld [vmem:[%s2332 + $0x28] sm:$0xf]
        %v2344 = vld [vmem:[%s2332 + $0x2c] sm:$0xf]
        %v2345 = vld [vmem:[%s2332 + $0x30] sm:$0xf]
        %v2346 = vld [vmem:[%s2332 + $0x34] sm:$0xf]
        %v2347 = vld [vmem:[%s2332 + $0x38] sm:$0xf]
        %v2348 = vld [vmem:[%s2332 + $0x3c] sm:$0xf]
        %v2366 = vunpack.c.l.b16 %v2318
        %v2367 = vunpack.c.l.b16 %v2297
        %v2368 = vunpack.c.l.b16 %v2298
        %v2369 = vunpack.c.l.b16 %v2299
        %v2370 = vunpack.c.l.b16 %v2319
        %v2371 = vunpack.c.l.b16 %v2320
        %v2372 = vunpack.c.l.b16 %v2321
        %v2373 = vunpack.c.l.b16 %v2322
        %v2374 = vunpack.c.l.b16 %v2323
        %v2375 = vunpack.c.l.b16 %v2324
        %v2376 = vunpack.c.l.b16 %v2325
        %v2377 = vunpack.c.l.b16 %v2326
        %v2378 = vunpack.c.l.b16 %v2327
        %v2379 = vunpack.c.l.b16 %v2328
        %v2380 = vunpack.c.l.b16 %v2329
        %v2381 = vunpack.c.l.b16 %v2330
        %v2382 = vunpack.c.l.b16 %v2331
        %v2383 = vpack.c.b16 %v2367, %v2366
        %v2384 = vpack.c.b16 %v2369, %v2368
        %v2385 = vpack.c.b16 %v2371, %v2370
        %v2386 = vpack.c.b16 %v2373, %v2372
        %v2387 = vpack.c.b16 %v2375, %v2374
        %v2388 = vpack.c.b16 %v2377, %v2376
        %v2389 = vpack.c.b16 %v2379, %v2378
        %v2390 = vpack.c.b16 %v2381, %v2380
        %v2391 = vpack.c.b16 %v2382, %v2382
        %vm2392 = vcmask 1044480
        %v2393 = vrot.slane %v2383, 3
        %v2394 = vrot.slane %v2384, 3
        %v2395 = vsel %vm2392, %v2393, %v2394
        %v2396 = vrot.slane %v2385, 3
        %v2397 = vsel %vm2392, %v2394, %v2396
        %v2398 = vrot.slane %v2386, 3
        %v2399 = vsel %vm2392, %v2396, %v2398
        %v2400 = vrot.slane %v2387, 3
        %v2401 = vsel %vm2392, %v2398, %v2400
        %v2402 = vrot.slane %v2388, 3
        %v2403 = vsel %vm2392, %v2400, %v2402
        %v2404 = vrot.slane %v2389, 3
        %v2405 = vsel %vm2392, %v2402, %v2404
        %v2406 = vrot.slane %v2390, 3
        %v2407 = vsel %vm2392, %v2404, %v2406
        %v2408 = vrot.slane %v2391, 3
        %v2409 = vsel %vm2392, %v2406, %v2408
        %v2434 = vunpack.c.l.b16 %v2333
        %v2435 = vunpack.c.l.b16 %v2334
        %v2436 = vunpack.c.l.b16 %v2335
        %v2437 = vunpack.c.l.b16 %v2336
        %v2438 = vunpack.c.l.b16 %v2337
        %v2439 = vunpack.c.l.b16 %v2338
        %v2440 = vunpack.c.l.b16 %v2339
        %v2441 = vunpack.c.l.b16 %v2340
        %v2442 = vunpack.c.l.b16 %v2341
        %v2443 = vunpack.c.l.b16 %v2342
        %v2444 = vunpack.c.l.b16 %v2343
        %v2445 = vunpack.c.l.b16 %v2344
        %v2446 = vunpack.c.l.b16 %v2345
        %v2447 = vunpack.c.l.b16 %v2346
        %v2448 = vunpack.c.l.b16 %v2347
        %v2449 = vunpack.c.l.b16 %v2348
        %v2450 = vpack.c.b16 %v2435, %v2434
        %v2451 = vpack.c.b16 %v2437, %v2436
        %v2452 = vpack.c.b16 %v2439, %v2438
        %v2453 = vpack.c.b16 %v2441, %v2440
        %v2454 = vpack.c.b16 %v2443, %v2442
        %v2455 = vpack.c.b16 %v2445, %v2444
        %v2456 = vpack.c.b16 %v2447, %v2446
        %v2457 = vpack.c.b16 %v2449, %v2448
        %2466 = vmatpush.bf16.msra.mxu0 %v2457
        %2467 = vmatpush.bf16.msra.mxu0 %v2456
        %2468 = vmatpush.bf16.msra.mxu0 %v2455
        %2469 = vmatpush.bf16.msra.mxu0 %v2454
        %2470 = vmatpush.bf16.msra.mxu0 %v2453
        %2471 = vmatpush.bf16.msra.mxu0 %v2452
        %2472 = vmatpush.bf16.msra.mxu0 %v2451
        %2473 = vmatpush.bf16.msra.mxu0 %v2450
        %2474 = vmatmul.bf16.gmra.mxu0 %v2395
        %v2475 = vpop.f32.mrf.mxu0
        %v2476 = vadd.f32 0.0, %v2475
        %v2477 = vpop.f32.mrf.mxu0
        %v2478 = vadd.f32 0.0, %v2477
        %2479 = vmatmul.bf16.gmra.mxu0 %v2397
        %v2480 = vpop.f32.mrf.mxu0
        %v2481 = vadd.f32 0.0, %v2480
        %v2482 = vpop.f32.mrf.mxu0
        %v2483 = vadd.f32 0.0, %v2482
        %2484 = vmatmul.bf16.gmra.mxu0 %v2399
        %v2485 = vpop.f32.mrf.mxu0
        %v2486 = vadd.f32 0.0, %v2485
        %v2487 = vpop.f32.mrf.mxu0
        %v2488 = vadd.f32 0.0, %v2487
        %2489 = vmatmul.bf16.gmra.mxu0 %v2401
        %v2490 = vpop.f32.mrf.mxu0
        %v2491 = vadd.f32 0.0, %v2490
        %v2492 = vpop.f32.mrf.mxu0
        %v2493 = vadd.f32 0.0, %v2492
        %2494 = vmatmul.bf16.gmra.mxu0 %v2403
        %v2495 = vpop.f32.mrf.mxu0
        %v2496 = vadd.f32 0.0, %v2495
        %v2497 = vpop.f32.mrf.mxu0
        %v2498 = vadd.f32 0.0, %v2497
        %2499 = vmatmul.bf16.gmra.mxu0 %v2405
        %v2500 = vpop.f32.mrf.mxu0
        %v2501 = vadd.f32 0.0, %v2500
        %v2502 = vpop.f32.mrf.mxu0
        %v2503 = vadd.f32 0.0, %v2502
        %2504 = vmatmul.bf16.gmra.mxu0 %v2407
        %v2505 = vpop.f32.mrf.mxu0
        %v2506 = vadd.f32 0.0, %v2505
        %v2507 = vpop.f32.mrf.mxu0
        %v2508 = vadd.f32 0.0, %v2507
        %2509 = vmatmul.bf16.gmra.mxu0 %v2409
        %v2510 = vpop.f32.mrf.mxu0
        %v2511 = vadd.f32 0.0, %v2510
        %v2512 = vpop.f32.mrf.mxu0
        %v2513 = vadd.f32 0.0, %v2512
        %2514 = vdwg.mxu0
        %v2529 = vunpack.c.l.b16 %v2284
        %v2530 = vunpack.c.l.b16 %v2285
        %v2531 = vunpack.c.l.b16 %v2286
        %v2532 = vunpack.c.l.b16 %v2287
        %v2533 = vunpack.c.l.b16 %v2288
        %v2534 = vunpack.c.l.b16 %v2289
        %v2535 = vunpack.c.l.b16 %v2290
        %v2536 = vunpack.c.l.b16 %v2291
        %v2537 = vunpack.c.l.b16 %v2292
        %v2538 = vunpack.c.l.b16 %v2293
        %v2539 = vunpack.c.l.b16 %v2294
        %v2540 = vunpack.c.l.b16 %v2295
        %v2541 = vunpack.c.l.b16 %v2296
        %v2542 = vunpack.c.l.b16 %v2300
        %v2543 = vpack.c.b16 %v2530, %v2529
        %v2544 = vpack.c.b16 %v2532, %v2531
        %v2545 = vpack.c.b16 %v2534, %v2533
        %v2546 = vpack.c.b16 %v2536, %v2535
        %v2547 = vpack.c.b16 %v2538, %v2537
        %v2548 = vpack.c.b16 %v2540, %v2539
        %v2549 = vpack.c.b16 %v2367, %v2541
        %v2550 = vpack.c.b16 %v2542, %v2542
        %v2551 = vrot.slane %v2543, 3
        %v2552 = vrot.slane %v2544, 3
        %v2553 = vsel %vm2392, %v2551, %v2552
        %v2554 = vrot.slane %v2545, 3
        %v2555 = vsel %vm2392, %v2552, %v2554
        %v2556 = vrot.slane %v2546, 3
        %v2557 = vsel %vm2392, %v2554, %v2556
        %v2558 = vrot.slane %v2547, 3
        %v2559 = vsel %vm2392, %v2556, %v2558
        %v2560 = vrot.slane %v2548, 3
        %v2561 = vsel %vm2392, %v2558, %v2560
        %v2562 = vrot.slane %v2549, 3
        %v2563 = vsel %vm2392, %v2560, %v2562
        %v2564 = vsel %vm2392, %v2562, %v2394
        %v2565 = vrot.slane %v2550, 3
        %v2566 = vsel %vm2392, %v2394, %v2565
        %v2591 = vunpack.c.l.b16 %v2302
        %v2592 = vunpack.c.l.b16 %v2303
        %v2593 = vunpack.c.l.b16 %v2304
        %v2594 = vunpack.c.l.b16 %v2305
        %v2595 = vunpack.c.l.b16 %v2306
        %v2596 = vunpack.c.l.b16 %v2307
        %v2597 = vunpack.c.l.b16 %v2308
        %v2598 = vunpack.c.l.b16 %v2309
        %v2599 = vunpack.c.l.b16 %v2310
        %v2600 = vunpack.c.l.b16 %v2311
        %v2601 = vunpack.c.l.b16 %v2312
        %v2602 = vunpack.c.l.b16 %v2313
        %v2603 = vunpack.c.l.b16 %v2314
        %v2604 = vunpack.c.l.b16 %v2315
        %v2605 = vunpack.c.l.b16 %v2316
        %v2606 = vunpack.c.l.b16 %v2317
        %v2607 = vpack.c.b16 %v2592, %v2591
        %v2608 = vpack.c.b16 %v2594, %v2593
        %v2609 = vpack.c.b16 %v2596, %v2595
        %v2610 = vpack.c.b16 %v2598, %v2597
        %v2611 = vpack.c.b16 %v2600, %v2599
        %v2612 = vpack.c.b16 %v2602, %v2601
        %v2613 = vpack.c.b16 %v2604, %v2603
        %v2614 = vpack.c.b16 %v2606, %v2605
        %2623 = vmatpush.bf16.msra.mxu0 %v2614
        %2624 = vmatpush.bf16.msra.mxu0 %v2613
        %2625 = vmatpush.bf16.msra.mxu0 %v2612
        %2626 = vmatpush.bf16.msra.mxu0 %v2611
        %2627 = vmatpush.bf16.msra.mxu0 %v2610
        %2628 = vmatpush.bf16.msra.mxu0 %v2609
        %2629 = vmatpush.bf16.msra.mxu0 %v2608
        %2630 = vmatpush.bf16.msra.mxu0 %v2607
        %2631 = vmatmul.bf16.gmra.mxu0 %v2553
        %v2632 = vpop.f32.mrf.mxu0
        %v2633 = vadd.f32 %v2476, %v2632
        %v2634 = vpop.f32.mrf.mxu0
        %v2635 = vadd.f32 %v2478, %v2634
        %2636 = vmatmul.bf16.gmra.mxu0 %v2555
        %v2637 = vpop.f32.mrf.mxu0
        %v2638 = vadd.f32 %v2481, %v2637
        %v2639 = vpop.f32.mrf.mxu0
        %v2640 = vadd.f32 %v2483, %v2639
        %2641 = vmatmul.bf16.gmra.mxu0 %v2557
        %v2642 = vpop.f32.mrf.mxu0
        %v2643 = vadd.f32 %v2486, %v2642
        %v2644 = vpop.f32.mrf.mxu0
        %v2645 = vadd.f32 %v2488, %v2644
        %2646 = vmatmul.bf16.gmra.mxu0 %v2559
        %v2647 = vpop.f32.mrf.mxu0
        %v2648 = vadd.f32 %v2491, %v2647
        %v2649 = vpop.f32.mrf.mxu0
        %v2650 = vadd.f32 %v2493, %v2649
        %2651 = vmatmul.bf16.gmra.mxu0 %v2561
        %v2652 = vpop.f32.mrf.mxu0
        %v2653 = vadd.f32 %v2496, %v2652
        %v2654 = vpop.f32.mrf.mxu0
        %v2655 = vadd.f32 %v2498, %v2654
        %2656 = vmatmul.bf16.gmra.mxu0 %v2563
        %v2657 = vpop.f32.mrf.mxu0
        %v2658 = vadd.f32 %v2501, %v2657
        %v2659 = vpop.f32.mrf.mxu0
        %v2660 = vadd.f32 %v2503, %v2659
        %2661 = vmatmul.bf16.gmra.mxu0 %v2564
        %v2662 = vpop.f32.mrf.mxu0
        %v2663 = vadd.f32 %v2506, %v2662
        %v2664 = vpop.f32.mrf.mxu0
        %v2665 = vadd.f32 %v2508, %v2664
        %2666 = vmatmul.bf16.gmra.mxu0 %v2566
        %v2667 = vpop.f32.mrf.mxu0
        %v2668 = vadd.f32 %v2511, %v2667
        %v2669 = vpop.f32.mrf.mxu0
        %v2670 = vadd.f32 %v2513, %v2669
        %2671 = vdwg.mxu0
        %v2672 = vld [vmem:[%s965 + $0xc8] sm:$0x8]
        %v2673 = vld [vmem:[%s965 + $0xcc] sm:$0xf]
        %v2674 = vld [vmem:[%s965 + $0xd0] sm:$0xf]
        %v2675 = vld [vmem:[%s965 + $0xd4] sm:$0xf]
        %v2676 = vld [vmem:[%s965 + $0xd8] sm:$0xf]
        %v2677 = vld [vmem:[%s965 + $0xdc] sm:$0xf]
        %v2678 = vld [vmem:[%s965 + $0xe0] sm:$0xf]
        %v2679 = vld [vmem:[%s965 + $0xe4] sm:$0xf]
        %v2680 = vld [vmem:[%s965 + $0xe8] sm:$0xf]
        %v2681 = vld [vmem:[%s965 + $0xec] sm:$0xf]
        %v2682 = vld [vmem:[%s965 + $0xf0] sm:$0xf]
        %v2683 = vld [vmem:[%s965 + $0xf4] sm:$0xf]
        %v2684 = vld [vmem:[%s965 + $0xf8] sm:$0xf]
        %v2685 = vld [vmem:[%s965 + $0xfc] sm:$0xf]
        %v2686 = vld [vmem:[%s965 + $0x100] sm:$0xf]
        %v2687 = vld [vmem:[%s965 + $0x104] sm:$0xf]
        %v2688 = vld [vmem:[%s965 + $0x108] sm:$0x7]
        %s2689 = scalar_lea.vmem [#allocation9], 512
        %v2690 = vld [vmem:[%s2689] sm:$0xf]
        %v2691 = vld [vmem:[%s2689 + $0x4] sm:$0xf]
        %v2692 = vld [vmem:[%s2689 + $0x8] sm:$0xf]
        %v2693 = vld [vmem:[%s2689 + $0xc] sm:$0xf]
        %v2694 = vld [vmem:[%s2689 + $0x10] sm:$0xf]
        %v2695 = vld [vmem:[%s2689 + $0x14] sm:$0xf]
        %v2696 = vld [vmem:[%s2689 + $0x18] sm:$0xf]
        %v2697 = vld [vmem:[%s2689 + $0x1c] sm:$0xf]
        %v2698 = vld [vmem:[%s2689 + $0x20] sm:$0xf]
        %v2699 = vld [vmem:[%s2689 + $0x24] sm:$0xf]
        %v2700 = vld [vmem:[%s2689 + $0x28] sm:$0xf]
        %v2701 = vld [vmem:[%s2689 + $0x2c] sm:$0xf]
        %v2702 = vld [vmem:[%s2689 + $0x30] sm:$0xf]
        %v2703 = vld [vmem:[%s2689 + $0x34] sm:$0xf]
        %v2704 = vld [vmem:[%s2689 + $0x38] sm:$0xf]
        %v2705 = vld [vmem:[%s2689 + $0x3c] sm:$0xf]
        %v2723 = vunpack.c.l.b16 %v2672
        %v2724 = vunpack.c.l.b16 %v2673
        %v2725 = vunpack.c.l.b16 %v2674
        %v2726 = vunpack.c.l.b16 %v2675
        %v2727 = vunpack.c.l.b16 %v2676
        %v2728 = vunpack.c.l.b16 %v2677
        %v2729 = vunpack.c.l.b16 %v2678
        %v2730 = vunpack.c.l.b16 %v2679
        %v2731 = vunpack.c.l.b16 %v2680
        %v2732 = vunpack.c.l.b16 %v2681
        %v2733 = vunpack.c.l.b16 %v2682
        %v2734 = vunpack.c.l.b16 %v2683
        %v2735 = vunpack.c.l.b16 %v2684
        %v2736 = vunpack.c.l.b16 %v2685
        %v2737 = vunpack.c.l.b16 %v2686
        %v2738 = vunpack.c.l.b16 %v2687
        %v2739 = vunpack.c.l.b16 %v2688
        %v2740 = vpack.c.b16 %v2724, %v2723
        %v2741 = vpack.c.b16 %v2726, %v2725
        %v2742 = vpack.c.b16 %v2728, %v2727
        %v2743 = vpack.c.b16 %v2730, %v2729
        %v2744 = vpack.c.b16 %v2732, %v2731
        %v2745 = vpack.c.b16 %v2734, %v2733
        %v2746 = vpack.c.b16 %v2736, %v2735
        %v2747 = vpack.c.b16 %v2738, %v2737
        %v2748 = vpack.c.b16 %v2739, %v2739
        %v2749 = vrot.slane %v2740, 3
        %v2750 = vrot.slane %v2741, 3
        %v2751 = vsel %vm2392, %v2749, %v2750
        %v2752 = vrot.slane %v2742, 3
        %v2753 = vsel %vm2392, %v2750, %v2752
        %v2754 = vrot.slane %v2743, 3
        %v2755 = vsel %vm2392, %v2752, %v2754
        %v2756 = vrot.slane %v2744, 3
        %v2757 = vsel %vm2392, %v2754, %v2756
        %v2758 = vrot.slane %v2745, 3
        %v2759 = vsel %vm2392, %v2756, %v2758
        %v2760 = vrot.slane %v2746, 3
        %v2761 = vsel %vm2392, %v2758, %v2760
        %v2762 = vrot.slane %v2747, 3
        %v2763 = vsel %vm2392, %v2760, %v2762
        %v2764 = vrot.slane %v2748, 3
        %v2765 = vsel %vm2392, %v2762, %v2764
        %v2790 = vunpack.c.l.b16 %v2690
        %v2791 = vunpack.c.l.b16 %v2691
        %v2792 = vunpack.c.l.b16 %v2692
        %v2793 = vunpack.c.l.b16 %v2693
        %v2794 = vunpack.c.l.b16 %v2694
        %v2795 = vunpack.c.l.b16 %v2695
        %v2796 = vunpack.c.l.b16 %v2696
        %v2797 = vunpack.c.l.b16 %v2697
        %v2798 = vunpack.c.l.b16 %v2698
        %v2799 = vunpack.c.l.b16 %v2699
        %v2800 = vunpack.c.l.b16 %v2700
        %v2801 = vunpack.c.l.b16 %v2701
        %v2802 = vunpack.c.l.b16 %v2702
        %v2803 = vunpack.c.l.b16 %v2703
        %v2804 = vunpack.c.l.b16 %v2704
        %v2805 = vunpack.c.l.b16 %v2705
        %v2806 = vpack.c.b16 %v2791, %v2790
        %v2807 = vpack.c.b16 %v2793, %v2792
        %v2808 = vpack.c.b16 %v2795, %v2794
        %v2809 = vpack.c.b16 %v2797, %v2796
        %v2810 = vpack.c.b16 %v2799, %v2798
        %v2811 = vpack.c.b16 %v2801, %v2800
        %v2812 = vpack.c.b16 %v2803, %v2802
        %v2813 = vpack.c.b16 %v2805, %v2804
        %2822 = vmatpush.bf16.msra.mxu0 %v2813
        %2823 = vmatpush.bf16.msra.mxu0 %v2812
        %2824 = vmatpush.bf16.msra.mxu0 %v2811
        %2825 = vmatpush.bf16.msra.mxu0 %v2810
        %2826 = vmatpush.bf16.msra.mxu0 %v2809
        %2827 = vmatpush.bf16.msra.mxu0 %v2808
        %2828 = vmatpush.bf16.msra.mxu0 %v2807
        %2829 = vmatpush.bf16.msra.mxu0 %v2806
        %2830 = vmatmul.bf16.gmra.mxu0 %v2751
        %v2831 = vpop.f32.mrf.mxu0
        %v2832 = vadd.f32 0.0, %v2831
        %v2833 = vpop.f32.mrf.mxu0
        %v2834 = vadd.f32 0.0, %v2833
        %2835 = vmatmul.bf16.gmra.mxu0 %v2753
        %v2836 = vpop.f32.mrf.mxu0
        %v2837 = vadd.f32 0.0, %v2836
        %v2838 = vpop.f32.mrf.mxu0
        %v2839 = vadd.f32 0.0, %v2838
        %2840 = vmatmul.bf16.gmra.mxu0 %v2755
        %v2841 = vpop.f32.mrf.mxu0
        %v2842 = vadd.f32 0.0, %v2841
        %v2843 = vpop.f32.mrf.mxu0
        %v2844 = vadd.f32 0.0, %v2843
        %2845 = vmatmul.bf16.gmra.mxu0 %v2757
        %v2846 = vpop.f32.mrf.mxu0
        %v2847 = vadd.f32 0.0, %v2846
        %v2848 = vpop.f32.mrf.mxu0
        %v2849 = vadd.f32 0.0, %v2848
        %2850 = vmatmul.bf16.gmra.mxu0 %v2759
        %v2851 = vpop.f32.mrf.mxu0
        %v2852 = vadd.f32 0.0, %v2851
        %v2853 = vpop.f32.mrf.mxu0
        %v2854 = vadd.f32 0.0, %v2853
        %2855 = vmatmul.bf16.gmra.mxu0 %v2761
        %v2856 = vpop.f32.mrf.mxu0
        %v2857 = vadd.f32 0.0, %v2856
        %v2858 = vpop.f32.mrf.mxu0
        %v2859 = vadd.f32 0.0, %v2858
        %2860 = vmatmul.bf16.gmra.mxu0 %v2763
        %v2861 = vpop.f32.mrf.mxu0
        %v2862 = vadd.f32 0.0, %v2861
        %v2863 = vpop.f32.mrf.mxu0
        %v2864 = vadd.f32 0.0, %v2863
        %2865 = vmatmul.bf16.gmra.mxu0 %v2765
        %v2866 = vpop.f32.mrf.mxu0
        %v2867 = vadd.f32 0.0, %v2866
        %v2868 = vpop.f32.mrf.mxu0
        %v2869 = vadd.f32 0.0, %v2868
        %2870 = vdwg.mxu0
        %v2871 = vadd.f32 %v2633, %v2832
        %v2872 = vadd.f32 %v2635, %v2834
        %v2873 = vadd.f32 %v2638, %v2837
        %v2874 = vadd.f32 %v2640, %v2839
        %v2875 = vadd.f32 %v2643, %v2842
        %v2876 = vadd.f32 %v2645, %v2844
        %v2877 = vadd.f32 %v2648, %v2847
        %v2878 = vadd.f32 %v2650, %v2849
        %v2879 = vadd.f32 %v2653, %v2852
        %v2880 = vadd.f32 %v2655, %v2854
        %v2881 = vadd.f32 %v2658, %v2857
        %v2882 = vadd.f32 %v2660, %v2859
        %v2883 = vadd.f32 %v2663, %v2862
        %v2884 = vadd.f32 %v2665, %v2864
        %v2885 = vadd.f32 %v2668, %v2867
        %v2886 = vadd.f32 %v2670, %v2869
        %v2887 = vsel %vm807, 1, 0
        %v2888 = vsel %vm808, 1, 0
        %v2889 = vsel %vm809, 1, 0
        %v2890 = vsel %vm810, 1, 0
        %v2891 = vsel %vm811, 1, 0
        %v2892 = vsel %vm812, 1, 0
        %v2893 = vsel %vm813, 1, 0
        %v2894 = vsel %vm814, 1, 0
        %v2895 = vsel %vm815, 1, 0
        %v2896 = vsel %vm816, 1, 0
        %v2897 = vsel %vm817, 1, 0
        %v2898 = vsel %vm818, 1, 0
        %v2899 = vsel %vm819, 1, 0
        %v2900 = vsel %vm820, 1, 0
        %v2901 = vsel %vm821, 1, 0
        %v2902 = vsel %vm822, 1, 0
        %vm2903 = vcmp.eq.s32.totalorder %v2887, 1
        %vm2904 = vcmp.eq.s32.totalorder %v2888, 1
        %vm2905 = vcmp.eq.s32.totalorder %v2889, 1
        %vm2906 = vcmp.eq.s32.totalorder %v2890, 1
        %vm2907 = vcmp.eq.s32.totalorder %v2891, 1
        %vm2908 = vcmp.eq.s32.totalorder %v2892, 1
        %vm2909 = vcmp.eq.s32.totalorder %v2893, 1
        %vm2910 = vcmp.eq.s32.totalorder %v2894, 1
        %vm2911 = vcmp.eq.s32.totalorder %v2895, 1
        %vm2912 = vcmp.eq.s32.totalorder %v2896, 1
        %vm2913 = vcmp.eq.s32.totalorder %v2897, 1
        %vm2914 = vcmp.eq.s32.totalorder %v2898, 1
        %vm2915 = vcmp.eq.s32.totalorder %v2899, 1
        %vm2916 = vcmp.eq.s32.totalorder %v2900, 1
        %vm2917 = vcmp.eq.s32.totalorder %v2901, 1
        %vm2918 = vcmp.eq.s32.totalorder %v2902, 1
        %v2919 = vsel %vm2903, %v2871, 0.0
        %v2920 = vsel %vm2904, %v2872, 0.0
        %v2921 = vsel %vm2905, %v2873, 0.0
        %v2922 = vsel %vm2906, %v2874, 0.0
        %v2923 = vsel %vm2907, %v2875, 0.0
        %v2924 = vsel %vm2908, %v2876, 0.0
        %v2925 = vsel %vm2909, %v2877, 0.0
        %v2926 = vsel %vm2910, %v2878, 0.0
        %v2927 = vsel %vm2911, %v2879, 0.0
        %v2928 = vsel %vm2912, %v2880, 0.0
        %v2929 = vsel %vm2913, %v2881, 0.0
        %v2930 = vsel %vm2914, %v2882, 0.0
        %v2931 = vsel %vm2915, %v2883, 0.0
        %v2932 = vsel %vm2916, %v2884, 0.0
        %v2933 = vsel %vm2917, %v2885, 0.0
        %v2934 = vsel %vm2918, %v2886, 0.0
        %v2935 = vadd.f32 %v2268, %v2919
        %v2936 = vadd.f32 %v2269, %v2920
        %v2937 = vadd.f32 %v2270, %v2921
        %v2938 = vadd.f32 %v2271, %v2922
        %v2939 = vadd.f32 %v2272, %v2923
        %v2940 = vadd.f32 %v2273, %v2924
        %v2941 = vadd.f32 %v2274, %v2925
        %v2942 = vadd.f32 %v2275, %v2926
        %v2943 = vadd.f32 %v2276, %v2927
        %v2944 = vadd.f32 %v2277, %v2928
        %v2945 = vadd.f32 %v2278, %v2929
        %v2946 = vadd.f32 %v2279, %v2930
        %v2947 = vadd.f32 %v2280, %v2931
        %v2948 = vadd.f32 %v2281, %v2932
        %v2949 = vadd.f32 %v2282, %v2933
        %v2950 = vadd.f32 %v2283, %v2934
        %s2951 = scalar_lea.vmem [#allocation4], 128
        %2952 = vst [vmem:[%s2951] sm:$0xff] %v2935
        %2953 = vst [vmem:[%s2951 + $0x8] sm:$0xff] %v2936
        %2954 = vst [vmem:[%s2951 + $0x10] sm:$0xff] %v2937
        %2955 = vst [vmem:[%s2951 + $0x18] sm:$0xff] %v2938
        %2956 = vst [vmem:[%s2951 + $0x20] sm:$0xff] %v2939
        %2957 = vst [vmem:[%s2951 + $0x28] sm:$0xff] %v2940
        %2958 = vst [vmem:[%s2951 + $0x30] sm:$0xff] %v2941
        %2959 = vst [vmem:[%s2951 + $0x38] sm:$0xff] %v2942
        %2960 = vst [vmem:[%s2951 + $0x40] sm:$0xff] %v2943
        %2961 = vst [vmem:[%s2951 + $0x48] sm:$0xff] %v2944
        %2962 = vst [vmem:[%s2951 + $0x50] sm:$0xff] %v2945
        %2963 = vst [vmem:[%s2951 + $0x58] sm:$0xff] %v2946
        %2964 = vst [vmem:[%s2951 + $0x60] sm:$0xff] %v2947
        %2965 = vst [vmem:[%s2951 + $0x68] sm:$0xff] %v2948
        %2966 = vst [vmem:[%s2951 + $0x70] sm:$0xff] %v2949
        %2967 = vst [vmem:[%s2951 + $0x78] sm:$0xff] %v2950
        %v2968 = vld [vmem:[%s965 + $0x30] sm:$0xc]
        %v2969 = vld [vmem:[%s965 + $0x34] sm:$0xf]
        %v2970 = vld [vmem:[%s965 + $0x38] sm:$0xf]
        %v2971 = vld [vmem:[%s965 + $0x3c] sm:$0xf]
        %v2972 = vld [vmem:[%s965 + $0x40] sm:$0xf]
        %v2973 = vld [vmem:[%s965 + $0x44] sm:$0xf]
        %v2974 = vld [vmem:[%s965 + $0x48] sm:$0xf]
        %v2975 = vld [vmem:[%s965 + $0x4c] sm:$0xf]
        %v2976 = vld [vmem:[%s965 + $0x50] sm:$0xf]
        %v2977 = vld [vmem:[%s965 + $0x54] sm:$0xf]
        %v2978 = vld [vmem:[%s965 + $0x58] sm:$0xf]
        %v2979 = vld [vmem:[%s965 + $0x5c] sm:$0xf]
        %v2980 = vld [vmem:[%s965 + $0x60] sm:$0xf]
        %v2981 = vld [vmem:[%s965 + $0x64] sm:$0xf]
        %v2982 = vld [vmem:[%s965 + $0x68] sm:$0xf]
        %v2983 = vld [vmem:[%s965 + $0x6c] sm:$0xf]
        %v2984 = vld [vmem:[%s965 + $0x70] sm:$0x3]
        %v2985 = vld [vmem:[#allocation12] sm:$0xf]
        %v2986 = vld [vmem:[#allocation12 + $0x4] sm:$0xf]
        %v2987 = vld [vmem:[#allocation12 + $0x8] sm:$0xf]
        %v2988 = vld [vmem:[#allocation12 + $0xc] sm:$0xf]
        %v2989 = vld [vmem:[#allocation12 + $0x10] sm:$0xf]
        %v2990 = vld [vmem:[#allocation12 + $0x14] sm:$0xf]
        %v2991 = vld [vmem:[#allocation12 + $0x18] sm:$0xf]
        %v2992 = vld [vmem:[#allocation12 + $0x1c] sm:$0xf]
        %v2993 = vld [vmem:[#allocation12 + $0x20] sm:$0xf]
        %v2994 = vld [vmem:[#allocation12 + $0x24] sm:$0xf]
        %v2995 = vld [vmem:[#allocation12 + $0x28] sm:$0xf]
        %v2996 = vld [vmem:[#allocation12 + $0x2c] sm:$0xf]
        %v2997 = vld [vmem:[#allocation12 + $0x30] sm:$0xf]
        %v2998 = vld [vmem:[#allocation12 + $0x34] sm:$0xf]
        %v2999 = vld [vmem:[#allocation12 + $0x38] sm:$0xf]
        %v3000 = vld [vmem:[#allocation12 + $0x3c] sm:$0xf]
        %v3001 = vld [vmem:[%s965 + $0x90] sm:$0xc]
        %v3002 = vld [vmem:[%s965 + $0x94] sm:$0xf]
        %v3003 = vld [vmem:[%s965 + $0x98] sm:$0xf]
        %v3004 = vld [vmem:[%s965 + $0x9c] sm:$0xf]
        %v3005 = vld [vmem:[%s965 + $0xa0] sm:$0xf]
        %v3006 = vld [vmem:[%s965 + $0xa4] sm:$0xf]
        %v3007 = vld [vmem:[%s965 + $0xa8] sm:$0xf]
        %v3008 = vld [vmem:[%s965 + $0xac] sm:$0xf]
        %v3009 = vld [vmem:[%s965 + $0xb0] sm:$0xf]
        %v3010 = vld [vmem:[%s965 + $0xb4] sm:$0xf]
        %v3011 = vld [vmem:[%s965 + $0xb8] sm:$0xf]
        %v3012 = vld [vmem:[%s965 + $0xbc] sm:$0xf]
        %v3013 = vld [vmem:[%s965 + $0xc0] sm:$0xf]
        %v3014 = vld [vmem:[%s965 + $0xc4] sm:$0xf]
        %v3015 = vld [vmem:[%s965 + $0xc8] sm:$0xf]
        %v3016 = vld [vmem:[%s965 + $0xcc] sm:$0xf]
        %v3017 = vld [vmem:[%s965 + $0xd0] sm:$0x3]
        %s3018 = scalar_lea.vmem [#allocation12], 192
        %v3019 = vld [vmem:[%s3018] sm:$0xf]
        %v3020 = vld [vmem:[%s3018 + $0x4] sm:$0xf]
        %v3021 = vld [vmem:[%s3018 + $0x8] sm:$0xf]
        %v3022 = vld [vmem:[%s3018 + $0xc] sm:$0xf]
        %v3023 = vld [vmem:[%s3018 + $0x10] sm:$0xf]
        %v3024 = vld [vmem:[%s3018 + $0x14] sm:$0xf]
        %v3025 = vld [vmem:[%s3018 + $0x18] sm:$0xf]
        %v3026 = vld [vmem:[%s3018 + $0x1c] sm:$0xf]
        %v3027 = vld [vmem:[%s3018 + $0x20] sm:$0xf]
        %v3028 = vld [vmem:[%s3018 + $0x24] sm:$0xf]
        %v3029 = vld [vmem:[%s3018 + $0x28] sm:$0xf]
        %v3030 = vld [vmem:[%s3018 + $0x2c] sm:$0xf]
        %v3031 = vld [vmem:[%s3018 + $0x30] sm:$0xf]
        %v3032 = vld [vmem:[%s3018 + $0x34] sm:$0xf]
        %v3033 = vld [vmem:[%s3018 + $0x38] sm:$0xf]
        %v3034 = vld [vmem:[%s3018 + $0x3c] sm:$0xf]
        %v3052 = vunpack.c.l.b16 %v3001
        %v3053 = vunpack.c.l.b16 %v3002
        %v3054 = vunpack.c.l.b16 %v3003
        %v3055 = vunpack.c.l.b16 %v3004
        %v3056 = vunpack.c.l.b16 %v3005
        %v3057 = vunpack.c.l.b16 %v3006
        %v3058 = vunpack.c.l.b16 %v3007
        %v3059 = vunpack.c.l.b16 %v3008
        %v3060 = vunpack.c.l.b16 %v3009
        %v3061 = vunpack.c.l.b16 %v3010
        %v3062 = vunpack.c.l.b16 %v3011
        %v3063 = vunpack.c.l.b16 %v3012
        %v3064 = vunpack.c.l.b16 %v3013
        %v3065 = vunpack.c.l.b16 %v3014
        %v3066 = vunpack.c.l.b16 %v3015
        %v3067 = vunpack.c.l.b16 %v3016
        %v3068 = vunpack.c.l.b16 %v3017
        %v3069 = vpack.c.b16 %v3053, %v3052
        %v3070 = vpack.c.b16 %v3055, %v3054
        %v3071 = vpack.c.b16 %v3057, %v3056
        %v3072 = vpack.c.b16 %v3059, %v3058
        %v3073 = vpack.c.b16 %v3061, %v3060
        %v3074 = vpack.c.b16 %v3063, %v3062
        %v3075 = vpack.c.b16 %v3065, %v3064
        %v3076 = vpack.c.b16 %v3067, %v3066
        %v3077 = vpack.c.b16 %v3068, %v3068
        %vm3078 = vcmask 1045504
        %v3079 = vrot.slane %v3069, 2
        %v3080 = vrot.slane %v3070, 2
        %v3081 = vsel %vm3078, %v3079, %v3080
        %v3082 = vrot.slane %v3071, 2
        %v3083 = vsel %vm3078, %v3080, %v3082
        %v3084 = vrot.slane %v3072, 2
        %v3085 = vsel %vm3078, %v3082, %v3084
        %v3086 = vrot.slane %v3073, 2
        %v3087 = vsel %vm3078, %v3084, %v3086
        %v3088 = vrot.slane %v3074, 2
        %v3089 = vsel %vm3078, %v3086, %v3088
        %v3090 = vrot.slane %v3075, 2
        %v3091 = vsel %vm3078, %v3088, %v3090
        %v3092 = vrot.slane %v3076, 2
        %v3093 = vsel %vm3078, %v3090, %v3092
        %v3094 = vrot.slane %v3077, 2
        %v3095 = vsel %vm3078, %v3092, %v3094
        %v3120 = vunpack.c.l.b16 %v3019
        %v3121 = vunpack.c.l.b16 %v3020
        %v3122 = vunpack.c.l.b16 %v3021
        %v3123 = vunpack.c.l.b16 %v3022
        %v3124 = vunpack.c.l.b16 %v3023
        %v3125 = vunpack.c.l.b16 %v3024
        %v3126 = vunpack.c.l.b16 %v3025
        %v3127 = vunpack.c.l.b16 %v3026
        %v3128 = vunpack.c.l.b16 %v3027
        %v3129 = vunpack.c.l.b16 %v3028
        %v3130 = vunpack.c.l.b16 %v3029
        %v3131 = vunpack.c.l.b16 %v3030
        %v3132 = vunpack.c.l.b16 %v3031
        %v3133 = vunpack.c.l.b16 %v3032
        %v3134 = vunpack.c.l.b16 %v3033
        %v3135 = vunpack.c.l.b16 %v3034
        %v3136 = vpack.c.b16 %v3121, %v3120
        %v3137 = vpack.c.b16 %v3123, %v3122
        %v3138 = vpack.c.b16 %v3125, %v3124
        %v3139 = vpack.c.b16 %v3127, %v3126
        %v3140 = vpack.c.b16 %v3129, %v3128
        %v3141 = vpack.c.b16 %v3131, %v3130
        %v3142 = vpack.c.b16 %v3133, %v3132
        %v3143 = vpack.c.b16 %v3135, %v3134
        %3152 = vmatpush.bf16.msra.mxu0 %v3143
        %3153 = vmatpush.bf16.msra.mxu0 %v3142
        %3154 = vmatpush.bf16.msra.mxu0 %v3141
        %3155 = vmatpush.bf16.msra.mxu0 %v3140
        %3156 = vmatpush.bf16.msra.mxu0 %v3139
        %3157 = vmatpush.bf16.msra.mxu0 %v3138
        %3158 = vmatpush.bf16.msra.mxu0 %v3137
        %3159 = vmatpush.bf16.msra.mxu0 %v3136
        %3160 = vmatmul.bf16.gmra.mxu0 %v3081
        %v3161 = vpop.f32.mrf.mxu0
        %v3162 = vadd.f32 0.0, %v3161
        %v3163 = vpop.f32.mrf.mxu0
        %v3164 = vadd.f32 0.0, %v3163
        %3165 = vmatmul.bf16.gmra.mxu0 %v3083
        %v3166 = vpop.f32.mrf.mxu0
        %v3167 = vadd.f32 0.0, %v3166
        %v3168 = vpop.f32.mrf.mxu0
        %v3169 = vadd.f32 0.0, %v3168
        %3170 = vmatmul.bf16.gmra.mxu0 %v3085
        %v3171 = vpop.f32.mrf.mxu0
        %v3172 = vadd.f32 0.0, %v3171
        %v3173 = vpop.f32.mrf.mxu0
        %v3174 = vadd.f32 0.0, %v3173
        %3175 = vmatmul.bf16.gmra.mxu0 %v3087
        %v3176 = vpop.f32.mrf.mxu0
        %v3177 = vadd.f32 0.0, %v3176
        %v3178 = vpop.f32.mrf.mxu0
        %v3179 = vadd.f32 0.0, %v3178
        %3180 = vmatmul.bf16.gmra.mxu0 %v3089
        %v3181 = vpop.f32.mrf.mxu0
        %v3182 = vadd.f32 0.0, %v3181
        %v3183 = vpop.f32.mrf.mxu0
        %v3184 = vadd.f32 0.0, %v3183
        %3185 = vmatmul.bf16.gmra.mxu0 %v3091
        %v3186 = vpop.f32.mrf.mxu0
        %v3187 = vadd.f32 0.0, %v3186
        %v3188 = vpop.f32.mrf.mxu0
        %v3189 = vadd.f32 0.0, %v3188
        %3190 = vmatmul.bf16.gmra.mxu0 %v3093
        %v3191 = vpop.f32.mrf.mxu0
        %v3192 = vadd.f32 0.0, %v3191
        %v3193 = vpop.f32.mrf.mxu0
        %v3194 = vadd.f32 0.0, %v3193
        %3195 = vmatmul.bf16.gmra.mxu0 %v3095
        %v3196 = vpop.f32.mrf.mxu0
        %v3197 = vadd.f32 0.0, %v3196
        %v3198 = vpop.f32.mrf.mxu0
        %v3199 = vadd.f32 0.0, %v3198
        %3200 = vdwg.mxu0
        %v3218 = vunpack.c.l.b16 %v2968
        %v3219 = vunpack.c.l.b16 %v2969
        %v3220 = vunpack.c.l.b16 %v2970
        %v3221 = vunpack.c.l.b16 %v2971
        %v3222 = vunpack.c.l.b16 %v2972
        %v3223 = vunpack.c.l.b16 %v2973
        %v3224 = vunpack.c.l.b16 %v2974
        %v3225 = vunpack.c.l.b16 %v2975
        %v3226 = vunpack.c.l.b16 %v2976
        %v3227 = vunpack.c.l.b16 %v2977
        %v3228 = vunpack.c.l.b16 %v2978
        %v3229 = vunpack.c.l.b16 %v2979
        %v3230 = vunpack.c.l.b16 %v2980
        %v3231 = vunpack.c.l.b16 %v2981
        %v3232 = vunpack.c.l.b16 %v2982
        %v3233 = vunpack.c.l.b16 %v2983
        %v3234 = vunpack.c.l.b16 %v2984
        %v3235 = vpack.c.b16 %v3219, %v3218
        %v3236 = vpack.c.b16 %v3221, %v3220
        %v3237 = vpack.c.b16 %v3223, %v3222
        %v3238 = vpack.c.b16 %v3225, %v3224
        %v3239 = vpack.c.b16 %v3227, %v3226
        %v3240 = vpack.c.b16 %v3229, %v3228
        %v3241 = vpack.c.b16 %v3231, %v3230
        %v3242 = vpack.c.b16 %v3233, %v3232
        %v3243 = vpack.c.b16 %v3234, %v3234
        %v3244 = vrot.slane %v3235, 2
        %v3245 = vrot.slane %v3236, 2
        %v3246 = vsel %vm3078, %v3244, %v3245
        %v3247 = vrot.slane %v3237, 2
        %v3248 = vsel %vm3078, %v3245, %v3247
        %v3249 = vrot.slane %v3238, 2
        %v3250 = vsel %vm3078, %v3247, %v3249
        %v3251 = vrot.slane %v3239, 2
        %v3252 = vsel %vm3078, %v3249, %v3251
        %v3253 = vrot.slane %v3240, 2
        %v3254 = vsel %vm3078, %v3251, %v3253
        %v3255 = vrot.slane %v3241, 2
        %v3256 = vsel %vm3078, %v3253, %v3255
        %v3257 = vrot.slane %v3242, 2
        %v3258 = vsel %vm3078, %v3255, %v3257
        %v3259 = vrot.slane %v3243, 2
        %v3260 = vsel %vm3078, %v3257, %v3259
        %v3285 = vunpack.c.l.b16 %v2985
        %v3286 = vunpack.c.l.b16 %v2986
        %v3287 = vunpack.c.l.b16 %v2987
        %v3288 = vunpack.c.l.b16 %v2988
        %v3289 = vunpack.c.l.b16 %v2989
        %v3290 = vunpack.c.l.b16 %v2990
        %v3291 = vunpack.c.l.b16 %v2991
        %v3292 = vunpack.c.l.b16 %v2992
        %v3293 = vunpack.c.l.b16 %v2993
        %v3294 = vunpack.c.l.b16 %v2994
        %v3295 = vunpack.c.l.b16 %v2995
        %v3296 = vunpack.c.l.b16 %v2996
        %v3297 = vunpack.c.l.b16 %v2997
        %v3298 = vunpack.c.l.b16 %v2998
        %v3299 = vunpack.c.l.b16 %v2999
        %v3300 = vunpack.c.l.b16 %v3000
        %v3301 = vpack.c.b16 %v3286, %v3285
        %v3302 = vpack.c.b16 %v3288, %v3287
        %v3303 = vpack.c.b16 %v3290, %v3289
        %v3304 = vpack.c.b16 %v3292, %v3291
        %v3305 = vpack.c.b16 %v3294, %v3293
        %v3306 = vpack.c.b16 %v3296, %v3295
        %v3307 = vpack.c.b16 %v3298, %v3297
        %v3308 = vpack.c.b16 %v3300, %v3299
        %3317 = vmatpush.bf16.msra.mxu0 %v3308
        %3318 = vmatpush.bf16.msra.mxu0 %v3307
        %3319 = vmatpush.bf16.msra.mxu0 %v3306
        %3320 = vmatpush.bf16.msra.mxu0 %v3305
        %3321 = vmatpush.bf16.msra.mxu0 %v3304
        %3322 = vmatpush.bf16.msra.mxu0 %v3303
        %3323 = vmatpush.bf16.msra.mxu0 %v3302
        %3324 = vmatpush.bf16.msra.mxu0 %v3301
        %3325 = vmatmul.bf16.gmra.mxu0 %v3246
        %v3326 = vpop.f32.mrf.mxu0
        %v3327 = vadd.f32 %v3162, %v3326
        %v3328 = vpop.f32.mrf.mxu0
        %v3329 = vadd.f32 %v3164, %v3328
        %3330 = vmatmul.bf16.gmra.mxu0 %v3248
        %v3331 = vpop.f32.mrf.mxu0
        %v3332 = vadd.f32 %v3167, %v3331
        %v3333 = vpop.f32.mrf.mxu0
        %v3334 = vadd.f32 %v3169, %v3333
        %3335 = vmatmul.bf16.gmra.mxu0 %v3250
        %v3336 = vpop.f32.mrf.mxu0
        %v3337 = vadd.f32 %v3172, %v3336
        %v3338 = vpop.f32.mrf.mxu0
        %v3339 = vadd.f32 %v3174, %v3338
        %3340 = vmatmul.bf16.gmra.mxu0 %v3252
        %v3341 = vpop.f32.mrf.mxu0
        %v3342 = vadd.f32 %v3177, %v3341
        %v3343 = vpop.f32.mrf.mxu0
        %v3344 = vadd.f32 %v3179, %v3343
        %3345 = vmatmul.bf16.gmra.mxu0 %v3254
        %v3346 = vpop.f32.mrf.mxu0
        %v3347 = vadd.f32 %v3182, %v3346
        %v3348 = vpop.f32.mrf.mxu0
        %v3349 = vadd.f32 %v3184, %v3348
        %3350 = vmatmul.bf16.gmra.mxu0 %v3256
        %v3351 = vpop.f32.mrf.mxu0
        %v3352 = vadd.f32 %v3187, %v3351
        %v3353 = vpop.f32.mrf.mxu0
        %v3354 = vadd.f32 %v3189, %v3353
        %3355 = vmatmul.bf16.gmra.mxu0 %v3258
        %v3356 = vpop.f32.mrf.mxu0
        %v3357 = vadd.f32 %v3192, %v3356
        %v3358 = vpop.f32.mrf.mxu0
        %v3359 = vadd.f32 %v3194, %v3358
        %3360 = vmatmul.bf16.gmra.mxu0 %v3260
        %v3361 = vpop.f32.mrf.mxu0
        %v3362 = vadd.f32 %v3197, %v3361
        %v3363 = vpop.f32.mrf.mxu0
        %v3364 = vadd.f32 %v3199, %v3363
        %3365 = vdwg.mxu0
        %v3366 = vld [vmem:[%s965 + $0xf0] sm:$0xc]
        %v3367 = vld [vmem:[%s965 + $0xf4] sm:$0xf]
        %v3368 = vld [vmem:[%s965 + $0xf8] sm:$0xf]
        %v3369 = vld [vmem:[%s965 + $0xfc] sm:$0xf]
        %v3370 = vld [vmem:[%s965 + $0x100] sm:$0xf]
        %v3371 = vld [vmem:[%s965 + $0x104] sm:$0xf]
        %v3372 = vld [vmem:[%s965 + $0x108] sm:$0xf]
        %v3373 = vld [vmem:[%s965 + $0x10c] sm:$0xf]
        %v3374 = vld [vmem:[%s965 + $0x110] sm:$0xf]
        %v3375 = vld [vmem:[%s965 + $0x114] sm:$0xf]
        %v3376 = vld [vmem:[%s965 + $0x118] sm:$0xf]
        %v3377 = vld [vmem:[%s965 + $0x11c] sm:$0xf]
        %v3378 = vld [vmem:[%s965 + $0x120] sm:$0xf]
        %v3379 = vld [vmem:[%s965 + $0x124] sm:$0xf]
        %v3380 = vld [vmem:[%s965 + $0x128] sm:$0xf]
        %v3381 = vld [vmem:[%s965 + $0x12c] sm:$0xf]
        %v3382 = vld [vmem:[%s965 + $0x130] sm:$0x3]
        %s3383 = scalar_lea.vmem [#allocation12], 384
        %v3384 = vld [vmem:[%s3383] sm:$0xf]
        %v3385 = vld [vmem:[%s3383 + $0x4] sm:$0xf]
        %v3386 = vld [vmem:[%s3383 + $0x8] sm:$0xf]
        %v3387 = vld [vmem:[%s3383 + $0xc] sm:$0xf]
        %v3388 = vld [vmem:[%s3383 + $0x10] sm:$0xf]
        %v3389 = vld [vmem:[%s3383 + $0x14] sm:$0xf]
        %v3390 = vld [vmem:[%s3383 + $0x18] sm:$0xf]
        %v3391 = vld [vmem:[%s3383 + $0x1c] sm:$0xf]
        %v3392 = vld [vmem:[%s3383 + $0x20] sm:$0xf]
        %v3393 = vld [vmem:[%s3383 + $0x24] sm:$0xf]
        %v3394 = vld [vmem:[%s3383 + $0x28] sm:$0xf]
        %v3395 = vld [vmem:[%s3383 + $0x2c] sm:$0xf]
        %v3396 = vld [vmem:[%s3383 + $0x30] sm:$0xf]
        %v3397 = vld [vmem:[%s3383 + $0x34] sm:$0xf]
        %v3398 = vld [vmem:[%s3383 + $0x38] sm:$0xf]
        %v3399 = vld [vmem:[%s3383 + $0x3c] sm:$0xf]
        %v3417 = vunpack.c.l.b16 %v3366
        %v3418 = vunpack.c.l.b16 %v3367
        %v3419 = vunpack.c.l.b16 %v3368
        %v3420 = vunpack.c.l.b16 %v3369
        %v3421 = vunpack.c.l.b16 %v3370
        %v3422 = vunpack.c.l.b16 %v3371
        %v3423 = vunpack.c.l.b16 %v3372
        %v3424 = vunpack.c.l.b16 %v3373
        %v3425 = vunpack.c.l.b16 %v3374
        %v3426 = vunpack.c.l.b16 %v3375
        %v3427 = vunpack.c.l.b16 %v3376
        %v3428 = vunpack.c.l.b16 %v3377
        %v3429 = vunpack.c.l.b16 %v3378
        %v3430 = vunpack.c.l.b16 %v3379
        %v3431 = vunpack.c.l.b16 %v3380
        %v3432 = vunpack.c.l.b16 %v3381
        %v3433 = vunpack.c.l.b16 %v3382
        %v3434 = vpack.c.b16 %v3418, %v3417
        %v3435 = vpack.c.b16 %v3420, %v3419
        %v3436 = vpack.c.b16 %v3422, %v3421
        %v3437 = vpack.c.b16 %v3424, %v3423
        %v3438 = vpack.c.b16 %v3426, %v3425
        %v3439 = vpack.c.b16 %v3428, %v3427
        %v3440 = vpack.c.b16 %v3430, %v3429
        %v3441 = vpack.c.b16 %v3432, %v3431
        %v3442 = vpack.c.b16 %v3433, %v3433
        %v3443 = vrot.slane %v3434, 2
        %v3444 = vrot.slane %v3435, 2
        %v3445 = vsel %vm3078, %v3443, %v3444
        %v3446 = vrot.slane %v3436, 2
        %v3447 = vsel %vm3078, %v3444, %v3446
        %v3448 = vrot.slane %v3437, 2
        %v3449 = vsel %vm3078, %v3446, %v3448
        %v3450 = vrot.slane %v3438, 2
        %v3451 = vsel %vm3078, %v3448, %v3450
        %v3452 = vrot.slane %v3439, 2
        %v3453 = vsel %vm3078, %v3450, %v3452
        %v3454 = vrot.slane %v3440, 2
        %v3455 = vsel %vm3078, %v3452, %v3454
        %v3456 = vrot.slane %v3441, 2
        %v3457 = vsel %vm3078, %v3454, %v3456
        %v3458 = vrot.slane %v3442, 2
        %v3459 = vsel %vm3078, %v3456, %v3458
        %v3484 = vunpack.c.l.b16 %v3384
        %v3485 = vunpack.c.l.b16 %v3385
        %v3486 = vunpack.c.l.b16 %v3386
        %v3487 = vunpack.c.l.b16 %v3387
        %v3488 = vunpack.c.l.b16 %v3388
        %v3489 = vunpack.c.l.b16 %v3389
        %v3490 = vunpack.c.l.b16 %v3390
        %v3491 = vunpack.c.l.b16 %v3391
        %v3492 = vunpack.c.l.b16 %v3392
        %v3493 = vunpack.c.l.b16 %v3393
        %v3494 = vunpack.c.l.b16 %v3394
        %v3495 = vunpack.c.l.b16 %v3395
        %v3496 = vunpack.c.l.b16 %v3396
        %v3497 = vunpack.c.l.b16 %v3397
        %v3498 = vunpack.c.l.b16 %v3398
        %v3499 = vunpack.c.l.b16 %v3399
        %v3500 = vpack.c.b16 %v3485, %v3484
        %v3501 = vpack.c.b16 %v3487, %v3486
        %v3502 = vpack.c.b16 %v3489, %v3488
        %v3503 = vpack.c.b16 %v3491, %v3490
        %v3504 = vpack.c.b16 %v3493, %v3492
        %v3505 = vpack.c.b16 %v3495, %v3494
        %v3506 = vpack.c.b16 %v3497, %v3496
        %v3507 = vpack.c.b16 %v3499, %v3498
        %3516 = vmatpush.bf16.msra.mxu0 %v3507
        %3517 = vmatpush.bf16.msra.mxu0 %v3506
        %3518 = vmatpush.bf16.msra.mxu0 %v3505
        %3519 = vmatpush.bf16.msra.mxu0 %v3504
        %3520 = vmatpush.bf16.msra.mxu0 %v3503
        %3521 = vmatpush.bf16.msra.mxu0 %v3502
        %3522 = vmatpush.bf16.msra.mxu0 %v3501
        %3523 = vmatpush.bf16.msra.mxu0 %v3500
        %3524 = vmatmul.bf16.gmra.mxu0 %v3445
        %v3525 = vpop.f32.mrf.mxu0
        %v3526 = vadd.f32 0.0, %v3525
        %v3527 = vpop.f32.mrf.mxu0
        %v3528 = vadd.f32 0.0, %v3527
        %3529 = vmatmul.bf16.gmra.mxu0 %v3447
        %v3530 = vpop.f32.mrf.mxu0
        %v3531 = vadd.f32 0.0, %v3530
        %v3532 = vpop.f32.mrf.mxu0
        %v3533 = vadd.f32 0.0, %v3532
        %3534 = vmatmul.bf16.gmra.mxu0 %v3449
        %v3535 = vpop.f32.mrf.mxu0
        %v3536 = vadd.f32 0.0, %v3535
        %v3537 = vpop.f32.mrf.mxu0
        %v3538 = vadd.f32 0.0, %v3537
        %3539 = vmatmul.bf16.gmra.mxu0 %v3451
        %v3540 = vpop.f32.mrf.mxu0
        %v3541 = vadd.f32 0.0, %v3540
        %v3542 = vpop.f32.mrf.mxu0
        %v3543 = vadd.f32 0.0, %v3542
        %3544 = vmatmul.bf16.gmra.mxu0 %v3453
        %v3545 = vpop.f32.mrf.mxu0
        %v3546 = vadd.f32 0.0, %v3545
        %v3547 = vpop.f32.mrf.mxu0
        %v3548 = vadd.f32 0.0, %v3547
        %3549 = vmatmul.bf16.gmra.mxu0 %v3455
        %v3550 = vpop.f32.mrf.mxu0
        %v3551 = vadd.f32 0.0, %v3550
        %v3552 = vpop.f32.mrf.mxu0
        %v3553 = vadd.f32 0.0, %v3552
        %3554 = vmatmul.bf16.gmra.mxu0 %v3457
        %v3555 = vpop.f32.mrf.mxu0
        %v3556 = vadd.f32 0.0, %v3555
        %v3557 = vpop.f32.mrf.mxu0
        %v3558 = vadd.f32 0.0, %v3557
        %3559 = vmatmul.bf16.gmra.mxu0 %v3459
        %v3560 = vpop.f32.mrf.mxu0
        %v3561 = vadd.f32 0.0, %v3560
        %v3562 = vpop.f32.mrf.mxu0
        %v3563 = vadd.f32 0.0, %v3562
        %3564 = vdwg.mxu0
        %v3565 = vadd.f32 %v3327, %v3526
        %v3566 = vadd.f32 %v3329, %v3528
        %v3567 = vadd.f32 %v3332, %v3531
        %v3568 = vadd.f32 %v3334, %v3533
        %v3569 = vadd.f32 %v3337, %v3536
        %v3570 = vadd.f32 %v3339, %v3538
        %v3571 = vadd.f32 %v3342, %v3541
        %v3572 = vadd.f32 %v3344, %v3543
        %v3573 = vadd.f32 %v3347, %v3546
        %v3574 = vadd.f32 %v3349, %v3548
        %v3575 = vadd.f32 %v3352, %v3551
        %v3576 = vadd.f32 %v3354, %v3553
        %v3577 = vadd.f32 %v3357, %v3556
        %v3578 = vadd.f32 %v3359, %v3558
        %v3579 = vadd.f32 %v3362, %v3561
        %v3580 = vadd.f32 %v3364, %v3563
        %v3581 = vsel %vm871, 1, 0
        %v3582 = vsel %vm872, 1, 0
        %v3583 = vsel %vm873, 1, 0
        %v3584 = vsel %vm874, 1, 0
        %v3585 = vsel %vm875, 1, 0
        %v3586 = vsel %vm876, 1, 0
        %v3587 = vsel %vm877, 1, 0
        %v3588 = vsel %vm878, 1, 0
        %v3589 = vsel %vm879, 1, 0
        %v3590 = vsel %vm880, 1, 0
        %v3591 = vsel %vm881, 1, 0
        %v3592 = vsel %vm882, 1, 0
        %v3593 = vsel %vm883, 1, 0
        %v3594 = vsel %vm884, 1, 0
        %v3595 = vsel %vm885, 1, 0
        %v3596 = vsel %vm886, 1, 0
        %vm3597 = vcmp.eq.s32.totalorder %v3581, 1
        %vm3598 = vcmp.eq.s32.totalorder %v3582, 1
        %vm3599 = vcmp.eq.s32.totalorder %v3583, 1
        %vm3600 = vcmp.eq.s32.totalorder %v3584, 1
        %vm3601 = vcmp.eq.s32.totalorder %v3585, 1
        %vm3602 = vcmp.eq.s32.totalorder %v3586, 1
        %vm3603 = vcmp.eq.s32.totalorder %v3587, 1
        %vm3604 = vcmp.eq.s32.totalorder %v3588, 1
        %vm3605 = vcmp.eq.s32.totalorder %v3589, 1
        %vm3606 = vcmp.eq.s32.totalorder %v3590, 1
        %vm3607 = vcmp.eq.s32.totalorder %v3591, 1
        %vm3608 = vcmp.eq.s32.totalorder %v3592, 1
        %vm3609 = vcmp.eq.s32.totalorder %v3593, 1
        %vm3610 = vcmp.eq.s32.totalorder %v3594, 1
        %vm3611 = vcmp.eq.s32.totalorder %v3595, 1
        %vm3612 = vcmp.eq.s32.totalorder %v3596, 1
        %v3613 = vsel %vm3597, %v3565, 0.0
        %v3614 = vsel %vm3598, %v3566, 0.0
        %v3615 = vsel %vm3599, %v3567, 0.0
        %v3616 = vsel %vm3600, %v3568, 0.0
        %v3617 = vsel %vm3601, %v3569, 0.0
        %v3618 = vsel %vm3602, %v3570, 0.0
        %v3619 = vsel %vm3603, %v3571, 0.0
        %v3620 = vsel %vm3604, %v3572, 0.0
        %v3621 = vsel %vm3605, %v3573, 0.0
        %v3622 = vsel %vm3606, %v3574, 0.0
        %v3623 = vsel %vm3607, %v3575, 0.0
        %v3624 = vsel %vm3608, %v3576, 0.0
        %v3625 = vsel %vm3609, %v3577, 0.0
        %v3626 = vsel %vm3610, %v3578, 0.0
        %v3627 = vsel %vm3611, %v3579, 0.0
        %v3628 = vsel %vm3612, %v3580, 0.0
        %v3629 = vld [vmem:[%s965 + $0x38] sm:$0xf]
        %v3630 = vld [vmem:[%s965 + $0x3c] sm:$0xf]
        %v3631 = vld [vmem:[%s965 + $0x40] sm:$0xf]
        %v3632 = vld [vmem:[%s965 + $0x44] sm:$0xf]
        %v3633 = vld [vmem:[%s965 + $0x48] sm:$0xf]
        %v3634 = vld [vmem:[%s965 + $0x4c] sm:$0xf]
        %v3635 = vld [vmem:[%s965 + $0x50] sm:$0xf]
        %v3636 = vld [vmem:[%s965 + $0x54] sm:$0xf]
        %v3637 = vld [vmem:[%s965 + $0x58] sm:$0xf]
        %v3638 = vld [vmem:[%s965 + $0x5c] sm:$0xf]
        %v3639 = vld [vmem:[%s965 + $0x60] sm:$0xf]
        %v3640 = vld [vmem:[%s965 + $0x64] sm:$0xf]
        %v3641 = vld [vmem:[%s965 + $0x68] sm:$0xf]
        %v3642 = vld [vmem:[%s965 + $0x6c] sm:$0xf]
        %v3643 = vld [vmem:[%s965 + $0x70] sm:$0xf]
        %v3644 = vld [vmem:[%s965 + $0x74] sm:$0xf]
        %s3645 = scalar_lea.vmem [#allocation12], 64
        %v3646 = vld [vmem:[%s3645] sm:$0xf]
        %v3647 = vld [vmem:[%s3645 + $0x4] sm:$0xf]
        %v3648 = vld [vmem:[%s3645 + $0x8] sm:$0xf]
        %v3649 = vld [vmem:[%s3645 + $0xc] sm:$0xf]
        %v3650 = vld [vmem:[%s3645 + $0x10] sm:$0xf]
        %v3651 = vld [vmem:[%s3645 + $0x14] sm:$0xf]
        %v3652 = vld [vmem:[%s3645 + $0x18] sm:$0xf]
        %v3653 = vld [vmem:[%s3645 + $0x1c] sm:$0xf]
        %v3654 = vld [vmem:[%s3645 + $0x20] sm:$0xf]
        %v3655 = vld [vmem:[%s3645 + $0x24] sm:$0xf]
        %v3656 = vld [vmem:[%s3645 + $0x28] sm:$0xf]
        %v3657 = vld [vmem:[%s3645 + $0x2c] sm:$0xf]
        %v3658 = vld [vmem:[%s3645 + $0x30] sm:$0xf]
        %v3659 = vld [vmem:[%s3645 + $0x34] sm:$0xf]
        %v3660 = vld [vmem:[%s3645 + $0x38] sm:$0xf]
        %v3661 = vld [vmem:[%s3645 + $0x3c] sm:$0xf]
        %v3662 = vld [vmem:[%s965 + $0x98] sm:$0xf]
        %v3663 = vld [vmem:[%s965 + $0x9c] sm:$0xf]
        %v3664 = vld [vmem:[%s965 + $0xa0] sm:$0xf]
        %v3665 = vld [vmem:[%s965 + $0xa4] sm:$0xf]
        %v3666 = vld [vmem:[%s965 + $0xa8] sm:$0xf]
        %v3667 = vld [vmem:[%s965 + $0xac] sm:$0xf]
        %v3668 = vld [vmem:[%s965 + $0xb0] sm:$0xf]
        %v3669 = vld [vmem:[%s965 + $0xb4] sm:$0xf]
        %v3670 = vld [vmem:[%s965 + $0xb8] sm:$0xf]
        %v3671 = vld [vmem:[%s965 + $0xbc] sm:$0xf]
        %v3672 = vld [vmem:[%s965 + $0xc0] sm:$0xf]
        %v3673 = vld [vmem:[%s965 + $0xc4] sm:$0xf]
        %v3674 = vld [vmem:[%s965 + $0xc8] sm:$0xf]
        %v3675 = vld [vmem:[%s965 + $0xcc] sm:$0xf]
        %v3676 = vld [vmem:[%s965 + $0xd0] sm:$0xf]
        %v3677 = vld [vmem:[%s965 + $0xd4] sm:$0xf]
        %s3678 = scalar_lea.vmem [#allocation12], 256
        %v3679 = vld [vmem:[%s3678] sm:$0xf]
        %v3680 = vld [vmem:[%s3678 + $0x4] sm:$0xf]
        %v3681 = vld [vmem:[%s3678 + $0x8] sm:$0xf]
        %v3682 = vld [vmem:[%s3678 + $0xc] sm:$0xf]
        %v3683 = vld [vmem:[%s3678 + $0x10] sm:$0xf]
        %v3684 = vld [vmem:[%s3678 + $0x14] sm:$0xf]
        %v3685 = vld [vmem:[%s3678 + $0x18] sm:$0xf]
        %v3686 = vld [vmem:[%s3678 + $0x1c] sm:$0xf]
        %v3687 = vld [vmem:[%s3678 + $0x20] sm:$0xf]
        %v3688 = vld [vmem:[%s3678 + $0x24] sm:$0xf]
        %v3689 = vld [vmem:[%s3678 + $0x28] sm:$0xf]
        %v3690 = vld [vmem:[%s3678 + $0x2c] sm:$0xf]
        %v3691 = vld [vmem:[%s3678 + $0x30] sm:$0xf]
        %v3692 = vld [vmem:[%s3678 + $0x34] sm:$0xf]
        %v3693 = vld [vmem:[%s3678 + $0x38] sm:$0xf]
        %v3694 = vld [vmem:[%s3678 + $0x3c] sm:$0xf]
        %v3711 = vunpack.c.l.b16 %v3662
        %v3712 = vunpack.c.l.b16 %v3663
        %v3713 = vunpack.c.l.b16 %v3664
        %v3714 = vunpack.c.l.b16 %v3665
        %v3715 = vunpack.c.l.b16 %v3666
        %v3716 = vunpack.c.l.b16 %v3667
        %v3717 = vunpack.c.l.b16 %v3668
        %v3718 = vunpack.c.l.b16 %v3669
        %v3719 = vunpack.c.l.b16 %v3670
        %v3720 = vunpack.c.l.b16 %v3671
        %v3721 = vunpack.c.l.b16 %v3672
        %v3722 = vunpack.c.l.b16 %v3673
        %v3723 = vunpack.c.l.b16 %v3674
        %v3724 = vunpack.c.l.b16 %v3675
        %v3725 = vunpack.c.l.b16 %v3676
        %v3726 = vunpack.c.l.b16 %v3677
        %v3727 = vpack.c.b16 %v3712, %v3711
        %v3728 = vpack.c.b16 %v3714, %v3713
        %v3729 = vpack.c.b16 %v3716, %v3715
        %v3730 = vpack.c.b16 %v3718, %v3717
        %v3731 = vpack.c.b16 %v3720, %v3719
        %v3732 = vpack.c.b16 %v3722, %v3721
        %v3733 = vpack.c.b16 %v3724, %v3723
        %v3734 = vpack.c.b16 %v3726, %v3725
        %v3759 = vunpack.c.l.b16 %v3679
        %v3760 = vunpack.c.l.b16 %v3680
        %v3761 = vunpack.c.l.b16 %v3681
        %v3762 = vunpack.c.l.b16 %v3682
        %v3763 = vunpack.c.l.b16 %v3683
        %v3764 = vunpack.c.l.b16 %v3684
        %v3765 = vunpack.c.l.b16 %v3685
        %v3766 = vunpack.c.l.b16 %v3686
        %v3767 = vunpack.c.l.b16 %v3687
        %v3768 = vunpack.c.l.b16 %v3688
        %v3769 = vunpack.c.l.b16 %v3689
        %v3770 = vunpack.c.l.b16 %v3690
        %v3771 = vunpack.c.l.b16 %v3691
        %v3772 = vunpack.c.l.b16 %v3692
        %v3773 = vunpack.c.l.b16 %v3693
        %v3774 = vunpack.c.l.b16 %v3694
        %v3775 = vpack.c.b16 %v3760, %v3759
        %v3776 = vpack.c.b16 %v3762, %v3761
        %v3777 = vpack.c.b16 %v3764, %v3763
        %v3778 = vpack.c.b16 %v3766, %v3765
        %v3779 = vpack.c.b16 %v3768, %v3767
        %v3780 = vpack.c.b16 %v3770, %v3769
        %v3781 = vpack.c.b16 %v3772, %v3771
        %v3782 = vpack.c.b16 %v3774, %v3773
        %3791 = vmatpush.bf16.msra.mxu0 %v3782
        %3792 = vmatpush.bf16.msra.mxu0 %v3781
        %3793 = vmatpush.bf16.msra.mxu0 %v3780
        %3794 = vmatpush.bf16.msra.mxu0 %v3779
        %3795 = vmatpush.bf16.msra.mxu0 %v3778
        %3796 = vmatpush.bf16.msra.mxu0 %v3777
        %3797 = vmatpush.bf16.msra.mxu0 %v3776
        %3798 = vmatpush.bf16.msra.mxu0 %v3775
        %3799 = vmatmul.bf16.gmra.mxu0 %v3727
        %v3800 = vpop.f32.mrf.mxu0
        %v3801 = vadd.f32 0.0, %v3800
        %v3802 = vpop.f32.mrf.mxu0
        %v3803 = vadd.f32 0.0, %v3802
        %3804 = vmatmul.bf16.gmra.mxu0 %v3728
        %v3805 = vpop.f32.mrf.mxu0
        %v3806 = vadd.f32 0.0, %v3805
        %v3807 = vpop.f32.mrf.mxu0
        %v3808 = vadd.f32 0.0, %v3807
        %3809 = vmatmul.bf16.gmra.mxu0 %v3729
        %v3810 = vpop.f32.mrf.mxu0
        %v3811 = vadd.f32 0.0, %v3810
        %v3812 = vpop.f32.mrf.mxu0
        %v3813 = vadd.f32 0.0, %v3812
        %3814 = vmatmul.bf16.gmra.mxu0 %v3730
        %v3815 = vpop.f32.mrf.mxu0
        %v3816 = vadd.f32 0.0, %v3815
        %v3817 = vpop.f32.mrf.mxu0
        %v3818 = vadd.f32 0.0, %v3817
        %3819 = vmatmul.bf16.gmra.mxu0 %v3731
        %v3820 = vpop.f32.mrf.mxu0
        %v3821 = vadd.f32 0.0, %v3820
        %v3822 = vpop.f32.mrf.mxu0
        %v3823 = vadd.f32 0.0, %v3822
        %3824 = vmatmul.bf16.gmra.mxu0 %v3732
        %v3825 = vpop.f32.mrf.mxu0
        %v3826 = vadd.f32 0.0, %v3825
        %v3827 = vpop.f32.mrf.mxu0
        %v3828 = vadd.f32 0.0, %v3827
        %3829 = vmatmul.bf16.gmra.mxu0 %v3733
        %v3830 = vpop.f32.mrf.mxu0
        %v3831 = vadd.f32 0.0, %v3830
        %v3832 = vpop.f32.mrf.mxu0
        %v3833 = vadd.f32 0.0, %v3832
        %3834 = vmatmul.bf16.gmra.mxu0 %v3734
        %v3835 = vpop.f32.mrf.mxu0
        %v3836 = vadd.f32 0.0, %v3835
        %v3837 = vpop.f32.mrf.mxu0
        %v3838 = vadd.f32 0.0, %v3837
        %3839 = vdwg.mxu0
        %v3856 = vunpack.c.l.b16 %v3629
        %v3857 = vunpack.c.l.b16 %v3630
        %v3858 = vunpack.c.l.b16 %v3631
        %v3859 = vunpack.c.l.b16 %v3632
        %v3860 = vunpack.c.l.b16 %v3633
        %v3861 = vunpack.c.l.b16 %v3634
        %v3862 = vunpack.c.l.b16 %v3635
        %v3863 = vunpack.c.l.b16 %v3636
        %v3864 = vunpack.c.l.b16 %v3637
        %v3865 = vunpack.c.l.b16 %v3638
        %v3866 = vunpack.c.l.b16 %v3639
        %v3867 = vunpack.c.l.b16 %v3640
        %v3868 = vunpack.c.l.b16 %v3641
        %v3869 = vunpack.c.l.b16 %v3642
        %v3870 = vunpack.c.l.b16 %v3643
        %v3871 = vunpack.c.l.b16 %v3644
        %v3872 = vpack.c.b16 %v3857, %v3856
        %v3873 = vpack.c.b16 %v3859, %v3858
        %v3874 = vpack.c.b16 %v3861, %v3860
        %v3875 = vpack.c.b16 %v3863, %v3862
        %v3876 = vpack.c.b16 %v3865, %v3864
        %v3877 = vpack.c.b16 %v3867, %v3866
        %v3878 = vpack.c.b16 %v3869, %v3868
        %v3879 = vpack.c.b16 %v3871, %v3870
        %v3904 = vunpack.c.l.b16 %v3646
        %v3905 = vunpack.c.l.b16 %v3647
        %v3906 = vunpack.c.l.b16 %v3648
        %v3907 = vunpack.c.l.b16 %v3649
        %v3908 = vunpack.c.l.b16 %v3650
        %v3909 = vunpack.c.l.b16 %v3651
        %v3910 = vunpack.c.l.b16 %v3652
        %v3911 = vunpack.c.l.b16 %v3653
        %v3912 = vunpack.c.l.b16 %v3654
        %v3913 = vunpack.c.l.b16 %v3655
        %v3914 = vunpack.c.l.b16 %v3656
        %v3915 = vunpack.c.l.b16 %v3657
        %v3916 = vunpack.c.l.b16 %v3658
        %v3917 = vunpack.c.l.b16 %v3659
        %v3918 = vunpack.c.l.b16 %v3660
        %v3919 = vunpack.c.l.b16 %v3661
        %v3920 = vpack.c.b16 %v3905, %v3904
        %v3921 = vpack.c.b16 %v3907, %v3906
        %v3922 = vpack.c.b16 %v3909, %v3908
        %v3923 = vpack.c.b16 %v3911, %v3910
        %v3924 = vpack.c.b16 %v3913, %v3912
        %v3925 = vpack.c.b16 %v3915, %v3914
        %v3926 = vpack.c.b16 %v3917, %v3916
        %v3927 = vpack.c.b16 %v3919, %v3918
        %3936 = vmatpush.bf16.msra.mxu0 %v3927
        %3937 = vmatpush.bf16.msra.mxu0 %v3926
        %3938 = vmatpush.bf16.msra.mxu0 %v3925
        %3939 = vmatpush.bf16.msra.mxu0 %v3924
        %3940 = vmatpush.bf16.msra.mxu0 %v3923
        %3941 = vmatpush.bf16.msra.mxu0 %v3922
        %3942 = vmatpush.bf16.msra.mxu0 %v3921
        %3943 = vmatpush.bf16.msra.mxu0 %v3920
        %3944 = vmatmul.bf16.gmra.mxu0 %v3872
        %v3945 = vpop.f32.mrf.mxu0
        %v3946 = vadd.f32 %v3801, %v3945
        %v3947 = vpop.f32.mrf.mxu0
        %v3948 = vadd.f32 %v3803, %v3947
        %3949 = vmatmul.bf16.gmra.mxu0 %v3873
        %v3950 = vpop.f32.mrf.mxu0
        %v3951 = vadd.f32 %v3806, %v3950
        %v3952 = vpop.f32.mrf.mxu0
        %v3953 = vadd.f32 %v3808, %v3952
        %3954 = vmatmul.bf16.gmra.mxu0 %v3874
        %v3955 = vpop.f32.mrf.mxu0
        %v3956 = vadd.f32 %v3811, %v3955
        %v3957 = vpop.f32.mrf.mxu0
        %v3958 = vadd.f32 %v3813, %v3957
        %3959 = vmatmul.bf16.gmra.mxu0 %v3875
        %v3960 = vpop.f32.mrf.mxu0
        %v3961 = vadd.f32 %v3816, %v3960
        %v3962 = vpop.f32.mrf.mxu0
        %v3963 = vadd.f32 %v3818, %v3962
        %3964 = vmatmul.bf16.gmra.mxu0 %v3876
        %v3965 = vpop.f32.mrf.mxu0
        %v3966 = vadd.f32 %v3821, %v3965
        %v3967 = vpop.f32.mrf.mxu0
        %v3968 = vadd.f32 %v3823, %v3967
        %3969 = vmatmul.bf16.gmra.mxu0 %v3877
        %v3970 = vpop.f32.mrf.mxu0
        %v3971 = vadd.f32 %v3826, %v3970
        %v3972 = vpop.f32.mrf.mxu0
        %v3973 = vadd.f32 %v3828, %v3972
        %3974 = vmatmul.bf16.gmra.mxu0 %v3878
        %v3975 = vpop.f32.mrf.mxu0
        %v3976 = vadd.f32 %v3831, %v3975
        %v3977 = vpop.f32.mrf.mxu0
        %v3978 = vadd.f32 %v3833, %v3977
        %3979 = vmatmul.bf16.gmra.mxu0 %v3879
        %v3980 = vpop.f32.mrf.mxu0
        %v3981 = vadd.f32 %v3836, %v3980
        %v3982 = vpop.f32.mrf.mxu0
        %v3983 = vadd.f32 %v3838, %v3982
        %3984 = vdwg.mxu0
        %v3985 = vld [vmem:[%s965 + $0xf8] sm:$0xf]
        %v3986 = vld [vmem:[%s965 + $0xfc] sm:$0xf]
        %v3987 = vld [vmem:[%s965 + $0x100] sm:$0xf]
        %v3988 = vld [vmem:[%s965 + $0x104] sm:$0xf]
        %v3989 = vld [vmem:[%s965 + $0x108] sm:$0xf]
        %v3990 = vld [vmem:[%s965 + $0x10c] sm:$0xf]
        %v3991 = vld [vmem:[%s965 + $0x110] sm:$0xf]
        %v3992 = vld [vmem:[%s965 + $0x114] sm:$0xf]
        %v3993 = vld [vmem:[%s965 + $0x118] sm:$0xf]
        %v3994 = vld [vmem:[%s965 + $0x11c] sm:$0xf]
        %v3995 = vld [vmem:[%s965 + $0x120] sm:$0xf]
        %v3996 = vld [vmem:[%s965 + $0x124] sm:$0xf]
        %v3997 = vld [vmem:[%s965 + $0x128] sm:$0xf]
        %v3998 = vld [vmem:[%s965 + $0x12c] sm:$0xf]
        %v3999 = vld [vmem:[%s965 + $0x130] sm:$0xf]
        %v4000 = vld [vmem:[%s965 + $0x134] sm:$0xf]
        %s4001 = scalar_lea.vmem [#allocation12], 448
        %v4002 = vld [vmem:[%s4001] sm:$0xf]
        %v4003 = vld [vmem:[%s4001 + $0x4] sm:$0xf]
        %v4004 = vld [vmem:[%s4001 + $0x8] sm:$0xf]
        %v4005 = vld [vmem:[%s4001 + $0xc] sm:$0xf]
        %v4006 = vld [vmem:[%s4001 + $0x10] sm:$0xf]
        %v4007 = vld [vmem:[%s4001 + $0x14] sm:$0xf]
        %v4008 = vld [vmem:[%s4001 + $0x18] sm:$0xf]
        %v4009 = vld [vmem:[%s4001 + $0x1c] sm:$0xf]
        %v4010 = vld [vmem:[%s4001 + $0x20] sm:$0xf]
        %v4011 = vld [vmem:[%s4001 + $0x24] sm:$0xf]
        %v4012 = vld [vmem:[%s4001 + $0x28] sm:$0xf]
        %v4013 = vld [vmem:[%s4001 + $0x2c] sm:$0xf]
        %v4014 = vld [vmem:[%s4001 + $0x30] sm:$0xf]
        %v4015 = vld [vmem:[%s4001 + $0x34] sm:$0xf]
        %v4016 = vld [vmem:[%s4001 + $0x38] sm:$0xf]
        %v4017 = vld [vmem:[%s4001 + $0x3c] sm:$0xf]
        %v4034 = vunpack.c.l.b16 %v3985
        %v4035 = vunpack.c.l.b16 %v3986
        %v4036 = vunpack.c.l.b16 %v3987
        %v4037 = vunpack.c.l.b16 %v3988
        %v4038 = vunpack.c.l.b16 %v3989
        %v4039 = vunpack.c.l.b16 %v3990
        %v4040 = vunpack.c.l.b16 %v3991
        %v4041 = vunpack.c.l.b16 %v3992
        %v4042 = vunpack.c.l.b16 %v3993
        %v4043 = vunpack.c.l.b16 %v3994
        %v4044 = vunpack.c.l.b16 %v3995
        %v4045 = vunpack.c.l.b16 %v3996
        %v4046 = vunpack.c.l.b16 %v3997
        %v4047 = vunpack.c.l.b16 %v3998
        %v4048 = vunpack.c.l.b16 %v3999
        %v4049 = vunpack.c.l.b16 %v4000
        %v4050 = vpack.c.b16 %v4035, %v4034
        %v4051 = vpack.c.b16 %v4037, %v4036
        %v4052 = vpack.c.b16 %v4039, %v4038
        %v4053 = vpack.c.b16 %v4041, %v4040
        %v4054 = vpack.c.b16 %v4043, %v4042
        %v4055 = vpack.c.b16 %v4045, %v4044
        %v4056 = vpack.c.b16 %v4047, %v4046
        %v4057 = vpack.c.b16 %v4049, %v4048
        %v4082 = vunpack.c.l.b16 %v4002
        %v4083 = vunpack.c.l.b16 %v4003
        %v4084 = vunpack.c.l.b16 %v4004
        %v4085 = vunpack.c.l.b16 %v4005
        %v4086 = vunpack.c.l.b16 %v4006
        %v4087 = vunpack.c.l.b16 %v4007
        %v4088 = vunpack.c.l.b16 %v4008
        %v4089 = vunpack.c.l.b16 %v4009
        %v4090 = vunpack.c.l.b16 %v4010
        %v4091 = vunpack.c.l.b16 %v4011
        %v4092 = vunpack.c.l.b16 %v4012
        %v4093 = vunpack.c.l.b16 %v4013
        %v4094 = vunpack.c.l.b16 %v4014
        %v4095 = vunpack.c.l.b16 %v4015
        %v4096 = vunpack.c.l.b16 %v4016
        %v4097 = vunpack.c.l.b16 %v4017
        %v4098 = vpack.c.b16 %v4083, %v4082
        %v4099 = vpack.c.b16 %v4085, %v4084
        %v4100 = vpack.c.b16 %v4087, %v4086
        %v4101 = vpack.c.b16 %v4089, %v4088
        %v4102 = vpack.c.b16 %v4091, %v4090
        %v4103 = vpack.c.b16 %v4093, %v4092
        %v4104 = vpack.c.b16 %v4095, %v4094
        %v4105 = vpack.c.b16 %v4097, %v4096
        %4114 = vmatpush.bf16.msra.mxu0 %v4105
        %4115 = vmatpush.bf16.msra.mxu0 %v4104
        %4116 = vmatpush.bf16.msra.mxu0 %v4103
        %4117 = vmatpush.bf16.msra.mxu0 %v4102
        %4118 = vmatpush.bf16.msra.mxu0 %v4101
        %4119 = vmatpush.bf16.msra.mxu0 %v4100
        %4120 = vmatpush.bf16.msra.mxu0 %v4099
        %4121 = vmatpush.bf16.msra.mxu0 %v4098
        %4122 = vmatmul.bf16.gmra.mxu0 %v4050
        %v4123 = vpop.f32.mrf.mxu0
        %v4124 = vadd.f32 0.0, %v4123
        %v4125 = vpop.f32.mrf.mxu0
        %v4126 = vadd.f32 0.0, %v4125
        %4127 = vmatmul.bf16.gmra.mxu0 %v4051
        %v4128 = vpop.f32.mrf.mxu0
        %v4129 = vadd.f32 0.0, %v4128
        %v4130 = vpop.f32.mrf.mxu0
        %v4131 = vadd.f32 0.0, %v4130
        %4132 = vmatmul.bf16.gmra.mxu0 %v4052
        %v4133 = vpop.f32.mrf.mxu0
        %v4134 = vadd.f32 0.0, %v4133
        %v4135 = vpop.f32.mrf.mxu0
        %v4136 = vadd.f32 0.0, %v4135
        %4137 = vmatmul.bf16.gmra.mxu0 %v4053
        %v4138 = vpop.f32.mrf.mxu0
        %v4139 = vadd.f32 0.0, %v4138
        %v4140 = vpop.f32.mrf.mxu0
        %v4141 = vadd.f32 0.0, %v4140
        %4142 = vmatmul.bf16.gmra.mxu0 %v4054
        %v4143 = vpop.f32.mrf.mxu0
        %v4144 = vadd.f32 0.0, %v4143
        %v4145 = vpop.f32.mrf.mxu0
        %v4146 = vadd.f32 0.0, %v4145
        %4147 = vmatmul.bf16.gmra.mxu0 %v4055
        %v4148 = vpop.f32.mrf.mxu0
        %v4149 = vadd.f32 0.0, %v4148
        %v4150 = vpop.f32.mrf.mxu0
        %v4151 = vadd.f32 0.0, %v4150
        %4152 = vmatmul.bf16.gmra.mxu0 %v4056
        %v4153 = vpop.f32.mrf.mxu0
        %v4154 = vadd.f32 0.0, %v4153
        %v4155 = vpop.f32.mrf.mxu0
        %v4156 = vadd.f32 0.0, %v4155
        %4157 = vmatmul.bf16.gmra.mxu0 %v4057
        %v4158 = vpop.f32.mrf.mxu0
        %v4159 = vadd.f32 0.0, %v4158
        %v4160 = vpop.f32.mrf.mxu0
        %v4161 = vadd.f32 0.0, %v4160
        %4162 = vdwg.mxu0
        %v4163 = vadd.f32 %v3946, %v4124
        %v4164 = vadd.f32 %v3948, %v4126
        %v4165 = vadd.f32 %v3951, %v4129
        %v4166 = vadd.f32 %v3953, %v4131
        %v4167 = vadd.f32 %v3956, %v4134
        %v4168 = vadd.f32 %v3958, %v4136
        %v4169 = vadd.f32 %v3961, %v4139
        %v4170 = vadd.f32 %v3963, %v4141
        %v4171 = vadd.f32 %v3966, %v4144
        %v4172 = vadd.f32 %v3968, %v4146
        %v4173 = vadd.f32 %v3971, %v4149
        %v4174 = vadd.f32 %v3973, %v4151
        %v4175 = vadd.f32 %v3976, %v4154
        %v4176 = vadd.f32 %v3978, %v4156
        %v4177 = vadd.f32 %v3981, %v4159
        %v4178 = vadd.f32 %v3983, %v4161
        %v4179 = vadd.f32 %v3613, %v4163
        %v4180 = vadd.f32 %v3614, %v4164
        %v4181 = vadd.f32 %v3615, %v4165
        %v4182 = vadd.f32 %v3616, %v4166
        %v4183 = vadd.f32 %v3617, %v4167
        %v4184 = vadd.f32 %v3618, %v4168
        %v4185 = vadd.f32 %v3619, %v4169
        %v4186 = vadd.f32 %v3620, %v4170
        %v4187 = vadd.f32 %v3621, %v4171
        %v4188 = vadd.f32 %v3622, %v4172
        %v4189 = vadd.f32 %v3623, %v4173
        %v4190 = vadd.f32 %v3624, %v4174
        %v4191 = vadd.f32 %v3625, %v4175
        %v4192 = vadd.f32 %v3626, %v4176
        %v4193 = vadd.f32 %v3627, %v4177
        %v4194 = vadd.f32 %v3628, %v4178
        %v4195 = vld [vmem:[%s965 + $0x3c] sm:$0xc]
        %v4196 = vld [vmem:[%s965 + $0x40] sm:$0xf]
        %v4197 = vld [vmem:[%s965 + $0x44] sm:$0xf]
        %v4198 = vld [vmem:[%s965 + $0x48] sm:$0xf]
        %v4199 = vld [vmem:[%s965 + $0x4c] sm:$0xf]
        %v4200 = vld [vmem:[%s965 + $0x50] sm:$0xf]
        %v4201 = vld [vmem:[%s965 + $0x54] sm:$0xf]
        %v4202 = vld [vmem:[%s965 + $0x58] sm:$0xf]
        %v4203 = vld [vmem:[%s965 + $0x5c] sm:$0xf]
        %v4204 = vld [vmem:[%s965 + $0x60] sm:$0xf]
        %v4205 = vld [vmem:[%s965 + $0x64] sm:$0xf]
        %v4206 = vld [vmem:[%s965 + $0x68] sm:$0xf]
        %v4207 = vld [vmem:[%s965 + $0x6c] sm:$0xf]
        %v4208 = vld [vmem:[%s965 + $0x70] sm:$0xf]
        %v4209 = vld [vmem:[%s965 + $0x74] sm:$0xf]
        %v4210 = vld [vmem:[%s965 + $0x78] sm:$0xf]
        %v4211 = vld [vmem:[%s965 + $0x7c] sm:$0x3]
        %s4212 = scalar_lea.vmem [#allocation12], 128
        %v4213 = vld [vmem:[%s4212] sm:$0xf]
        %v4214 = vld [vmem:[%s4212 + $0x4] sm:$0xf]
        %v4215 = vld [vmem:[%s4212 + $0x8] sm:$0xf]
        %v4216 = vld [vmem:[%s4212 + $0xc] sm:$0xf]
        %v4217 = vld [vmem:[%s4212 + $0x10] sm:$0xf]
        %v4218 = vld [vmem:[%s4212 + $0x14] sm:$0xf]
        %v4219 = vld [vmem:[%s4212 + $0x18] sm:$0xf]
        %v4220 = vld [vmem:[%s4212 + $0x1c] sm:$0xf]
        %v4221 = vld [vmem:[%s4212 + $0x20] sm:$0xf]
        %v4222 = vld [vmem:[%s4212 + $0x24] sm:$0xf]
        %v4223 = vld [vmem:[%s4212 + $0x28] sm:$0xf]
        %v4224 = vld [vmem:[%s4212 + $0x2c] sm:$0xf]
        %v4225 = vld [vmem:[%s4212 + $0x30] sm:$0xf]
        %v4226 = vld [vmem:[%s4212 + $0x34] sm:$0xf]
        %v4227 = vld [vmem:[%s4212 + $0x38] sm:$0xf]
        %v4228 = vld [vmem:[%s4212 + $0x3c] sm:$0xf]
        %v4229 = vld [vmem:[%s965 + $0x9c] sm:$0xc]
        %v4230 = vld [vmem:[%s965 + $0xa0] sm:$0xf]
        %v4231 = vld [vmem:[%s965 + $0xa4] sm:$0xf]
        %v4232 = vld [vmem:[%s965 + $0xa8] sm:$0xf]
        %v4233 = vld [vmem:[%s965 + $0xac] sm:$0xf]
        %v4234 = vld [vmem:[%s965 + $0xb0] sm:$0xf]
        %v4235 = vld [vmem:[%s965 + $0xb4] sm:$0xf]
        %v4236 = vld [vmem:[%s965 + $0xb8] sm:$0xf]
        %v4237 = vld [vmem:[%s965 + $0xbc] sm:$0xf]
        %v4238 = vld [vmem:[%s965 + $0xc0] sm:$0xf]
        %v4239 = vld [vmem:[%s965 + $0xc4] sm:$0xf]
        %v4240 = vld [vmem:[%s965 + $0xc8] sm:$0xf]
        %v4241 = vld [vmem:[%s965 + $0xcc] sm:$0xf]
        %v4242 = vld [vmem:[%s965 + $0xd0] sm:$0xf]
        %v4243 = vld [vmem:[%s965 + $0xd4] sm:$0xf]
        %v4244 = vld [vmem:[%s965 + $0xd8] sm:$0xf]
        %v4245 = vld [vmem:[%s965 + $0xdc] sm:$0x3]
        %s4246 = scalar_lea.vmem [#allocation12], 320
        %v4247 = vld [vmem:[%s4246] sm:$0xf]
        %v4248 = vld [vmem:[%s4246 + $0x4] sm:$0xf]
        %v4249 = vld [vmem:[%s4246 + $0x8] sm:$0xf]
        %v4250 = vld [vmem:[%s4246 + $0xc] sm:$0xf]
        %v4251 = vld [vmem:[%s4246 + $0x10] sm:$0xf]
        %v4252 = vld [vmem:[%s4246 + $0x14] sm:$0xf]
        %v4253 = vld [vmem:[%s4246 + $0x18] sm:$0xf]
        %v4254 = vld [vmem:[%s4246 + $0x1c] sm:$0xf]
        %v4255 = vld [vmem:[%s4246 + $0x20] sm:$0xf]
        %v4256 = vld [vmem:[%s4246 + $0x24] sm:$0xf]
        %v4257 = vld [vmem:[%s4246 + $0x28] sm:$0xf]
        %v4258 = vld [vmem:[%s4246 + $0x2c] sm:$0xf]
        %v4259 = vld [vmem:[%s4246 + $0x30] sm:$0xf]
        %v4260 = vld [vmem:[%s4246 + $0x34] sm:$0xf]
        %v4261 = vld [vmem:[%s4246 + $0x38] sm:$0xf]
        %v4262 = vld [vmem:[%s4246 + $0x3c] sm:$0xf]
        %v4280 = vunpack.c.l.b16 %v4229
        %v4281 = vunpack.c.l.b16 %v4230
        %v4282 = vunpack.c.l.b16 %v4231
        %v4283 = vunpack.c.l.b16 %v4232
        %v4284 = vunpack.c.l.b16 %v4233
        %v4285 = vunpack.c.l.b16 %v4234
        %v4286 = vunpack.c.l.b16 %v4235
        %v4287 = vunpack.c.l.b16 %v4236
        %v4288 = vunpack.c.l.b16 %v4237
        %v4289 = vunpack.c.l.b16 %v4238
        %v4290 = vunpack.c.l.b16 %v4239
        %v4291 = vunpack.c.l.b16 %v4240
        %v4292 = vunpack.c.l.b16 %v4241
        %v4293 = vunpack.c.l.b16 %v4242
        %v4294 = vunpack.c.l.b16 %v4243
        %v4295 = vunpack.c.l.b16 %v4244
        %v4296 = vunpack.c.l.b16 %v4245
        %v4297 = vpack.c.b16 %v4281, %v4280
        %v4298 = vpack.c.b16 %v4283, %v4282
        %v4299 = vpack.c.b16 %v4285, %v4284
        %v4300 = vpack.c.b16 %v4287, %v4286
        %v4301 = vpack.c.b16 %v4289, %v4288
        %v4302 = vpack.c.b16 %v4291, %v4290
        %v4303 = vpack.c.b16 %v4293, %v4292
        %v4304 = vpack.c.b16 %v4295, %v4294
        %v4305 = vpack.c.b16 %v4296, %v4296
        %v4306 = vrot.slane %v4297, 2
        %v4307 = vrot.slane %v4298, 2
        %v4308 = vsel %vm3078, %v4306, %v4307
        %v4309 = vrot.slane %v4299, 2
        %v4310 = vsel %vm3078, %v4307, %v4309
        %v4311 = vrot.slane %v4300, 2
        %v4312 = vsel %vm3078, %v4309, %v4311
        %v4313 = vrot.slane %v4301, 2
        %v4314 = vsel %vm3078, %v4311, %v4313
        %v4315 = vrot.slane %v4302, 2
        %v4316 = vsel %vm3078, %v4313, %v4315
        %v4317 = vrot.slane %v4303, 2
        %v4318 = vsel %vm3078, %v4315, %v4317
        %v4319 = vrot.slane %v4304, 2
        %v4320 = vsel %vm3078, %v4317, %v4319
        %v4321 = vrot.slane %v4305, 2
        %v4322 = vsel %vm3078, %v4319, %v4321
        %v4347 = vunpack.c.l.b16 %v4247
        %v4348 = vunpack.c.l.b16 %v4248
        %v4349 = vunpack.c.l.b16 %v4249
        %v4350 = vunpack.c.l.b16 %v4250
        %v4351 = vunpack.c.l.b16 %v4251
        %v4352 = vunpack.c.l.b16 %v4252
        %v4353 = vunpack.c.l.b16 %v4253
        %v4354 = vunpack.c.l.b16 %v4254
        %v4355 = vunpack.c.l.b16 %v4255
        %v4356 = vunpack.c.l.b16 %v4256
        %v4357 = vunpack.c.l.b16 %v4257
        %v4358 = vunpack.c.l.b16 %v4258
        %v4359 = vunpack.c.l.b16 %v4259
        %v4360 = vunpack.c.l.b16 %v4260
        %v4361 = vunpack.c.l.b16 %v4261
        %v4362 = vunpack.c.l.b16 %v4262
        %v4363 = vpack.c.b16 %v4348, %v4347
        %v4364 = vpack.c.b16 %v4350, %v4349
        %v4365 = vpack.c.b16 %v4352, %v4351
        %v4366 = vpack.c.b16 %v4354, %v4353
        %v4367 = vpack.c.b16 %v4356, %v4355
        %v4368 = vpack.c.b16 %v4358, %v4357
        %v4369 = vpack.c.b16 %v4360, %v4359
        %v4370 = vpack.c.b16 %v4362, %v4361
        %4379 = vmatpush.bf16.msra.mxu0 %v4370
        %4380 = vmatpush.bf16.msra.mxu0 %v4369
        %4381 = vmatpush.bf16.msra.mxu0 %v4368
        %4382 = vmatpush.bf16.msra.mxu0 %v4367
        %4383 = vmatpush.bf16.msra.mxu0 %v4366
        %4384 = vmatpush.bf16.msra.mxu0 %v4365
        %4385 = vmatpush.bf16.msra.mxu0 %v4364
        %4386 = vmatpush.bf16.msra.mxu0 %v4363
        %4387 = vmatmul.bf16.gmra.mxu0 %v4308
        %v4388 = vpop.f32.mrf.mxu0
        %v4389 = vadd.f32 0.0, %v4388
        %v4390 = vpop.f32.mrf.mxu0
        %v4391 = vadd.f32 0.0, %v4390
        %4392 = vmatmul.bf16.gmra.mxu0 %v4310
        %v4393 = vpop.f32.mrf.mxu0
        %v4394 = vadd.f32 0.0, %v4393
        %v4395 = vpop.f32.mrf.mxu0
        %v4396 = vadd.f32 0.0, %v4395
        %4397 = vmatmul.bf16.gmra.mxu0 %v4312
        %v4398 = vpop.f32.mrf.mxu0
        %v4399 = vadd.f32 0.0, %v4398
        %v4400 = vpop.f32.mrf.mxu0
        %v4401 = vadd.f32 0.0, %v4400
        %4402 = vmatmul.bf16.gmra.mxu0 %v4314
        %v4403 = vpop.f32.mrf.mxu0
        %v4404 = vadd.f32 0.0, %v4403
        %v4405 = vpop.f32.mrf.mxu0
        %v4406 = vadd.f32 0.0, %v4405
        %4407 = vmatmul.bf16.gmra.mxu0 %v4316
        %v4408 = vpop.f32.mrf.mxu0
        %v4409 = vadd.f32 0.0, %v4408
        %v4410 = vpop.f32.mrf.mxu0
        %v4411 = vadd.f32 0.0, %v4410
        %4412 = vmatmul.bf16.gmra.mxu0 %v4318
        %v4413 = vpop.f32.mrf.mxu0
        %v4414 = vadd.f32 0.0, %v4413
        %v4415 = vpop.f32.mrf.mxu0
        %v4416 = vadd.f32 0.0, %v4415
        %4417 = vmatmul.bf16.gmra.mxu0 %v4320
        %v4418 = vpop.f32.mrf.mxu0
        %v4419 = vadd.f32 0.0, %v4418
        %v4420 = vpop.f32.mrf.mxu0
        %v4421 = vadd.f32 0.0, %v4420
        %4422 = vmatmul.bf16.gmra.mxu0 %v4322
        %v4423 = vpop.f32.mrf.mxu0
        %v4424 = vadd.f32 0.0, %v4423
        %v4425 = vpop.f32.mrf.mxu0
        %v4426 = vadd.f32 0.0, %v4425
        %4427 = vdwg.mxu0
        %v4445 = vunpack.c.l.b16 %v4195
        %v4446 = vunpack.c.l.b16 %v4196
        %v4447 = vunpack.c.l.b16 %v4197
        %v4448 = vunpack.c.l.b16 %v4198
        %v4449 = vunpack.c.l.b16 %v4199
        %v4450 = vunpack.c.l.b16 %v4200
        %v4451 = vunpack.c.l.b16 %v4201
        %v4452 = vunpack.c.l.b16 %v4202
        %v4453 = vunpack.c.l.b16 %v4203
        %v4454 = vunpack.c.l.b16 %v4204
        %v4455 = vunpack.c.l.b16 %v4205
        %v4456 = vunpack.c.l.b16 %v4206
        %v4457 = vunpack.c.l.b16 %v4207
        %v4458 = vunpack.c.l.b16 %v4208
        %v4459 = vunpack.c.l.b16 %v4209
        %v4460 = vunpack.c.l.b16 %v4210
        %v4461 = vunpack.c.l.b16 %v4211
        %v4462 = vpack.c.b16 %v4446, %v4445
        %v4463 = vpack.c.b16 %v4448, %v4447
        %v4464 = vpack.c.b16 %v4450, %v4449
        %v4465 = vpack.c.b16 %v4452, %v4451
        %v4466 = vpack.c.b16 %v4454, %v4453
        %v4467 = vpack.c.b16 %v4456, %v4455
        %v4468 = vpack.c.b16 %v4458, %v4457
        %v4469 = vpack.c.b16 %v4460, %v4459
        %v4470 = vpack.c.b16 %v4461, %v4461
        %v4471 = vrot.slane %v4462, 2
        %v4472 = vrot.slane %v4463, 2
        %v4473 = vsel %vm3078, %v4471, %v4472
        %v4474 = vrot.slane %v4464, 2
        %v4475 = vsel %vm3078, %v4472, %v4474
        %v4476 = vrot.slane %v4465, 2
        %v4477 = vsel %vm3078, %v4474, %v4476
        %v4478 = vrot.slane %v4466, 2
        %v4479 = vsel %vm3078, %v4476, %v4478
        %v4480 = vrot.slane %v4467, 2
        %v4481 = vsel %vm3078, %v4478, %v4480
        %v4482 = vrot.slane %v4468, 2
        %v4483 = vsel %vm3078, %v4480, %v4482
        %v4484 = vrot.slane %v4469, 2
        %v4485 = vsel %vm3078, %v4482, %v4484
        %v4486 = vrot.slane %v4470, 2
        %v4487 = vsel %vm3078, %v4484, %v4486
        %v4512 = vunpack.c.l.b16 %v4213
        %v4513 = vunpack.c.l.b16 %v4214
        %v4514 = vunpack.c.l.b16 %v4215
        %v4515 = vunpack.c.l.b16 %v4216
        %v4516 = vunpack.c.l.b16 %v4217
        %v4517 = vunpack.c.l.b16 %v4218
        %v4518 = vunpack.c.l.b16 %v4219
        %v4519 = vunpack.c.l.b16 %v4220
        %v4520 = vunpack.c.l.b16 %v4221
        %v4521 = vunpack.c.l.b16 %v4222
        %v4522 = vunpack.c.l.b16 %v4223
        %v4523 = vunpack.c.l.b16 %v4224
        %v4524 = vunpack.c.l.b16 %v4225
        %v4525 = vunpack.c.l.b16 %v4226
        %v4526 = vunpack.c.l.b16 %v4227
        %v4527 = vunpack.c.l.b16 %v4228
        %v4528 = vpack.c.b16 %v4513, %v4512
        %v4529 = vpack.c.b16 %v4515, %v4514
        %v4530 = vpack.c.b16 %v4517, %v4516
        %v4531 = vpack.c.b16 %v4519, %v4518
        %v4532 = vpack.c.b16 %v4521, %v4520
        %v4533 = vpack.c.b16 %v4523, %v4522
        %v4534 = vpack.c.b16 %v4525, %v4524
        %v4535 = vpack.c.b16 %v4527, %v4526
        %4544 = vmatpush.bf16.msra.mxu0 %v4535
        %4545 = vmatpush.bf16.msra.mxu0 %v4534
        %4546 = vmatpush.bf16.msra.mxu0 %v4533
        %4547 = vmatpush.bf16.msra.mxu0 %v4532
        %4548 = vmatpush.bf16.msra.mxu0 %v4531
        %4549 = vmatpush.bf16.msra.mxu0 %v4530
        %4550 = vmatpush.bf16.msra.mxu0 %v4529
        %4551 = vmatpush.bf16.msra.mxu0 %v4528
        %4552 = vmatmul.bf16.gmra.mxu0 %v4473
        %v4553 = vpop.f32.mrf.mxu0
        %v4554 = vadd.f32 %v4389, %v4553
        %v4555 = vpop.f32.mrf.mxu0
        %v4556 = vadd.f32 %v4391, %v4555
        %4557 = vmatmul.bf16.gmra.mxu0 %v4475
        %v4558 = vpop.f32.mrf.mxu0
        %v4559 = vadd.f32 %v4394, %v4558
        %v4560 = vpop.f32.mrf.mxu0
        %v4561 = vadd.f32 %v4396, %v4560
        %4562 = vmatmul.bf16.gmra.mxu0 %v4477
        %v4563 = vpop.f32.mrf.mxu0
        %v4564 = vadd.f32 %v4399, %v4563
        %v4565 = vpop.f32.mrf.mxu0
        %v4566 = vadd.f32 %v4401, %v4565
        %4567 = vmatmul.bf16.gmra.mxu0 %v4479
        %v4568 = vpop.f32.mrf.mxu0
        %v4569 = vadd.f32 %v4404, %v4568
        %v4570 = vpop.f32.mrf.mxu0
        %v4571 = vadd.f32 %v4406, %v4570
        %4572 = vmatmul.bf16.gmra.mxu0 %v4481
        %v4573 = vpop.f32.mrf.mxu0
        %v4574 = vadd.f32 %v4409, %v4573
        %v4575 = vpop.f32.mrf.mxu0
        %v4576 = vadd.f32 %v4411, %v4575
        %4577 = vmatmul.bf16.gmra.mxu0 %v4483
        %v4578 = vpop.f32.mrf.mxu0
        %v4579 = vadd.f32 %v4414, %v4578
        %v4580 = vpop.f32.mrf.mxu0
        %v4581 = vadd.f32 %v4416, %v4580
        %4582 = vmatmul.bf16.gmra.mxu0 %v4485
        %v4583 = vpop.f32.mrf.mxu0
        %v4584 = vadd.f32 %v4419, %v4583
        %v4585 = vpop.f32.mrf.mxu0
        %v4586 = vadd.f32 %v4421, %v4585
        %4587 = vmatmul.bf16.gmra.mxu0 %v4487
        %v4588 = vpop.f32.mrf.mxu0
        %v4589 = vadd.f32 %v4424, %v4588
        %v4590 = vpop.f32.mrf.mxu0
        %v4591 = vadd.f32 %v4426, %v4590
        %4592 = vdwg.mxu0
        %v4593 = vld [vmem:[%s965 + $0xfc] sm:$0xc]
        %v4594 = vld [vmem:[%s965 + $0x100] sm:$0xf]
        %v4595 = vld [vmem:[%s965 + $0x104] sm:$0xf]
        %v4596 = vld [vmem:[%s965 + $0x108] sm:$0xf]
        %v4597 = vld [vmem:[%s965 + $0x10c] sm:$0xf]
        %v4598 = vld [vmem:[%s965 + $0x110] sm:$0xf]
        %v4599 = vld [vmem:[%s965 + $0x114] sm:$0xf]
        %v4600 = vld [vmem:[%s965 + $0x118] sm:$0xf]
        %v4601 = vld [vmem:[%s965 + $0x11c] sm:$0xf]
        %v4602 = vld [vmem:[%s965 + $0x120] sm:$0xf]
        %v4603 = vld [vmem:[%s965 + $0x124] sm:$0xf]
        %v4604 = vld [vmem:[%s965 + $0x128] sm:$0xf]
        %v4605 = vld [vmem:[%s965 + $0x12c] sm:$0xf]
        %v4606 = vld [vmem:[%s965 + $0x130] sm:$0xf]
        %v4607 = vld [vmem:[%s965 + $0x134] sm:$0xf]
        %v4608 = vld [vmem:[%s965 + $0x138] sm:$0xf]
        %v4609 = vld [vmem:[%s965 + $0x13c] sm:$0x3]
        %s4610 = scalar_lea.vmem [#allocation12], 512
        %v4611 = vld [vmem:[%s4610] sm:$0xf]
        %v4612 = vld [vmem:[%s4610 + $0x4] sm:$0xf]
        %v4613 = vld [vmem:[%s4610 + $0x8] sm:$0xf]
        %v4614 = vld [vmem:[%s4610 + $0xc] sm:$0xf]
        %v4615 = vld [vmem:[%s4610 + $0x10] sm:$0xf]
        %v4616 = vld [vmem:[%s4610 + $0x14] sm:$0xf]
        %v4617 = vld [vmem:[%s4610 + $0x18] sm:$0xf]
        %v4618 = vld [vmem:[%s4610 + $0x1c] sm:$0xf]
        %v4619 = vld [vmem:[%s4610 + $0x20] sm:$0xf]
        %v4620 = vld [vmem:[%s4610 + $0x24] sm:$0xf]
        %v4621 = vld [vmem:[%s4610 + $0x28] sm:$0xf]
        %v4622 = vld [vmem:[%s4610 + $0x2c] sm:$0xf]
        %v4623 = vld [vmem:[%s4610 + $0x30] sm:$0xf]
        %v4624 = vld [vmem:[%s4610 + $0x34] sm:$0xf]
        %v4625 = vld [vmem:[%s4610 + $0x38] sm:$0xf]
        %v4626 = vld [vmem:[%s4610 + $0x3c] sm:$0xf]
        %v4644 = vunpack.c.l.b16 %v4593
        %v4645 = vunpack.c.l.b16 %v4594
        %v4646 = vunpack.c.l.b16 %v4595
        %v4647 = vunpack.c.l.b16 %v4596
        %v4648 = vunpack.c.l.b16 %v4597
        %v4649 = vunpack.c.l.b16 %v4598
        %v4650 = vunpack.c.l.b16 %v4599
        %v4651 = vunpack.c.l.b16 %v4600
        %v4652 = vunpack.c.l.b16 %v4601
        %v4653 = vunpack.c.l.b16 %v4602
        %v4654 = vunpack.c.l.b16 %v4603
        %v4655 = vunpack.c.l.b16 %v4604
        %v4656 = vunpack.c.l.b16 %v4605
        %v4657 = vunpack.c.l.b16 %v4606
        %v4658 = vunpack.c.l.b16 %v4607
        %v4659 = vunpack.c.l.b16 %v4608
        %v4660 = vunpack.c.l.b16 %v4609
        %v4661 = vpack.c.b16 %v4645, %v4644
        %v4662 = vpack.c.b16 %v4647, %v4646
        %v4663 = vpack.c.b16 %v4649, %v4648
        %v4664 = vpack.c.b16 %v4651, %v4650
        %v4665 = vpack.c.b16 %v4653, %v4652
        %v4666 = vpack.c.b16 %v4655, %v4654
        %v4667 = vpack.c.b16 %v4657, %v4656
        %v4668 = vpack.c.b16 %v4659, %v4658
        %v4669 = vpack.c.b16 %v4660, %v4660
        %v4670 = vrot.slane %v4661, 2
        %v4671 = vrot.slane %v4662, 2
        %v4672 = vsel %vm3078, %v4670, %v4671
        %v4673 = vrot.slane %v4663, 2
        %v4674 = vsel %vm3078, %v4671, %v4673
        %v4675 = vrot.slane %v4664, 2
        %v4676 = vsel %vm3078, %v4673, %v4675
        %v4677 = vrot.slane %v4665, 2
        %v4678 = vsel %vm3078, %v4675, %v4677
        %v4679 = vrot.slane %v4666, 2
        %v4680 = vsel %vm3078, %v4677, %v4679
        %v4681 = vrot.slane %v4667, 2
        %v4682 = vsel %vm3078, %v4679, %v4681
        %v4683 = vrot.slane %v4668, 2
        %v4684 = vsel %vm3078, %v4681, %v4683
        %v4685 = vrot.slane %v4669, 2
        %v4686 = vsel %vm3078, %v4683, %v4685
        %v4711 = vunpack.c.l.b16 %v4611
        %v4712 = vunpack.c.l.b16 %v4612
        %v4713 = vunpack.c.l.b16 %v4613
        %v4714 = vunpack.c.l.b16 %v4614
        %v4715 = vunpack.c.l.b16 %v4615
        %v4716 = vunpack.c.l.b16 %v4616
        %v4717 = vunpack.c.l.b16 %v4617
        %v4718 = vunpack.c.l.b16 %v4618
        %v4719 = vunpack.c.l.b16 %v4619
        %v4720 = vunpack.c.l.b16 %v4620
        %v4721 = vunpack.c.l.b16 %v4621
        %v4722 = vunpack.c.l.b16 %v4622
        %v4723 = vunpack.c.l.b16 %v4623
        %v4724 = vunpack.c.l.b16 %v4624
        %v4725 = vunpack.c.l.b16 %v4625
        %v4726 = vunpack.c.l.b16 %v4626
        %v4727 = vpack.c.b16 %v4712, %v4711
        %v4728 = vpack.c.b16 %v4714, %v4713
        %v4729 = vpack.c.b16 %v4716, %v4715
        %v4730 = vpack.c.b16 %v4718, %v4717
        %v4731 = vpack.c.b16 %v4720, %v4719
        %v4732 = vpack.c.b16 %v4722, %v4721
        %v4733 = vpack.c.b16 %v4724, %v4723
        %v4734 = vpack.c.b16 %v4726, %v4725
        %4743 = vmatpush.bf16.msra.mxu0 %v4734
        %4744 = vmatpush.bf16.msra.mxu0 %v4733
        %4745 = vmatpush.bf16.msra.mxu0 %v4732
        %4746 = vmatpush.bf16.msra.mxu0 %v4731
        %4747 = vmatpush.bf16.msra.mxu0 %v4730
        %4748 = vmatpush.bf16.msra.mxu0 %v4729
        %4749 = vmatpush.bf16.msra.mxu0 %v4728
        %4750 = vmatpush.bf16.msra.mxu0 %v4727
        %4751 = vmatmul.bf16.gmra.mxu0 %v4672
        %v4752 = vpop.f32.mrf.mxu0
        %v4753 = vadd.f32 0.0, %v4752
        %v4754 = vpop.f32.mrf.mxu0
        %v4755 = vadd.f32 0.0, %v4754
        %4756 = vmatmul.bf16.gmra.mxu0 %v4674
        %v4757 = vpop.f32.mrf.mxu0
        %v4758 = vadd.f32 0.0, %v4757
        %v4759 = vpop.f32.mrf.mxu0
        %v4760 = vadd.f32 0.0, %v4759
        %4761 = vmatmul.bf16.gmra.mxu0 %v4676
        %v4762 = vpop.f32.mrf.mxu0
        %v4763 = vadd.f32 0.0, %v4762
        %v4764 = vpop.f32.mrf.mxu0
        %v4765 = vadd.f32 0.0, %v4764
        %4766 = vmatmul.bf16.gmra.mxu0 %v4678
        %v4767 = vpop.f32.mrf.mxu0
        %v4768 = vadd.f32 0.0, %v4767
        %v4769 = vpop.f32.mrf.mxu0
        %v4770 = vadd.f32 0.0, %v4769
        %4771 = vmatmul.bf16.gmra.mxu0 %v4680
        %v4772 = vpop.f32.mrf.mxu0
        %v4773 = vadd.f32 0.0, %v4772
        %v4774 = vpop.f32.mrf.mxu0
        %v4775 = vadd.f32 0.0, %v4774
        %4776 = vmatmul.bf16.gmra.mxu0 %v4682
        %v4777 = vpop.f32.mrf.mxu0
        %v4778 = vadd.f32 0.0, %v4777
        %v4779 = vpop.f32.mrf.mxu0
        %v4780 = vadd.f32 0.0, %v4779
        %4781 = vmatmul.bf16.gmra.mxu0 %v4684
        %v4782 = vpop.f32.mrf.mxu0
        %v4783 = vadd.f32 0.0, %v4782
        %v4784 = vpop.f32.mrf.mxu0
        %v4785 = vadd.f32 0.0, %v4784
        %4786 = vmatmul.bf16.gmra.mxu0 %v4686
        %v4787 = vpop.f32.mrf.mxu0
        %v4788 = vadd.f32 0.0, %v4787
        %v4789 = vpop.f32.mrf.mxu0
        %v4790 = vadd.f32 0.0, %v4789
        %4791 = vdwg.mxu0
        %v4792 = vadd.f32 %v4554, %v4753
        %v4793 = vadd.f32 %v4556, %v4755
        %v4794 = vadd.f32 %v4559, %v4758
        %v4795 = vadd.f32 %v4561, %v4760
        %v4796 = vadd.f32 %v4564, %v4763
        %v4797 = vadd.f32 %v4566, %v4765
        %v4798 = vadd.f32 %v4569, %v4768
        %v4799 = vadd.f32 %v4571, %v4770
        %v4800 = vadd.f32 %v4574, %v4773
        %v4801 = vadd.f32 %v4576, %v4775
        %v4802 = vadd.f32 %v4579, %v4778
        %v4803 = vadd.f32 %v4581, %v4780
        %v4804 = vadd.f32 %v4584, %v4783
        %v4805 = vadd.f32 %v4586, %v4785
        %v4806 = vadd.f32 %v4589, %v4788
        %v4807 = vadd.f32 %v4591, %v4790
        %v4808 = vsel %vm935, 1, 0
        %v4809 = vsel %vm936, 1, 0
        %v4810 = vsel %vm937, 1, 0
        %v4811 = vsel %vm938, 1, 0
        %v4812 = vsel %vm939, 1, 0
        %v4813 = vsel %vm940, 1, 0
        %v4814 = vsel %vm941, 1, 0
        %v4815 = vsel %vm942, 1, 0
        %v4816 = vsel %vm943, 1, 0
        %v4817 = vsel %vm944, 1, 0
        %v4818 = vsel %vm945, 1, 0
        %v4819 = vsel %vm946, 1, 0
        %v4820 = vsel %vm947, 1, 0
        %v4821 = vsel %vm948, 1, 0
        %v4822 = vsel %vm949, 1, 0
        %v4823 = vsel %vm950, 1, 0
        %vm4824 = vcmp.eq.s32.totalorder %v4808, 1
        %vm4825 = vcmp.eq.s32.totalorder %v4809, 1
        %vm4826 = vcmp.eq.s32.totalorder %v4810, 1
        %vm4827 = vcmp.eq.s32.totalorder %v4811, 1
        %vm4828 = vcmp.eq.s32.totalorder %v4812, 1
        %vm4829 = vcmp.eq.s32.totalorder %v4813, 1
        %vm4830 = vcmp.eq.s32.totalorder %v4814, 1
        %vm4831 = vcmp.eq.s32.totalorder %v4815, 1
        %vm4832 = vcmp.eq.s32.totalorder %v4816, 1
        %vm4833 = vcmp.eq.s32.totalorder %v4817, 1
        %vm4834 = vcmp.eq.s32.totalorder %v4818, 1
        %vm4835 = vcmp.eq.s32.totalorder %v4819, 1
        %vm4836 = vcmp.eq.s32.totalorder %v4820, 1
        %vm4837 = vcmp.eq.s32.totalorder %v4821, 1
        %vm4838 = vcmp.eq.s32.totalorder %v4822, 1
        %vm4839 = vcmp.eq.s32.totalorder %v4823, 1
        %v4840 = vsel %vm4824, %v4792, 0.0
        %v4841 = vsel %vm4825, %v4793, 0.0
        %v4842 = vsel %vm4826, %v4794, 0.0
        %v4843 = vsel %vm4827, %v4795, 0.0
        %v4844 = vsel %vm4828, %v4796, 0.0
        %v4845 = vsel %vm4829, %v4797, 0.0
        %v4846 = vsel %vm4830, %v4798, 0.0
        %v4847 = vsel %vm4831, %v4799, 0.0
        %v4848 = vsel %vm4832, %v4800, 0.0
        %v4849 = vsel %vm4833, %v4801, 0.0
        %v4850 = vsel %vm4834, %v4802, 0.0
        %v4851 = vsel %vm4835, %v4803, 0.0
        %v4852 = vsel %vm4836, %v4804, 0.0
        %v4853 = vsel %vm4837, %v4805, 0.0
        %v4854 = vsel %vm4838, %v4806, 0.0
        %v4855 = vsel %vm4839, %v4807, 0.0
        %v4856 = vadd.f32 %v4179, %v4840
        %v4857 = vadd.f32 %v4180, %v4841
        %v4858 = vadd.f32 %v4181, %v4842
        %v4859 = vadd.f32 %v4182, %v4843
        %v4860 = vadd.f32 %v4183, %v4844
        %v4861 = vadd.f32 %v4184, %v4845
        %v4862 = vadd.f32 %v4185, %v4846
        %v4863 = vadd.f32 %v4186, %v4847
        %v4864 = vadd.f32 %v4187, %v4848
        %v4865 = vadd.f32 %v4188, %v4849
        %v4866 = vadd.f32 %v4189, %v4850
        %v4867 = vadd.f32 %v4190, %v4851
        %v4868 = vadd.f32 %v4191, %v4852
        %v4869 = vadd.f32 %v4192, %v4853
        %v4870 = vadd.f32 %v4193, %v4854
        %v4871 = vadd.f32 %v4194, %v4855
        %s4872 = scalar_lea.vmem [#allocation4], 256
        %4873 = vst [vmem:[%s4872] sm:$0xff] %v4856
        %4874 = vst [vmem:[%s4872 + $0x8] sm:$0xff] %v4857
        %4875 = vst [vmem:[%s4872 + $0x10] sm:$0xff] %v4858
        %4876 = vst [vmem:[%s4872 + $0x18] sm:$0xff] %v4859
        %4877 = vst [vmem:[%s4872 + $0x20] sm:$0xff] %v4860
        %4878 = vst [vmem:[%s4872 + $0x28] sm:$0xff] %v4861
        %4879 = vst [vmem:[%s4872 + $0x30] sm:$0xff] %v4862
        %4880 = vst [vmem:[%s4872 + $0x38] sm:$0xff] %v4863
        %4881 = vst [vmem:[%s4872 + $0x40] sm:$0xff] %v4864
        %4882 = vst [vmem:[%s4872 + $0x48] sm:$0xff] %v4865
        %4883 = vst [vmem:[%s4872 + $0x50] sm:$0xff] %v4866
        %4884 = vst [vmem:[%s4872 + $0x58] sm:$0xff] %v4867
        %4885 = vst [vmem:[%s4872 + $0x60] sm:$0xff] %v4868
        %4886 = vst [vmem:[%s4872 + $0x68] sm:$0xff] %v4869
        %4887 = vst [vmem:[%s4872 + $0x70] sm:$0xff] %v4870
        %4888 = vst [vmem:[%s4872 + $0x78] sm:$0xff] %v4871
        %v4889 = vld [vmem:[%s965 + $0x98] sm:$0xf]
        %v4890 = vld [vmem:[%s965 + $0x9c] sm:$0xf]
        %v4891 = vld [vmem:[%s965 + $0xa0] sm:$0xf]
        %v4892 = vld [vmem:[%s965 + $0xa4] sm:$0xf]
        %v4893 = vld [vmem:[%s965 + $0xa8] sm:$0xf]
        %v4894 = vld [vmem:[%s965 + $0xac] sm:$0xf]
        %v4895 = vld [vmem:[%s965 + $0xb0] sm:$0xf]
        %v4896 = vld [vmem:[%s965 + $0xb4] sm:$0xf]
        %v4897 = vld [vmem:[%s965 + $0xb8] sm:$0xf]
        %v4898 = vld [vmem:[%s965 + $0xbc] sm:$0xf]
        %v4899 = vld [vmem:[%s965 + $0xc0] sm:$0xf]
        %v4900 = vld [vmem:[%s965 + $0xc4] sm:$0xf]
        %v4901 = vld [vmem:[%s965 + $0xc8] sm:$0xf]
        %v4902 = vld [vmem:[%s965 + $0xcc] sm:$0xf]
        %v4903 = vld [vmem:[%s965 + $0xd0] sm:$0xf]
        %v4904 = vld [vmem:[%s965 + $0xd4] sm:$0xf]
        %s4905 = scalar_lea.vmem [#allocation14], 256
        %v4906 = vld [vmem:[%s4905] sm:$0xf]
        %v4907 = vld [vmem:[%s4905 + $0x4] sm:$0xf]
        %v4908 = vld [vmem:[%s4905 + $0x8] sm:$0xf]
        %v4909 = vld [vmem:[%s4905 + $0xc] sm:$0xf]
        %v4910 = vld [vmem:[%s4905 + $0x10] sm:$0xf]
        %v4911 = vld [vmem:[%s4905 + $0x14] sm:$0xf]
        %v4912 = vld [vmem:[%s4905 + $0x18] sm:$0xf]
        %v4913 = vld [vmem:[%s4905 + $0x1c] sm:$0xf]
        %v4914 = vld [vmem:[%s4905 + $0x20] sm:$0xf]
        %v4915 = vld [vmem:[%s4905 + $0x24] sm:$0xf]
        %v4916 = vld [vmem:[%s4905 + $0x28] sm:$0xf]
        %v4917 = vld [vmem:[%s4905 + $0x2c] sm:$0xf]
        %v4918 = vld [vmem:[%s4905 + $0x30] sm:$0xf]
        %v4919 = vld [vmem:[%s4905 + $0x34] sm:$0xf]
        %v4920 = vld [vmem:[%s4905 + $0x38] sm:$0xf]
        %v4921 = vld [vmem:[%s4905 + $0x3c] sm:$0xf]
        %v4938 = vunpack.c.l.b16 %v4889
        %v4939 = vunpack.c.l.b16 %v4890
        %v4940 = vunpack.c.l.b16 %v4891
        %v4941 = vunpack.c.l.b16 %v4892
        %v4942 = vunpack.c.l.b16 %v4893
        %v4943 = vunpack.c.l.b16 %v4894
        %v4944 = vunpack.c.l.b16 %v4895
        %v4945 = vunpack.c.l.b16 %v4896
        %v4946 = vunpack.c.l.b16 %v4897
        %v4947 = vunpack.c.l.b16 %v4898
        %v4948 = vunpack.c.l.b16 %v4899
        %v4949 = vunpack.c.l.b16 %v4900
        %v4950 = vunpack.c.l.b16 %v4901
        %v4951 = vunpack.c.l.b16 %v4902
        %v4952 = vunpack.c.l.b16 %v4903
        %v4953 = vunpack.c.l.b16 %v4904
        %v4954 = vpack.c.b16 %v4939, %v4938
        %v4955 = vpack.c.b16 %v4941, %v4940
        %v4956 = vpack.c.b16 %v4943, %v4942
        %v4957 = vpack.c.b16 %v4945, %v4944
        %v4958 = vpack.c.b16 %v4947, %v4946
        %v4959 = vpack.c.b16 %v4949, %v4948
        %v4960 = vpack.c.b16 %v4951, %v4950
        %v4961 = vpack.c.b16 %v4953, %v4952
        %v4986 = vunpack.c.l.b16 %v4906
        %v4987 = vunpack.c.l.b16 %v4907
        %v4988 = vunpack.c.l.b16 %v4908
        %v4989 = vunpack.c.l.b16 %v4909
        %v4990 = vunpack.c.l.b16 %v4910
        %v4991 = vunpack.c.l.b16 %v4911
        %v4992 = vunpack.c.l.b16 %v4912
        %v4993 = vunpack.c.l.b16 %v4913
        %v4994 = vunpack.c.l.b16 %v4914
        %v4995 = vunpack.c.l.b16 %v4915
        %v4996 = vunpack.c.l.b16 %v4916
        %v4997 = vunpack.c.l.b16 %v4917
        %v4998 = vunpack.c.l.b16 %v4918
        %v4999 = vunpack.c.l.b16 %v4919
        %v5000 = vunpack.c.l.b16 %v4920
        %v5001 = vunpack.c.l.b16 %v4921
        %v5002 = vpack.c.b16 %v4987, %v4986
        %v5003 = vpack.c.b16 %v4989, %v4988
        %v5004 = vpack.c.b16 %v4991, %v4990
        %v5005 = vpack.c.b16 %v4993, %v4992
        %v5006 = vpack.c.b16 %v4995, %v4994
        %v5007 = vpack.c.b16 %v4997, %v4996
        %v5008 = vpack.c.b16 %v4999, %v4998
        %v5009 = vpack.c.b16 %v5001, %v5000
        %5018 = vmatpush.bf16.msra.mxu0 %v5009
        %5019 = vmatpush.bf16.msra.mxu0 %v5008
        %5020 = vmatpush.bf16.msra.mxu0 %v5007
        %5021 = vmatpush.bf16.msra.mxu0 %v5006
        %5022 = vmatpush.bf16.msra.mxu0 %v5005
        %5023 = vmatpush.bf16.msra.mxu0 %v5004
        %5024 = vmatpush.bf16.msra.mxu0 %v5003
        %5025 = vmatpush.bf16.msra.mxu0 %v5002
        %5026 = vmatmul.bf16.gmra.mxu0 %v4954
        %v5027 = vpop.f32.mrf.mxu0
        %v5028 = vadd.f32 0.0, %v5027
        %v5029 = vpop.f32.mrf.mxu0
        %v5030 = vadd.f32 0.0, %v5029
        %5031 = vmatmul.bf16.gmra.mxu0 %v4955
        %v5032 = vpop.f32.mrf.mxu0
        %v5033 = vadd.f32 0.0, %v5032
        %v5034 = vpop.f32.mrf.mxu0
        %v5035 = vadd.f32 0.0, %v5034
        %5036 = vmatmul.bf16.gmra.mxu0 %v4956
        %v5037 = vpop.f32.mrf.mxu0
        %v5038 = vadd.f32 0.0, %v5037
        %v5039 = vpop.f32.mrf.mxu0
        %v5040 = vadd.f32 0.0, %v5039
        %5041 = vmatmul.bf16.gmra.mxu0 %v4957
        %v5042 = vpop.f32.mrf.mxu0
        %v5043 = vadd.f32 0.0, %v5042
        %v5044 = vpop.f32.mrf.mxu0
        %v5045 = vadd.f32 0.0, %v5044
        %5046 = vmatmul.bf16.gmra.mxu0 %v4958
        %v5047 = vpop.f32.mrf.mxu0
        %v5048 = vadd.f32 0.0, %v5047
        %v5049 = vpop.f32.mrf.mxu0
        %v5050 = vadd.f32 0.0, %v5049
        %5051 = vmatmul.bf16.gmra.mxu0 %v4959
        %v5052 = vpop.f32.mrf.mxu0
        %v5053 = vadd.f32 0.0, %v5052
        %v5054 = vpop.f32.mrf.mxu0
        %v5055 = vadd.f32 0.0, %v5054
        %5056 = vmatmul.bf16.gmra.mxu0 %v4960
        %v5057 = vpop.f32.mrf.mxu0
        %v5058 = vadd.f32 0.0, %v5057
        %v5059 = vpop.f32.mrf.mxu0
        %v5060 = vadd.f32 0.0, %v5059
        %5061 = vmatmul.bf16.gmra.mxu0 %v4961
        %v5062 = vpop.f32.mrf.mxu0
        %v5063 = vadd.f32 0.0, %v5062
        %v5064 = vpop.f32.mrf.mxu0
        %v5065 = vadd.f32 0.0, %v5064
        %5066 = vdwg.mxu0
        %s5067 = scalar_lea.vmem [#allocation4], 384
        %5068 = vst [vmem:[%s5067] sm:$0xff] %v5028
        %5069 = vst [vmem:[%s5067 + $0x8] sm:$0xff] %v5030
        %5070 = vst [vmem:[%s5067 + $0x10] sm:$0xff] %v5033
        %5071 = vst [vmem:[%s5067 + $0x18] sm:$0xff] %v5035
        %5072 = vst [vmem:[%s5067 + $0x20] sm:$0xff] %v5038
        %5073 = vst [vmem:[%s5067 + $0x28] sm:$0xff] %v5040
        %5074 = vst [vmem:[%s5067 + $0x30] sm:$0xff] %v5043
        %5075 = vst [vmem:[%s5067 + $0x38] sm:$0xff] %v5045
        %5076 = vst [vmem:[%s5067 + $0x40] sm:$0xff] %v5048
        %5077 = vst [vmem:[%s5067 + $0x48] sm:$0xff] %v5050
        %5078 = vst [vmem:[%s5067 + $0x50] sm:$0xff] %v5053
        %5079 = vst [vmem:[%s5067 + $0x58] sm:$0xff] %v5055
        %5080 = vst [vmem:[%s5067 + $0x60] sm:$0xff] %v5058
        %5081 = vst [vmem:[%s5067 + $0x68] sm:$0xff] %v5060
        %5082 = vst [vmem:[%s5067 + $0x70] sm:$0xff] %v5063
        %5083 = vst [vmem:[%s5067 + $0x78] sm:$0xff] %v5065
        %v5084 = vld [vmem:[#allocation4] sm:$0xff]
        %v5085 = vld [vmem:[#allocation4 + $0x8] sm:$0xff]
        %v5086 = vld [vmem:[#allocation4 + $0x10] sm:$0xff]
        %v5087 = vld [vmem:[#allocation4 + $0x18] sm:$0xff]
        %v5088 = vld [vmem:[#allocation4 + $0x20] sm:$0xff]
        %v5089 = vld [vmem:[#allocation4 + $0x28] sm:$0xff]
        %v5090 = vld [vmem:[#allocation4 + $0x30] sm:$0xff]
        %v5091 = vld [vmem:[#allocation4 + $0x38] sm:$0xff]
        %v5092 = vld [vmem:[#allocation4 + $0x40] sm:$0xff]
        %v5093 = vld [vmem:[#allocation4 + $0x48] sm:$0xff]
        %v5094 = vld [vmem:[#allocation4 + $0x50] sm:$0xff]
        %v5095 = vld [vmem:[#allocation4 + $0x58] sm:$0xff]
        %v5096 = vld [vmem:[#allocation4 + $0x60] sm:$0xff]
        %v5097 = vld [vmem:[#allocation4 + $0x68] sm:$0xff]
        %v5098 = vld [vmem:[#allocation4 + $0x70] sm:$0xff]
        %v5099 = vld [vmem:[#allocation4 + $0x78] sm:$0xff]
        %v5100 = vld [vmem:[%s2] sm:$0x1]
        %v5102 = vperm.slane %v5100, 0
        %v5104 = vadd.f32 %v5084, %v5102
        %v5105 = vadd.f32 %v5085, %v5102
        %v5106 = vadd.f32 %v5086, %v5102
        %v5107 = vadd.f32 %v5087, %v5102
        %v5108 = vadd.f32 %v5088, %v5102
        %v5109 = vadd.f32 %v5089, %v5102
        %v5110 = vadd.f32 %v5090, %v5102
        %v5111 = vadd.f32 %v5091, %v5102
        %v5112 = vadd.f32 %v5092, %v5102
        %v5113 = vadd.f32 %v5093, %v5102
        %v5114 = vadd.f32 %v5094, %v5102
        %v5115 = vadd.f32 %v5095, %v5102
        %v5116 = vadd.f32 %v5096, %v5102
        %v5117 = vadd.f32 %v5097, %v5102
        %v5118 = vadd.f32 %v5098, %v5102
        %v5119 = vadd.f32 %v5099, %v5102
        %v5120 = vmax.f32 %v5104, 0.0
        %v5121 = vmax.f32 %v5105, 0.0
        %v5122 = vmax.f32 %v5106, 0.0
        %v5123 = vmax.f32 %v5107, 0.0
        %v5124 = vmax.f32 %v5108, 0.0
        %v5125 = vmax.f32 %v5109, 0.0
        %v5126 = vmax.f32 %v5110, 0.0
        %v5127 = vmax.f32 %v5111, 0.0
        %v5128 = vmax.f32 %v5112, 0.0
        %v5129 = vmax.f32 %v5113, 0.0
        %v5130 = vmax.f32 %v5114, 0.0
        %v5131 = vmax.f32 %v5115, 0.0
        %v5132 = vmax.f32 %v5116, 0.0
        %v5133 = vmax.f32 %v5117, 0.0
        %v5134 = vmax.f32 %v5118, 0.0
        %v5135 = vmax.f32 %v5119, 0.0
        %v5136 = vpack.c.bf16 %v5121, %v5120
        %v5137 = vpack.c.bf16 %v5123, %v5122
        %v5138 = vpack.c.bf16 %v5125, %v5124
        %v5139 = vpack.c.bf16 %v5127, %v5126
        %v5140 = vpack.c.bf16 %v5129, %v5128
        %v5141 = vpack.c.bf16 %v5131, %v5130
        %v5142 = vpack.c.bf16 %v5133, %v5132
        %v5143 = vpack.c.bf16 %v5135, %v5134
        %v5144 = vld [vmem:[#allocation15] sm:$0xf]
        %v5145 = vld [vmem:[#allocation15 + $0x4] sm:$0xf]
        %v5146 = vld [vmem:[#allocation15 + $0x8] sm:$0xf]
        %v5147 = vld [vmem:[#allocation15 + $0xc] sm:$0xf]
        %v5148 = vld [vmem:[#allocation15 + $0x10] sm:$0xf]
        %v5149 = vld [vmem:[#allocation15 + $0x14] sm:$0xf]
        %v5150 = vld [vmem:[#allocation15 + $0x18] sm:$0xf]
        %v5151 = vld [vmem:[#allocation15 + $0x1c] sm:$0xf]
        %v5152 = vld [vmem:[#allocation15 + $0x20] sm:$0xf]
        %v5153 = vld [vmem:[#allocation15 + $0x24] sm:$0xf]
        %v5154 = vld [vmem:[#allocation15 + $0x28] sm:$0xf]
        %v5155 = vld [vmem:[#allocation15 + $0x2c] sm:$0xf]
        %v5156 = vld [vmem:[#allocation15 + $0x30] sm:$0xf]
        %v5157 = vld [vmem:[#allocation15 + $0x34] sm:$0xf]
        %v5158 = vld [vmem:[#allocation15 + $0x38] sm:$0xf]
        %v5159 = vld [vmem:[#allocation15 + $0x3c] sm:$0xf]
        %v5176 = vunpack.c.l.b16 %v5144
        %v5177 = vunpack.c.l.b16 %v5145
        %v5178 = vunpack.c.l.b16 %v5146
        %v5179 = vunpack.c.l.b16 %v5147
        %v5180 = vunpack.c.l.b16 %v5148
        %v5181 = vunpack.c.l.b16 %v5149
        %v5182 = vunpack.c.l.b16 %v5150
        %v5183 = vunpack.c.l.b16 %v5151
        %v5184 = vunpack.c.l.b16 %v5152
        %v5185 = vunpack.c.l.b16 %v5153
        %v5186 = vunpack.c.l.b16 %v5154
        %v5187 = vunpack.c.l.b16 %v5155
        %v5188 = vunpack.c.l.b16 %v5156
        %v5189 = vunpack.c.l.b16 %v5157
        %v5190 = vunpack.c.l.b16 %v5158
        %v5191 = vunpack.c.l.b16 %v5159
        %v5192 = vpack.c.b16 %v5177, %v5176
        %v5193 = vpack.c.b16 %v5179, %v5178
        %v5194 = vpack.c.b16 %v5181, %v5180
        %v5195 = vpack.c.b16 %v5183, %v5182
        %v5196 = vpack.c.b16 %v5185, %v5184
        %v5197 = vpack.c.b16 %v5187, %v5186
        %v5198 = vpack.c.b16 %v5189, %v5188
        %v5199 = vpack.c.b16 %v5191, %v5190
        %5208 = vmatpush.bf16.msra.mxu0 %v5199
        %5209 = vmatpush.bf16.msra.mxu0 %v5198
        %5210 = vmatpush.bf16.msra.mxu0 %v5197
        %5211 = vmatpush.bf16.msra.mxu0 %v5196
        %5212 = vmatpush.bf16.msra.mxu0 %v5195
        %5213 = vmatpush.bf16.msra.mxu0 %v5194
        %5214 = vmatpush.bf16.msra.mxu0 %v5193
        %5215 = vmatpush.bf16.msra.mxu0 %v5192
        %5216 = vmatmul.bf16.gmra.mxu0 %v5136
        %v5217 = vpop.f32.mrf.mxu0
        %v5218 = vadd.f32 0.0, %v5217
        %v5219 = vpop.f32.mrf.mxu0
        %v5220 = vadd.f32 0.0, %v5219
        %5221 = vmatmul.bf16.gmra.mxu0 %v5137
        %v5222 = vpop.f32.mrf.mxu0
        %v5223 = vadd.f32 0.0, %v5222
        %v5224 = vpop.f32.mrf.mxu0
        %v5225 = vadd.f32 0.0, %v5224
        %5226 = vmatmul.bf16.gmra.mxu0 %v5138
        %v5227 = vpop.f32.mrf.mxu0
        %v5228 = vadd.f32 0.0, %v5227
        %v5229 = vpop.f32.mrf.mxu0
        %v5230 = vadd.f32 0.0, %v5229
        %5231 = vmatmul.bf16.gmra.mxu0 %v5139
        %v5232 = vpop.f32.mrf.mxu0
        %v5233 = vadd.f32 0.0, %v5232
        %v5234 = vpop.f32.mrf.mxu0
        %v5235 = vadd.f32 0.0, %v5234
        %5236 = vmatmul.bf16.gmra.mxu0 %v5140
        %v5237 = vpop.f32.mrf.mxu0
        %v5238 = vadd.f32 0.0, %v5237
        %v5239 = vpop.f32.mrf.mxu0
        %v5240 = vadd.f32 0.0, %v5239
        %5241 = vmatmul.bf16.gmra.mxu0 %v5141
        %v5242 = vpop.f32.mrf.mxu0
        %v5243 = vadd.f32 0.0, %v5242
        %v5244 = vpop.f32.mrf.mxu0
        %v5245 = vadd.f32 0.0, %v5244
        %5246 = vmatmul.bf16.gmra.mxu0 %v5142
        %v5247 = vpop.f32.mrf.mxu0
        %v5248 = vadd.f32 0.0, %v5247
        %v5249 = vpop.f32.mrf.mxu0
        %v5250 = vadd.f32 0.0, %v5249
        %5251 = vmatmul.bf16.gmra.mxu0 %v5143
        %v5252 = vpop.f32.mrf.mxu0
        %v5253 = vadd.f32 0.0, %v5252
        %v5254 = vpop.f32.mrf.mxu0
        %v5255 = vadd.f32 0.0, %v5254
        %5256 = vdwg.mxu0
        %5257 = vst [vmem:[#allocation5] sm:$0xff] %v5218
        %5258 = vst [vmem:[#allocation5 + $0x8] sm:$0xff] %v5220
        %5259 = vst [vmem:[#allocation5 + $0x10] sm:$0xff] %v5223
        %5260 = vst [vmem:[#allocation5 + $0x18] sm:$0xff] %v5225
        %5261 = vst [vmem:[#allocation5 + $0x20] sm:$0xff] %v5228
        %5262 = vst [vmem:[#allocation5 + $0x28] sm:$0xff] %v5230
        %5263 = vst [vmem:[#allocation5 + $0x30] sm:$0xff] %v5233
        %5264 = vst [vmem:[#allocation5 + $0x38] sm:$0xff] %v5235
        %5265 = vst [vmem:[#allocation5 + $0x40] sm:$0xff] %v5238
        %5266 = vst [vmem:[#allocation5 + $0x48] sm:$0xff] %v5240
        %5267 = vst [vmem:[#allocation5 + $0x50] sm:$0xff] %v5243
        %5268 = vst [vmem:[#allocation5 + $0x58] sm:$0xff] %v5245
        %5269 = vst [vmem:[#allocation5 + $0x60] sm:$0xff] %v5248
        %5270 = vst [vmem:[#allocation5 + $0x68] sm:$0xff] %v5250
        %5271 = vst [vmem:[#allocation5 + $0x70] sm:$0xff] %v5253
        %5272 = vst [vmem:[#allocation5 + $0x78] sm:$0xff] %v5255
        %v5273 = vld [vmem:[%s2951] sm:$0xff]
        %v5274 = vld [vmem:[%s2951 + $0x8] sm:$0xff]
        %v5275 = vld [vmem:[%s2951 + $0x10] sm:$0xff]
        %v5276 = vld [vmem:[%s2951 + $0x18] sm:$0xff]
        %v5277 = vld [vmem:[%s2951 + $0x20] sm:$0xff]
        %v5278 = vld [vmem:[%s2951 + $0x28] sm:$0xff]
        %v5279 = vld [vmem:[%s2951 + $0x30] sm:$0xff]
        %v5280 = vld [vmem:[%s2951 + $0x38] sm:$0xff]
        %v5281 = vld [vmem:[%s2951 + $0x40] sm:$0xff]
        %v5282 = vld [vmem:[%s2951 + $0x48] sm:$0xff]
        %v5283 = vld [vmem:[%s2951 + $0x50] sm:$0xff]
        %v5284 = vld [vmem:[%s2951 + $0x58] sm:$0xff]
        %v5285 = vld [vmem:[%s2951 + $0x60] sm:$0xff]
        %v5286 = vld [vmem:[%s2951 + $0x68] sm:$0xff]
        %v5287 = vld [vmem:[%s2951 + $0x70] sm:$0xff]
        %v5288 = vld [vmem:[%s2951 + $0x78] sm:$0xff]
        %v5289 = vld [vmem:[#allocation11] sm:$0x1]
        %v5291 = vperm.slane %v5289, 0
        %v5293 = vadd.f32 %v5273, %v5291
        %v5294 = vadd.f32 %v5274, %v5291
        %v5295 = vadd.f32 %v5275, %v5291
        %v5296 = vadd.f32 %v5276, %v5291
        %v5297 = vadd.f32 %v5277, %v5291
        %v5298 = vadd.f32 %v5278, %v5291
        %v5299 = vadd.f32 %v5279, %v5291
        %v5300 = vadd.f32 %v5280, %v5291
        %v5301 = vadd.f32 %v5281, %v5291
        %v5302 = vadd.f32 %v5282, %v5291
        %v5303 = vadd.f32 %v5283, %v5291
        %v5304 = vadd.f32 %v5284, %v5291
        %v5305 = vadd.f32 %v5285, %v5291
        %v5306 = vadd.f32 %v5286, %v5291
        %v5307 = vadd.f32 %v5287, %v5291
        %v5308 = vadd.f32 %v5288, %v5291
        %v5309 = vmax.f32 %v5293, 0.0
        %v5310 = vmax.f32 %v5294, 0.0
        %v5311 = vmax.f32 %v5295, 0.0
        %v5312 = vmax.f32 %v5296, 0.0
        %v5313 = vmax.f32 %v5297, 0.0
        %v5314 = vmax.f32 %v5298, 0.0
        %v5315 = vmax.f32 %v5299, 0.0
        %v5316 = vmax.f32 %v5300, 0.0
        %v5317 = vmax.f32 %v5301, 0.0
        %v5318 = vmax.f32 %v5302, 0.0
        %v5319 = vmax.f32 %v5303, 0.0
        %v5320 = vmax.f32 %v5304, 0.0
        %v5321 = vmax.f32 %v5305, 0.0
        %v5322 = vmax.f32 %v5306, 0.0
        %v5323 = vmax.f32 %v5307, 0.0
        %v5324 = vmax.f32 %v5308, 0.0
        %v5325 = vpack.c.bf16 %v5310, %v5309
        %v5326 = vpack.c.bf16 %v5312, %v5311
        %v5327 = vpack.c.bf16 %v5314, %v5313
        %v5328 = vpack.c.bf16 %v5316, %v5315
        %v5329 = vpack.c.bf16 %v5318, %v5317
        %v5330 = vpack.c.bf16 %v5320, %v5319
        %v5331 = vpack.c.bf16 %v5322, %v5321
        %v5332 = vpack.c.bf16 %v5324, %v5323
        %s5333 = scalar_lea.vmem [#allocation15], 64
        %v5334 = vld [vmem:[%s5333] sm:$0xf]
        %v5335 = vld [vmem:[%s5333 + $0x4] sm:$0xf]
        %v5336 = vld [vmem:[%s5333 + $0x8] sm:$0xf]
        %v5337 = vld [vmem:[%s5333 + $0xc] sm:$0xf]
        %v5338 = vld [vmem:[%s5333 + $0x10] sm:$0xf]
        %v5339 = vld [vmem:[%s5333 + $0x14] sm:$0xf]
        %v5340 = vld [vmem:[%s5333 + $0x18] sm:$0xf]
        %v5341 = vld [vmem:[%s5333 + $0x1c] sm:$0xf]
        %v5342 = vld [vmem:[%s5333 + $0x20] sm:$0xf]
        %v5343 = vld [vmem:[%s5333 + $0x24] sm:$0xf]
        %v5344 = vld [vmem:[%s5333 + $0x28] sm:$0xf]
        %v5345 = vld [vmem:[%s5333 + $0x2c] sm:$0xf]
        %v5346 = vld [vmem:[%s5333 + $0x30] sm:$0xf]
        %v5347 = vld [vmem:[%s5333 + $0x34] sm:$0xf]
        %v5348 = vld [vmem:[%s5333 + $0x38] sm:$0xf]
        %v5349 = vld [vmem:[%s5333 + $0x3c] sm:$0xf]
        %v5366 = vunpack.c.l.b16 %v5334
        %v5367 = vunpack.c.l.b16 %v5335
        %v5368 = vunpack.c.l.b16 %v5336
        %v5369 = vunpack.c.l.b16 %v5337
        %v5370 = vunpack.c.l.b16 %v5338
        %v5371 = vunpack.c.l.b16 %v5339
        %v5372 = vunpack.c.l.b16 %v5340
        %v5373 = vunpack.c.l.b16 %v5341
        %v5374 = vunpack.c.l.b16 %v5342
        %v5375 = vunpack.c.l.b16 %v5343
        %v5376 = vunpack.c.l.b16 %v5344
        %v5377 = vunpack.c.l.b16 %v5345
        %v5378 = vunpack.c.l.b16 %v5346
        %v5379 = vunpack.c.l.b16 %v5347
        %v5380 = vunpack.c.l.b16 %v5348
        %v5381 = vunpack.c.l.b16 %v5349
        %v5382 = vpack.c.b16 %v5367, %v5366
        %v5383 = vpack.c.b16 %v5369, %v5368
        %v5384 = vpack.c.b16 %v5371, %v5370
        %v5385 = vpack.c.b16 %v5373, %v5372
        %v5386 = vpack.c.b16 %v5375, %v5374
        %v5387 = vpack.c.b16 %v5377, %v5376
        %v5388 = vpack.c.b16 %v5379, %v5378
        %v5389 = vpack.c.b16 %v5381, %v5380
        %5398 = vmatpush.bf16.msra.mxu0 %v5389
        %5399 = vmatpush.bf16.msra.mxu0 %v5388
        %5400 = vmatpush.bf16.msra.mxu0 %v5387
        %5401 = vmatpush.bf16.msra.mxu0 %v5386
        %5402 = vmatpush.bf16.msra.mxu0 %v5385
        %5403 = vmatpush.bf16.msra.mxu0 %v5384
        %5404 = vmatpush.bf16.msra.mxu0 %v5383
        %5405 = vmatpush.bf16.msra.mxu0 %v5382
        %5406 = vmatmul.bf16.gmra.mxu0 %v5325
        %v5407 = vpop.f32.mrf.mxu0
        %v5408 = vadd.f32 0.0, %v5407
        %v5409 = vpop.f32.mrf.mxu0
        %v5410 = vadd.f32 0.0, %v5409
        %5411 = vmatmul.bf16.gmra.mxu0 %v5326
        %v5412 = vpop.f32.mrf.mxu0
        %v5413 = vadd.f32 0.0, %v5412
        %v5414 = vpop.f32.mrf.mxu0
        %v5415 = vadd.f32 0.0, %v5414
        %5416 = vmatmul.bf16.gmra.mxu0 %v5327
        %v5417 = vpop.f32.mrf.mxu0
        %v5418 = vadd.f32 0.0, %v5417
        %v5419 = vpop.f32.mrf.mxu0
        %v5420 = vadd.f32 0.0, %v5419
        %5421 = vmatmul.bf16.gmra.mxu0 %v5328
        %v5422 = vpop.f32.mrf.mxu0
        %v5423 = vadd.f32 0.0, %v5422
        %v5424 = vpop.f32.mrf.mxu0
        %v5425 = vadd.f32 0.0, %v5424
        %5426 = vmatmul.bf16.gmra.mxu0 %v5329
        %v5427 = vpop.f32.mrf.mxu0
        %v5428 = vadd.f32 0.0, %v5427
        %v5429 = vpop.f32.mrf.mxu0
        %v5430 = vadd.f32 0.0, %v5429
        %5431 = vmatmul.bf16.gmra.mxu0 %v5330
        %v5432 = vpop.f32.mrf.mxu0
        %v5433 = vadd.f32 0.0, %v5432
        %v5434 = vpop.f32.mrf.mxu0
        %v5435 = vadd.f32 0.0, %v5434
        %5436 = vmatmul.bf16.gmra.mxu0 %v5331
        %v5437 = vpop.f32.mrf.mxu0
        %v5438 = vadd.f32 0.0, %v5437
        %v5439 = vpop.f32.mrf.mxu0
        %v5440 = vadd.f32 0.0, %v5439
        %5441 = vmatmul.bf16.gmra.mxu0 %v5332
        %v5442 = vpop.f32.mrf.mxu0
        %v5443 = vadd.f32 0.0, %v5442
        %v5444 = vpop.f32.mrf.mxu0
        %v5445 = vadd.f32 0.0, %v5444
        %5446 = vdwg.mxu0
        %v5447 = vld [vmem:[#allocation5] sm:$0xff]
        %v5448 = vld [vmem:[#allocation5 + $0x8] sm:$0xff]
        %v5449 = vld [vmem:[#allocation5 + $0x10] sm:$0xff]
        %v5450 = vld [vmem:[#allocation5 + $0x18] sm:$0xff]
        %v5451 = vld [vmem:[#allocation5 + $0x20] sm:$0xff]
        %v5452 = vld [vmem:[#allocation5 + $0x28] sm:$0xff]
        %v5453 = vld [vmem:[#allocation5 + $0x30] sm:$0xff]
        %v5454 = vld [vmem:[#allocation5 + $0x38] sm:$0xff]
        %v5455 = vld [vmem:[#allocation5 + $0x40] sm:$0xff]
        %v5456 = vld [vmem:[#allocation5 + $0x48] sm:$0xff]
        %v5457 = vld [vmem:[#allocation5 + $0x50] sm:$0xff]
        %v5458 = vld [vmem:[#allocation5 + $0x58] sm:$0xff]
        %v5459 = vld [vmem:[#allocation5 + $0x60] sm:$0xff]
        %v5460 = vld [vmem:[#allocation5 + $0x68] sm:$0xff]
        %v5461 = vld [vmem:[#allocation5 + $0x70] sm:$0xff]
        %v5462 = vld [vmem:[#allocation5 + $0x78] sm:$0xff]
        %v5463 = vadd.f32 %v5447, %v5408
        %v5464 = vadd.f32 %v5448, %v5410
        %v5465 = vadd.f32 %v5449, %v5413
        %v5466 = vadd.f32 %v5450, %v5415
        %v5467 = vadd.f32 %v5451, %v5418
        %v5468 = vadd.f32 %v5452, %v5420
        %v5469 = vadd.f32 %v5453, %v5423
        %v5470 = vadd.f32 %v5454, %v5425
        %v5471 = vadd.f32 %v5455, %v5428
        %v5472 = vadd.f32 %v5456, %v5430
        %v5473 = vadd.f32 %v5457, %v5433
        %v5474 = vadd.f32 %v5458, %v5435
        %v5475 = vadd.f32 %v5459, %v5438
        %v5476 = vadd.f32 %v5460, %v5440
        %v5477 = vadd.f32 %v5461, %v5443
        %v5478 = vadd.f32 %v5462, %v5445
        %5479 = vst [vmem:[#allocation5] sm:$0xff] %v5463
        %5480 = vst [vmem:[#allocation5 + $0x8] sm:$0xff] %v5464
        %5481 = vst [vmem:[#allocation5 + $0x10] sm:$0xff] %v5465
        %5482 = vst [vmem:[#allocation5 + $0x18] sm:$0xff] %v5466
        %5483 = vst [vmem:[#allocation5 + $0x20] sm:$0xff] %v5467
        %5484 = vst [vmem:[#allocation5 + $0x28] sm:$0xff] %v5468
        %5485 = vst [vmem:[#allocation5 + $0x30] sm:$0xff] %v5469
        %5486 = vst [vmem:[#allocation5 + $0x38] sm:$0xff] %v5470
        %5487 = vst [vmem:[#allocation5 + $0x40] sm:$0xff] %v5471
        %5488 = vst [vmem:[#allocation5 + $0x48] sm:$0xff] %v5472
        %5489 = vst [vmem:[#allocation5 + $0x50] sm:$0xff] %v5473
        %5490 = vst [vmem:[#allocation5 + $0x58] sm:$0xff] %v5474
        %5491 = vst [vmem:[#allocation5 + $0x60] sm:$0xff] %v5475
        %5492 = vst [vmem:[#allocation5 + $0x68] sm:$0xff] %v5476
        %5493 = vst [vmem:[#allocation5 + $0x70] sm:$0xff] %v5477
        %5494 = vst [vmem:[#allocation5 + $0x78] sm:$0xff] %v5478
        %v5495 = vld [vmem:[%s4872] sm:$0xff]
        %v5496 = vld [vmem:[%s4872 + $0x8] sm:$0xff]
        %v5497 = vld [vmem:[%s4872 + $0x10] sm:$0xff]
        %v5498 = vld [vmem:[%s4872 + $0x18] sm:$0xff]
        %v5499 = vld [vmem:[%s4872 + $0x20] sm:$0xff]
        %v5500 = vld [vmem:[%s4872 + $0x28] sm:$0xff]
        %v5501 = vld [vmem:[%s4872 + $0x30] sm:$0xff]
        %v5502 = vld [vmem:[%s4872 + $0x38] sm:$0xff]
        %v5503 = vld [vmem:[%s4872 + $0x40] sm:$0xff]
        %v5504 = vld [vmem:[%s4872 + $0x48] sm:$0xff]
        %v5505 = vld [vmem:[%s4872 + $0x50] sm:$0xff]
        %v5506 = vld [vmem:[%s4872 + $0x58] sm:$0xff]
        %v5507 = vld [vmem:[%s4872 + $0x60] sm:$0xff]
        %v5508 = vld [vmem:[%s4872 + $0x68] sm:$0xff]
        %v5509 = vld [vmem:[%s4872 + $0x70] sm:$0xff]
        %v5510 = vld [vmem:[%s4872 + $0x78] sm:$0xff]
        %v5511 = vld [vmem:[%s6] sm:$0x1]
        %v5513 = vperm.slane %v5511, 0
        %v5515 = vadd.f32 %v5495, %v5513
        %v5516 = vadd.f32 %v5496, %v5513
        %v5517 = vadd.f32 %v5497, %v5513
        %v5518 = vadd.f32 %v5498, %v5513
        %v5519 = vadd.f32 %v5499, %v5513
        %v5520 = vadd.f32 %v5500, %v5513
        %v5521 = vadd.f32 %v5501, %v5513
        %v5522 = vadd.f32 %v5502, %v5513
        %v5523 = vadd.f32 %v5503, %v5513
        %v5524 = vadd.f32 %v5504, %v5513
        %v5525 = vadd.f32 %v5505, %v5513
        %v5526 = vadd.f32 %v5506, %v5513
        %v5527 = vadd.f32 %v5507, %v5513
        %v5528 = vadd.f32 %v5508, %v5513
        %v5529 = vadd.f32 %v5509, %v5513
        %v5530 = vadd.f32 %v5510, %v5513
        %v5531 = vmax.f32 %v5515, 0.0
        %v5532 = vmax.f32 %v5516, 0.0
        %v5533 = vmax.f32 %v5517, 0.0
        %v5534 = vmax.f32 %v5518, 0.0
        %v5535 = vmax.f32 %v5519, 0.0
        %v5536 = vmax.f32 %v5520, 0.0
        %v5537 = vmax.f32 %v5521, 0.0
        %v5538 = vmax.f32 %v5522, 0.0
        %v5539 = vmax.f32 %v5523, 0.0
        %v5540 = vmax.f32 %v5524, 0.0
        %v5541 = vmax.f32 %v5525, 0.0
        %v5542 = vmax.f32 %v5526, 0.0
        %v5543 = vmax.f32 %v5527, 0.0
        %v5544 = vmax.f32 %v5528, 0.0
        %v5545 = vmax.f32 %v5529, 0.0
        %v5546 = vmax.f32 %v5530, 0.0
        %v5547 = vpack.c.bf16 %v5532, %v5531
        %v5548 = vpack.c.bf16 %v5534, %v5533
        %v5549 = vpack.c.bf16 %v5536, %v5535
        %v5550 = vpack.c.bf16 %v5538, %v5537
        %v5551 = vpack.c.bf16 %v5540, %v5539
        %v5552 = vpack.c.bf16 %v5542, %v5541
        %v5553 = vpack.c.bf16 %v5544, %v5543
        %v5554 = vpack.c.bf16 %v5546, %v5545
        %s5555 = scalar_lea.vmem [#allocation15], 128
        %v5556 = vld [vmem:[%s5555] sm:$0xf]
        %v5557 = vld [vmem:[%s5555 + $0x4] sm:$0xf]
        %v5558 = vld [vmem:[%s5555 + $0x8] sm:$0xf]
        %v5559 = vld [vmem:[%s5555 + $0xc] sm:$0xf]
        %v5560 = vld [vmem:[%s5555 + $0x10] sm:$0xf]
        %v5561 = vld [vmem:[%s5555 + $0x14] sm:$0xf]
        %v5562 = vld [vmem:[%s5555 + $0x18] sm:$0xf]
        %v5563 = vld [vmem:[%s5555 + $0x1c] sm:$0xf]
        %v5564 = vld [vmem:[%s5555 + $0x20] sm:$0xf]
        %v5565 = vld [vmem:[%s5555 + $0x24] sm:$0xf]
        %v5566 = vld [vmem:[%s5555 + $0x28] sm:$0xf]
        %v5567 = vld [vmem:[%s5555 + $0x2c] sm:$0xf]
        %v5568 = vld [vmem:[%s5555 + $0x30] sm:$0xf]
        %v5569 = vld [vmem:[%s5555 + $0x34] sm:$0xf]
        %v5570 = vld [vmem:[%s5555 + $0x38] sm:$0xf]
        %v5571 = vld [vmem:[%s5555 + $0x3c] sm:$0xf]
        %v5588 = vunpack.c.l.b16 %v5556
        %v5589 = vunpack.c.l.b16 %v5557
        %v5590 = vunpack.c.l.b16 %v5558
        %v5591 = vunpack.c.l.b16 %v5559
        %v5592 = vunpack.c.l.b16 %v5560
        %v5593 = vunpack.c.l.b16 %v5561
        %v5594 = vunpack.c.l.b16 %v5562
        %v5595 = vunpack.c.l.b16 %v5563
        %v5596 = vunpack.c.l.b16 %v5564
        %v5597 = vunpack.c.l.b16 %v5565
        %v5598 = vunpack.c.l.b16 %v5566
        %v5599 = vunpack.c.l.b16 %v5567
        %v5600 = vunpack.c.l.b16 %v5568
        %v5601 = vunpack.c.l.b16 %v5569
        %v5602 = vunpack.c.l.b16 %v5570
        %v5603 = vunpack.c.l.b16 %v5571
        %v5604 = vpack.c.b16 %v5589, %v5588
        %v5605 = vpack.c.b16 %v5591, %v5590
        %v5606 = vpack.c.b16 %v5593, %v5592
        %v5607 = vpack.c.b16 %v5595, %v5594
        %v5608 = vpack.c.b16 %v5597, %v5596
        %v5609 = vpack.c.b16 %v5599, %v5598
        %v5610 = vpack.c.b16 %v5601, %v5600
        %v5611 = vpack.c.b16 %v5603, %v5602
        %5620 = vmatpush.bf16.msra.mxu0 %v5611
        %5621 = vmatpush.bf16.msra.mxu0 %v5610
        %5622 = vmatpush.bf16.msra.mxu0 %v5609
        %5623 = vmatpush.bf16.msra.mxu0 %v5608
        %5624 = vmatpush.bf16.msra.mxu0 %v5607
        %5625 = vmatpush.bf16.msra.mxu0 %v5606
        %5626 = vmatpush.bf16.msra.mxu0 %v5605
        %5627 = vmatpush.bf16.msra.mxu0 %v5604
        %5628 = vmatmul.bf16.gmra.mxu0 %v5547
        %v5629 = vpop.f32.mrf.mxu0
        %v5630 = vadd.f32 0.0, %v5629
        %v5631 = vpop.f32.mrf.mxu0
        %v5632 = vadd.f32 0.0, %v5631
        %5633 = vmatmul.bf16.gmra.mxu0 %v5548
        %v5634 = vpop.f32.mrf.mxu0
        %v5635 = vadd.f32 0.0, %v5634
        %v5636 = vpop.f32.mrf.mxu0
        %v5637 = vadd.f32 0.0, %v5636
        %5638 = vmatmul.bf16.gmra.mxu0 %v5549
        %v5639 = vpop.f32.mrf.mxu0
        %v5640 = vadd.f32 0.0, %v5639
        %v5641 = vpop.f32.mrf.mxu0
        %v5642 = vadd.f32 0.0, %v5641
        %5643 = vmatmul.bf16.gmra.mxu0 %v5550
        %v5644 = vpop.f32.mrf.mxu0
        %v5645 = vadd.f32 0.0, %v5644
        %v5646 = vpop.f32.mrf.mxu0
        %v5647 = vadd.f32 0.0, %v5646
        %5648 = vmatmul.bf16.gmra.mxu0 %v5551
        %v5649 = vpop.f32.mrf.mxu0
        %v5650 = vadd.f32 0.0, %v5649
        %v5651 = vpop.f32.mrf.mxu0
        %v5652 = vadd.f32 0.0, %v5651
        %5653 = vmatmul.bf16.gmra.mxu0 %v5552
        %v5654 = vpop.f32.mrf.mxu0
        %v5655 = vadd.f32 0.0, %v5654
        %v5656 = vpop.f32.mrf.mxu0
        %v5657 = vadd.f32 0.0, %v5656
        %5658 = vmatmul.bf16.gmra.mxu0 %v5553
        %v5659 = vpop.f32.mrf.mxu0
        %v5660 = vadd.f32 0.0, %v5659
        %v5661 = vpop.f32.mrf.mxu0
        %v5662 = vadd.f32 0.0, %v5661
        %5663 = vmatmul.bf16.gmra.mxu0 %v5554
        %v5664 = vpop.f32.mrf.mxu0
        %v5665 = vadd.f32 0.0, %v5664
        %v5666 = vpop.f32.mrf.mxu0
        %v5667 = vadd.f32 0.0, %v5666
        %5668 = vdwg.mxu0
        %v5669 = vld [vmem:[#allocation5] sm:$0xff]
        %v5670 = vld [vmem:[#allocation5 + $0x8] sm:$0xff]
        %v5671 = vld [vmem:[#allocation5 + $0x10] sm:$0xff]
        %v5672 = vld [vmem:[#allocation5 + $0x18] sm:$0xff]
        %v5673 = vld [vmem:[#allocation5 + $0x20] sm:$0xff]
        %v5674 = vld [vmem:[#allocation5 + $0x28] sm:$0xff]
        %v5675 = vld [vmem:[#allocation5 + $0x30] sm:$0xff]
        %v5676 = vld [vmem:[#allocation5 + $0x38] sm:$0xff]
        %v5677 = vld [vmem:[#allocation5 + $0x40] sm:$0xff]
        %v5678 = vld [vmem:[#allocation5 + $0x48] sm:$0xff]
        %v5679 = vld [vmem:[#allocation5 + $0x50] sm:$0xff]
        %v5680 = vld [vmem:[#allocation5 + $0x58] sm:$0xff]
        %v5681 = vld [vmem:[#allocation5 + $0x60] sm:$0xff]
        %v5682 = vld [vmem:[#allocation5 + $0x68] sm:$0xff]
        %v5683 = vld [vmem:[#allocation5 + $0x70] sm:$0xff]
        %v5684 = vld [vmem:[#allocation5 + $0x78] sm:$0xff]
        %v5685 = vadd.f32 %v5669, %v5630
        %v5686 = vadd.f32 %v5670, %v5632
        %v5687 = vadd.f32 %v5671, %v5635
        %v5688 = vadd.f32 %v5672, %v5637
        %v5689 = vadd.f32 %v5673, %v5640
        %v5690 = vadd.f32 %v5674, %v5642
        %v5691 = vadd.f32 %v5675, %v5645
        %v5692 = vadd.f32 %v5676, %v5647
        %v5693 = vadd.f32 %v5677, %v5650
        %v5694 = vadd.f32 %v5678, %v5652
        %v5695 = vadd.f32 %v5679, %v5655
        %v5696 = vadd.f32 %v5680, %v5657
        %v5697 = vadd.f32 %v5681, %v5660
        %v5698 = vadd.f32 %v5682, %v5662
        %v5699 = vadd.f32 %v5683, %v5665
        %v5700 = vadd.f32 %v5684, %v5667
        %5701 = vst [vmem:[#allocation5] sm:$0xff] %v5685
        %5702 = vst [vmem:[#allocation5 + $0x8] sm:$0xff] %v5686
        %5703 = vst [vmem:[#allocation5 + $0x10] sm:$0xff] %v5687
        %5704 = vst [vmem:[#allocation5 + $0x18] sm:$0xff] %v5688
        %5705 = vst [vmem:[#allocation5 + $0x20] sm:$0xff] %v5689
        %5706 = vst [vmem:[#allocation5 + $0x28] sm:$0xff] %v5690
        %5707 = vst [vmem:[#allocation5 + $0x30] sm:$0xff] %v5691
        %5708 = vst [vmem:[#allocation5 + $0x38] sm:$0xff] %v5692
        %5709 = vst [vmem:[#allocation5 + $0x40] sm:$0xff] %v5693
        %5710 = vst [vmem:[#allocation5 + $0x48] sm:$0xff] %v5694
        %5711 = vst [vmem:[#allocation5 + $0x50] sm:$0xff] %v5695
        %5712 = vst [vmem:[#allocation5 + $0x58] sm:$0xff] %v5696
        %5713 = vst [vmem:[#allocation5 + $0x60] sm:$0xff] %v5697
        %5714 = vst [vmem:[#allocation5 + $0x68] sm:$0xff] %v5698
        %5715 = vst [vmem:[#allocation5 + $0x70] sm:$0xff] %v5699
        %5716 = vst [vmem:[#allocation5 + $0x78] sm:$0xff] %v5700
        %v5717 = vld [vmem:[%s5067] sm:$0xff]
        %v5718 = vld [vmem:[%s5067 + $0x8] sm:$0xff]
        %v5719 = vld [vmem:[%s5067 + $0x10] sm:$0xff]
        %v5720 = vld [vmem:[%s5067 + $0x18] sm:$0xff]
        %v5721 = vld [vmem:[%s5067 + $0x20] sm:$0xff]
        %v5722 = vld [vmem:[%s5067 + $0x28] sm:$0xff]
        %v5723 = vld [vmem:[%s5067 + $0x30] sm:$0xff]
        %v5724 = vld [vmem:[%s5067 + $0x38] sm:$0xff]
        %v5725 = vld [vmem:[%s5067 + $0x40] sm:$0xff]
        %v5726 = vld [vmem:[%s5067 + $0x48] sm:$0xff]
        %v5727 = vld [vmem:[%s5067 + $0x50] sm:$0xff]
        %v5728 = vld [vmem:[%s5067 + $0x58] sm:$0xff]
        %v5729 = vld [vmem:[%s5067 + $0x60] sm:$0xff]
        %v5730 = vld [vmem:[%s5067 + $0x68] sm:$0xff]
        %v5731 = vld [vmem:[%s5067 + $0x70] sm:$0xff]
        %v5732 = vld [vmem:[%s5067 + $0x78] sm:$0xff]
        %v5733 = vld [vmem:[%s8] sm:$0x1]
        %v5735 = vperm.slane %v5733, 0
        %v5737 = vadd.f32 %v5717, %v5735
        %v5738 = vadd.f32 %v5718, %v5735
        %v5739 = vadd.f32 %v5719, %v5735
        %v5740 = vadd.f32 %v5720, %v5735
        %v5741 = vadd.f32 %v5721, %v5735
        %v5742 = vadd.f32 %v5722, %v5735
        %v5743 = vadd.f32 %v5723, %v5735
        %v5744 = vadd.f32 %v5724, %v5735
        %v5745 = vadd.f32 %v5725, %v5735
        %v5746 = vadd.f32 %v5726, %v5735
        %v5747 = vadd.f32 %v5727, %v5735
        %v5748 = vadd.f32 %v5728, %v5735
        %v5749 = vadd.f32 %v5729, %v5735
        %v5750 = vadd.f32 %v5730, %v5735
        %v5751 = vadd.f32 %v5731, %v5735
        %v5752 = vadd.f32 %v5732, %v5735
        %v5753 = vmax.f32 %v5737, 0.0
        %v5754 = vmax.f32 %v5738, 0.0
        %v5755 = vmax.f32 %v5739, 0.0
        %v5756 = vmax.f32 %v5740, 0.0
        %v5757 = vmax.f32 %v5741, 0.0
        %v5758 = vmax.f32 %v5742, 0.0
        %v5759 = vmax.f32 %v5743, 0.0
        %v5760 = vmax.f32 %v5744, 0.0
        %v5761 = vmax.f32 %v5745, 0.0
        %v5762 = vmax.f32 %v5746, 0.0
        %v5763 = vmax.f32 %v5747, 0.0
        %v5764 = vmax.f32 %v5748, 0.0
        %v5765 = vmax.f32 %v5749, 0.0
        %v5766 = vmax.f32 %v5750, 0.0
        %v5767 = vmax.f32 %v5751, 0.0
        %v5768 = vmax.f32 %v5752, 0.0
        %v5769 = vpack.c.bf16 %v5754, %v5753
        %v5770 = vpack.c.bf16 %v5756, %v5755
        %v5771 = vpack.c.bf16 %v5758, %v5757
        %v5772 = vpack.c.bf16 %v5760, %v5759
        %v5773 = vpack.c.bf16 %v5762, %v5761
        %v5774 = vpack.c.bf16 %v5764, %v5763
        %v5775 = vpack.c.bf16 %v5766, %v5765
        %v5776 = vpack.c.bf16 %v5768, %v5767
        %s5777 = scalar_lea.vmem [#allocation15], 192
        %v5778 = vld [vmem:[%s5777] sm:$0xf]
        %v5779 = vld [vmem:[%s5777 + $0x4] sm:$0xf]
        %v5780 = vld [vmem:[%s5777 + $0x8] sm:$0xf]
        %v5781 = vld [vmem:[%s5777 + $0xc] sm:$0xf]
        %v5782 = vld [vmem:[%s5777 + $0x10] sm:$0xf]
        %v5783 = vld [vmem:[%s5777 + $0x14] sm:$0xf]
        %v5784 = vld [vmem:[%s5777 + $0x18] sm:$0xf]
        %v5785 = vld [vmem:[%s5777 + $0x1c] sm:$0xf]
        %v5786 = vld [vmem:[%s5777 + $0x20] sm:$0xf]
        %v5787 = vld [vmem:[%s5777 + $0x24] sm:$0xf]
        %v5788 = vld [vmem:[%s5777 + $0x28] sm:$0xf]
        %v5789 = vld [vmem:[%s5777 + $0x2c] sm:$0xf]
        %v5790 = vld [vmem:[%s5777 + $0x30] sm:$0xf]
        %v5791 = vld [vmem:[%s5777 + $0x34] sm:$0xf]
        %v5792 = vld [vmem:[%s5777 + $0x38] sm:$0xf]
        %v5793 = vld [vmem:[%s5777 + $0x3c] sm:$0xf]
        %v5810 = vunpack.c.l.b16 %v5778
        %v5811 = vunpack.c.l.b16 %v5779
        %v5812 = vunpack.c.l.b16 %v5780
        %v5813 = vunpack.c.l.b16 %v5781
        %v5814 = vunpack.c.l.b16 %v5782
        %v5815 = vunpack.c.l.b16 %v5783
        %v5816 = vunpack.c.l.b16 %v5784
        %v5817 = vunpack.c.l.b16 %v5785
        %v5818 = vunpack.c.l.b16 %v5786
        %v5819 = vunpack.c.l.b16 %v5787
        %v5820 = vunpack.c.l.b16 %v5788
        %v5821 = vunpack.c.l.b16 %v5789
        %v5822 = vunpack.c.l.b16 %v5790
        %v5823 = vunpack.c.l.b16 %v5791
        %v5824 = vunpack.c.l.b16 %v5792
        %v5825 = vunpack.c.l.b16 %v5793
        %v5826 = vpack.c.b16 %v5811, %v5810
        %v5827 = vpack.c.b16 %v5813, %v5812
        %v5828 = vpack.c.b16 %v5815, %v5814
        %v5829 = vpack.c.b16 %v5817, %v5816
        %v5830 = vpack.c.b16 %v5819, %v5818
        %v5831 = vpack.c.b16 %v5821, %v5820
        %v5832 = vpack.c.b16 %v5823, %v5822
        %v5833 = vpack.c.b16 %v5825, %v5824
        %5842 = vmatpush.bf16.msra.mxu0 %v5833
        %5843 = vmatpush.bf16.msra.mxu0 %v5832
        %5844 = vmatpush.bf16.msra.mxu0 %v5831
        %5845 = vmatpush.bf16.msra.mxu0 %v5830
        %5846 = vmatpush.bf16.msra.mxu0 %v5829
        %5847 = vmatpush.bf16.msra.mxu0 %v5828
        %5848 = vmatpush.bf16.msra.mxu0 %v5827
        %5849 = vmatpush.bf16.msra.mxu0 %v5826
        %5850 = vmatmul.bf16.gmra.mxu0 %v5769
        %v5851 = vpop.f32.mrf.mxu0
        %v5852 = vadd.f32 0.0, %v5851
        %v5853 = vpop.f32.mrf.mxu0
        %v5854 = vadd.f32 0.0, %v5853
        %5855 = vmatmul.bf16.gmra.mxu0 %v5770
        %v5856 = vpop.f32.mrf.mxu0
        %v5857 = vadd.f32 0.0, %v5856
        %v5858 = vpop.f32.mrf.mxu0
        %v5859 = vadd.f32 0.0, %v5858
        %5860 = vmatmul.bf16.gmra.mxu0 %v5771
        %v5861 = vpop.f32.mrf.mxu0
        %v5862 = vadd.f32 0.0, %v5861
        %v5863 = vpop.f32.mrf.mxu0
        %v5864 = vadd.f32 0.0, %v5863
        %5865 = vmatmul.bf16.gmra.mxu0 %v5772
        %v5866 = vpop.f32.mrf.mxu0
        %v5867 = vadd.f32 0.0, %v5866
        %v5868 = vpop.f32.mrf.mxu0
        %v5869 = vadd.f32 0.0, %v5868
        %5870 = vmatmul.bf16.gmra.mxu0 %v5773
        %v5871 = vpop.f32.mrf.mxu0
        %v5872 = vadd.f32 0.0, %v5871
        %v5873 = vpop.f32.mrf.mxu0
        %v5874 = vadd.f32 0.0, %v5873
        %5875 = vmatmul.bf16.gmra.mxu0 %v5774
        %v5876 = vpop.f32.mrf.mxu0
        %v5877 = vadd.f32 0.0, %v5876
        %v5878 = vpop.f32.mrf.mxu0
        %v5879 = vadd.f32 0.0, %v5878
        %5880 = vmatmul.bf16.gmra.mxu0 %v5775
        %v5881 = vpop.f32.mrf.mxu0
        %v5882 = vadd.f32 0.0, %v5881
        %v5883 = vpop.f32.mrf.mxu0
        %v5884 = vadd.f32 0.0, %v5883
        %5885 = vmatmul.bf16.gmra.mxu0 %v5776
        %v5886 = vpop.f32.mrf.mxu0
        %v5887 = vadd.f32 0.0, %v5886
        %v5888 = vpop.f32.mrf.mxu0
        %v5889 = vadd.f32 0.0, %v5888
        %5890 = vdwg.mxu0
        %v5891 = vld [vmem:[#allocation5] sm:$0xff]
        %v5892 = vld [vmem:[#allocation5 + $0x8] sm:$0xff]
        %v5893 = vld [vmem:[#allocation5 + $0x10] sm:$0xff]
        %v5894 = vld [vmem:[#allocation5 + $0x18] sm:$0xff]
        %v5895 = vld [vmem:[#allocation5 + $0x20] sm:$0xff]
        %v5896 = vld [vmem:[#allocation5 + $0x28] sm:$0xff]
        %v5897 = vld [vmem:[#allocation5 + $0x30] sm:$0xff]
        %v5898 = vld [vmem:[#allocation5 + $0x38] sm:$0xff]
        %v5899 = vld [vmem:[#allocation5 + $0x40] sm:$0xff]
        %v5900 = vld [vmem:[#allocation5 + $0x48] sm:$0xff]
        %v5901 = vld [vmem:[#allocation5 + $0x50] sm:$0xff]
        %v5902 = vld [vmem:[#allocation5 + $0x58] sm:$0xff]
        %v5903 = vld [vmem:[#allocation5 + $0x60] sm:$0xff]
        %v5904 = vld [vmem:[#allocation5 + $0x68] sm:$0xff]
        %v5905 = vld [vmem:[#allocation5 + $0x70] sm:$0xff]
        %v5906 = vld [vmem:[#allocation5 + $0x78] sm:$0xff]
        %v5907 = vadd.f32 %v5891, %v5852
        %v5908 = vadd.f32 %v5892, %v5854
        %v5909 = vadd.f32 %v5893, %v5857
        %v5910 = vadd.f32 %v5894, %v5859
        %v5911 = vadd.f32 %v5895, %v5862
        %v5912 = vadd.f32 %v5896, %v5864
        %v5913 = vadd.f32 %v5897, %v5867
        %v5914 = vadd.f32 %v5898, %v5869
        %v5915 = vadd.f32 %v5899, %v5872
        %v5916 = vadd.f32 %v5900, %v5874
        %v5917 = vadd.f32 %v5901, %v5877
        %v5918 = vadd.f32 %v5902, %v5879
        %v5919 = vadd.f32 %v5903, %v5882
        %v5920 = vadd.f32 %v5904, %v5884
        %v5921 = vadd.f32 %v5905, %v5887
        %v5922 = vadd.f32 %v5906, %v5889
        %5923 = vst [vmem:[#allocation5] sm:$0xff] %v5907
        %5924 = vst [vmem:[#allocation5 + $0x8] sm:$0xff] %v5908
        %5925 = vst [vmem:[#allocation5 + $0x10] sm:$0xff] %v5909
        %5926 = vst [vmem:[#allocation5 + $0x18] sm:$0xff] %v5910
        %5927 = vst [vmem:[#allocation5 + $0x20] sm:$0xff] %v5911
        %5928 = vst [vmem:[#allocation5 + $0x28] sm:$0xff] %v5912
        %5929 = vst [vmem:[#allocation5 + $0x30] sm:$0xff] %v5913
        %5930 = vst [vmem:[#allocation5 + $0x38] sm:$0xff] %v5914
        %5931 = vst [vmem:[#allocation5 + $0x40] sm:$0xff] %v5915
        %5932 = vst [vmem:[#allocation5 + $0x48] sm:$0xff] %v5916
        %5933 = vst [vmem:[#allocation5 + $0x50] sm:$0xff] %v5917
        %5934 = vst [vmem:[#allocation5 + $0x58] sm:$0xff] %v5918
        %5935 = vst [vmem:[#allocation5 + $0x60] sm:$0xff] %v5919
        %5936 = vst [vmem:[#allocation5 + $0x68] sm:$0xff] %v5920
        %5937 = vst [vmem:[#allocation5 + $0x70] sm:$0xff] %v5921
        %5938 = vst [vmem:[#allocation5 + $0x78] sm:$0xff] %v5922
        %v5939 = vld [vmem:[#allocation5] sm:$0xff]
        %v5940 = vld [vmem:[#allocation5 + $0x8] sm:$0xff]
        %v5941 = vld [vmem:[#allocation5 + $0x10] sm:$0xff]
        %v5942 = vld [vmem:[#allocation5 + $0x18] sm:$0xff]
        %v5943 = vld [vmem:[#allocation5 + $0x20] sm:$0xff]
        %v5944 = vld [vmem:[#allocation5 + $0x28] sm:$0xff]
        %v5945 = vld [vmem:[#allocation5 + $0x30] sm:$0xff]
        %v5946 = vld [vmem:[#allocation5 + $0x38] sm:$0xff]
        %v5947 = vld [vmem:[#allocation5 + $0x40] sm:$0xff]
        %v5948 = vld [vmem:[#allocation5 + $0x48] sm:$0xff]
        %v5949 = vld [vmem:[#allocation5 + $0x50] sm:$0xff]
        %v5950 = vld [vmem:[#allocation5 + $0x58] sm:$0xff]
        %v5951 = vld [vmem:[#allocation5 + $0x60] sm:$0xff]
        %v5952 = vld [vmem:[#allocation5 + $0x68] sm:$0xff]
        %v5953 = vld [vmem:[#allocation5 + $0x70] sm:$0xff]
        %v5954 = vld [vmem:[#allocation5 + $0x78] sm:$0xff]
        %v5955 = vld [vmem:[%s464] sm:$0x1]
        %v5957 = vperm.slane %v5955, 0
        %v5959 = vadd.f32 %v5939, %v5957
        %v5960 = vadd.f32 %v5940, %v5957
        %v5961 = vadd.f32 %v5941, %v5957
        %v5962 = vadd.f32 %v5942, %v5957
        %v5963 = vadd.f32 %v5943, %v5957
        %v5964 = vadd.f32 %v5944, %v5957
        %v5965 = vadd.f32 %v5945, %v5957
        %v5966 = vadd.f32 %v5946, %v5957
        %v5967 = vadd.f32 %v5947, %v5957
        %v5968 = vadd.f32 %v5948, %v5957
        %v5969 = vadd.f32 %v5949, %v5957
        %v5970 = vadd.f32 %v5950, %v5957
        %v5971 = vadd.f32 %v5951, %v5957
        %v5972 = vadd.f32 %v5952, %v5957
        %v5973 = vadd.f32 %v5953, %v5957
        %v5974 = vadd.f32 %v5954, %v5957
        %v5975 = vmax.f32 %v5959, 0.0
        %v5976 = vmax.f32 %v5960, 0.0
        %v5977 = vmax.f32 %v5961, 0.0
        %v5978 = vmax.f32 %v5962, 0.0
        %v5979 = vmax.f32 %v5963, 0.0
        %v5980 = vmax.f32 %v5964, 0.0
        %v5981 = vmax.f32 %v5965, 0.0
        %v5982 = vmax.f32 %v5966, 0.0
        %v5983 = vmax.f32 %v5967, 0.0
        %v5984 = vmax.f32 %v5968, 0.0
        %v5985 = vmax.f32 %v5969, 0.0
        %v5986 = vmax.f32 %v5970, 0.0
        %v5987 = vmax.f32 %v5971, 0.0
        %v5988 = vmax.f32 %v5972, 0.0
        %v5989 = vmax.f32 %v5973, 0.0
        %v5990 = vmax.f32 %v5974, 0.0
        %v5991 = vpack.c.bf16 %v5975, %v5975
        %v5992 = vpack.c.bf16 %v5976, %v5976
        %v5993 = vpack.c.bf16 %v5977, %v5977
        %v5994 = vpack.c.bf16 %v5978, %v5978
        %v5995 = vpack.c.bf16 %v5979, %v5979
        %v5996 = vpack.c.bf16 %v5980, %v5980
        %v5997 = vpack.c.bf16 %v5981, %v5981
        %v5998 = vpack.c.bf16 %v5982, %v5982
        %v5999 = vpack.c.bf16 %v5983, %v5983
        %v6000 = vpack.c.bf16 %v5984, %v5984
        %v6001 = vpack.c.bf16 %v5985, %v5985
        %v6002 = vpack.c.bf16 %v5986, %v5986
        %v6003 = vpack.c.bf16 %v5987, %v5987
        %v6004 = vpack.c.bf16 %v5988, %v5988
        %v6005 = vpack.c.bf16 %v5989, %v5989
        %v6006 = vpack.c.bf16 %v5990, %v5990
        %6007 = vst [vmem:[%s461] sm:$0xf] %v5991
        %6008 = vst [vmem:[%s461 + $0x4] sm:$0xf] %v5992
        %6009 = vst [vmem:[%s461 + $0x8] sm:$0xf] %v5993
        %6010 = vst [vmem:[%s461 + $0xc] sm:$0xf] %v5994
        %6011 = vst [vmem:[%s461 + $0x10] sm:$0xf] %v5995
        %6012 = vst [vmem:[%s461 + $0x14] sm:$0xf] %v5996
        %6013 = vst [vmem:[%s461 + $0x18] sm:$0xf] %v5997
        %6014 = vst [vmem:[%s461 + $0x1c] sm:$0xf] %v5998
        %6015 = vst [vmem:[%s461 + $0x20] sm:$0xf] %v5999
        %6016 = vst [vmem:[%s461 + $0x24] sm:$0xf] %v6000
        %6017 = vst [vmem:[%s461 + $0x28] sm:$0xf] %v6001
        %6018 = vst [vmem:[%s461 + $0x2c] sm:$0xf] %v6002
        %6019 = vst [vmem:[%s461 + $0x30] sm:$0xf] %v6003
        %6020 = vst [vmem:[%s461 + $0x34] sm:$0xf] %v6004
        %6021 = vst [vmem:[%s461 + $0x38] sm:$0xf] %v6005
        %6022 = vst [vmem:[%s461 + $0x3c] sm:$0xf] %v6006
        %s6023 = sand.u32 %s266, 1
        %s6024 = scalar_lea.sflag [#allocation8], %s6023
        %s6025 = sand.u32 %s266, 1
        %s6026 = smul.addr %s6025, 64
        %s6027 = scalar_lea.vmem [#allocation17], %s6026
        // Predicated region
        $region101: #{tpu_custom_call.1} parent=59 // pred_check
          %p6028 = pneg %p276
        $region102: #{tpu_custom_call.1} parent=59 // pred_check_branch
          %6030 = sbr.rel (%p6028) target = $region104
        $region103: #{tpu_custom_call.1} parent=59 // pred_region
          %s6031 = smul.u32 16, %s34
          %6033 = vsyncadd %s6024, 0
          %s6034 = smul.addr %s33, 32
          %s6035 = sadd.s32 %s6031, %s6034
          %s6036 = smul.addr %s6035, 4
          %s6037 = scalar_lea.hbm %s11, %s6036
          %s6038 = sshll.u32 %s6027, 4
          %s6039 = int_to_ptr.vmem [resolvable:$true] %s6038
          %s6040 = sshll.u32 %s6037, 4
          %s6041 = int_to_ptr.hbm [resolvable:$true] %s6040
          %6046 = dma.vmem_to_hbm [thread:$0]  %s6039, 1024, %s6041, %s6024, 64, 64, 4
        $region104: #{tpu_custom_call.1} parent=59 // pred_fallthru
          _
      $region60: #{tpu_custom_call.1} parent=5 // pred_fallthru
        _
      %p6047 = scmp.le.s32.totalorder 2, %s24
      // Predicated region
      $region105: #{tpu_custom_call.1} parent=5 // pred_check
        %p6048 = pneg %p6047
      $region106: #{tpu_custom_call.1} parent=5 // pred_check_branch
        %6050 = sbr.rel (%p6048) target = $region108
      $region107: #{tpu_custom_call.1} parent=5 // pred_region
        %s6051 = ssub.s32 %s24, 2
        // Predicated region
        $region109: #{tpu_custom_call.1} parent=107 // pred_check
          %p6052 = pneg %p282
        $region110: #{tpu_custom_call.1} parent=107 // pred_check_branch
          %6054 = sbr.rel (%p6052) target = $region112
        $region111: #{tpu_custom_call.1} parent=107 // pred_region
          %s6055 = sand.u32 %s267, 1
          %s6056 = scalar_lea.sflag [#allocation8], %s6055
          %s6057 = sand.u32 %s267, 1
          %s6058 = smul.addr %s6057, 64
          %s6059 = scalar_lea.vmem [#allocation17], %s6058
          %6061 = dma.done %s6056, 1024
        $region112: #{tpu_custom_call.1} parent=107 // pred_fallthru
          _
      $region108: #{tpu_custom_call.1} parent=5 // pred_fallthru
        _
    $region6: #{tpu_custom_call.1} parent=1 // loop_footer
      %s28 = sadd.s32 1, %s24
    $region7: #{tpu_custom_call.1} parent=1 // loop_footer_branch
      %23 = sbr.rel target = $region3
    $region8: #{tpu_custom_call.1} parent=1 // loop_exit
      _
    %6062 = vsyncpa [#allocation7], 1
    %s6063 = scalar_lea.sflag [#allocation7], 1
    %6064 = vsyncpa %s6063, 1
    %6065 = vsyncpa [#allocation10], 1
    %6066 = vsyncpa [#allocation13], 1
    %6067 = vsyncpa [#allocation16], 1
    %6068 = vsyncpa [#allocation8], 1
    %s6069 = scalar_lea.sflag [#allocation8], 1
    %6070 = vsyncpa %s6069, 1
  %6071 = vsyncmov [#allocation3]
  %s6072 = vpop.sfrf %6071
  %p6073 = scmp.eq.s32.totalorder %s6072, 0
  %p6074 = pneg %p6073
  %6076 = shalt.err (%p6074)
  %s6077 = scalar_lea.sflag [#allocation3], 1
  %6078 = vsyncmov %s6077
  %s6079 = vpop.sfrf %6078
  %p6080 = scmp.eq.s32.totalorder %s6079, 0
  %p6081 = pneg %p6080
  %6083 = shalt.err (%p6081)

</llo_original>
